<compile_context>
chip_gen: v6e
topology: v6e:2x2x1
jax: 0.10.0
libtpu: 0.0.40
codegen_flags: <defaults>
</compile_context>

<pallas_src>
import jax
import jax.numpy as jnp
from jax.experimental import pallas as pl
from jax.experimental.pallas import tpu as pltpu

_SQRT2_INV = 0.7071067811865476
_EPS = 1e-5  # nn.GroupNorm default eps


def _gelu(x):
    # exact (erf-based) GELU, matching torch nn.GELU() / F.gelu default
    return 0.5 * x * (1.0 + jax.lax.erf(x * _SQRT2_INV))


# ------------------------------ fused kernel ---------------------------------

def _down_kernel(xc_ref, t_ref,
                 w1_ref, g1_ref, b1_ref,
                 w2_ref, g2_ref, b2_ref,
                 w3_ref, g3_ref, b3_ref,
                 w4_ref, g4_ref, b4_ref,
                 we_ref, be_ref,
                 o_ref,
                 pad_a, pad_b):
    HWp = o_ref.shape[1]
    Hh = pad_a.shape[0] - 2
    Wh = pad_a.shape[1] - 2

    # Zero the padded scratch.  Only the 1-wide borders actually need to be
    # zero (they provide the conv 'same' padding; the interior is overwritten
    # every conv), but a full memset of this tiny buffer is one cheap vst loop
    # and is correct regardless of how the parallel grid is sharded per core.
    pad_a[...] = jnp.zeros_like(pad_a)
    pad_b[...] = jnp.zeros_like(pad_b)

    def conv3x3(pad_ref, f, w_ref):
        # f:      (HWp, Cf) channels-last feature map (VMEM-resident value)
        # w_ref:  (9, Cf, Co) conv taps (HWIO flattened over the 3x3 window)
        # 3x3 conv = 9 accumulated (HWp, Cf) @ (Cf, Co) MXU matmuls over
        # statically shifted windows of the zero-bordered scratch.
        Cf = pad_ref.shape[2]
        Co = w_ref.shape[2]
        pad_ref[1:Hh + 1, 1:Wh + 1, :] = f.reshape(Hh, Wh, Cf)
        acc = jnp.zeros((HWp, Co), jnp.float32)
        for dy in range(3):
            for dx in range(3):
                if dy == 1 and dx == 1:
                    xs = f                      # centre tap: reuse live value
                else:
                    xs = pad_ref[dy:dy + Hh, dx:dx + Wh, :].reshape(HWp, Cf)
                acc = acc + jnp.dot(xs, w_ref[dy * 3 + dx],
                                    preferred_element_type=jnp.float32)
        return acc

    def groupnorm(y, g_ref, b_ref):
        # GroupNorm(num_groups=1, C): stats over all positions & channels,
        # one pass (sum / sum-of-squares); rsqrt on the EUP.
        inv_n = 1.0 / (y.shape[0] * y.shape[1])
        s = jnp.sum(y)
        ss = jnp.sum(y * y)
        mu = s * inv_n
        var = ss * inv_n - mu * mu
        return (y - mu) * jax.lax.rsqrt(var + _EPS) * g_ref[...] + b_ref[...]

    # ---- MaxPool2d(2): max of the 4 pre-gathered 2x2 window candidates -----
    xc = xc_ref[0]                                    # (4, HWp, Cin)
    p0 = jnp.maximum(jnp.maximum(xc[0], xc[1]),
                     jnp.maximum(xc[2], xc[3]))       # (HWp, Cin)

    # ---- DoubleConv(Cin, Cin, residual=True):
    #      gelu(x + GN(conv(gelu(GN(conv(x)))))) -------------------------------
    h1 = _gelu(groupnorm(conv3x3(pad_a, p0, w1_ref), g1_ref, b1_ref))
    h2 = _gelu(p0 + groupnorm(conv3x3(pad_a, h1, w2_ref), g2_ref, b2_ref))

    # ---- DoubleConv(Cin, Cout): GN(conv(gelu(GN(conv(x))))) -----------------
    h3 = _gelu(groupnorm(conv3x3(pad_a, h2, w3_ref), g3_ref, b3_ref))
    y4 = groupnorm(conv3x3(pad_b, h3, w4_ref), g4_ref, b4_ref)

    # ---- + Linear(SiLU(t)), broadcast over all spatial positions -----------
    tt = t_ref[0]                                     # (1, E)
    emb = jnp.dot(tt * jax.nn.sigmoid(tt), we_ref[...],
                  preferred_element_type=jnp.float32) + be_ref[...]   # (1, Co)
    o_ref[0] = (y4 + emb).astype(o_ref.dtype)


# ------------------------------ host wrapper ---------------------------------

def down_forward(params, x_nchw, t):
    """Down(x, t): x NCHW float32, t [N, emb_dim]; returns NCHW float32."""
    N, Cin, H, W = x_nchw.shape
    Hh, Wh = H // 2, W // 2
    HWp = Hh * Wh
    Cout = params["w4"].shape[-1]
    E = params["we"].shape[0]

    # Single XLA gather on the input: 2x2 pool candidates, channels-last,
    # spatially flattened -> (N, 4, HWp, Cin).  Everything else is in-kernel.
    xc = (x_nchw.reshape(N, Cin, Hh, 2, Wh, 2)
                .transpose(0, 3, 5, 2, 4, 1)
                .reshape(N, 4, HWp, Cin))
    t3 = t.reshape(N, 1, E)

    def taps(w):                       # HWIO (3,3,Ci,Co) -> (9, Ci, Co)
        return w.reshape(9, w.shape[2], w.shape[3])

    def row(v):                        # (C,) -> (1, C)
        return v.reshape(1, -1)

    args = [
        xc, t3,
        taps(params["w1"]), row(params["g1"]), row(params["b1"]),
        taps(params["w2"]), row(params["g2"]), row(params["b2"]),
        taps(params["w3"]), row(params["g3"]), row(params["b3"]),
        taps(params["w4"]), row(params["g4"]), row(params["b4"]),
        params["we"], row(params["be"]),
    ]

    def full_spec(a):  # grid-invariant operand: constant index_map -> fetched once
        return pl.BlockSpec(a.shape, lambda i, _nd=a.ndim: (0,) * _nd)

    in_specs = [
        pl.BlockSpec((1, 4, HWp, Cin), lambda i: (i, 0, 0, 0)),   # xc
        pl.BlockSpec((1, 1, E), lambda i: (i, 0, 0)),             # t
    ] + [full_spec(a) for a in args[2:]]

    out = pl.pallas_call(
        _down_kernel,
        out_shape=jax.ShapeDtypeStruct((N, HWp, Cout), jnp.float32),
        grid=(N,),
        in_specs=in_specs,
        out_specs=pl.BlockSpec((1, HWp, Cout), lambda i: (i, 0, 0)),
        scratch_shapes=[pltpu.VMEM((Hh + 2, Wh + 2, Cin), jnp.float32),
                        pltpu.VMEM((Hh + 2, Wh + 2, Cout), jnp.float32)],
        compiler_params=pltpu.CompilerParams(
            dimension_semantics=("parallel",)),
    )(*args)

    return out.reshape(N, Hh, Wh, Cout).transpose(0, 3, 1, 2)     # NHWC -> NCHW


down_forward_jit = jax.jit(down_forward)


# ------------------------------ reference ------------------------------------

def reference(params, x, t):
    N, C, H, W = x.shape
    h = x.reshape(N, C, H // 2, 2, W // 2, 2).max(axis=(3, 5))

    def conv(h, w):  # w is HWIO [3,3,Cin,Cout]
        return jax.lax.conv_general_dilated(
            h, w, (1, 1), ((1, 1), (1, 1)),
            dimension_numbers=("NCHW", "HWIO", "NCHW"))

    def gn(h, g, b):
        mu = h.mean(axis=(1, 2, 3), keepdims=True)
        var = ((h - mu) ** 2).mean(axis=(1, 2, 3), keepdims=True)
        hn = (h - mu) / jnp.sqrt(var + _EPS)
        return hn * g[None, :, None, None] + b[None, :, None, None]

    gelu = lambda v: 0.5 * v * (1.0 + jax.lax.erf(v * _SQRT2_INV))
    h1 = gelu(gn(conv(h, params["w1"]), params["g1"], params["b1"]))
    h2 = gelu(h + gn(conv(h1, params["w2"]), params["g2"], params["b2"]))
    h3 = gelu(gn(conv(h2, params["w3"]), params["g3"], params["b3"]))
    h4 = gn(conv(h3, params["w4"]), params["g4"], params["b4"])
    emb = jax.nn.silu(t) @ params["we"] + params["be"]
    return h4 + emb[:, :, None, None]


# -------------------------------- main ---------------------------------------

if __name__ == "__main__":
    N, Cin, Cout, H, W, E = 2, 4, 8, 16, 16, 256
    key = jax.random.PRNGKey(0)
    ks = jax.random.split(key, 16)
    params = {
        # conv weights stored HWIO: [3, 3, Cin, Cout]
        "w1": 0.2 * jax.random.normal(ks[0], (3, 3, Cin, Cin), jnp.float32),
        "w2": 0.2 * jax.random.normal(ks[1], (3, 3, Cin, Cin), jnp.float32),
        "w3": 0.2 * jax.random.normal(ks[2], (3, 3, Cin, Cout), jnp.float32),
        "w4": 0.2 * jax.random.normal(ks[3], (3, 3, Cout, Cout), jnp.float32),
        "g1": 1.0 + 0.1 * jax.random.normal(ks[4], (Cin,), jnp.float32),
        "b1": 0.1 * jax.random.normal(ks[5], (Cin,), jnp.float32),
        "g2": 1.0 + 0.1 * jax.random.normal(ks[6], (Cin,), jnp.float32),
        "b2": 0.1 * jax.random.normal(ks[7], (Cin,), jnp.float32),
        "g3": 1.0 + 0.1 * jax.random.normal(ks[8], (Cout,), jnp.float32),
        "b3": 0.1 * jax.random.normal(ks[9], (Cout,), jnp.float32),
        "g4": 1.0 + 0.1 * jax.random.normal(ks[10], (Cout,), jnp.float32),
        "b4": 0.1 * jax.random.normal(ks[11], (Cout,), jnp.float32),
        "we": 0.05 * jax.random.normal(ks[12], (E, Cout), jnp.float32),  # Linear weight^T
        "be": 0.05 * jax.random.normal(ks[13], (Cout,), jnp.float32),
    }
    x = jax.random.normal(ks[14], (N, Cin, H, W), jnp.float32)   # NCHW like PyTorch
    t = jax.random.normal(ks[15], (N, E), jnp.float32)

    out = down_forward_jit(params, x, t)
    out = jax.block_until_ready(out)

    ref = reference(params, x, t)
    assert out.shape == ref.shape == (N, Cout, H // 2, W // 2)
    assert float(jnp.max(jnp.abs(out - ref))) < 1e-2
    print("KERNEL_OK")
</pallas_src>

<mosaic_0001>
module attributes {stable_mosaic.version = 11 : i64} {
  func.func @_down_kernel(%arg0: i32, %arg1: memref<1x4x64x4xf32, #tpu.memory_space<vmem>>, %arg2: memref<1x1x256xf32, #tpu.memory_space<vmem>>, %arg3: memref<9x4x4xf32, #tpu.memory_space<vmem>>, %arg4: memref<1x4xf32, #tpu.memory_space<vmem>>, %arg5: memref<1x4xf32, #tpu.memory_space<vmem>>, %arg6: memref<9x4x4xf32, #tpu.memory_space<vmem>>, %arg7: memref<1x4xf32, #tpu.memory_space<vmem>>, %arg8: memref<1x4xf32, #tpu.memory_space<vmem>>, %arg9: memref<9x4x8xf32, #tpu.memory_space<vmem>>, %arg10: memref<1x8xf32, #tpu.memory_space<vmem>>, %arg11: memref<1x8xf32, #tpu.memory_space<vmem>>, %arg12: memref<9x8x8xf32, #tpu.memory_space<vmem>>, %arg13: memref<1x8xf32, #tpu.memory_space<vmem>>, %arg14: memref<1x8xf32, #tpu.memory_space<vmem>>, %arg15: memref<256x8xf32, #tpu.memory_space<vmem>>, %arg16: memref<1x8xf32, #tpu.memory_space<vmem>>, %arg17: memref<1x64x8xf32, #tpu.memory_space<vmem>>, %arg18: memref<10x10x4xf32, #tpu.memory_space<vmem>>, %arg19: memref<10x10x8xf32, #tpu.memory_space<vmem>>) attributes {dimension_semantics = [#tpu.dimension_semantics<parallel>], iteration_bounds = array<i64: 2>, scalar_prefetch = 0 : i64, scratch_operands = 2 : i64, tpu.core_type = #tpu.core_type<tc>, window_params = [{transform_indices = @transform_0, window_bounds = array<i64: 1, 4, 64, 4>}, {transform_indices = @transform_1, window_bounds = array<i64: 1, 1, 256>}, {pipeline_mode = #tpu.pipeline_mode<synchronous>, transform_indices = @transform_2, window_bounds = array<i64: 9, 4, 4>}, {pipeline_mode = #tpu.pipeline_mode<synchronous>, transform_indices = @transform_3, window_bounds = array<i64: 1, 4>}, {pipeline_mode = #tpu.pipeline_mode<synchronous>, transform_indices = @transform_4, window_bounds = array<i64: 1, 4>}, {pipeline_mode = #tpu.pipeline_mode<synchronous>, transform_indices = @transform_5, window_bounds = array<i64: 9, 4, 4>}, {pipeline_mode = #tpu.pipeline_mode<synchronous>, transform_indices = @transform_6, window_bounds = array<i64: 1, 4>}, {pipeline_mode = #tpu.pipeline_mode<synchronous>, transform_indices = @transform_7, window_bounds = array<i64: 1, 4>}, {pipeline_mode = #tpu.pipeline_mode<synchronous>, transform_indices = @transform_8, window_bounds = array<i64: 9, 4, 8>}, {pipeline_mode = #tpu.pipeline_mode<synchronous>, transform_indices = @transform_9, window_bounds = array<i64: 1, 8>}, {pipeline_mode = #tpu.pipeline_mode<synchronous>, transform_indices = @transform_10, window_bounds = array<i64: 1, 8>}, {pipeline_mode = #tpu.pipeline_mode<synchronous>, transform_indices = @transform_11, window_bounds = array<i64: 9, 8, 8>}, {pipeline_mode = #tpu.pipeline_mode<synchronous>, transform_indices = @transform_12, window_bounds = array<i64: 1, 8>}, {pipeline_mode = #tpu.pipeline_mode<synchronous>, transform_indices = @transform_13, window_bounds = array<i64: 1, 8>}, {pipeline_mode = #tpu.pipeline_mode<synchronous>, transform_indices = @transform_14, window_bounds = array<i64: 256, 8>}, {pipeline_mode = #tpu.pipeline_mode<synchronous>, transform_indices = @transform_15, window_bounds = array<i64: 1, 8>}, {transform_indices = @transform_16, window_bounds = array<i64: 1, 64, 8>}]} {
    %cst = arith.constant 0.000000e+00 : f32
    %0 = vector.broadcast %cst : f32 to vector<10x10x4xf32>
    %c0 = arith.constant 0 : index
    %c0_0 = arith.constant 0 : index
    %c0_1 = arith.constant 0 : index
    %1 = vector.load %arg18[%c0, %c0_0, %c0_1] : memref<10x10x4xf32, #tpu.memory_space<vmem>>, vector<10x10x4xf32>
    tpu.vector_store %arg18[%c0, %c0_0, %c0_1], %0 {strides = array<i32>} : memref<10x10x4xf32, #tpu.memory_space<vmem>>, vector<10x10x4xf32>,
    %cst_2 = arith.constant 0.000000e+00 : f32
    %2 = vector.broadcast %cst_2 : f32 to vector<10x10x8xf32>
    %c0_3 = arith.constant 0 : index
    %c0_4 = arith.constant 0 : index
    %c0_5 = arith.constant 0 : index
    %3 = vector.load %arg19[%c0_3, %c0_4, %c0_5] : memref<10x10x8xf32, #tpu.memory_space<vmem>>, vector<10x10x8xf32>
    tpu.vector_store %arg19[%c0_3, %c0_4, %c0_5], %2 {strides = array<i32>} : memref<10x10x8xf32, #tpu.memory_space<vmem>>, vector<10x10x8xf32>,
    %c0_6 = arith.constant 0 : index
    %c0_7 = arith.constant 0 : index
    %c0_8 = arith.constant 0 : index
    %c0_9 = arith.constant 0 : index
    %4 = vector.load %arg1[%c0_6, %c0_7, %c0_8, %c0_9] : memref<1x4x64x4xf32, #tpu.memory_space<vmem>>, vector<1x4x64x4xf32>
    %5 = vector.shape_cast %4 : vector<1x4x64x4xf32> to vector<4x64x4xf32>
    %6 = vector.extract_strided_slice %5 {offsets = [0, 0, 0], sizes = [1, 64, 4], strides = [1, 1, 1]} : vector<4x64x4xf32> to vector<1x64x4xf32>
    %7 = vector.shape_cast %6 : vector<1x64x4xf32> to vector<64x4xf32>
    %8 = vector.extract_strided_slice %5 {offsets = [1, 0, 0], sizes = [1, 64, 4], strides = [1, 1, 1]} : vector<4x64x4xf32> to vector<1x64x4xf32>
    %9 = vector.shape_cast %8 : vector<1x64x4xf32> to vector<64x4xf32>
    %10 = arith.maximumf %7, %9 : vector<64x4xf32>
    %11 = vector.extract_strided_slice %5 {offsets = [2, 0, 0], sizes = [1, 64, 4], strides = [1, 1, 1]} : vector<4x64x4xf32> to vector<1x64x4xf32>
    %12 = vector.shape_cast %11 : vector<1x64x4xf32> to vector<64x4xf32>
    %13 = vector.extract_strided_slice %5 {offsets = [3, 0, 0], sizes = [1, 64, 4], strides = [1, 1, 1]} : vector<4x64x4xf32> to vector<1x64x4xf32>
    %14 = vector.shape_cast %13 : vector<1x64x4xf32> to vector<64x4xf32>
    %15 = arith.maximumf %12, %14 : vector<64x4xf32>
    %16 = arith.maximumf %10, %15 : vector<64x4xf32>
    %17 = vector.shape_cast %16 : vector<64x4xf32> to vector<8x8x4xf32>
    %c1 = arith.constant 1 : index
    %c1_10 = arith.constant 1 : index
    %c0_11 = arith.constant 0 : index
    %18 = vector.load %arg18[%c1, %c1_10, %c0_11] : memref<10x10x4xf32, #tpu.memory_space<vmem>>, vector<8x8x4xf32>
    tpu.vector_store %arg18[%c1, %c1_10, %c0_11], %17 {strides = array<i32>} : memref<10x10x4xf32, #tpu.memory_space<vmem>>, vector<8x8x4xf32>,
    %cst_12 = arith.constant 0.000000e+00 : f32
    %19 = vector.broadcast %cst_12 : f32 to vector<64x4xf32>
    %c0_13 = arith.constant 0 : index
    %c0_14 = arith.constant 0 : index
    %c0_15 = arith.constant 0 : index
    %20 = vector.load %arg18[%c0_13, %c0_14, %c0_15] : memref<10x10x4xf32, #tpu.memory_space<vmem>>, vector<8x8x4xf32>
    %21 = vector.shape_cast %20 : vector<8x8x4xf32> to vector<64x4xf32>
    %c0_16 = arith.constant 0 : index
    %c0_17 = arith.constant 0 : index
    %c0_18 = arith.constant 0 : index
    %22 = vector.load %arg3[%c0_16, %c0_17, %c0_18] : memref<9x4x4xf32, #tpu.memory_space<vmem>>, vector<1x4x4xf32>
    %23 = vector.shape_cast %22 : vector<1x4x4xf32> to vector<4x4xf32>
    %cst_19 = arith.constant dense<0.000000e+00> : vector<64x4xf32>
    %24 = tpu.matmul %21, %23, %cst_19 {dimension_numbers = #tpu.dot_dimension_numbers<[1], [0], [0], [1], [0, 0, 1, 1], [], []>} : vector<64x4xf32>, vector<4x4xf32>, vector<64x4xf32> -> vector<64x4xf32>
    %25 = arith.addf %19, %24 : vector<64x4xf32>
    %c0_20 = arith.constant 0 : index
    %c1_21 = arith.constant 1 : index
    %c0_22 = arith.constant 0 : index
    %26 = vector.load %arg18[%c0_20, %c1_21, %c0_22] : memref<10x10x4xf32, #tpu.memory_space<vmem>>, vector<8x8x4xf32>
    %27 = vector.shape_cast %26 : vector<8x8x4xf32> to vector<64x4xf32>
    %c1_23 = arith.constant 1 : index
    %c0_24 = arith.constant 0 : index
    %c0_25 = arith.constant 0 : index
    %28 = vector.load %arg3[%c1_23, %c0_24, %c0_25] : memref<9x4x4xf32, #tpu.memory_space<vmem>>, vector<1x4x4xf32>
    %29 = vector.shape_cast %28 : vector<1x4x4xf32> to vector<4x4xf32>
    %cst_26 = arith.constant dense<0.000000e+00> : vector<64x4xf32>
    %30 = tpu.matmul %27, %29, %cst_26 {dimension_numbers = #tpu.dot_dimension_numbers<[1], [0], [0], [1], [0, 0, 1, 1], [], []>} : vector<64x4xf32>, vector<4x4xf32>, vector<64x4xf32> -> vector<64x4xf32>
    %31 = arith.addf %25, %30 : vector<64x4xf32>
    %c0_27 = arith.constant 0 : index
    %c2 = arith.constant 2 : index
    %c0_28 = arith.constant 0 : index
    %32 = vector.load %arg18[%c0_27, %c2, %c0_28] : memref<10x10x4xf32, #tpu.memory_space<vmem>>, vector<8x8x4xf32>
    %33 = vector.shape_cast %32 : vector<8x8x4xf32> to vector<64x4xf32>
    %c2_29 = arith.constant 2 : index
    %c0_30 = arith.constant 0 : index
    %c0_31 = arith.constant 0 : index
    %34 = vector.load %arg3[%c2_29, %c0_30, %c0_31] : memref<9x4x4xf32, #tpu.memory_space<vmem>>, vector<1x4x4xf32>
    %35 = vector.shape_cast %34 : vector<1x4x4xf32> to vector<4x4xf32>
    %cst_32 = arith.constant dense<0.000000e+00> : vector<64x4xf32>
    %36 = tpu.matmul %33, %35, %cst_32 {dimension_numbers = #tpu.dot_dimension_numbers<[1], [0], [0], [1], [0, 0, 1, 1], [], []>} : vector<64x4xf32>, vector<4x4xf32>, vector<64x4xf32> -> vector<64x4xf32>
    %37 = arith.addf %31, %36 : vector<64x4xf32>
    %c1_33 = arith.constant 1 : index
    %c0_34 = arith.constant 0 : index
    %c0_35 = arith.constant 0 : index
    %38 = vector.load %arg18[%c1_33, %c0_34, %c0_35] : memref<10x10x4xf32, #tpu.memory_space<vmem>>, vector<8x8x4xf32>
    %39 = vector.shape_cast %38 : vector<8x8x4xf32> to vector<64x4xf32>
    %c3 = arith.constant 3 : index
    %c0_36 = arith.constant 0 : index
    %c0_37 = arith.constant 0 : index
    %40 = vector.load %arg3[%c3, %c0_36, %c0_37] : memref<9x4x4xf32, #tpu.memory_space<vmem>>, vector<1x4x4xf32>
    %41 = vector.shape_cast %40 : vector<1x4x4xf32> to vector<4x4xf32>
    %cst_38 = arith.constant dense<0.000000e+00> : vector<64x4xf32>
    %42 = tpu.matmul %39, %41, %cst_38 {dimension_numbers = #tpu.dot_dimension_numbers<[1], [0], [0], [1], [0, 0, 1, 1], [], []>} : vector<64x4xf32>, vector<4x4xf32>, vector<64x4xf32> -> vector<64x4xf32>
    %43 = arith.addf %37, %42 : vector<64x4xf32>
    %c4 = arith.constant 4 : index
    %c0_39 = arith.constant 0 : index
    %c0_40 = arith.constant 0 : index
    %44 = vector.load %arg3[%c4, %c0_39, %c0_40] : memref<9x4x4xf32, #tpu.memory_space<vmem>>, vector<1x4x4xf32>
    %45 = vector.shape_cast %44 : vector<1x4x4xf32> to vector<4x4xf32>
    %cst_41 = arith.constant dense<0.000000e+00> : vector<64x4xf32>
    %46 = tpu.matmul %16, %45, %cst_41 {dimension_numbers = #tpu.dot_dimension_numbers<[1], [0], [0], [1], [0, 0, 1, 1], [], []>} : vector<64x4xf32>, vector<4x4xf32>, vector<64x4xf32> -> vector<64x4xf32>
    %47 = arith.addf %43, %46 : vector<64x4xf32>
    %c1_42 = arith.constant 1 : index
    %c2_43 = arith.constant 2 : index
    %c0_44 = arith.constant 0 : index
    %48 = vector.load %arg18[%c1_42, %c2_43, %c0_44] : memref<10x10x4xf32, #tpu.memory_space<vmem>>, vector<8x8x4xf32>
    %49 = vector.shape_cast %48 : vector<8x8x4xf32> to vector<64x4xf32>
    %c5 = arith.constant 5 : index
    %c0_45 = arith.constant 0 : index
    %c0_46 = arith.constant 0 : index
    %50 = vector.load %arg3[%c5, %c0_45, %c0_46] : memref<9x4x4xf32, #tpu.memory_space<vmem>>, vector<1x4x4xf32>
    %51 = vector.shape_cast %50 : vector<1x4x4xf32> to vector<4x4xf32>
    %cst_47 = arith.constant dense<0.000000e+00> : vector<64x4xf32>
    %52 = tpu.matmul %49, %51, %cst_47 {dimension_numbers = #tpu.dot_dimension_numbers<[1], [0], [0], [1], [0, 0, 1, 1], [], []>} : vector<64x4xf32>, vector<4x4xf32>, vector<64x4xf32> -> vector<64x4xf32>
    %53 = arith.addf %47, %52 : vector<64x4xf32>
    %c2_48 = arith.constant 2 : index
    %c0_49 = arith.constant 0 : index
    %c0_50 = arith.constant 0 : index
    %54 = vector.load %arg18[%c2_48, %c0_49, %c0_50] : memref<10x10x4xf32, #tpu.memory_space<vmem>>, vector<8x8x4xf32>
    %55 = vector.shape_cast %54 : vector<8x8x4xf32> to vector<64x4xf32>
    %c6 = arith.constant 6 : index
    %c0_51 = arith.constant 0 : index
    %c0_52 = arith.constant 0 : index
    %56 = vector.load %arg3[%c6, %c0_51, %c0_52] : memref<9x4x4xf32, #tpu.memory_space<vmem>>, vector<1x4x4xf32>
    %57 = vector.shape_cast %56 : vector<1x4x4xf32> to vector<4x4xf32>
    %cst_53 = arith.constant dense<0.000000e+00> : vector<64x4xf32>
    %58 = tpu.matmul %55, %57, %cst_53 {dimension_numbers = #tpu.dot_dimension_numbers<[1], [0], [0], [1], [0, 0, 1, 1], [], []>} : vector<64x4xf32>, vector<4x4xf32>, vector<64x4xf32> -> vector<64x4xf32>
    %59 = arith.addf %53, %58 : vector<64x4xf32>
    %c2_54 = arith.constant 2 : index
    %c1_55 = arith.constant 1 : index
    %c0_56 = arith.constant 0 : index
    %60 = vector.load %arg18[%c2_54, %c1_55, %c0_56] : memref<10x10x4xf32, #tpu.memory_space<vmem>>, vector<8x8x4xf32>
    %61 = vector.shape_cast %60 : vector<8x8x4xf32> to vector<64x4xf32>
    %c7 = arith.constant 7 : index
    %c0_57 = arith.constant 0 : index
    %c0_58 = arith.constant 0 : index
    %62 = vector.load %arg3[%c7, %c0_57, %c0_58] : memref<9x4x4xf32, #tpu.memory_space<vmem>>, vector<1x4x4xf32>
    %63 = vector.shape_cast %62 : vector<1x4x4xf32> to vector<4x4xf32>
    %cst_59 = arith.constant dense<0.000000e+00> : vector<64x4xf32>
    %64 = tpu.matmul %61, %63, %cst_59 {dimension_numbers = #tpu.dot_dimension_numbers<[1], [0], [0], [1], [0, 0, 1, 1], [], []>} : vector<64x4xf32>, vector<4x4xf32>, vector<64x4xf32> -> vector<64x4xf32>
    %65 = arith.addf %59, %64 : vector<64x4xf32>
    %c2_60 = arith.constant 2 : index
    %c2_61 = arith.constant 2 : index
    %c0_62 = arith.constant 0 : index
    %66 = vector.load %arg18[%c2_60, %c2_61, %c0_62] : memref<10x10x4xf32, #tpu.memory_space<vmem>>, vector<8x8x4xf32>
    %67 = vector.shape_cast %66 : vector<8x8x4xf32> to vector<64x4xf32>
    %c8 = arith.constant 8 : index
    %c0_63 = arith.constant 0 : index
    %c0_64 = arith.constant 0 : index
    %68 = vector.load %arg3[%c8, %c0_63, %c0_64] : memref<9x4x4xf32, #tpu.memory_space<vmem>>, vector<1x4x4xf32>
    %69 = vector.shape_cast %68 : vector<1x4x4xf32> to vector<4x4xf32>
    %cst_65 = arith.constant dense<0.000000e+00> : vector<64x4xf32>
    %70 = tpu.matmul %67, %69, %cst_65 {dimension_numbers = #tpu.dot_dimension_numbers<[1], [0], [0], [1], [0, 0, 1, 1], [], []>} : vector<64x4xf32>, vector<4x4xf32>, vector<64x4xf32> -> vector<64x4xf32>
    %71 = arith.addf %65, %70 : vector<64x4xf32>
    %72 = vector.shape_cast %71 : vector<64x4xf32> to vector<1x64x4xf32>
    %cst_66 = arith.constant dense<0.000000e+00> : vector<1xf32>
    %73 = vector.multi_reduction <add>, %72, %cst_66 [1, 2] : vector<1x64x4xf32> to vector<1xf32>
    %74 = vector.shape_cast %73 : vector<1xf32> to vector<1x1x1xf32>
    %75 = vector.extract %74[0, 0, 0] : f32 from vector<1x1x1xf32>
    %76 = arith.mulf %71, %71 : vector<64x4xf32>
    %77 = vector.shape_cast %76 : vector<64x4xf32> to vector<1x64x4xf32>
    %cst_67 = arith.constant dense<0.000000e+00> : vector<1xf32>
    %78 = vector.multi_reduction <add>, %77, %cst_67 [1, 2] : vector<1x64x4xf32> to vector<1xf32>
    %79 = vector.shape_cast %78 : vector<1xf32> to vector<1x1x1xf32>
    %80 = vector.extract %79[0, 0, 0] : f32 from vector<1x1x1xf32>
    %cst_68 = arith.constant 3.906250e-03 : f32
    %81 = arith.mulf %75, %cst_68 : f32
    %cst_69 = arith.constant 3.906250e-03 : f32
    %82 = arith.mulf %80, %cst_69 : f32
    %83 = arith.mulf %81, %81 : f32
    %84 = arith.subf %82, %83 : f32
    %85 = vector.broadcast %81 : f32 to vector<64x4xf32>
    %86 = arith.subf %71, %85 : vector<64x4xf32>
    %cst_70 = arith.constant 9.99999974E-6 : f32
    %87 = arith.addf %84, %cst_70 : f32
    %88 = math.rsqrt %87 : f32
    %89 = vector.broadcast %88 : f32 to vector<64x4xf32>
    %90 = arith.mulf %86, %89 : vector<64x4xf32>
    %c0_71 = arith.constant 0 : index
    %c0_72 = arith.constant 0 : index
    %91 = vector.load %arg4[%c0_71, %c0_72] : memref<1x4xf32, #tpu.memory_space<vmem>>, vector<1x4xf32>
    %92 = vector.broadcast %91 : vector<1x4xf32> to vector<64x4xf32>
    %93 = arith.mulf %90, %92 : vector<64x4xf32>
    %c0_73 = arith.constant 0 : index
    %c0_74 = arith.constant 0 : index
    %94 = vector.load %arg5[%c0_73, %c0_74] : memref<1x4xf32, #tpu.memory_space<vmem>>, vector<1x4xf32>
    %95 = vector.broadcast %94 : vector<1x4xf32> to vector<64x4xf32>
    %96 = arith.addf %93, %95 : vector<64x4xf32>
    %cst_75 = arith.constant 5.000000e-01 : f32
    %97 = vector.broadcast %cst_75 : f32 to vector<64x4xf32>
    %98 = arith.mulf %97, %96 : vector<64x4xf32>
    %cst_76 = arith.constant 0.707106769 : f32
    %99 = vector.broadcast %cst_76 : f32 to vector<64x4xf32>
    %100 = arith.mulf %96, %99 : vector<64x4xf32>
    %101 = math.erf %100 : vector<64x4xf32>
    %cst_77 = arith.constant 1.000000e+00 : f32
    %102 = vector.broadcast %cst_77 : f32 to vector<64x4xf32>
    %103 = arith.addf %102, %101 : vector<64x4xf32>
    %104 = arith.mulf %98, %103 : vector<64x4xf32>
    %105 = vector.shape_cast %104 : vector<64x4xf32> to vector<8x8x4xf32>
    %c1_78 = arith.constant 1 : index
    %c1_79 = arith.constant 1 : index
    %c0_80 = arith.constant 0 : index
    %106 = vector.load %arg18[%c1_78, %c1_79, %c0_80] : memref<10x10x4xf32, #tpu.memory_space<vmem>>, vector<8x8x4xf32>
    tpu.vector_store %arg18[%c1_78, %c1_79, %c0_80], %105 {strides = array<i32>} : memref<10x10x4xf32, #tpu.memory_space<vmem>>, vector<8x8x4xf32>,
    %cst_81 = arith.constant 0.000000e+00 : f32
    %107 = vector.broadcast %cst_81 : f32 to vector<64x4xf32>
    %c0_82 = arith.constant 0 : index
    %c0_83 = arith.constant 0 : index
    %c0_84 = arith.constant 0 : index
    %108 = vector.load %arg18[%c0_82, %c0_83, %c0_84] : memref<10x10x4xf32, #tpu.memory_space<vmem>>, vector<8x8x4xf32>
    %109 = vector.shape_cast %108 : vector<8x8x4xf32> to vector<64x4xf32>
    %c0_85 = arith.constant 0 : index
    %c0_86 = arith.constant 0 : index
    %c0_87 = arith.constant 0 : index
    %110 = vector.load %arg6[%c0_85, %c0_86, %c0_87] : memref<9x4x4xf32, #tpu.memory_space<vmem>>, vector<1x4x4xf32>
    %111 = vector.shape_cast %110 : vector<1x4x4xf32> to vector<4x4xf32>
    %cst_88 = arith.constant dense<0.000000e+00> : vector<64x4xf32>
    %112 = tpu.matmul %109, %111, %cst_88 {dimension_numbers = #tpu.dot_dimension_numbers<[1], [0], [0], [1], [0, 0, 1, 1], [], []>} : vector<64x4xf32>, vector<4x4xf32>, vector<64x4xf32> -> vector<64x4xf32>
    %113 = arith.addf %107, %112 : vector<64x4xf32>
    %c0_89 = arith.constant 0 : index
    %c1_90 = arith.constant 1 : index
    %c0_91 = arith.constant 0 : index
    %114 = vector.load %arg18[%c0_89, %c1_90, %c0_91] : memref<10x10x4xf32, #tpu.memory_space<vmem>>, vector<8x8x4xf32>
    %115 = vector.shape_cast %114 : vector<8x8x4xf32> to vector<64x4xf32>
    %c1_92 = arith.constant 1 : index
    %c0_93 = arith.constant 0 : index
    %c0_94 = arith.constant 0 : index
    %116 = vector.load %arg6[%c1_92, %c0_93, %c0_94] : memref<9x4x4xf32, #tpu.memory_space<vmem>>, vector<1x4x4xf32>
    %117 = vector.shape_cast %116 : vector<1x4x4xf32> to vector<4x4xf32>
    %cst_95 = arith.constant dense<0.000000e+00> : vector<64x4xf32>
    %118 = tpu.matmul %115, %117, %cst_95 {dimension_numbers = #tpu.dot_dimension_numbers<[1], [0], [0], [1], [0, 0, 1, 1], [], []>} : vector<64x4xf32>, vector<4x4xf32>, vector<64x4xf32> -> vector<64x4xf32>
    %119 = arith.addf %113, %118 : vector<64x4xf32>
    %c0_96 = arith.constant 0 : index
    %c2_97 = arith.constant 2 : index
    %c0_98 = arith.constant 0 : index
    %120 = vector.load %arg18[%c0_96, %c2_97, %c0_98] : memref<10x10x4xf32, #tpu.memory_space<vmem>>, vector<8x8x4xf32>
    %121 = vector.shape_cast %120 : vector<8x8x4xf32> to vector<64x4xf32>
    %c2_99 = arith.constant 2 : index
    %c0_100 = arith.constant 0 : index
    %c0_101 = arith.constant 0 : index
    %122 = vector.load %arg6[%c2_99, %c0_100, %c0_101] : memref<9x4x4xf32, #tpu.memory_space<vmem>>, vector<1x4x4xf32>
    %123 = vector.shape_cast %122 : vector<1x4x4xf32> to vector<4x4xf32>
    %cst_102 = arith.constant dense<0.000000e+00> : vector<64x4xf32>
    %124 = tpu.matmul %121, %123, %cst_102 {dimension_numbers = #tpu.dot_dimension_numbers<[1], [0], [0], [1], [0, 0, 1, 1], [], []>} : vector<64x4xf32>, vector<4x4xf32>, vector<64x4xf32> -> vector<64x4xf32>
    %125 = arith.addf %119, %124 : vector<64x4xf32>
    %c1_103 = arith.constant 1 : index
    %c0_104 = arith.constant 0 : index
    %c0_105 = arith.constant 0 : index
    %126 = vector.load %arg18[%c1_103, %c0_104, %c0_105] : memref<10x10x4xf32, #tpu.memory_space<vmem>>, vector<8x8x4xf32>
    %127 = vector.shape_cast %126 : vector<8x8x4xf32> to vector<64x4xf32>
    %c3_106 = arith.constant 3 : index
    %c0_107 = arith.constant 0 : index
    %c0_108 = arith.constant 0 : index
    %128 = vector.load %arg6[%c3_106, %c0_107, %c0_108] : memref<9x4x4xf32, #tpu.memory_space<vmem>>, vector<1x4x4xf32>
    %129 = vector.shape_cast %128 : vector<1x4x4xf32> to vector<4x4xf32>
    %cst_109 = arith.constant dense<0.000000e+00> : vector<64x4xf32>
    %130 = tpu.matmul %127, %129, %cst_109 {dimension_numbers = #tpu.dot_dimension_numbers<[1], [0], [0], [1], [0, 0, 1, 1], [], []>} : vector<64x4xf32>, vector<4x4xf32>, vector<64x4xf32> -> vector<64x4xf32>
    %131 = arith.addf %125, %130 : vector<64x4xf32>
    %c4_110 = arith.constant 4 : index
    %c0_111 = arith.constant 0 : index
    %c0_112 = arith.constant 0 : index
    %132 = vector.load %arg6[%c4_110, %c0_111, %c0_112] : memref<9x4x4xf32, #tpu.memory_space<vmem>>, vector<1x4x4xf32>
    %133 = vector.shape_cast %132 : vector<1x4x4xf32> to vector<4x4xf32>
    %cst_113 = arith.constant dense<0.000000e+00> : vector<64x4xf32>
    %134 = tpu.matmul %104, %133, %cst_113 {dimension_numbers = #tpu.dot_dimension_numbers<[1], [0], [0], [1], [0, 0, 1, 1], [], []>} : vector<64x4xf32>, vector<4x4xf32>, vector<64x4xf32> -> vector<64x4xf32>
    %135 = arith.addf %131, %134 : vector<64x4xf32>
    %c1_114 = arith.constant 1 : index
    %c2_115 = arith.constant 2 : index
    %c0_116 = arith.constant 0 : index
    %136 = vector.load %arg18[%c1_114, %c2_115, %c0_116] : memref<10x10x4xf32, #tpu.memory_space<vmem>>, vector<8x8x4xf32>
    %137 = vector.shape_cast %136 : vector<8x8x4xf32> to vector<64x4xf32>
    %c5_117 = arith.constant 5 : index
    %c0_118 = arith.constant 0 : index
    %c0_119 = arith.constant 0 : index
    %138 = vector.load %arg6[%c5_117, %c0_118, %c0_119] : memref<9x4x4xf32, #tpu.memory_space<vmem>>, vector<1x4x4xf32>
    %139 = vector.shape_cast %138 : vector<1x4x4xf32> to vector<4x4xf32>
    %cst_120 = arith.constant dense<0.000000e+00> : vector<64x4xf32>
    %140 = tpu.matmul %137, %139, %cst_120 {dimension_numbers = #tpu.dot_dimension_numbers<[1], [0], [0], [1], [0, 0, 1, 1], [], []>} : vector<64x4xf32>, vector<4x4xf32>, vector<64x4xf32> -> vector<64x4xf32>
    %141 = arith.addf %135, %140 : vector<64x4xf32>
    %c2_121 = arith.constant 2 : index
    %c0_122 = arith.constant 0 : index
    %c0_123 = arith.constant 0 : index
    %142 = vector.load %arg18[%c2_121, %c0_122, %c0_123] : memref<10x10x4xf32, #tpu.memory_space<vmem>>, vector<8x8x4xf32>
    %143 = vector.shape_cast %142 : vector<8x8x4xf32> to vector<64x4xf32>
    %c6_124 = arith.constant 6 : index
    %c0_125 = arith.constant 0 : index
    %c0_126 = arith.constant 0 : index
    %144 = vector.load %arg6[%c6_124, %c0_125, %c0_126] : memref<9x4x4xf32, #tpu.memory_space<vmem>>, vector<1x4x4xf32>
    %145 = vector.shape_cast %144 : vector<1x4x4xf32> to vector<4x4xf32>
    %cst_127 = arith.constant dense<0.000000e+00> : vector<64x4xf32>
    %146 = tpu.matmul %143, %145, %cst_127 {dimension_numbers = #tpu.dot_dimension_numbers<[1], [0], [0], [1], [0, 0, 1, 1], [], []>} : vector<64x4xf32>, vector<4x4xf32>, vector<64x4xf32> -> vector<64x4xf32>
    %147 = arith.addf %141, %146 : vector<64x4xf32>
    %c2_128 = arith.constant 2 : index
    %c1_129 = arith.constant 1 : index
    %c0_130 = arith.constant 0 : index
    %148 = vector.load %arg18[%c2_128, %c1_129, %c0_130] : memref<10x10x4xf32, #tpu.memory_space<vmem>>, vector<8x8x4xf32>
    %149 = vector.shape_cast %148 : vector<8x8x4xf32> to vector<64x4xf32>
    %c7_131 = arith.constant 7 : index
    %c0_132 = arith.constant 0 : index
    %c0_133 = arith.constant 0 : index
    %150 = vector.load %arg6[%c7_131, %c0_132, %c0_133] : memref<9x4x4xf32, #tpu.memory_space<vmem>>, vector<1x4x4xf32>
    %151 = vector.shape_cast %150 : vector<1x4x4xf32> to vector<4x4xf32>
    %cst_134 = arith.constant dense<0.000000e+00> : vector<64x4xf32>
    %152 = tpu.matmul %149, %151, %cst_134 {dimension_numbers = #tpu.dot_dimension_numbers<[1], [0], [0], [1], [0, 0, 1, 1], [], []>} : vector<64x4xf32>, vector<4x4xf32>, vector<64x4xf32> -> vector<64x4xf32>
    %153 = arith.addf %147, %152 : vector<64x4xf32>
    %c2_135 = arith.constant 2 : index
    %c2_136 = arith.constant 2 : index
    %c0_137 = arith.constant 0 : index
    %154 = vector.load %arg18[%c2_135, %c2_136, %c0_137] : memref<10x10x4xf32, #tpu.memory_space<vmem>>, vector<8x8x4xf32>
    %155 = vector.shape_cast %154 : vector<8x8x4xf32> to vector<64x4xf32>
    %c8_138 = arith.constant 8 : index
    %c0_139 = arith.constant 0 : index
    %c0_140 = arith.constant 0 : index
    %156 = vector.load %arg6[%c8_138, %c0_139, %c0_140] : memref<9x4x4xf32, #tpu.memory_space<vmem>>, vector<1x4x4xf32>
    %157 = vector.shape_cast %156 : vector<1x4x4xf32> to vector<4x4xf32>
    %cst_141 = arith.constant dense<0.000000e+00> : vector<64x4xf32>
    %158 = tpu.matmul %155, %157, %cst_141 {dimension_numbers = #tpu.dot_dimension_numbers<[1], [0], [0], [1], [0, 0, 1, 1], [], []>} : vector<64x4xf32>, vector<4x4xf32>, vector<64x4xf32> -> vector<64x4xf32>
    %159 = arith.addf %153, %158 : vector<64x4xf32>
    %160 = vector.shape_cast %159 : vector<64x4xf32> to vector<1x64x4xf32>
    %cst_142 = arith.constant dense<0.000000e+00> : vector<1xf32>
    %161 = vector.multi_reduction <add>, %160, %cst_142 [1, 2] : vector<1x64x4xf32> to vector<1xf32>
    %162 = vector.shape_cast %161 : vector<1xf32> to vector<1x1x1xf32>
    %163 = vector.extract %162[0, 0, 0] : f32 from vector<1x1x1xf32>
    %164 = arith.mulf %159, %159 : vector<64x4xf32>
    %165 = vector.shape_cast %164 : vector<64x4xf32> to vector<1x64x4xf32>
    %cst_143 = arith.constant dense<0.000000e+00> : vector<1xf32>
    %166 = vector.multi_reduction <add>, %165, %cst_143 [1, 2] : vector<1x64x4xf32> to vector<1xf32>
    %167 = vector.shape_cast %166 : vector<1xf32> to vector<1x1x1xf32>
    %168 = vector.extract %167[0, 0, 0] : f32 from vector<1x1x1xf32>
    %cst_144 = arith.constant 3.906250e-03 : f32
    %169 = arith.mulf %163, %cst_144 : f32
    %cst_145 = arith.constant 3.906250e-03 : f32
    %170 = arith.mulf %168, %cst_145 : f32
    %171 = arith.mulf %169, %169 : f32
    %172 = arith.subf %170, %171 : f32
    %173 = vector.broadcast %169 : f32 to vector<64x4xf32>
    %174 = arith.subf %159, %173 : vector<64x4xf32>
    %cst_146 = arith.constant 9.99999974E-6 : f32
    %175 = arith.addf %172, %cst_146 : f32
    %176 = math.rsqrt %175 : f32
    %177 = vector.broadcast %176 : f32 to vector<64x4xf32>
    %178 = arith.mulf %174, %177 : vector<64x4xf32>
    %c0_147 = arith.constant 0 : index
    %c0_148 = arith.constant 0 : index
    %179 = vector.load %arg7[%c0_147, %c0_148] : memref<1x4xf32, #tpu.memory_space<vmem>>, vector<1x4xf32>
    %180 = vector.broadcast %179 : vector<1x4xf32> to vector<64x4xf32>
    %181 = arith.mulf %178, %180 : vector<64x4xf32>
    %c0_149 = arith.constant 0 : index
    %c0_150 = arith.constant 0 : index
    %182 = vector.load %arg8[%c0_149, %c0_150] : memref<1x4xf32, #tpu.memory_space<vmem>>, vector<1x4xf32>
    %183 = vector.broadcast %182 : vector<1x4xf32> to vector<64x4xf32>
    %184 = arith.addf %181, %183 : vector<64x4xf32>
    %185 = arith.addf %16, %184 : vector<64x4xf32>
    %cst_151 = arith.constant 5.000000e-01 : f32
    %186 = vector.broadcast %cst_151 : f32 to vector<64x4xf32>
    %187 = arith.mulf %186, %185 : vector<64x4xf32>
    %cst_152 = arith.constant 0.707106769 : f32
    %188 = vector.broadcast %cst_152 : f32 to vector<64x4xf32>
    %189 = arith.mulf %185, %188 : vector<64x4xf32>
    %190 = math.erf %189 : vector<64x4xf32>
    %cst_153 = arith.constant 1.000000e+00 : f32
    %191 = vector.broadcast %cst_153 : f32 to vector<64x4xf32>
    %192 = arith.addf %191, %190 : vector<64x4xf32>
    %193 = arith.mulf %187, %192 : vector<64x4xf32>
    %194 = vector.shape_cast %193 : vector<64x4xf32> to vector<8x8x4xf32>
    %c1_154 = arith.constant 1 : index
    %c1_155 = arith.constant 1 : index
    %c0_156 = arith.constant 0 : index
    %195 = vector.load %arg18[%c1_154, %c1_155, %c0_156] : memref<10x10x4xf32, #tpu.memory_space<vmem>>, vector<8x8x4xf32>
    tpu.vector_store %arg18[%c1_154, %c1_155, %c0_156], %194 {strides = array<i32>} : memref<10x10x4xf32, #tpu.memory_space<vmem>>, vector<8x8x4xf32>,
    %cst_157 = arith.constant 0.000000e+00 : f32
    %196 = vector.broadcast %cst_157 : f32 to vector<64x8xf32>
    %c0_158 = arith.constant 0 : index
    %c0_159 = arith.constant 0 : index
    %c0_160 = arith.constant 0 : index
    %197 = vector.load %arg18[%c0_158, %c0_159, %c0_160] : memref<10x10x4xf32, #tpu.memory_space<vmem>>, vector<8x8x4xf32>
    %198 = vector.shape_cast %197 : vector<8x8x4xf32> to vector<64x4xf32>
    %c0_161 = arith.constant 0 : index
    %c0_162 = arith.constant 0 : index
    %c0_163 = arith.constant 0 : index
    %199 = vector.load %arg9[%c0_161, %c0_162, %c0_163] : memref<9x4x8xf32, #tpu.memory_space<vmem>>, vector<1x4x8xf32>
    %200 = vector.shape_cast %199 : vector<1x4x8xf32> to vector<4x8xf32>
    %cst_164 = arith.constant dense<0.000000e+00> : vector<64x8xf32>
    %201 = tpu.matmul %198, %200, %cst_164 {dimension_numbers = #tpu.dot_dimension_numbers<[1], [0], [0], [1], [0, 0, 1, 1], [], []>} : vector<64x4xf32>, vector<4x8xf32>, vector<64x8xf32> -> vector<64x8xf32>
    %202 = arith.addf %196, %201 : vector<64x8xf32>
    %c0_165 = arith.constant 0 : index
    %c1_166 = arith.constant 1 : index
    %c0_167 = arith.constant 0 : index
    %203 = vector.load %arg18[%c0_165, %c1_166, %c0_167] : memref<10x10x4xf32, #tpu.memory_space<vmem>>, vector<8x8x4xf32>
    %204 = vector.shape_cast %203 : vector<8x8x4xf32> to vector<64x4xf32>
    %c1_168 = arith.constant 1 : index
    %c0_169 = arith.constant 0 : index
    %c0_170 = arith.constant 0 : index
    %205 = vector.load %arg9[%c1_168, %c0_169, %c0_170] : memref<9x4x8xf32, #tpu.memory_space<vmem>>, vector<1x4x8xf32>
    %206 = vector.shape_cast %205 : vector<1x4x8xf32> to vector<4x8xf32>
    %cst_171 = arith.constant dense<0.000000e+00> : vector<64x8xf32>
    %207 = tpu.matmul %204, %206, %cst_171 {dimension_numbers = #tpu.dot_dimension_numbers<[1], [0], [0], [1], [0, 0, 1, 1], [], []>} : vector<64x4xf32>, vector<4x8xf32>, vector<64x8xf32> -> vector<64x8xf32>
    %208 = arith.addf %202, %207 : vector<64x8xf32>
    %c0_172 = arith.constant 0 : index
    %c2_173 = arith.constant 2 : index
    %c0_174 = arith.constant 0 : index
    %209 = vector.load %arg18[%c0_172, %c2_173, %c0_174] : memref<10x10x4xf32, #tpu.memory_space<vmem>>, vector<8x8x4xf32>
    %210 = vector.shape_cast %209 : vector<8x8x4xf32> to vector<64x4xf32>
    %c2_175 = arith.constant 2 : index
    %c0_176 = arith.constant 0 : index
    %c0_177 = arith.constant 0 : index
    %211 = vector.load %arg9[%c2_175, %c0_176, %c0_177] : memref<9x4x8xf32, #tpu.memory_space<vmem>>, vector<1x4x8xf32>
    %212 = vector.shape_cast %211 : vector<1x4x8xf32> to vector<4x8xf32>
    %cst_178 = arith.constant dense<0.000000e+00> : vector<64x8xf32>
    %213 = tpu.matmul %210, %212, %cst_178 {dimension_numbers = #tpu.dot_dimension_numbers<[1], [0], [0], [1], [0, 0, 1, 1], [], []>} : vector<64x4xf32>, vector<4x8xf32>, vector<64x8xf32> -> vector<64x8xf32>
    %214 = arith.addf %208, %213 : vector<64x8xf32>
    %c1_179 = arith.constant 1 : index
    %c0_180 = arith.constant 0 : index
    %c0_181 = arith.constant 0 : index
    %215 = vector.load %arg18[%c1_179, %c0_180, %c0_181] : memref<10x10x4xf32, #tpu.memory_space<vmem>>, vector<8x8x4xf32>
    %216 = vector.shape_cast %215 : vector<8x8x4xf32> to vector<64x4xf32>
    %c3_182 = arith.constant 3 : index
    %c0_183 = arith.constant 0 : index
    %c0_184 = arith.constant 0 : index
    %217 = vector.load %arg9[%c3_182, %c0_183, %c0_184] : memref<9x4x8xf32, #tpu.memory_space<vmem>>, vector<1x4x8xf32>
    %218 = vector.shape_cast %217 : vector<1x4x8xf32> to vector<4x8xf32>
    %cst_185 = arith.constant dense<0.000000e+00> : vector<64x8xf32>
    %219 = tpu.matmul %216, %218, %cst_185 {dimension_numbers = #tpu.dot_dimension_numbers<[1], [0], [0], [1], [0, 0, 1, 1], [], []>} : vector<64x4xf32>, vector<4x8xf32>, vector<64x8xf32> -> vector<64x8xf32>
    %220 = arith.addf %214, %219 : vector<64x8xf32>
    %c4_186 = arith.constant 4 : index
    %c0_187 = arith.constant 0 : index
    %c0_188 = arith.constant 0 : index
    %221 = vector.load %arg9[%c4_186, %c0_187, %c0_188] : memref<9x4x8xf32, #tpu.memory_space<vmem>>, vector<1x4x8xf32>
    %222 = vector.shape_cast %221 : vector<1x4x8xf32> to vector<4x8xf32>
    %cst_189 = arith.constant dense<0.000000e+00> : vector<64x8xf32>
    %223 = tpu.matmul %193, %222, %cst_189 {dimension_numbers = #tpu.dot_dimension_numbers<[1], [0], [0], [1], [0, 0, 1, 1], [], []>} : vector<64x4xf32>, vector<4x8xf32>, vector<64x8xf32> -> vector<64x8xf32>
    %224 = arith.addf %220, %223 : vector<64x8xf32>
    %c1_190 = arith.constant 1 : index
    %c2_191 = arith.constant 2 : index
    %c0_192 = arith.constant 0 : index
    %225 = vector.load %arg18[%c1_190, %c2_191, %c0_192] : memref<10x10x4xf32, #tpu.memory_space<vmem>>, vector<8x8x4xf32>
    %226 = vector.shape_cast %225 : vector<8x8x4xf32> to vector<64x4xf32>
    %c5_193 = arith.constant 5 : index
    %c0_194 = arith.constant 0 : index
    %c0_195 = arith.constant 0 : index
    %227 = vector.load %arg9[%c5_193, %c0_194, %c0_195] : memref<9x4x8xf32, #tpu.memory_space<vmem>>, vector<1x4x8xf32>
    %228 = vector.shape_cast %227 : vector<1x4x8xf32> to vector<4x8xf32>
    %cst_196 = arith.constant dense<0.000000e+00> : vector<64x8xf32>
    %229 = tpu.matmul %226, %228, %cst_196 {dimension_numbers = #tpu.dot_dimension_numbers<[1], [0], [0], [1], [0, 0, 1, 1], [], []>} : vector<64x4xf32>, vector<4x8xf32>, vector<64x8xf32> -> vector<64x8xf32>
    %230 = arith.addf %224, %229 : vector<64x8xf32>
    %c2_197 = arith.constant 2 : index
    %c0_198 = arith.constant 0 : index
    %c0_199 = arith.constant 0 : index
    %231 = vector.load %arg18[%c2_197, %c0_198, %c0_199] : memref<10x10x4xf32, #tpu.memory_space<vmem>>, vector<8x8x4xf32>
    %232 = vector.shape_cast %231 : vector<8x8x4xf32> to vector<64x4xf32>
    %c6_200 = arith.constant 6 : index
    %c0_201 = arith.constant 0 : index
    %c0_202 = arith.constant 0 : index
    %233 = vector.load %arg9[%c6_200, %c0_201, %c0_202] : memref<9x4x8xf32, #tpu.memory_space<vmem>>, vector<1x4x8xf32>
    %234 = vector.shape_cast %233 : vector<1x4x8xf32> to vector<4x8xf32>
    %cst_203 = arith.constant dense<0.000000e+00> : vector<64x8xf32>
    %235 = tpu.matmul %232, %234, %cst_203 {dimension_numbers = #tpu.dot_dimension_numbers<[1], [0], [0], [1], [0, 0, 1, 1], [], []>} : vector<64x4xf32>, vector<4x8xf32>, vector<64x8xf32> -> vector<64x8xf32>
    %236 = arith.addf %230, %235 : vector<64x8xf32>
    %c2_204 = arith.constant 2 : index
    %c1_205 = arith.constant 1 : index
    %c0_206 = arith.constant 0 : index
    %237 = vector.load %arg18[%c2_204, %c1_205, %c0_206] : memref<10x10x4xf32, #tpu.memory_space<vmem>>, vector<8x8x4xf32>
    %238 = vector.shape_cast %237 : vector<8x8x4xf32> to vector<64x4xf32>
    %c7_207 = arith.constant 7 : index
    %c0_208 = arith.constant 0 : index
    %c0_209 = arith.constant 0 : index
    %239 = vector.load %arg9[%c7_207, %c0_208, %c0_209] : memref<9x4x8xf32, #tpu.memory_space<vmem>>, vector<1x4x8xf32>
    %240 = vector.shape_cast %239 : vector<1x4x8xf32> to vector<4x8xf32>
    %cst_210 = arith.constant dense<0.000000e+00> : vector<64x8xf32>
    %241 = tpu.matmul %238, %240, %cst_210 {dimension_numbers = #tpu.dot_dimension_numbers<[1], [0], [0], [1], [0, 0, 1, 1], [], []>} : vector<64x4xf32>, vector<4x8xf32>, vector<64x8xf32> -> vector<64x8xf32>
    %242 = arith.addf %236, %241 : vector<64x8xf32>
    %c2_211 = arith.constant 2 : index
    %c2_212 = arith.constant 2 : index
    %c0_213 = arith.constant 0 : index
    %243 = vector.load %arg18[%c2_211, %c2_212, %c0_213] : memref<10x10x4xf32, #tpu.memory_space<vmem>>, vector<8x8x4xf32>
    %244 = vector.shape_cast %243 : vector<8x8x4xf32> to vector<64x4xf32>
    %c8_214 = arith.constant 8 : index
    %c0_215 = arith.constant 0 : index
    %c0_216 = arith.constant 0 : index
    %245 = vector.load %arg9[%c8_214, %c0_215, %c0_216] : memref<9x4x8xf32, #tpu.memory_space<vmem>>, vector<1x4x8xf32>
    %246 = vector.shape_cast %245 : vector<1x4x8xf32> to vector<4x8xf32>
    %cst_217 = arith.constant dense<0.000000e+00> : vector<64x8xf32>
    %247 = tpu.matmul %244, %246, %cst_217 {dimension_numbers = #tpu.dot_dimension_numbers<[1], [0], [0], [1], [0, 0, 1, 1], [], []>} : vector<64x4xf32>, vector<4x8xf32>, vector<64x8xf32> -> vector<64x8xf32>
    %248 = arith.addf %242, %247 : vector<64x8xf32>
    %249 = vector.shape_cast %248 : vector<64x8xf32> to vector<1x64x8xf32>
    %cst_218 = arith.constant dense<0.000000e+00> : vector<1xf32>
    %250 = vector.multi_reduction <add>, %249, %cst_218 [1, 2] : vector<1x64x8xf32> to vector<1xf32>
    %251 = vector.shape_cast %250 : vector<1xf32> to vector<1x1x1xf32>
    %252 = vector.extract %251[0, 0, 0] : f32 from vector<1x1x1xf32>
    %253 = arith.mulf %248, %248 : vector<64x8xf32>
    %254 = vector.shape_cast %253 : vector<64x8xf32> to vector<1x64x8xf32>
    %cst_219 = arith.constant dense<0.000000e+00> : vector<1xf32>
    %255 = vector.multi_reduction <add>, %254, %cst_219 [1, 2] : vector<1x64x8xf32> to vector<1xf32>
    %256 = vector.shape_cast %255 : vector<1xf32> to vector<1x1x1xf32>
    %257 = vector.extract %256[0, 0, 0] : f32 from vector<1x1x1xf32>
    %cst_220 = arith.constant 0.001953125 : f32
    %258 = arith.mulf %252, %cst_220 : f32
    %cst_221 = arith.constant 0.001953125 : f32
    %259 = arith.mulf %257, %cst_221 : f32
    %260 = arith.mulf %258, %258 : f32
    %261 = arith.subf %259, %260 : f32
    %262 = vector.broadcast %258 : f32 to vector<64x8xf32>
    %263 = arith.subf %248, %262 : vector<64x8xf32>
    %cst_222 = arith.constant 9.99999974E-6 : f32
    %264 = arith.addf %261, %cst_222 : f32
    %265 = math.rsqrt %264 : f32
    %266 = vector.broadcast %265 : f32 to vector<64x8xf32>
    %267 = arith.mulf %263, %266 : vector<64x8xf32>
    %c0_223 = arith.constant 0 : index
    %c0_224 = arith.constant 0 : index
    %268 = vector.load %arg10[%c0_223, %c0_224] : memref<1x8xf32, #tpu.memory_space<vmem>>, vector<1x8xf32>
    %269 = vector.broadcast %268 : vector<1x8xf32> to vector<64x8xf32>
    %270 = arith.mulf %267, %269 : vector<64x8xf32>
    %c0_225 = arith.constant 0 : index
    %c0_226 = arith.constant 0 : index
    %271 = vector.load %arg11[%c0_225, %c0_226] : memref<1x8xf32, #tpu.memory_space<vmem>>, vector<1x8xf32>
    %272 = vector.broadcast %271 : vector<1x8xf32> to vector<64x8xf32>
    %273 = arith.addf %270, %272 : vector<64x8xf32>
    %cst_227 = arith.constant 5.000000e-01 : f32
    %274 = vector.broadcast %cst_227 : f32 to vector<64x8xf32>
    %275 = arith.mulf %274, %273 : vector<64x8xf32>
    %cst_228 = arith.constant 0.707106769 : f32
    %276 = vector.broadcast %cst_228 : f32 to vector<64x8xf32>
    %277 = arith.mulf %273, %276 : vector<64x8xf32>
    %278 = math.erf %277 : vector<64x8xf32>
    %cst_229 = arith.constant 1.000000e+00 : f32
    %279 = vector.broadcast %cst_229 : f32 to vector<64x8xf32>
    %280 = arith.addf %279, %278 : vector<64x8xf32>
    %281 = arith.mulf %275, %280 : vector<64x8xf32>
    %282 = vector.shape_cast %281 : vector<64x8xf32> to vector<8x8x8xf32>
    %c1_230 = arith.constant 1 : index
    %c1_231 = arith.constant 1 : index
    %c0_232 = arith.constant 0 : index
    %283 = vector.load %arg19[%c1_230, %c1_231, %c0_232] : memref<10x10x8xf32, #tpu.memory_space<vmem>>, vector<8x8x8xf32>
    tpu.vector_store %arg19[%c1_230, %c1_231, %c0_232], %282 {strides = array<i32>} : memref<10x10x8xf32, #tpu.memory_space<vmem>>, vector<8x8x8xf32>,
    %cst_233 = arith.constant 0.000000e+00 : f32
    %284 = vector.broadcast %cst_233 : f32 to vector<64x8xf32>
    %c0_234 = arith.constant 0 : index
    %c0_235 = arith.constant 0 : index
    %c0_236 = arith.constant 0 : index
    %285 = vector.load %arg19[%c0_234, %c0_235, %c0_236] : memref<10x10x8xf32, #tpu.memory_space<vmem>>, vector<8x8x8xf32>
    %286 = vector.shape_cast %285 : vector<8x8x8xf32> to vector<64x8xf32>
    %c0_237 = arith.constant 0 : index
    %c0_238 = arith.constant 0 : index
    %c0_239 = arith.constant 0 : index
    %287 = vector.load %arg12[%c0_237, %c0_238, %c0_239] : memref<9x8x8xf32, #tpu.memory_space<vmem>>, vector<1x8x8xf32>
    %288 = vector.shape_cast %287 : vector<1x8x8xf32> to vector<8x8xf32>
    %cst_240 = arith.constant dense<0.000000e+00> : vector<64x8xf32>
    %289 = tpu.matmul %286, %288, %cst_240 {dimension_numbers = #tpu.dot_dimension_numbers<[1], [0], [0], [1], [0, 0, 1, 1], [], []>} : vector<64x8xf32>, vector<8x8xf32>, vector<64x8xf32> -> vector<64x8xf32>
    %290 = arith.addf %284, %289 : vector<64x8xf32>
    %c0_241 = arith.constant 0 : index
    %c1_242 = arith.constant 1 : index
    %c0_243 = arith.constant 0 : index
    %291 = vector.load %arg19[%c0_241, %c1_242, %c0_243] : memref<10x10x8xf32, #tpu.memory_space<vmem>>, vector<8x8x8xf32>
    %292 = vector.shape_cast %291 : vector<8x8x8xf32> to vector<64x8xf32>
    %c1_244 = arith.constant 1 : index
    %c0_245 = arith.constant 0 : index
    %c0_246 = arith.constant 0 : index
    %293 = vector.load %arg12[%c1_244, %c0_245, %c0_246] : memref<9x8x8xf32, #tpu.memory_space<vmem>>, vector<1x8x8xf32>
    %294 = vector.shape_cast %293 : vector<1x8x8xf32> to vector<8x8xf32>
    %cst_247 = arith.constant dense<0.000000e+00> : vector<64x8xf32>
    %295 = tpu.matmul %292, %294, %cst_247 {dimension_numbers = #tpu.dot_dimension_numbers<[1], [0], [0], [1], [0, 0, 1, 1], [], []>} : vector<64x8xf32>, vector<8x8xf32>, vector<64x8xf32> -> vector<64x8xf32>
    %296 = arith.addf %290, %295 : vector<64x8xf32>
    %c0_248 = arith.constant 0 : index
    %c2_249 = arith.constant 2 : index
    %c0_250 = arith.constant 0 : index
    %297 = vector.load %arg19[%c0_248, %c2_249, %c0_250] : memref<10x10x8xf32, #tpu.memory_space<vmem>>, vector<8x8x8xf32>
    %298 = vector.shape_cast %297 : vector<8x8x8xf32> to vector<64x8xf32>
    %c2_251 = arith.constant 2 : index
    %c0_252 = arith.constant 0 : index
    %c0_253 = arith.constant 0 : index
    %299 = vector.load %arg12[%c2_251, %c0_252, %c0_253] : memref<9x8x8xf32, #tpu.memory_space<vmem>>, vector<1x8x8xf32>
    %300 = vector.shape_cast %299 : vector<1x8x8xf32> to vector<8x8xf32>
    %cst_254 = arith.constant dense<0.000000e+00> : vector<64x8xf32>
    %301 = tpu.matmul %298, %300, %cst_254 {dimension_numbers = #tpu.dot_dimension_numbers<[1], [0], [0], [1], [0, 0, 1, 1], [], []>} : vector<64x8xf32>, vector<8x8xf32>, vector<64x8xf32> -> vector<64x8xf32>
    %302 = arith.addf %296, %301 : vector<64x8xf32>
    %c1_255 = arith.constant 1 : index
    %c0_256 = arith.constant 0 : index
    %c0_257 = arith.constant 0 : index
    %303 = vector.load %arg19[%c1_255, %c0_256, %c0_257] : memref<10x10x8xf32, #tpu.memory_space<vmem>>, vector<8x8x8xf32>
    %304 = vector.shape_cast %303 : vector<8x8x8xf32> to vector<64x8xf32>
    %c3_258 = arith.constant 3 : index
    %c0_259 = arith.constant 0 : index
    %c0_260 = arith.constant 0 : index
    %305 = vector.load %arg12[%c3_258, %c0_259, %c0_260] : memref<9x8x8xf32, #tpu.memory_space<vmem>>, vector<1x8x8xf32>
    %306 = vector.shape_cast %305 : vector<1x8x8xf32> to vector<8x8xf32>
    %cst_261 = arith.constant dense<0.000000e+00> : vector<64x8xf32>
    %307 = tpu.matmul %304, %306, %cst_261 {dimension_numbers = #tpu.dot_dimension_numbers<[1], [0], [0], [1], [0, 0, 1, 1], [], []>} : vector<64x8xf32>, vector<8x8xf32>, vector<64x8xf32> -> vector<64x8xf32>
    %308 = arith.addf %302, %307 : vector<64x8xf32>
    %c4_262 = arith.constant 4 : index
    %c0_263 = arith.constant 0 : index
    %c0_264 = arith.constant 0 : index
    %309 = vector.load %arg12[%c4_262, %c0_263, %c0_264] : memref<9x8x8xf32, #tpu.memory_space<vmem>>, vector<1x8x8xf32>
    %310 = vector.shape_cast %309 : vector<1x8x8xf32> to vector<8x8xf32>
    %cst_265 = arith.constant dense<0.000000e+00> : vector<64x8xf32>
    %311 = tpu.matmul %281, %310, %cst_265 {dimension_numbers = #tpu.dot_dimension_numbers<[1], [0], [0], [1], [0, 0, 1, 1], [], []>} : vector<64x8xf32>, vector<8x8xf32>, vector<64x8xf32> -> vector<64x8xf32>
    %312 = arith.addf %308, %311 : vector<64x8xf32>
    %c1_266 = arith.constant 1 : index
    %c2_267 = arith.constant 2 : index
    %c0_268 = arith.constant 0 : index
    %313 = vector.load %arg19[%c1_266, %c2_267, %c0_268] : memref<10x10x8xf32, #tpu.memory_space<vmem>>, vector<8x8x8xf32>
    %314 = vector.shape_cast %313 : vector<8x8x8xf32> to vector<64x8xf32>
    %c5_269 = arith.constant 5 : index
    %c0_270 = arith.constant 0 : index
    %c0_271 = arith.constant 0 : index
    %315 = vector.load %arg12[%c5_269, %c0_270, %c0_271] : memref<9x8x8xf32, #tpu.memory_space<vmem>>, vector<1x8x8xf32>
    %316 = vector.shape_cast %315 : vector<1x8x8xf32> to vector<8x8xf32>
    %cst_272 = arith.constant dense<0.000000e+00> : vector<64x8xf32>
    %317 = tpu.matmul %314, %316, %cst_272 {dimension_numbers = #tpu.dot_dimension_numbers<[1], [0], [0], [1], [0, 0, 1, 1], [], []>} : vector<64x8xf32>, vector<8x8xf32>, vector<64x8xf32> -> vector<64x8xf32>
    %318 = arith.addf %312, %317 : vector<64x8xf32>
    %c2_273 = arith.constant 2 : index
    %c0_274 = arith.constant 0 : index
    %c0_275 = arith.constant 0 : index
    %319 = vector.load %arg19[%c2_273, %c0_274, %c0_275] : memref<10x10x8xf32, #tpu.memory_space<vmem>>, vector<8x8x8xf32>
    %320 = vector.shape_cast %319 : vector<8x8x8xf32> to vector<64x8xf32>
    %c6_276 = arith.constant 6 : index
    %c0_277 = arith.constant 0 : index
    %c0_278 = arith.constant 0 : index
    %321 = vector.load %arg12[%c6_276, %c0_277, %c0_278] : memref<9x8x8xf32, #tpu.memory_space<vmem>>, vector<1x8x8xf32>
    %322 = vector.shape_cast %321 : vector<1x8x8xf32> to vector<8x8xf32>
    %cst_279 = arith.constant dense<0.000000e+00> : vector<64x8xf32>
    %323 = tpu.matmul %320, %322, %cst_279 {dimension_numbers = #tpu.dot_dimension_numbers<[1], [0], [0], [1], [0, 0, 1, 1], [], []>} : vector<64x8xf32>, vector<8x8xf32>, vector<64x8xf32> -> vector<64x8xf32>
    %324 = arith.addf %318, %323 : vector<64x8xf32>
    %c2_280 = arith.constant 2 : index
    %c1_281 = arith.constant 1 : index
    %c0_282 = arith.constant 0 : index
    %325 = vector.load %arg19[%c2_280, %c1_281, %c0_282] : memref<10x10x8xf32, #tpu.memory_space<vmem>>, vector<8x8x8xf32>
    %326 = vector.shape_cast %325 : vector<8x8x8xf32> to vector<64x8xf32>
    %c7_283 = arith.constant 7 : index
    %c0_284 = arith.constant 0 : index
    %c0_285 = arith.constant 0 : index
    %327 = vector.load %arg12[%c7_283, %c0_284, %c0_285] : memref<9x8x8xf32, #tpu.memory_space<vmem>>, vector<1x8x8xf32>
    %328 = vector.shape_cast %327 : vector<1x8x8xf32> to vector<8x8xf32>
    %cst_286 = arith.constant dense<0.000000e+00> : vector<64x8xf32>
    %329 = tpu.matmul %326, %328, %cst_286 {dimension_numbers = #tpu.dot_dimension_numbers<[1], [0], [0], [1], [0, 0, 1, 1], [], []>} : vector<64x8xf32>, vector<8x8xf32>, vector<64x8xf32> -> vector<64x8xf32>
    %330 = arith.addf %324, %329 : vector<64x8xf32>
    %c2_287 = arith.constant 2 : index
    %c2_288 = arith.constant 2 : index
    %c0_289 = arith.constant 0 : index
    %331 = vector.load %arg19[%c2_287, %c2_288, %c0_289] : memref<10x10x8xf32, #tpu.memory_space<vmem>>, vector<8x8x8xf32>
    %332 = vector.shape_cast %331 : vector<8x8x8xf32> to vector<64x8xf32>
    %c8_290 = arith.constant 8 : index
    %c0_291 = arith.constant 0 : index
    %c0_292 = arith.constant 0 : index
    %333 = vector.load %arg12[%c8_290, %c0_291, %c0_292] : memref<9x8x8xf32, #tpu.memory_space<vmem>>, vector<1x8x8xf32>
    %334 = vector.shape_cast %333 : vector<1x8x8xf32> to vector<8x8xf32>
    %cst_293 = arith.constant dense<0.000000e+00> : vector<64x8xf32>
    %335 = tpu.matmul %332, %334, %cst_293 {dimension_numbers = #tpu.dot_dimension_numbers<[1], [0], [0], [1], [0, 0, 1, 1], [], []>} : vector<64x8xf32>, vector<8x8xf32>, vector<64x8xf32> -> vector<64x8xf32>
    %336 = arith.addf %330, %335 : vector<64x8xf32>
    %337 = vector.shape_cast %336 : vector<64x8xf32> to vector<1x64x8xf32>
    %cst_294 = arith.constant dense<0.000000e+00> : vector<1xf32>
    %338 = vector.multi_reduction <add>, %337, %cst_294 [1, 2] : vector<1x64x8xf32> to vector<1xf32>
    %339 = vector.shape_cast %338 : vector<1xf32> to vector<1x1x1xf32>
    %340 = vector.extract %339[0, 0, 0] : f32 from vector<1x1x1xf32>
    %341 = arith.mulf %336, %336 : vector<64x8xf32>
    %342 = vector.shape_cast %341 : vector<64x8xf32> to vector<1x64x8xf32>
    %cst_295 = arith.constant dense<0.000000e+00> : vector<1xf32>
    %343 = vector.multi_reduction <add>, %342, %cst_295 [1, 2] : vector<1x64x8xf32> to vector<1xf32>
    %344 = vector.shape_cast %343 : vector<1xf32> to vector<1x1x1xf32>
    %345 = vector.extract %344[0, 0, 0] : f32 from vector<1x1x1xf32>
    %cst_296 = arith.constant 0.001953125 : f32
    %346 = arith.mulf %340, %cst_296 : f32
    %cst_297 = arith.constant 0.001953125 : f32
    %347 = arith.mulf %345, %cst_297 : f32
    %348 = arith.mulf %346, %346 : f32
    %349 = arith.subf %347, %348 : f32
    %350 = vector.broadcast %346 : f32 to vector<64x8xf32>
    %351 = arith.subf %336, %350 : vector<64x8xf32>
    %cst_298 = arith.constant 9.99999974E-6 : f32
    %352 = arith.addf %349, %cst_298 : f32
    %353 = math.rsqrt %352 : f32
    %354 = vector.broadcast %353 : f32 to vector<64x8xf32>
    %355 = arith.mulf %351, %354 : vector<64x8xf32>
    %c0_299 = arith.constant 0 : index
    %c0_300 = arith.constant 0 : index
    %356 = vector.load %arg13[%c0_299, %c0_300] : memref<1x8xf32, #tpu.memory_space<vmem>>, vector<1x8xf32>
    %357 = vector.broadcast %356 : vector<1x8xf32> to vector<64x8xf32>
    %358 = arith.mulf %355, %357 : vector<64x8xf32>
    %c0_301 = arith.constant 0 : index
    %c0_302 = arith.constant 0 : index
    %359 = vector.load %arg14[%c0_301, %c0_302] : memref<1x8xf32, #tpu.memory_space<vmem>>, vector<1x8xf32>
    %360 = vector.broadcast %359 : vector<1x8xf32> to vector<64x8xf32>
    %361 = arith.addf %358, %360 : vector<64x8xf32>
    %c0_303 = arith.constant 0 : index
    %c0_304 = arith.constant 0 : index
    %c0_305 = arith.constant 0 : index
    %362 = vector.load %arg2[%c0_303, %c0_304, %c0_305] : memref<1x1x256xf32, #tpu.memory_space<vmem>>, vector<1x1x256xf32>
    %363 = vector.shape_cast %362 : vector<1x1x256xf32> to vector<1x256xf32>
    %364 = arith.negf %363 : vector<1x256xf32>
    %365 = math.exp %364 : vector<1x256xf32>
    %cst_306 = arith.constant 1.000000e+00 : f32
    %366 = vector.broadcast %cst_306 : f32 to vector<1x256xf32>
    %367 = arith.addf %366, %365 : vector<1x256xf32>
    %368 = arith.divf %366, %367 : vector<1x256xf32>
    %369 = arith.mulf %363, %368 : vector<1x256xf32>
    %c0_307 = arith.constant 0 : index
    %c0_308 = arith.constant 0 : index
    %370 = vector.load %arg15[%c0_307, %c0_308] : memref<256x8xf32, #tpu.memory_space<vmem>>, vector<256x8xf32>
    %cst_309 = arith.constant dense<0.000000e+00> : vector<1x8xf32>
    %371 = tpu.matmul %369, %370, %cst_309 {dimension_numbers = #tpu.dot_dimension_numbers<[1], [0], [0], [1], [0, 0, 1, 1], [], []>} : vector<1x256xf32>, vector<256x8xf32>, vector<1x8xf32> -> vector<1x8xf32>
    %c0_310 = arith.constant 0 : index
    %c0_311 = arith.constant 0 : index
    %372 = vector.load %arg16[%c0_310, %c0_311] : memref<1x8xf32, #tpu.memory_space<vmem>>, vector<1x8xf32>
    %373 = arith.addf %371, %372 : vector<1x8xf32>
    %374 = vector.broadcast %373 : vector<1x8xf32> to vector<64x8xf32>
    %375 = arith.addf %361, %374 : vector<64x8xf32>
    %c0_312 = arith.constant 0 : index
    %c0_313 = arith.constant 0 : index
    %c0_314 = arith.constant 0 : index
    %376 = vector.load %arg17[%c0_312, %c0_313, %c0_314] : memref<1x64x8xf32, #tpu.memory_space<vmem>>, vector<1x64x8xf32>
    %377 = vector.shape_cast %376 : vector<1x64x8xf32> to vector<64x8xf32>
    %378 = vector.shape_cast %375 : vector<64x8xf32> to vector<1x64x8xf32>
    tpu.vector_store %arg17[%c0_312, %c0_313, %c0_314], %378 {strides = array<i32>} : memref<1x64x8xf32, #tpu.memory_space<vmem>>, vector<1x64x8xf32>,
    return
  }
  func.func @transform_0(%arg0: i32) -> (i32, i32, i32, i32) {
    %c0_i32 = arith.constant 0 : i32
    %c0_i32_0 = arith.constant 0 : i32
    %c0_i32_1 = arith.constant 0 : i32
    %c0_i32_2 = arith.constant 0 : i32
    return %arg0, %c0_i32, %c0_i32_0, %c0_i32_1 : i32, i32, i32, i32
  }
  func.func @transform_1(%arg0: i32) -> (i32, i32, i32) {
    %c0_i32 = arith.constant 0 : i32
    %c0_i32_0 = arith.constant 0 : i32
    %c0_i32_1 = arith.constant 0 : i32
    return %arg0, %c0_i32, %c0_i32_0 : i32, i32, i32
  }
  func.func @transform_2(%arg0: i32) -> (i32, i32, i32) {
    %c0_i32 = arith.constant 0 : i32
    %c0_i32_0 = arith.constant 0 : i32
    %c0_i32_1 = arith.constant 0 : i32
    %c0_i32_2 = arith.constant 0 : i32
    return %c0_i32, %c0_i32_0, %c0_i32_1 : i32, i32, i32
  }
  func.func @transform_3(%arg0: i32) -> (i32, i32) {
    %c0_i32 = arith.constant 0 : i32
    %c0_i32_0 = arith.constant 0 : i32
    %c0_i32_1 = arith.constant 0 : i32
    return %c0_i32, %c0_i32_0 : i32, i32
  }
  func.func @transform_4(%arg0: i32) -> (i32, i32) {
    %c0_i32 = arith.constant 0 : i32
    %c0_i32_0 = arith.constant 0 : i32
    %c0_i32_1 = arith.constant 0 : i32
    return %c0_i32, %c0_i32_0 : i32, i32
  }
  func.func @transform_5(%arg0: i32) -> (i32, i32, i32) {
    %c0_i32 = arith.constant 0 : i32
    %c0_i32_0 = arith.constant 0 : i32
    %c0_i32_1 = arith.constant 0 : i32
    %c0_i32_2 = arith.constant 0 : i32
    return %c0_i32, %c0_i32_0, %c0_i32_1 : i32, i32, i32
  }
  func.func @transform_6(%arg0: i32) -> (i32, i32) {
    %c0_i32 = arith.constant 0 : i32
    %c0_i32_0 = arith.constant 0 : i32
    %c0_i32_1 = arith.constant 0 : i32
    return %c0_i32, %c0_i32_0 : i32, i32
  }
  func.func @transform_7(%arg0: i32) -> (i32, i32) {
    %c0_i32 = arith.constant 0 : i32
    %c0_i32_0 = arith.constant 0 : i32
    %c0_i32_1 = arith.constant 0 : i32
    return %c0_i32, %c0_i32_0 : i32, i32
  }
  func.func @transform_8(%arg0: i32) -> (i32, i32, i32) {
    %c0_i32 = arith.constant 0 : i32
    %c0_i32_0 = arith.constant 0 : i32
    %c0_i32_1 = arith.constant 0 : i32
    %c0_i32_2 = arith.constant 0 : i32
    return %c0_i32, %c0_i32_0, %c0_i32_1 : i32, i32, i32
  }
  func.func @transform_9(%arg0: i32) -> (i32, i32) {
    %c0_i32 = arith.constant 0 : i32
    %c0_i32_0 = arith.constant 0 : i32
    %c0_i32_1 = arith.constant 0 : i32
    return %c0_i32, %c0_i32_0 : i32, i32
  }
  func.func @transform_10(%arg0: i32) -> (i32, i32) {
    %c0_i32 = arith.constant 0 : i32
    %c0_i32_0 = arith.constant 0 : i32
    %c0_i32_1 = arith.constant 0 : i32
    return %c0_i32, %c0_i32_0 : i32, i32
  }
  func.func @transform_11(%arg0: i32) -> (i32, i32, i32) {
    %c0_i32 = arith.constant 0 : i32
    %c0_i32_0 = arith.constant 0 : i32
    %c0_i32_1 = arith.constant 0 : i32
    %c0_i32_2 = arith.constant 0 : i32
    return %c0_i32, %c0_i32_0, %c0_i32_1 : i32, i32, i32
  }
  func.func @transform_12(%arg0: i32) -> (i32, i32) {
    %c0_i32 = arith.constant 0 : i32
    %c0_i32_0 = arith.constant 0 : i32
    %c0_i32_1 = arith.constant 0 : i32
    return %c0_i32, %c0_i32_0 : i32, i32
  }
  func.func @transform_13(%arg0: i32) -> (i32, i32) {
    %c0_i32 = arith.constant 0 : i32
    %c0_i32_0 = arith.constant 0 : i32
    %c0_i32_1 = arith.constant 0 : i32
    return %c0_i32, %c0_i32_0 : i32, i32
  }
  func.func @transform_14(%arg0: i32) -> (i32, i32) {
    %c0_i32 = arith.constant 0 : i32
    %c0_i32_0 = arith.constant 0 : i32
    %c0_i32_1 = arith.constant 0 : i32
    return %c0_i32, %c0_i32_0 : i32, i32
  }
  func.func @transform_15(%arg0: i32) -> (i32, i32) {
    %c0_i32 = arith.constant 0 : i32
    %c0_i32_0 = arith.constant 0 : i32
    %c0_i32_1 = arith.constant 0 : i32
    return %c0_i32, %c0_i32_0 : i32, i32
  }
  func.func @transform_16(%arg0: i32) -> (i32, i32, i32) {
    %c0_i32 = arith.constant 0 : i32
    %c0_i32_0 = arith.constant 0 : i32
    %c0_i32_1 = arith.constant 0 : i32
    return %arg0, %c0_i32, %c0_i32_0 : i32, i32, i32
  }
}

</mosaic_0001>

<llo_original>
// kernel: down_forward.1
$region0: #{down_forward.1}
  #allocation0 [shape = 'u32[]', space=smem, size = 0x4, offset = 0x4, fixed_abs, tag = 'smem constant byte address 0x4 - core index']
  #allocation1 [shape = 'u32[144,128]{1,0:T(1,128)}', space=vmem, size = 0x12000, scoped, tag = 'internal scratch']
  #allocation2 [shape = 'f32[10,10,4]{2,1,0:T(8,128)}', space=vmem, size = 0x14000, scoped, tag = 'scratch operand']
  #allocation3 [shape = 'f32[10,10,8]{2,1,0:T(8,128)}', space=vmem, size = 0x14000, scoped, tag = 'scratch operand']
  %s0 = inlined_call_operand.vmem [shape: f32[2,4,64,4], index: 0, kind: input, shape index: {}]
  %s1 = inlined_call_operand.vmem [shape: f32[2,1,256], index: 1, kind: input, shape index: {}]
  %s2 = inlined_call_operand.vmem [shape: f32[9,4,4], index: 2, kind: input, shape index: {}]
  %s3 = inlined_call_operand.vmem [shape: f32[1,4], index: 3, kind: input, shape index: {}]
  %s4 = inlined_call_operand.vmem [shape: f32[1,4], index: 4, kind: input, shape index: {}]
  %s5 = inlined_call_operand.vmem [shape: f32[9,4,4], index: 5, kind: input, shape index: {}]
  %s6 = inlined_call_operand.vmem [shape: f32[1,4], index: 6, kind: input, shape index: {}]
  %s7 = inlined_call_operand.vmem [shape: f32[1,4], index: 7, kind: input, shape index: {}]
  %s8 = inlined_call_operand.vmem [shape: f32[9,4,8], index: 8, kind: input, shape index: {}]
  %s9 = inlined_call_operand.vmem [shape: f32[1,8], index: 9, kind: input, shape index: {}]
  %s10 = inlined_call_operand.vmem [shape: f32[1,8], index: 10, kind: input, shape index: {}]
  %s11 = inlined_call_operand.vmem [shape: f32[9,8,8], index: 11, kind: input, shape index: {}]
  %s12 = inlined_call_operand.vmem [shape: f32[1,8], index: 12, kind: input, shape index: {}]
  %s13 = inlined_call_operand.vmem [shape: f32[1,8], index: 13, kind: input, shape index: {}]
  %s14 = inlined_call_operand.vmem [shape: f32[256,8], index: 14, kind: input, shape index: {}]
  %s15 = inlined_call_operand.vmem [shape: f32[1,8], index: 15, kind: input, shape index: {}]
  %s16 = inlined_call_operand.vmem [shape: f32[2,64,8], index: 16, kind: output, shape index: {}]
  %s17 = sld [smem:[#allocation0]]
  $region97: #{down_forward.1} parent=0
    _
  %s19 = ssub.s32 1, %s17
  %s20 = scalar_select 0, %s19, %s17
  loop: start=0, step=1, limit=4
  $region2: #{down_forward.1} parent=0 // loop_pre_header
    _
  $region3: #{down_forward.1} parent=0 // loop_header
    %s22 = sphi 0, %s26
    %p23 = scmp.ge.s32.totalorder %s22, 4
    %s32 = sphi 0, %s34
    %s35 = sphi 0, %s32
    %s36 = sphi 0, %s35
    %s52 = sphi 0, %s36
    %s58 = sphi 0, %s60
    %s61 = sphi 0, %s58
    %s62 = sphi 0, %s61
    %s78 = sphi 0, %s62
    %s82 = sphi 0, %s82
    %s84 = sphi 0, %s82
    %s85 = sphi 0, %s84
    %s99 = sphi 0, %s85
    %s103 = sphi 0, %s103
    %s105 = sphi 0, %s103
    %s106 = sphi 0, %s105
    %s120 = sphi 0, %s106
    %s124 = sphi 0, %s124
    %s126 = sphi 0, %s124
    %s127 = sphi 0, %s126
    %s141 = sphi 0, %s127
    %s145 = sphi 0, %s145
    %s147 = sphi 0, %s145
    %s148 = sphi 0, %s147
    %s162 = sphi 0, %s148
    %s166 = sphi 0, %s166
    %s168 = sphi 0, %s166
    %s169 = sphi 0, %s168
    %s183 = sphi 0, %s169
    %s187 = sphi 0, %s187
    %s189 = sphi 0, %s187
    %s190 = sphi 0, %s189
    %s204 = sphi 0, %s190
    %s208 = sphi 0, %s208
    %s210 = sphi 0, %s208
    %s211 = sphi 0, %s210
    %s225 = sphi 0, %s211
    %s229 = sphi 0, %s229
    %s231 = sphi 0, %s229
    %s232 = sphi 0, %s231
    %s246 = sphi 0, %s232
    %s250 = sphi 0, %s250
    %s252 = sphi 0, %s250
    %s253 = sphi 0, %s252
    %s267 = sphi 0, %s253
    %s271 = sphi 0, %s271
    %s273 = sphi 0, %s271
    %s274 = sphi 0, %s273
    %s288 = sphi 0, %s274
    %s292 = sphi 0, %s292
    %s294 = sphi 0, %s292
    %s295 = sphi 0, %s294
    %s309 = sphi 0, %s295
    %s313 = sphi 0, %s313
    %s315 = sphi 0, %s313
    %s316 = sphi 0, %s315
    %s330 = sphi 0, %s316
    %s334 = sphi 0, %s334
    %s336 = sphi 0, %s334
    %s337 = sphi 0, %s336
    %s351 = sphi 0, %s337
    %s355 = sphi 0, %s355
    %s357 = sphi 0, %s355
    %s358 = sphi 0, %s357
    %s372 = sphi 0, %s358
    %s378 = sphi 0, %s380
    %s381 = sphi 0, %s378
    %s382 = sphi 0, %s381
    %s398 = sphi 0, %s382
  $region4: #{down_forward.1} parent=0 // loop_header_branch
    %25 = sbr.rel (%p23) target = $region8
  $region5: #{down_forward.1} parent=0 // loop_body
    %s27 = ssub.s32 %s22, 1
    %s28 = ssub.s32 %s22, 2
    %s29 = sadd.s32 %s22, 1
    %s30 = ssub.s32 %s22, %s29
    %p31 = scmp.eq.s32.totalorder %s30, 0
    %s33 = sadd.s32 %s32, 1
    %s34 = scalar_select %p31, %s32, %s33
    %p37 = pneg %p31
    %p38 = scmp.eq.s32.totalorder %s22, 1
    %p39 = por %p37, %p38
    %p40 = scmp.ne.s32.totalorder %s32, %s35
    %p41 = scmp.eq.s32.totalorder %s22, 0
    %p42 = por %p40, %p41
    %p43 = scmp.ne.s32.totalorder %s32, %s35
    %p44 = scmp.eq.s32.totalorder %s27, 1
    %p45 = por %p43, %p44
    %p46 = scmp.ne.s32.totalorder %s35, %s36
    %p47 = scmp.eq.s32.totalorder %s27, 0
    %p48 = por %p46, %p47
    %p49 = scmp.ne.s32.totalorder %s35, %s36
    %p50 = scmp.eq.s32.totalorder %s28, 1
    %p51 = por %p49, %p50
    %p53 = scmp.ne.s32.totalorder %s36, %s52
    %p54 = scmp.eq.s32.totalorder %s28, 0
    %p55 = por %p53, %p54
    %s56 = ssub.s32 %s22, %s29
    %p57 = scmp.eq.s32.totalorder %s56, 0
    %s59 = sadd.s32 %s58, 1
    %s60 = scalar_select %p57, %s58, %s59
    %p63 = pneg %p57
    %p64 = scmp.eq.s32.totalorder %s22, 1
    %p65 = por %p63, %p64
    %p66 = scmp.ne.s32.totalorder %s58, %s61
    %p67 = scmp.eq.s32.totalorder %s22, 0
    %p68 = por %p66, %p67
    %p69 = scmp.ne.s32.totalorder %s58, %s61
    %p70 = scmp.eq.s32.totalorder %s27, 1
    %p71 = por %p69, %p70
    %p72 = scmp.ne.s32.totalorder %s61, %s62
    %p73 = scmp.eq.s32.totalorder %s27, 0
    %p74 = por %p72, %p73
    %p75 = scmp.ne.s32.totalorder %s61, %s62
    %p76 = scmp.eq.s32.totalorder %s28, 1
    %p77 = por %p75, %p76
    %p79 = scmp.ne.s32.totalorder %s62, %s78
    %p80 = scmp.eq.s32.totalorder %s28, 0
    %p81 = por %p79, %p80
    %s83 = sadd.s32 %s82, 1
    %p86 = scmp.eq.s32.totalorder %s22, 1
    %p87 = scmp.ne.s32.totalorder %s82, %s84
    %p88 = scmp.eq.s32.totalorder %s22, 0
    %p89 = por %p87, %p88
    %p90 = scmp.ne.s32.totalorder %s82, %s84
    %p91 = scmp.eq.s32.totalorder %s27, 1
    %p92 = por %p90, %p91
    %p93 = scmp.ne.s32.totalorder %s84, %s85
    %p94 = scmp.eq.s32.totalorder %s27, 0
    %p95 = por %p93, %p94
    %p96 = scmp.ne.s32.totalorder %s84, %s85
    %p97 = scmp.eq.s32.totalorder %s28, 1
    %p98 = por %p96, %p97
    %p100 = scmp.ne.s32.totalorder %s85, %s99
    %p101 = scmp.eq.s32.totalorder %s28, 0
    %p102 = por %p100, %p101
    %s104 = sadd.s32 %s103, 1
    %p107 = scmp.eq.s32.totalorder %s22, 1
    %p108 = scmp.ne.s32.totalorder %s103, %s105
    %p109 = scmp.eq.s32.totalorder %s22, 0
    %p110 = por %p108, %p109
    %p111 = scmp.ne.s32.totalorder %s103, %s105
    %p112 = scmp.eq.s32.totalorder %s27, 1
    %p113 = por %p111, %p112
    %p114 = scmp.ne.s32.totalorder %s105, %s106
    %p115 = scmp.eq.s32.totalorder %s27, 0
    %p116 = por %p114, %p115
    %p117 = scmp.ne.s32.totalorder %s105, %s106
    %p118 = scmp.eq.s32.totalorder %s28, 1
    %p119 = por %p117, %p118
    %p121 = scmp.ne.s32.totalorder %s106, %s120
    %p122 = scmp.eq.s32.totalorder %s28, 0
    %p123 = por %p121, %p122
    %s125 = sadd.s32 %s124, 1
    %p128 = scmp.eq.s32.totalorder %s22, 1
    %p129 = scmp.ne.s32.totalorder %s124, %s126
    %p130 = scmp.eq.s32.totalorder %s22, 0
    %p131 = por %p129, %p130
    %p132 = scmp.ne.s32.totalorder %s124, %s126
    %p133 = scmp.eq.s32.totalorder %s27, 1
    %p134 = por %p132, %p133
    %p135 = scmp.ne.s32.totalorder %s126, %s127
    %p136 = scmp.eq.s32.totalorder %s27, 0
    %p137 = por %p135, %p136
    %p138 = scmp.ne.s32.totalorder %s126, %s127
    %p139 = scmp.eq.s32.totalorder %s28, 1
    %p140 = por %p138, %p139
    %p142 = scmp.ne.s32.totalorder %s127, %s141
    %p143 = scmp.eq.s32.totalorder %s28, 0
    %p144 = por %p142, %p143
    %s146 = sadd.s32 %s145, 1
    %p149 = scmp.eq.s32.totalorder %s22, 1
    %p150 = scmp.ne.s32.totalorder %s145, %s147
    %p151 = scmp.eq.s32.totalorder %s22, 0
    %p152 = por %p150, %p151
    %p153 = scmp.ne.s32.totalorder %s145, %s147
    %p154 = scmp.eq.s32.totalorder %s27, 1
    %p155 = por %p153, %p154
    %p156 = scmp.ne.s32.totalorder %s147, %s148
    %p157 = scmp.eq.s32.totalorder %s27, 0
    %p158 = por %p156, %p157
    %p159 = scmp.ne.s32.totalorder %s147, %s148
    %p160 = scmp.eq.s32.totalorder %s28, 1
    %p161 = por %p159, %p160
    %p163 = scmp.ne.s32.totalorder %s148, %s162
    %p164 = scmp.eq.s32.totalorder %s28, 0
    %p165 = por %p163, %p164
    %s167 = sadd.s32 %s166, 1
    %p170 = scmp.eq.s32.totalorder %s22, 1
    %p171 = scmp.ne.s32.totalorder %s166, %s168
    %p172 = scmp.eq.s32.totalorder %s22, 0
    %p173 = por %p171, %p172
    %p174 = scmp.ne.s32.totalorder %s166, %s168
    %p175 = scmp.eq.s32.totalorder %s27, 1
    %p176 = por %p174, %p175
    %p177 = scmp.ne.s32.totalorder %s168, %s169
    %p178 = scmp.eq.s32.totalorder %s27, 0
    %p179 = por %p177, %p178
    %p180 = scmp.ne.s32.totalorder %s168, %s169
    %p181 = scmp.eq.s32.totalorder %s28, 1
    %p182 = por %p180, %p181
    %p184 = scmp.ne.s32.totalorder %s169, %s183
    %p185 = scmp.eq.s32.totalorder %s28, 0
    %p186 = por %p184, %p185
    %s188 = sadd.s32 %s187, 1
    %p191 = scmp.eq.s32.totalorder %s22, 1
    %p192 = scmp.ne.s32.totalorder %s187, %s189
    %p193 = scmp.eq.s32.totalorder %s22, 0
    %p194 = por %p192, %p193
    %p195 = scmp.ne.s32.totalorder %s187, %s189
    %p196 = scmp.eq.s32.totalorder %s27, 1
    %p197 = por %p195, %p196
    %p198 = scmp.ne.s32.totalorder %s189, %s190
    %p199 = scmp.eq.s32.totalorder %s27, 0
    %p200 = por %p198, %p199
    %p201 = scmp.ne.s32.totalorder %s189, %s190
    %p202 = scmp.eq.s32.totalorder %s28, 1
    %p203 = por %p201, %p202
    %p205 = scmp.ne.s32.totalorder %s190, %s204
    %p206 = scmp.eq.s32.totalorder %s28, 0
    %p207 = por %p205, %p206
    %s209 = sadd.s32 %s208, 1
    %p212 = scmp.eq.s32.totalorder %s22, 1
    %p213 = scmp.ne.s32.totalorder %s208, %s210
    %p214 = scmp.eq.s32.totalorder %s22, 0
    %p215 = por %p213, %p214
    %p216 = scmp.ne.s32.totalorder %s208, %s210
    %p217 = scmp.eq.s32.totalorder %s27, 1
    %p218 = por %p216, %p217
    %p219 = scmp.ne.s32.totalorder %s210, %s211
    %p220 = scmp.eq.s32.totalorder %s27, 0
    %p221 = por %p219, %p220
    %p222 = scmp.ne.s32.totalorder %s210, %s211
    %p223 = scmp.eq.s32.totalorder %s28, 1
    %p224 = por %p222, %p223
    %p226 = scmp.ne.s32.totalorder %s211, %s225
    %p227 = scmp.eq.s32.totalorder %s28, 0
    %p228 = por %p226, %p227
    %s230 = sadd.s32 %s229, 1
    %p233 = scmp.eq.s32.totalorder %s22, 1
    %p234 = scmp.ne.s32.totalorder %s229, %s231
    %p235 = scmp.eq.s32.totalorder %s22, 0
    %p236 = por %p234, %p235
    %p237 = scmp.ne.s32.totalorder %s229, %s231
    %p238 = scmp.eq.s32.totalorder %s27, 1
    %p239 = por %p237, %p238
    %p240 = scmp.ne.s32.totalorder %s231, %s232
    %p241 = scmp.eq.s32.totalorder %s27, 0
    %p242 = por %p240, %p241
    %p243 = scmp.ne.s32.totalorder %s231, %s232
    %p244 = scmp.eq.s32.totalorder %s28, 1
    %p245 = por %p243, %p244
    %p247 = scmp.ne.s32.totalorder %s232, %s246
    %p248 = scmp.eq.s32.totalorder %s28, 0
    %p249 = por %p247, %p248
    %s251 = sadd.s32 %s250, 1
    %p254 = scmp.eq.s32.totalorder %s22, 1
    %p255 = scmp.ne.s32.totalorder %s250, %s252
    %p256 = scmp.eq.s32.totalorder %s22, 0
    %p257 = por %p255, %p256
    %p258 = scmp.ne.s32.totalorder %s250, %s252
    %p259 = scmp.eq.s32.totalorder %s27, 1
    %p260 = por %p258, %p259
    %p261 = scmp.ne.s32.totalorder %s252, %s253
    %p262 = scmp.eq.s32.totalorder %s27, 0
    %p263 = por %p261, %p262
    %p264 = scmp.ne.s32.totalorder %s252, %s253
    %p265 = scmp.eq.s32.totalorder %s28, 1
    %p266 = por %p264, %p265
    %p268 = scmp.ne.s32.totalorder %s253, %s267
    %p269 = scmp.eq.s32.totalorder %s28, 0
    %p270 = por %p268, %p269
    %s272 = sadd.s32 %s271, 1
    %p275 = scmp.eq.s32.totalorder %s22, 1
    %p276 = scmp.ne.s32.totalorder %s271, %s273
    %p277 = scmp.eq.s32.totalorder %s22, 0
    %p278 = por %p276, %p277
    %p279 = scmp.ne.s32.totalorder %s271, %s273
    %p280 = scmp.eq.s32.totalorder %s27, 1
    %p281 = por %p279, %p280
    %p282 = scmp.ne.s32.totalorder %s273, %s274
    %p283 = scmp.eq.s32.totalorder %s27, 0
    %p284 = por %p282, %p283
    %p285 = scmp.ne.s32.totalorder %s273, %s274
    %p286 = scmp.eq.s32.totalorder %s28, 1
    %p287 = por %p285, %p286
    %p289 = scmp.ne.s32.totalorder %s274, %s288
    %p290 = scmp.eq.s32.totalorder %s28, 0
    %p291 = por %p289, %p290
    %s293 = sadd.s32 %s292, 1
    %p296 = scmp.eq.s32.totalorder %s22, 1
    %p297 = scmp.ne.s32.totalorder %s292, %s294
    %p298 = scmp.eq.s32.totalorder %s22, 0
    %p299 = por %p297, %p298
    %p300 = scmp.ne.s32.totalorder %s292, %s294
    %p301 = scmp.eq.s32.totalorder %s27, 1
    %p302 = por %p300, %p301
    %p303 = scmp.ne.s32.totalorder %s294, %s295
    %p304 = scmp.eq.s32.totalorder %s27, 0
    %p305 = por %p303, %p304
    %p306 = scmp.ne.s32.totalorder %s294, %s295
    %p307 = scmp.eq.s32.totalorder %s28, 1
    %p308 = por %p306, %p307
    %p310 = scmp.ne.s32.totalorder %s295, %s309
    %p311 = scmp.eq.s32.totalorder %s28, 0
    %p312 = por %p310, %p311
    %s314 = sadd.s32 %s313, 1
    %p317 = scmp.eq.s32.totalorder %s22, 1
    %p318 = scmp.ne.s32.totalorder %s313, %s315
    %p319 = scmp.eq.s32.totalorder %s22, 0
    %p320 = por %p318, %p319
    %p321 = scmp.ne.s32.totalorder %s313, %s315
    %p322 = scmp.eq.s32.totalorder %s27, 1
    %p323 = por %p321, %p322
    %p324 = scmp.ne.s32.totalorder %s315, %s316
    %p325 = scmp.eq.s32.totalorder %s27, 0
    %p326 = por %p324, %p325
    %p327 = scmp.ne.s32.totalorder %s315, %s316
    %p328 = scmp.eq.s32.totalorder %s28, 1
    %p329 = por %p327, %p328
    %p331 = scmp.ne.s32.totalorder %s316, %s330
    %p332 = scmp.eq.s32.totalorder %s28, 0
    %p333 = por %p331, %p332
    %s335 = sadd.s32 %s334, 1
    %p338 = scmp.eq.s32.totalorder %s22, 1
    %p339 = scmp.ne.s32.totalorder %s334, %s336
    %p340 = scmp.eq.s32.totalorder %s22, 0
    %p341 = por %p339, %p340
    %p342 = scmp.ne.s32.totalorder %s334, %s336
    %p343 = scmp.eq.s32.totalorder %s27, 1
    %p344 = por %p342, %p343
    %p345 = scmp.ne.s32.totalorder %s336, %s337
    %p346 = scmp.eq.s32.totalorder %s27, 0
    %p347 = por %p345, %p346
    %p348 = scmp.ne.s32.totalorder %s336, %s337
    %p349 = scmp.eq.s32.totalorder %s28, 1
    %p350 = por %p348, %p349
    %p352 = scmp.ne.s32.totalorder %s337, %s351
    %p353 = scmp.eq.s32.totalorder %s28, 0
    %p354 = por %p352, %p353
    %s356 = sadd.s32 %s355, 1
    %p359 = scmp.eq.s32.totalorder %s22, 1
    %p360 = scmp.ne.s32.totalorder %s355, %s357
    %p361 = scmp.eq.s32.totalorder %s22, 0
    %p362 = por %p360, %p361
    %p363 = scmp.ne.s32.totalorder %s355, %s357
    %p364 = scmp.eq.s32.totalorder %s27, 1
    %p365 = por %p363, %p364
    %p366 = scmp.ne.s32.totalorder %s357, %s358
    %p367 = scmp.eq.s32.totalorder %s27, 0
    %p368 = por %p366, %p367
    %p369 = scmp.ne.s32.totalorder %s357, %s358
    %p370 = scmp.eq.s32.totalorder %s28, 1
    %p371 = por %p369, %p370
    %p373 = scmp.ne.s32.totalorder %s358, %s372
    %p374 = scmp.eq.s32.totalorder %s28, 0
    %p375 = por %p373, %p374
    %s376 = ssub.s32 %s22, %s29
    %p377 = scmp.eq.s32.totalorder %s376, 0
    %s379 = sadd.s32 %s378, 1
    %s380 = scalar_select %p377, %s378, %s379
    %p383 = pneg %p377
    %p384 = scmp.eq.s32.totalorder %s22, 1
    %p385 = por %p383, %p384
    %p386 = scmp.ne.s32.totalorder %s378, %s381
    %p387 = scmp.eq.s32.totalorder %s22, 0
    %p388 = por %p386, %p387
    %p389 = scmp.ne.s32.totalorder %s378, %s381
    %p390 = scmp.eq.s32.totalorder %s27, 1
    %p391 = por %p389, %p390
    %p392 = scmp.ne.s32.totalorder %s381, %s382
    %p393 = scmp.eq.s32.totalorder %s27, 0
    %p394 = por %p392, %p393
    %p395 = scmp.ne.s32.totalorder %s381, %s382
    %p396 = scmp.eq.s32.totalorder %s28, 1
    %p397 = por %p395, %p396
    %p399 = scmp.ne.s32.totalorder %s382, %s398
    %p400 = scmp.eq.s32.totalorder %s28, 0
    %p401 = por %p399, %p400
    %p402 = scmp.le.s32.totalorder 1, %s22
    %p403 = scmp.lt.s32.totalorder %s22, 3
    %p404 = pnand %p402, %p403
    %p405 = pneg %p404
    // Predicated region
    $region9: #{down_forward.1} parent=5 // pred_check
      _
    $region10: #{down_forward.1} parent=5 // pred_check_branch
      %407 = sbr.rel (%p404) target = $region12
    $region11: #{down_forward.1} parent=5 // pred_region
      %s408 = ssub.s32 %s22, 1
      // Predicated region
      $region13: #{down_forward.1} parent=11 // pred_check
        %p409 = pneg %p95
      $region14: #{down_forward.1} parent=11 // pred_check_branch
        %411 = sbr.rel (%p409) target = $region16
      $region15: #{down_forward.1} parent=11 // pred_region
        _
      $region16: #{down_forward.1} parent=11 // pred_fallthru
        _
      // Predicated region
      $region17: #{down_forward.1} parent=11 // pred_check
        %p412 = pneg %p116
      $region18: #{down_forward.1} parent=11 // pred_check_branch
        %414 = sbr.rel (%p412) target = $region20
      $region19: #{down_forward.1} parent=11 // pred_region
        _
      $region20: #{down_forward.1} parent=11 // pred_fallthru
        _
      // Predicated region
      $region21: #{down_forward.1} parent=11 // pred_check
        %p415 = pneg %p137
      $region22: #{down_forward.1} parent=11 // pred_check_branch
        %417 = sbr.rel (%p415) target = $region24
      $region23: #{down_forward.1} parent=11 // pred_region
        _
      $region24: #{down_forward.1} parent=11 // pred_fallthru
        _
      // Predicated region
      $region25: #{down_forward.1} parent=11 // pred_check
        %p418 = pneg %p158
      $region26: #{down_forward.1} parent=11 // pred_check_branch
        %420 = sbr.rel (%p418) target = $region28
      $region27: #{down_forward.1} parent=11 // pred_region
        _
      $region28: #{down_forward.1} parent=11 // pred_fallthru
        _
      // Predicated region
      $region29: #{down_forward.1} parent=11 // pred_check
        %p421 = pneg %p179
      $region30: #{down_forward.1} parent=11 // pred_check_branch
        %423 = sbr.rel (%p421) target = $region32
      $region31: #{down_forward.1} parent=11 // pred_region
        _
      $region32: #{down_forward.1} parent=11 // pred_fallthru
        _
      // Predicated region
      $region33: #{down_forward.1} parent=11 // pred_check
        %p424 = pneg %p200
      $region34: #{down_forward.1} parent=11 // pred_check_branch
        %426 = sbr.rel (%p424) target = $region36
      $region35: #{down_forward.1} parent=11 // pred_region
        _
      $region36: #{down_forward.1} parent=11 // pred_fallthru
        _
      // Predicated region
      $region37: #{down_forward.1} parent=11 // pred_check
        %p427 = pneg %p221
      $region38: #{down_forward.1} parent=11 // pred_check_branch
        %429 = sbr.rel (%p427) target = $region40
      $region39: #{down_forward.1} parent=11 // pred_region
        _
      $region40: #{down_forward.1} parent=11 // pred_fallthru
        _
      // Predicated region
      $region41: #{down_forward.1} parent=11 // pred_check
        %p430 = pneg %p242
      $region42: #{down_forward.1} parent=11 // pred_check_branch
        %432 = sbr.rel (%p430) target = $region44
      $region43: #{down_forward.1} parent=11 // pred_region
        _
      $region44: #{down_forward.1} parent=11 // pred_fallthru
        _
      // Predicated region
      $region45: #{down_forward.1} parent=11 // pred_check
        %p433 = pneg %p263
      $region46: #{down_forward.1} parent=11 // pred_check_branch
        %435 = sbr.rel (%p433) target = $region48
      $region47: #{down_forward.1} parent=11 // pred_region
        _
      $region48: #{down_forward.1} parent=11 // pred_fallthru
        _
      // Predicated region
      $region49: #{down_forward.1} parent=11 // pred_check
        %p436 = pneg %p284
      $region50: #{down_forward.1} parent=11 // pred_check_branch
        %438 = sbr.rel (%p436) target = $region52
      $region51: #{down_forward.1} parent=11 // pred_region
        _
      $region52: #{down_forward.1} parent=11 // pred_fallthru
        _
      // Predicated region
      $region53: #{down_forward.1} parent=11 // pred_check
        %p439 = pneg %p305
      $region54: #{down_forward.1} parent=11 // pred_check_branch
        %441 = sbr.rel (%p439) target = $region56
      $region55: #{down_forward.1} parent=11 // pred_region
        _
      $region56: #{down_forward.1} parent=11 // pred_fallthru
        _
      // Predicated region
      $region57: #{down_forward.1} parent=11 // pred_check
        %p442 = pneg %p326
      $region58: #{down_forward.1} parent=11 // pred_check_branch
        %444 = sbr.rel (%p442) target = $region60
      $region59: #{down_forward.1} parent=11 // pred_region
        _
      $region60: #{down_forward.1} parent=11 // pred_fallthru
        _
      // Predicated region
      $region61: #{down_forward.1} parent=11 // pred_check
        %p445 = pneg %p347
      $region62: #{down_forward.1} parent=11 // pred_check_branch
        %447 = sbr.rel (%p445) target = $region64
      $region63: #{down_forward.1} parent=11 // pred_region
        _
      $region64: #{down_forward.1} parent=11 // pred_fallthru
        _
      // Predicated region
      $region65: #{down_forward.1} parent=11 // pred_check
        %p448 = pneg %p368
      $region66: #{down_forward.1} parent=11 // pred_check_branch
        %450 = sbr.rel (%p448) target = $region68
      $region67: #{down_forward.1} parent=11 // pred_region
        _
      $region68: #{down_forward.1} parent=11 // pred_fallthru
        _
    $region12: #{down_forward.1} parent=5 // pred_fallthru
      _
    %p451 = scmp.lt.s32.totalorder %s22, 2
    // Predicated region
    $region69: #{down_forward.1} parent=5 // pred_check
      %p452 = pneg %p451
    $region70: #{down_forward.1} parent=5 // pred_check_branch
      %454 = sbr.rel (%p452) target = $region72
    $region71: #{down_forward.1} parent=5 // pred_region
      // Predicated region
      $region73: #{down_forward.1} parent=71 // pred_check
        %p455 = pneg %p42
      $region74: #{down_forward.1} parent=71 // pred_check_branch
        %457 = sbr.rel (%p455) target = $region76
      $region75: #{down_forward.1} parent=71 // pred_region
        %p458 = scmp.lt.s32.totalorder %s22, 1
        %s459 = scalar_select %p458, %s22, 1
        %s460 = smul.addr %s459, 32
        %s461 = smul.addr %s460, 8
        %s462 = scalar_lea.vmem %s0, %s461
      $region76: #{down_forward.1} parent=71 // pred_fallthru
        _
      // Predicated region
      $region77: #{down_forward.1} parent=71 // pred_check
        %p463 = pneg %p68
      $region78: #{down_forward.1} parent=71 // pred_check_branch
        %465 = sbr.rel (%p463) target = $region80
      $region79: #{down_forward.1} parent=71 // pred_region
        %p466 = scmp.lt.s32.totalorder %s22, 1
        %s467 = scalar_select %p466, %s22, 1
        %s468 = smul.addr %s467, 2
        %s469 = scalar_lea.vmem %s1, %s468
      $region80: #{down_forward.1} parent=71 // pred_fallthru
        _
    $region72: #{down_forward.1} parent=5 // pred_fallthru
      _
    %p470 = scmp.le.s32.totalorder 1, %s22
    %p471 = scmp.lt.s32.totalorder %s22, 3
    %p472 = pnand %p470, %p471
    %p473 = pneg %p472
    // Predicated region
    $region81: #{down_forward.1} parent=5 // pred_check
      _
    $region82: #{down_forward.1} parent=5 // pred_check_branch
      %475 = sbr.rel (%p472) target = $region84
    $region83: #{down_forward.1} parent=5 // pred_region
      %s476 = ssub.s32 %s22, 1
      %p477 = scmp.lt.s32.totalorder %s27, 1
      %s478 = scalar_select %p477, %s27, 1
      %s479 = smul.addr %s478, 32
      %s480 = smul.addr %s479, 8
      %s481 = scalar_lea.vmem %s0, %s480
      %p482 = pneg %p48
      %p483 = pneg %p45
      %p484 = scmp.lt.s32.totalorder %s27, 1
      %s485 = scalar_select %p484, %s27, 1
      %s486 = smul.addr %s485, 2
      %s487 = scalar_lea.vmem %s1, %s486
      %p488 = pneg %p74
      %p489 = pneg %p71
      %p490 = pneg %p95
      %p491 = pneg %p92
      %p492 = pneg %p116
      %p493 = pneg %p113
      %p494 = pneg %p137
      %p495 = pneg %p134
      %p496 = pneg %p158
      %p497 = pneg %p155
      %p498 = pneg %p179
      %p499 = pneg %p176
      %p500 = pneg %p200
      %p501 = pneg %p197
      %p502 = pneg %p221
      %p503 = pneg %p218
      %p504 = pneg %p242
      %p505 = pneg %p239
      %p506 = pneg %p263
      %p507 = pneg %p260
      %p508 = pneg %p284
      %p509 = pneg %p281
      %p510 = pneg %p305
      %p511 = pneg %p302
      %p512 = pneg %p326
      %p513 = pneg %p323
      %p514 = pneg %p347
      %p515 = pneg %p344
      %p516 = pneg %p368
      %p517 = pneg %p365
      %p518 = pneg %p394
      %p519 = pneg %p391
      %p520 = scmp.lt.s32.totalorder %s27, 1
      %s521 = scalar_select %p520, %s27, 1
      %s522 = smul.addr %s521, 8
      %s523 = smul.addr %s522, 8
      %s524 = scalar_lea.vmem %s16, %s523
      %p525 = scmp.lt.s32.totalorder %s27, 1
      %s526 = scalar_select %p525, %s27, 1
      %s527 = smul.addr %s526, 32
      %s528 = smul.addr %s527, 8
      %s529 = scalar_lea.vmem %s0, %s528
      %p530 = scmp.lt.s32.totalorder %s27, 1
      %s531 = scalar_select %p530, %s27, 1
      %s532 = smul.addr %s531, 2
      %s533 = scalar_lea.vmem %s1, %s532
      %p534 = scmp.lt.s32.totalorder %s27, 1
      %s535 = scalar_select %p534, %s27, 1
      %s536 = smul.addr %s535, 8
      %s537 = smul.addr %s536, 8
      %s538 = scalar_lea.vmem %s16, %s537
      %vm539 = vcmask 31744
      %540 = vst.msk [vmem:[#allocation2] sm:$0xff] %vm539, 0.0
      %vm541 = vcmask 25600
      %542 = vst.msk [vmem:[#allocation2 + $0x8] sm:$0x3] %vm541, 0.0
      %543 = vst.msk [vmem:[#allocation2 + $0x10] sm:$0xff] %vm539, 0.0
      %544 = vst.msk [vmem:[#allocation2 + $0x18] sm:$0x3] %vm541, 0.0
      %545 = vst.msk [vmem:[#allocation2 + $0x20] sm:$0xff] %vm539, 0.0
      %546 = vst.msk [vmem:[#allocation2 + $0x28] sm:$0x3] %vm541, 0.0
      %547 = vst.msk [vmem:[#allocation2 + $0x30] sm:$0xff] %vm539, 0.0
      %548 = vst.msk [vmem:[#allocation2 + $0x38] sm:$0x3] %vm541, 0.0
      %549 = vst.msk [vmem:[#allocation2 + $0x40] sm:$0xff] %vm539, 0.0
      %550 = vst.msk [vmem:[#allocation2 + $0x48] sm:$0x3] %vm541, 0.0
      %551 = vst.msk [vmem:[#allocation2 + $0x50] sm:$0xff] %vm539, 0.0
      %552 = vst.msk [vmem:[#allocation2 + $0x58] sm:$0x3] %vm541, 0.0
      %553 = vst.msk [vmem:[#allocation2 + $0x60] sm:$0xff] %vm539, 0.0
      %554 = vst.msk [vmem:[#allocation2 + $0x68] sm:$0x3] %vm541, 0.0
      %555 = vst.msk [vmem:[#allocation2 + $0x70] sm:$0xff] %vm539, 0.0
      %556 = vst.msk [vmem:[#allocation2 + $0x78] sm:$0x3] %vm541, 0.0
      %557 = vst.msk [vmem:[#allocation2 + $0x80] sm:$0xff] %vm539, 0.0
      %558 = vst.msk [vmem:[#allocation2 + $0x88] sm:$0x3] %vm541, 0.0
      %559 = vst.msk [vmem:[#allocation2 + $0x90] sm:$0xff] %vm539, 0.0
      %560 = vst.msk [vmem:[#allocation2 + $0x98] sm:$0x3] %vm541, 0.0
      %vm561 = vcmask 64512
      %562 = vst.msk [vmem:[#allocation3] sm:$0xff] %vm561, 0.0
      %vm563 = vcmask 58368
      %564 = vst.msk [vmem:[#allocation3 + $0x8] sm:$0x3] %vm563, 0.0
      %565 = vst.msk [vmem:[#allocation3 + $0x10] sm:$0xff] %vm561, 0.0
      %566 = vst.msk [vmem:[#allocation3 + $0x18] sm:$0x3] %vm563, 0.0
      %567 = vst.msk [vmem:[#allocation3 + $0x20] sm:$0xff] %vm561, 0.0
      %568 = vst.msk [vmem:[#allocation3 + $0x28] sm:$0x3] %vm563, 0.0
      %569 = vst.msk [vmem:[#allocation3 + $0x30] sm:$0xff] %vm561, 0.0
      %570 = vst.msk [vmem:[#allocation3 + $0x38] sm:$0x3] %vm563, 0.0
      %571 = vst.msk [vmem:[#allocation3 + $0x40] sm:$0xff] %vm561, 0.0
      %572 = vst.msk [vmem:[#allocation3 + $0x48] sm:$0x3] %vm563, 0.0
      %573 = vst.msk [vmem:[#allocation3 + $0x50] sm:$0xff] %vm561, 0.0
      %574 = vst.msk [vmem:[#allocation3 + $0x58] sm:$0x3] %vm563, 0.0
      %575 = vst.msk [vmem:[#allocation3 + $0x60] sm:$0xff] %vm561, 0.0
      %576 = vst.msk [vmem:[#allocation3 + $0x68] sm:$0x3] %vm563, 0.0
      %577 = vst.msk [vmem:[#allocation3 + $0x70] sm:$0xff] %vm561, 0.0
      %578 = vst.msk [vmem:[#allocation3 + $0x78] sm:$0x3] %vm563, 0.0
      %579 = vst.msk [vmem:[#allocation3 + $0x80] sm:$0xff] %vm561, 0.0
      %580 = vst.msk [vmem:[#allocation3 + $0x88] sm:$0x3] %vm563, 0.0
      %581 = vst.msk [vmem:[#allocation3 + $0x90] sm:$0xff] %vm561, 0.0
      %582 = vst.msk [vmem:[#allocation3 + $0x98] sm:$0x3] %vm563, 0.0
      %v583 = vld [vmem:[%s529] sm:$0xff]
      %v584 = vld [vmem:[%s529 + $0x8] sm:$0xff]
      %v585 = vld [vmem:[%s529 + $0x10] sm:$0xff]
      %v586 = vld [vmem:[%s529 + $0x18] sm:$0xff]
      %v587 = vld [vmem:[%s529 + $0x20] sm:$0xff]
      %v588 = vld [vmem:[%s529 + $0x28] sm:$0xff]
      %v589 = vld [vmem:[%s529 + $0x30] sm:$0xff]
      %v590 = vld [vmem:[%s529 + $0x38] sm:$0xff]
      %v591 = vld [vmem:[%s529 + $0x40] sm:$0xff]
      %v592 = vld [vmem:[%s529 + $0x48] sm:$0xff]
      %v593 = vld [vmem:[%s529 + $0x50] sm:$0xff]
      %v594 = vld [vmem:[%s529 + $0x58] sm:$0xff]
      %v595 = vld [vmem:[%s529 + $0x60] sm:$0xff]
      %v596 = vld [vmem:[%s529 + $0x68] sm:$0xff]
      %v597 = vld [vmem:[%s529 + $0x70] sm:$0xff]
      %v598 = vld [vmem:[%s529 + $0x78] sm:$0xff]
      %v599 = vld [vmem:[%s529 + $0x80] sm:$0xff]
      %v600 = vld [vmem:[%s529 + $0x88] sm:$0xff]
      %v601 = vld [vmem:[%s529 + $0x90] sm:$0xff]
      %v602 = vld [vmem:[%s529 + $0x98] sm:$0xff]
      %v603 = vld [vmem:[%s529 + $0xa0] sm:$0xff]
      %v604 = vld [vmem:[%s529 + $0xa8] sm:$0xff]
      %v605 = vld [vmem:[%s529 + $0xb0] sm:$0xff]
      %v606 = vld [vmem:[%s529 + $0xb8] sm:$0xff]
      %v607 = vld [vmem:[%s529 + $0xc0] sm:$0xff]
      %v608 = vld [vmem:[%s529 + $0xc8] sm:$0xff]
      %v609 = vld [vmem:[%s529 + $0xd0] sm:$0xff]
      %v610 = vld [vmem:[%s529 + $0xd8] sm:$0xff]
      %v611 = vld [vmem:[%s529 + $0xe0] sm:$0xff]
      %v612 = vld [vmem:[%s529 + $0xe8] sm:$0xff]
      %v613 = vld [vmem:[%s529 + $0xf0] sm:$0xff]
      %v614 = vld [vmem:[%s529 + $0xf8] sm:$0xff]
      %v615 = vmax.f32 %v583, %v591
      %v616 = vmax.f32 %v584, %v592
      %v617 = vmax.f32 %v585, %v593
      %v618 = vmax.f32 %v586, %v594
      %v619 = vmax.f32 %v587, %v595
      %v620 = vmax.f32 %v588, %v596
      %v621 = vmax.f32 %v589, %v597
      %v622 = vmax.f32 %v590, %v598
      %v623 = vmax.f32 %v599, %v607
      %v624 = vmax.f32 %v600, %v608
      %v625 = vmax.f32 %v601, %v609
      %v626 = vmax.f32 %v602, %v610
      %v627 = vmax.f32 %v603, %v611
      %v628 = vmax.f32 %v604, %v612
      %v629 = vmax.f32 %v605, %v613
      %v630 = vmax.f32 %v606, %v614
      %v631 = vmax.f32 %v615, %v623
      %v632 = vmax.f32 %v616, %v624
      %v633 = vmax.f32 %v617, %v625
      %v634 = vmax.f32 %v618, %v626
      %v635 = vmax.f32 %v619, %v627
      %v636 = vmax.f32 %v620, %v628
      %v637 = vmax.f32 %v621, %v629
      %v638 = vmax.f32 %v622, %v630
      %s639 = scalar_lea.vmem [#allocation2], 16
      %640 = vst.msk [vmem:[%s639 + $0x1] sm:$0xff] %vm539, %v631
      %641 = vst.msk [vmem:[%s639 + $0x11] sm:$0xff] %vm539, %v632
      %642 = vst.msk [vmem:[%s639 + $0x21] sm:$0xff] %vm539, %v633
      %643 = vst.msk [vmem:[%s639 + $0x31] sm:$0xff] %vm539, %v634
      %644 = vst.msk [vmem:[%s639 + $0x41] sm:$0xff] %vm539, %v635
      %645 = vst.msk [vmem:[%s639 + $0x51] sm:$0xff] %vm539, %v636
      %646 = vst.msk [vmem:[%s639 + $0x61] sm:$0xff] %vm539, %v637
      %647 = vst.msk [vmem:[%s639 + $0x71] sm:$0xff] %vm539, %v638
      %v648 = vld [vmem:[#allocation2] sm:$0xff]
      %v649 = vld [vmem:[#allocation2 + $0x10] sm:$0xff]
      %v650 = vld [vmem:[#allocation2 + $0x20] sm:$0xff]
      %v651 = vld [vmem:[#allocation2 + $0x30] sm:$0xff]
      %v652 = vld [vmem:[#allocation2 + $0x40] sm:$0xff]
      %v653 = vld [vmem:[#allocation2 + $0x50] sm:$0xff]
      %v654 = vld [vmem:[#allocation2 + $0x60] sm:$0xff]
      %v655 = vld [vmem:[#allocation2 + $0x70] sm:$0xff]
      %v656 = vld [vmem:[%s2] sm:$0xf]
      %v657 = vld [vmem:[#allocation2 + $0x1] sm:$0xff]
      %v658 = vld [vmem:[#allocation2 + $0x11] sm:$0xff]
      %v659 = vld [vmem:[#allocation2 + $0x21] sm:$0xff]
      %v660 = vld [vmem:[#allocation2 + $0x31] sm:$0xff]
      %v661 = vld [vmem:[#allocation2 + $0x41] sm:$0xff]
      %v662 = vld [vmem:[#allocation2 + $0x51] sm:$0xff]
      %v663 = vld [vmem:[#allocation2 + $0x61] sm:$0xff]
      %v664 = vld [vmem:[#allocation2 + $0x71] sm:$0xff]
      %s665 = scalar_lea.vmem %s2, 4
      %v666 = vld [vmem:[%s665] sm:$0xf]
      %v668 = vsel %vm539, %v657, 0
      %v671 = vsel %vm539, %v658, 0
      %v674 = vsel %vm539, %v659, 0
      %v677 = vsel %vm539, %v660, 0
      %v680 = vsel %vm539, %v661, 0
      %v683 = vsel %vm539, %v662, 0
      %v686 = vsel %vm539, %v663, 0
      %v689 = vsel %vm539, %v664, 0
      %vm691 = vcmask 1043456
      %v693 = vsel %vm691, %v666, 0
      %695 = vmatprep.subr.mxu0 0.0
      %696 = vmatpush1.msra.mxu0 0.0
      %697 = vmatprep.subr.mxu0 0.0
      %698 = vmatpush1.msra.mxu0 0.0
      %699 = vmatprep.subr.mxu0 0.0
      %700 = vmatpush1.msra.mxu0 0.0
      %701 = vmatprep.subr.mxu0 0.0
      %702 = vmatpush1.msra.mxu0 0.0
      %703 = vmatprep.subr.mxu0 0.0
      %704 = vmatpush1.msra.mxu0 0.0
      %705 = vmatprep.subr.mxu0 0.0
      %706 = vmatpush1.msra.mxu0 0.0
      %707 = vmatprep.subr.mxu0 0.0
      %708 = vmatpush1.msra.mxu0 0.0
      %709 = vmatprep.subr.mxu0 0.0
      %710 = vmatpush1.msra.mxu0 0.0
      %711 = vmatprep.subr.mxu0 0.0
      %712 = vmatpush1.msra.mxu0 0.0
      %713 = vmatprep.subr.mxu0 0.0
      %714 = vmatpush1.msra.mxu0 0.0
      %715 = vmatprep.subr.mxu0 0.0
      %716 = vmatpush1.msra.mxu0 0.0
      %717 = vmatprep.subr.mxu0 0.0
      %718 = vmatpush1.msra.mxu0 0.0
      %719 = vmatprep.subr.mxu0 0.0
      %720 = vmatpush1.msra.mxu0 0.0
      %721 = vmatprep.subr.mxu0 0.0
      %722 = vmatpush1.msra.mxu0 0.0
      %723 = vmatprep.subr.mxu0 0.0
      %724 = vmatpush1.msra.mxu0 0.0
      %725 = vmatprep.subr.mxu0 0.0
      %726 = vmatpush1.msra.mxu0 %v693
      %727 = vmatprep.subr.mxu0 0.0
      %728 = vmatpush2.msra.mxu0 0.0
      %729 = vmatprep.subr.mxu0 0.0
      %730 = vmatpush2.msra.mxu0 0.0
      %731 = vmatprep.subr.mxu0 0.0
      %732 = vmatpush2.msra.mxu0 0.0
      %733 = vmatprep.subr.mxu0 0.0
      %734 = vmatpush2.msra.mxu0 0.0
      %735 = vmatprep.subr.mxu0 0.0
      %736 = vmatpush2.msra.mxu0 0.0
      %737 = vmatprep.subr.mxu0 0.0
      %738 = vmatpush2.msra.mxu0 0.0
      %739 = vmatprep.subr.mxu0 0.0
      %740 = vmatpush2.msra.mxu0 0.0
      %741 = vmatprep.subr.mxu0 0.0
      %742 = vmatpush2.msra.mxu0 0.0
      %743 = vmatprep.subr.mxu0 0.0
      %744 = vmatpush2.msra.mxu0 0.0
      %745 = vmatprep.subr.mxu0 0.0
      %746 = vmatpush2.msra.mxu0 0.0
      %747 = vmatprep.subr.mxu0 0.0
      %748 = vmatpush2.msra.mxu0 0.0
      %749 = vmatprep.subr.mxu0 0.0
      %750 = vmatpush2.msra.mxu0 0.0
      %751 = vmatprep.subr.mxu0 0.0
      %752 = vmatpush2.msra.mxu0 0.0
      %753 = vmatprep.subr.mxu0 0.0
      %754 = vmatpush2.msra.mxu0 0.0
      %755 = vmatprep.subr.mxu0 0.0
      %756 = vmatpush2.msra.mxu0 0.0
      %757 = vmatprep.subr.mxu0 0.0
      %758 = vmatpush2.msra.mxu0 0.0
      %759 = vmatprep.mubr.f32.mxu0 0.0
      %760 = vmatmul.mubr.f32.gmra.mxu0 %v668
      %v761 = vpop.f32.mrf.mxu0
      %v762 = vadd.f32 0.0, %v761
      %v763 = vpop.f32.mrf.mxu0
      %764 = vmatprep.mubr.f32.mxu0 0.0
      %765 = vmatmul.mubr.f32.gmra.mxu0 %v671
      %v766 = vpop.f32.mrf.mxu0
      %v767 = vadd.f32 0.0, %v766
      %v768 = vpop.f32.mrf.mxu0
      %769 = vmatprep.mubr.f32.mxu0 0.0
      %770 = vmatmul.mubr.f32.gmra.mxu0 %v674
      %v771 = vpop.f32.mrf.mxu0
      %v772 = vadd.f32 0.0, %v771
      %v773 = vpop.f32.mrf.mxu0
      %774 = vmatprep.mubr.f32.mxu0 0.0
      %775 = vmatmul.mubr.f32.gmra.mxu0 %v677
      %v776 = vpop.f32.mrf.mxu0
      %v777 = vadd.f32 0.0, %v776
      %v778 = vpop.f32.mrf.mxu0
      %779 = vmatprep.mubr.f32.mxu0 0.0
      %780 = vmatmul.mubr.f32.gmra.mxu0 %v680
      %v781 = vpop.f32.mrf.mxu0
      %v782 = vadd.f32 0.0, %v781
      %v783 = vpop.f32.mrf.mxu0
      %784 = vmatprep.mubr.f32.mxu0 0.0
      %785 = vmatmul.mubr.f32.gmra.mxu0 %v683
      %v786 = vpop.f32.mrf.mxu0
      %v787 = vadd.f32 0.0, %v786
      %v788 = vpop.f32.mrf.mxu0
      %789 = vmatprep.mubr.f32.mxu0 0.0
      %790 = vmatmul.mubr.f32.gmra.mxu0 %v686
      %v791 = vpop.f32.mrf.mxu0
      %v792 = vadd.f32 0.0, %v791
      %v793 = vpop.f32.mrf.mxu0
      %794 = vmatprep.mubr.f32.mxu0 0.0
      %795 = vmatmul.mubr.f32.gmra.mxu0 %v689
      %v796 = vpop.f32.mrf.mxu0
      %v797 = vadd.f32 0.0, %v796
      %v798 = vpop.f32.mrf.mxu0
      %799 = vdwg.mxu0
      %v801 = vsel %vm539, %v648, 0
      %v804 = vsel %vm539, %v649, 0
      %v807 = vsel %vm539, %v650, 0
      %v810 = vsel %vm539, %v651, 0
      %v813 = vsel %vm539, %v652, 0
      %v816 = vsel %vm539, %v653, 0
      %v819 = vsel %vm539, %v654, 0
      %v822 = vsel %vm539, %v655, 0
      %v825 = vsel %vm691, %v656, 0
      %827 = vmatprep.subr.mxu0 0.0
      %828 = vmatpush1.msra.mxu0 0.0
      %829 = vmatprep.subr.mxu0 0.0
      %830 = vmatpush1.msra.mxu0 0.0
      %831 = vmatprep.subr.mxu0 0.0
      %832 = vmatpush1.msra.mxu0 0.0
      %833 = vmatprep.subr.mxu0 0.0
      %834 = vmatpush1.msra.mxu0 0.0
      %835 = vmatprep.subr.mxu0 0.0
      %836 = vmatpush1.msra.mxu0 0.0
      %837 = vmatprep.subr.mxu0 0.0
      %838 = vmatpush1.msra.mxu0 0.0
      %839 = vmatprep.subr.mxu0 0.0
      %840 = vmatpush1.msra.mxu0 0.0
      %841 = vmatprep.subr.mxu0 0.0
      %842 = vmatpush1.msra.mxu0 0.0
      %843 = vmatprep.subr.mxu0 0.0
      %844 = vmatpush1.msra.mxu0 0.0
      %845 = vmatprep.subr.mxu0 0.0
      %846 = vmatpush1.msra.mxu0 0.0
      %847 = vmatprep.subr.mxu0 0.0
      %848 = vmatpush1.msra.mxu0 0.0
      %849 = vmatprep.subr.mxu0 0.0
      %850 = vmatpush1.msra.mxu0 0.0
      %851 = vmatprep.subr.mxu0 0.0
      %852 = vmatpush1.msra.mxu0 0.0
      %853 = vmatprep.subr.mxu0 0.0
      %854 = vmatpush1.msra.mxu0 0.0
      %855 = vmatprep.subr.mxu0 0.0
      %856 = vmatpush1.msra.mxu0 0.0
      %857 = vmatprep.subr.mxu0 0.0
      %858 = vmatpush1.msra.mxu0 %v825
      %859 = vmatprep.subr.mxu0 0.0
      %860 = vmatpush2.msra.mxu0 0.0
      %861 = vmatprep.subr.mxu0 0.0
      %862 = vmatpush2.msra.mxu0 0.0
      %863 = vmatprep.subr.mxu0 0.0
      %864 = vmatpush2.msra.mxu0 0.0
      %865 = vmatprep.subr.mxu0 0.0
      %866 = vmatpush2.msra.mxu0 0.0
      %867 = vmatprep.subr.mxu0 0.0
      %868 = vmatpush2.msra.mxu0 0.0
      %869 = vmatprep.subr.mxu0 0.0
      %870 = vmatpush2.msra.mxu0 0.0
      %871 = vmatprep.subr.mxu0 0.0
      %872 = vmatpush2.msra.mxu0 0.0
      %873 = vmatprep.subr.mxu0 0.0
      %874 = vmatpush2.msra.mxu0 0.0
      %875 = vmatprep.subr.mxu0 0.0
      %876 = vmatpush2.msra.mxu0 0.0
      %877 = vmatprep.subr.mxu0 0.0
      %878 = vmatpush2.msra.mxu0 0.0
      %879 = vmatprep.subr.mxu0 0.0
      %880 = vmatpush2.msra.mxu0 0.0
      %881 = vmatprep.subr.mxu0 0.0
      %882 = vmatpush2.msra.mxu0 0.0
      %883 = vmatprep.subr.mxu0 0.0
      %884 = vmatpush2.msra.mxu0 0.0
      %885 = vmatprep.subr.mxu0 0.0
      %886 = vmatpush2.msra.mxu0 0.0
      %887 = vmatprep.subr.mxu0 0.0
      %888 = vmatpush2.msra.mxu0 0.0
      %889 = vmatprep.subr.mxu0 0.0
      %890 = vmatpush2.msra.mxu0 0.0
      %891 = vmatprep.mubr.f32.mxu0 0.0
      %892 = vmatmul.mubr.f32.gmra.mxu0 %v801
      %v893 = vpop.f32.mrf.mxu0
      %v894 = vadd.f32 %v762, %v893
      %v895 = vpop.f32.mrf.mxu0
      %896 = vmatprep.mubr.f32.mxu0 0.0
      %897 = vmatmul.mubr.f32.gmra.mxu0 %v804
      %v898 = vpop.f32.mrf.mxu0
      %v899 = vadd.f32 %v767, %v898
      %v900 = vpop.f32.mrf.mxu0
      %901 = vmatprep.mubr.f32.mxu0 0.0
      %902 = vmatmul.mubr.f32.gmra.mxu0 %v807
      %v903 = vpop.f32.mrf.mxu0
      %v904 = vadd.f32 %v772, %v903
      %v905 = vpop.f32.mrf.mxu0
      %906 = vmatprep.mubr.f32.mxu0 0.0
      %907 = vmatmul.mubr.f32.gmra.mxu0 %v810
      %v908 = vpop.f32.mrf.mxu0
      %v909 = vadd.f32 %v777, %v908
      %v910 = vpop.f32.mrf.mxu0
      %911 = vmatprep.mubr.f32.mxu0 0.0
      %912 = vmatmul.mubr.f32.gmra.mxu0 %v813
      %v913 = vpop.f32.mrf.mxu0
      %v914 = vadd.f32 %v782, %v913
      %v915 = vpop.f32.mrf.mxu0
      %916 = vmatprep.mubr.f32.mxu0 0.0
      %917 = vmatmul.mubr.f32.gmra.mxu0 %v816
      %v918 = vpop.f32.mrf.mxu0
      %v919 = vadd.f32 %v787, %v918
      %v920 = vpop.f32.mrf.mxu0
      %921 = vmatprep.mubr.f32.mxu0 0.0
      %922 = vmatmul.mubr.f32.gmra.mxu0 %v819
      %v923 = vpop.f32.mrf.mxu0
      %v924 = vadd.f32 %v792, %v923
      %v925 = vpop.f32.mrf.mxu0
      %926 = vmatprep.mubr.f32.mxu0 0.0
      %927 = vmatmul.mubr.f32.gmra.mxu0 %v822
      %v928 = vpop.f32.mrf.mxu0
      %v929 = vadd.f32 %v797, %v928
      %v930 = vpop.f32.mrf.mxu0
      %931 = vdwg.mxu0
      %v932 = vld [vmem:[#allocation2 + $0x2] sm:$0xff]
      %v933 = vld [vmem:[#allocation2 + $0x12] sm:$0xff]
      %v934 = vld [vmem:[#allocation2 + $0x22] sm:$0xff]
      %v935 = vld [vmem:[#allocation2 + $0x32] sm:$0xff]
      %v936 = vld [vmem:[#allocation2 + $0x42] sm:$0xff]
      %v937 = vld [vmem:[#allocation2 + $0x52] sm:$0xff]
      %v938 = vld [vmem:[#allocation2 + $0x62] sm:$0xff]
      %v939 = vld [vmem:[#allocation2 + $0x72] sm:$0xff]
      %s940 = scalar_lea.vmem %s2, 8
      %v941 = vld [vmem:[%s940] sm:$0xf]
      %v943 = vsel %vm539, %v932, 0
      %v946 = vsel %vm539, %v933, 0
      %v949 = vsel %vm539, %v934, 0
      %v952 = vsel %vm539, %v935, 0
      %v955 = vsel %vm539, %v936, 0
      %v958 = vsel %vm539, %v937, 0
      %v961 = vsel %vm539, %v938, 0
      %v964 = vsel %vm539, %v939, 0
      %v967 = vsel %vm691, %v941, 0
      %969 = vmatprep.subr.mxu0 0.0
      %970 = vmatpush1.msra.mxu0 0.0
      %971 = vmatprep.subr.mxu0 0.0
      %972 = vmatpush1.msra.mxu0 0.0
      %973 = vmatprep.subr.mxu0 0.0
      %974 = vmatpush1.msra.mxu0 0.0
      %975 = vmatprep.subr.mxu0 0.0
      %976 = vmatpush1.msra.mxu0 0.0
      %977 = vmatprep.subr.mxu0 0.0
      %978 = vmatpush1.msra.mxu0 0.0
      %979 = vmatprep.subr.mxu0 0.0
      %980 = vmatpush1.msra.mxu0 0.0
      %981 = vmatprep.subr.mxu0 0.0
      %982 = vmatpush1.msra.mxu0 0.0
      %983 = vmatprep.subr.mxu0 0.0
      %984 = vmatpush1.msra.mxu0 0.0
      %985 = vmatprep.subr.mxu0 0.0
      %986 = vmatpush1.msra.mxu0 0.0
      %987 = vmatprep.subr.mxu0 0.0
      %988 = vmatpush1.msra.mxu0 0.0
      %989 = vmatprep.subr.mxu0 0.0
      %990 = vmatpush1.msra.mxu0 0.0
      %991 = vmatprep.subr.mxu0 0.0
      %992 = vmatpush1.msra.mxu0 0.0
      %993 = vmatprep.subr.mxu0 0.0
      %994 = vmatpush1.msra.mxu0 0.0
      %995 = vmatprep.subr.mxu0 0.0
      %996 = vmatpush1.msra.mxu0 0.0
      %997 = vmatprep.subr.mxu0 0.0
      %998 = vmatpush1.msra.mxu0 0.0
      %999 = vmatprep.subr.mxu0 0.0
      %1000 = vmatpush1.msra.mxu0 %v967
      %1001 = vmatprep.subr.mxu0 0.0
      %1002 = vmatpush2.msra.mxu0 0.0
      %1003 = vmatprep.subr.mxu0 0.0
      %1004 = vmatpush2.msra.mxu0 0.0
      %1005 = vmatprep.subr.mxu0 0.0
      %1006 = vmatpush2.msra.mxu0 0.0
      %1007 = vmatprep.subr.mxu0 0.0
      %1008 = vmatpush2.msra.mxu0 0.0
      %1009 = vmatprep.subr.mxu0 0.0
      %1010 = vmatpush2.msra.mxu0 0.0
      %1011 = vmatprep.subr.mxu0 0.0
      %1012 = vmatpush2.msra.mxu0 0.0
      %1013 = vmatprep.subr.mxu0 0.0
      %1014 = vmatpush2.msra.mxu0 0.0
      %1015 = vmatprep.subr.mxu0 0.0
      %1016 = vmatpush2.msra.mxu0 0.0
      %1017 = vmatprep.subr.mxu0 0.0
      %1018 = vmatpush2.msra.mxu0 0.0
      %1019 = vmatprep.subr.mxu0 0.0
      %1020 = vmatpush2.msra.mxu0 0.0
      %1021 = vmatprep.subr.mxu0 0.0
      %1022 = vmatpush2.msra.mxu0 0.0
      %1023 = vmatprep.subr.mxu0 0.0
      %1024 = vmatpush2.msra.mxu0 0.0
      %1025 = vmatprep.subr.mxu0 0.0
      %1026 = vmatpush2.msra.mxu0 0.0
      %1027 = vmatprep.subr.mxu0 0.0
      %1028 = vmatpush2.msra.mxu0 0.0
      %1029 = vmatprep.subr.mxu0 0.0
      %1030 = vmatpush2.msra.mxu0 0.0
      %1031 = vmatprep.subr.mxu0 0.0
      %1032 = vmatpush2.msra.mxu0 0.0
      %1033 = vmatprep.mubr.f32.mxu0 0.0
      %1034 = vmatmul.mubr.f32.gmra.mxu0 %v943
      %v1035 = vpop.f32.mrf.mxu0
      %v1036 = vadd.f32 0.0, %v1035
      %v1037 = vpop.f32.mrf.mxu0
      %1038 = vmatprep.mubr.f32.mxu0 0.0
      %1039 = vmatmul.mubr.f32.gmra.mxu0 %v946
      %v1040 = vpop.f32.mrf.mxu0
      %v1041 = vadd.f32 0.0, %v1040
      %v1042 = vpop.f32.mrf.mxu0
      %1043 = vmatprep.mubr.f32.mxu0 0.0
      %1044 = vmatmul.mubr.f32.gmra.mxu0 %v949
      %v1045 = vpop.f32.mrf.mxu0
      %v1046 = vadd.f32 0.0, %v1045
      %v1047 = vpop.f32.mrf.mxu0
      %1048 = vmatprep.mubr.f32.mxu0 0.0
      %1049 = vmatmul.mubr.f32.gmra.mxu0 %v952
      %v1050 = vpop.f32.mrf.mxu0
      %v1051 = vadd.f32 0.0, %v1050
      %v1052 = vpop.f32.mrf.mxu0
      %1053 = vmatprep.mubr.f32.mxu0 0.0
      %1054 = vmatmul.mubr.f32.gmra.mxu0 %v955
      %v1055 = vpop.f32.mrf.mxu0
      %v1056 = vadd.f32 0.0, %v1055
      %v1057 = vpop.f32.mrf.mxu0
      %1058 = vmatprep.mubr.f32.mxu0 0.0
      %1059 = vmatmul.mubr.f32.gmra.mxu0 %v958
      %v1060 = vpop.f32.mrf.mxu0
      %v1061 = vadd.f32 0.0, %v1060
      %v1062 = vpop.f32.mrf.mxu0
      %1063 = vmatprep.mubr.f32.mxu0 0.0
      %1064 = vmatmul.mubr.f32.gmra.mxu0 %v961
      %v1065 = vpop.f32.mrf.mxu0
      %v1066 = vadd.f32 0.0, %v1065
      %v1067 = vpop.f32.mrf.mxu0
      %1068 = vmatprep.mubr.f32.mxu0 0.0
      %1069 = vmatmul.mubr.f32.gmra.mxu0 %v964
      %v1070 = vpop.f32.mrf.mxu0
      %v1071 = vadd.f32 0.0, %v1070
      %v1072 = vpop.f32.mrf.mxu0
      %1073 = vdwg.mxu0
      %v1074 = vadd.f32 %v894, %v1036
      %v1075 = vadd.f32 %v899, %v1041
      %v1076 = vadd.f32 %v904, %v1046
      %v1077 = vadd.f32 %v909, %v1051
      %v1078 = vadd.f32 %v914, %v1056
      %v1079 = vadd.f32 %v919, %v1061
      %v1080 = vadd.f32 %v924, %v1066
      %v1081 = vadd.f32 %v929, %v1071
      %v1082 = vld [vmem:[%s639] sm:$0xff]
      %v1083 = vld [vmem:[%s639 + $0x10] sm:$0xff]
      %v1084 = vld [vmem:[%s639 + $0x20] sm:$0xff]
      %v1085 = vld [vmem:[%s639 + $0x30] sm:$0xff]
      %v1086 = vld [vmem:[%s639 + $0x40] sm:$0xff]
      %v1087 = vld [vmem:[%s639 + $0x50] sm:$0xff]
      %v1088 = vld [vmem:[%s639 + $0x60] sm:$0xff]
      %v1089 = vld [vmem:[%s639 + $0x70] sm:$0xff]
      %s1090 = scalar_lea.vmem %s2, 12
      %v1091 = vld [vmem:[%s1090] sm:$0xf]
      %v1093 = vsel %vm539, %v1082, 0
      %v1096 = vsel %vm539, %v1083, 0
      %v1099 = vsel %vm539, %v1084, 0
      %v1102 = vsel %vm539, %v1085, 0
      %v1105 = vsel %vm539, %v1086, 0
      %v1108 = vsel %vm539, %v1087, 0
      %v1111 = vsel %vm539, %v1088, 0
      %v1114 = vsel %vm539, %v1089, 0
      %v1117 = vsel %vm691, %v1091, 0
      %1119 = vmatprep.subr.mxu0 0.0
      %1120 = vmatpush1.msra.mxu0 0.0
      %1121 = vmatprep.subr.mxu0 0.0
      %1122 = vmatpush1.msra.mxu0 0.0
      %1123 = vmatprep.subr.mxu0 0.0
      %1124 = vmatpush1.msra.mxu0 0.0
      %1125 = vmatprep.subr.mxu0 0.0
      %1126 = vmatpush1.msra.mxu0 0.0
      %1127 = vmatprep.subr.mxu0 0.0
      %1128 = vmatpush1.msra.mxu0 0.0
      %1129 = vmatprep.subr.mxu0 0.0
      %1130 = vmatpush1.msra.mxu0 0.0
      %1131 = vmatprep.subr.mxu0 0.0
      %1132 = vmatpush1.msra.mxu0 0.0
      %1133 = vmatprep.subr.mxu0 0.0
      %1134 = vmatpush1.msra.mxu0 0.0
      %1135 = vmatprep.subr.mxu0 0.0
      %1136 = vmatpush1.msra.mxu0 0.0
      %1137 = vmatprep.subr.mxu0 0.0
      %1138 = vmatpush1.msra.mxu0 0.0
      %1139 = vmatprep.subr.mxu0 0.0
      %1140 = vmatpush1.msra.mxu0 0.0
      %1141 = vmatprep.subr.mxu0 0.0
      %1142 = vmatpush1.msra.mxu0 0.0
      %1143 = vmatprep.subr.mxu0 0.0
      %1144 = vmatpush1.msra.mxu0 0.0
      %1145 = vmatprep.subr.mxu0 0.0
      %1146 = vmatpush1.msra.mxu0 0.0
      %1147 = vmatprep.subr.mxu0 0.0
      %1148 = vmatpush1.msra.mxu0 0.0
      %1149 = vmatprep.subr.mxu0 0.0
      %1150 = vmatpush1.msra.mxu0 %v1117
      %1151 = vmatprep.subr.mxu0 0.0
      %1152 = vmatpush2.msra.mxu0 0.0
      %1153 = vmatprep.subr.mxu0 0.0
      %1154 = vmatpush2.msra.mxu0 0.0
      %1155 = vmatprep.subr.mxu0 0.0
      %1156 = vmatpush2.msra.mxu0 0.0
      %1157 = vmatprep.subr.mxu0 0.0
      %1158 = vmatpush2.msra.mxu0 0.0
      %1159 = vmatprep.subr.mxu0 0.0
      %1160 = vmatpush2.msra.mxu0 0.0
      %1161 = vmatprep.subr.mxu0 0.0
      %1162 = vmatpush2.msra.mxu0 0.0
      %1163 = vmatprep.subr.mxu0 0.0
      %1164 = vmatpush2.msra.mxu0 0.0
      %1165 = vmatprep.subr.mxu0 0.0
      %1166 = vmatpush2.msra.mxu0 0.0
      %1167 = vmatprep.subr.mxu0 0.0
      %1168 = vmatpush2.msra.mxu0 0.0
      %1169 = vmatprep.subr.mxu0 0.0
      %1170 = vmatpush2.msra.mxu0 0.0
      %1171 = vmatprep.subr.mxu0 0.0
      %1172 = vmatpush2.msra.mxu0 0.0
      %1173 = vmatprep.subr.mxu0 0.0
      %1174 = vmatpush2.msra.mxu0 0.0
      %1175 = vmatprep.subr.mxu0 0.0
      %1176 = vmatpush2.msra.mxu0 0.0
      %1177 = vmatprep.subr.mxu0 0.0
      %1178 = vmatpush2.msra.mxu0 0.0
      %1179 = vmatprep.subr.mxu0 0.0
      %1180 = vmatpush2.msra.mxu0 0.0
      %1181 = vmatprep.subr.mxu0 0.0
      %1182 = vmatpush2.msra.mxu0 0.0
      %1183 = vmatprep.mubr.f32.mxu0 0.0
      %1184 = vmatmul.mubr.f32.gmra.mxu0 %v1093
      %v1185 = vpop.f32.mrf.mxu0
      %v1186 = vadd.f32 0.0, %v1185
      %v1187 = vpop.f32.mrf.mxu0
      %1188 = vmatprep.mubr.f32.mxu0 0.0
      %1189 = vmatmul.mubr.f32.gmra.mxu0 %v1096
      %v1190 = vpop.f32.mrf.mxu0
      %v1191 = vadd.f32 0.0, %v1190
      %v1192 = vpop.f32.mrf.mxu0
      %1193 = vmatprep.mubr.f32.mxu0 0.0
      %1194 = vmatmul.mubr.f32.gmra.mxu0 %v1099
      %v1195 = vpop.f32.mrf.mxu0
      %v1196 = vadd.f32 0.0, %v1195
      %v1197 = vpop.f32.mrf.mxu0
      %1198 = vmatprep.mubr.f32.mxu0 0.0
      %1199 = vmatmul.mubr.f32.gmra.mxu0 %v1102
      %v1200 = vpop.f32.mrf.mxu0
      %v1201 = vadd.f32 0.0, %v1200
      %v1202 = vpop.f32.mrf.mxu0
      %1203 = vmatprep.mubr.f32.mxu0 0.0
      %1204 = vmatmul.mubr.f32.gmra.mxu0 %v1105
      %v1205 = vpop.f32.mrf.mxu0
      %v1206 = vadd.f32 0.0, %v1205
      %v1207 = vpop.f32.mrf.mxu0
      %1208 = vmatprep.mubr.f32.mxu0 0.0
      %1209 = vmatmul.mubr.f32.gmra.mxu0 %v1108
      %v1210 = vpop.f32.mrf.mxu0
      %v1211 = vadd.f32 0.0, %v1210
      %v1212 = vpop.f32.mrf.mxu0
      %1213 = vmatprep.mubr.f32.mxu0 0.0
      %1214 = vmatmul.mubr.f32.gmra.mxu0 %v1111
      %v1215 = vpop.f32.mrf.mxu0
      %v1216 = vadd.f32 0.0, %v1215
      %v1217 = vpop.f32.mrf.mxu0
      %1218 = vmatprep.mubr.f32.mxu0 0.0
      %1219 = vmatmul.mubr.f32.gmra.mxu0 %v1114
      %v1220 = vpop.f32.mrf.mxu0
      %v1221 = vadd.f32 0.0, %v1220
      %v1222 = vpop.f32.mrf.mxu0
      %1223 = vdwg.mxu0
      %v1224 = vadd.f32 %v1074, %v1186
      %v1225 = vadd.f32 %v1075, %v1191
      %v1226 = vadd.f32 %v1076, %v1196
      %v1227 = vadd.f32 %v1077, %v1201
      %v1228 = vadd.f32 %v1078, %v1206
      %v1229 = vadd.f32 %v1079, %v1211
      %v1230 = vadd.f32 %v1080, %v1216
      %v1231 = vadd.f32 %v1081, %v1221
      %s1232 = scalar_lea.vmem %s2, 16
      %v1233 = vld [vmem:[%s1232] sm:$0xf]
      %v1235 = vsel %vm539, %v631, 0
      %v1238 = vsel %vm539, %v632, 0
      %v1241 = vsel %vm539, %v633, 0
      %v1244 = vsel %vm539, %v634, 0
      %v1247 = vsel %vm539, %v635, 0
      %v1250 = vsel %vm539, %v636, 0
      %v1253 = vsel %vm539, %v637, 0
      %v1256 = vsel %vm539, %v638, 0
      %v1259 = vsel %vm691, %v1233, 0
      %1261 = vmatprep.subr.mxu0 0.0
      %1262 = vmatpush1.msra.mxu0 0.0
      %1263 = vmatprep.subr.mxu0 0.0
      %1264 = vmatpush1.msra.mxu0 0.0
      %1265 = vmatprep.subr.mxu0 0.0
      %1266 = vmatpush1.msra.mxu0 0.0
      %1267 = vmatprep.subr.mxu0 0.0
      %1268 = vmatpush1.msra.mxu0 0.0
      %1269 = vmatprep.subr.mxu0 0.0
      %1270 = vmatpush1.msra.mxu0 0.0
      %1271 = vmatprep.subr.mxu0 0.0
      %1272 = vmatpush1.msra.mxu0 0.0
      %1273 = vmatprep.subr.mxu0 0.0
      %1274 = vmatpush1.msra.mxu0 0.0
      %1275 = vmatprep.subr.mxu0 0.0
      %1276 = vmatpush1.msra.mxu0 0.0
      %1277 = vmatprep.subr.mxu0 0.0
      %1278 = vmatpush1.msra.mxu0 0.0
      %1279 = vmatprep.subr.mxu0 0.0
      %1280 = vmatpush1.msra.mxu0 0.0
      %1281 = vmatprep.subr.mxu0 0.0
      %1282 = vmatpush1.msra.mxu0 0.0
      %1283 = vmatprep.subr.mxu0 0.0
      %1284 = vmatpush1.msra.mxu0 0.0
      %1285 = vmatprep.subr.mxu0 0.0
      %1286 = vmatpush1.msra.mxu0 0.0
      %1287 = vmatprep.subr.mxu0 0.0
      %1288 = vmatpush1.msra.mxu0 0.0
      %1289 = vmatprep.subr.mxu0 0.0
      %1290 = vmatpush1.msra.mxu0 0.0
      %1291 = vmatprep.subr.mxu0 0.0
      %1292 = vmatpush1.msra.mxu0 %v1259
      %1293 = vmatprep.subr.mxu0 0.0
      %1294 = vmatpush2.msra.mxu0 0.0
      %1295 = vmatprep.subr.mxu0 0.0
      %1296 = vmatpush2.msra.mxu0 0.0
      %1297 = vmatprep.subr.mxu0 0.0
      %1298 = vmatpush2.msra.mxu0 0.0
      %1299 = vmatprep.subr.mxu0 0.0
      %1300 = vmatpush2.msra.mxu0 0.0
      %1301 = vmatprep.subr.mxu0 0.0
      %1302 = vmatpush2.msra.mxu0 0.0
      %1303 = vmatprep.subr.mxu0 0.0
      %1304 = vmatpush2.msra.mxu0 0.0
      %1305 = vmatprep.subr.mxu0 0.0
      %1306 = vmatpush2.msra.mxu0 0.0
      %1307 = vmatprep.subr.mxu0 0.0
      %1308 = vmatpush2.msra.mxu0 0.0
      %1309 = vmatprep.subr.mxu0 0.0
      %1310 = vmatpush2.msra.mxu0 0.0
      %1311 = vmatprep.subr.mxu0 0.0
      %1312 = vmatpush2.msra.mxu0 0.0
      %1313 = vmatprep.subr.mxu0 0.0
      %1314 = vmatpush2.msra.mxu0 0.0
      %1315 = vmatprep.subr.mxu0 0.0
      %1316 = vmatpush2.msra.mxu0 0.0
      %1317 = vmatprep.subr.mxu0 0.0
      %1318 = vmatpush2.msra.mxu0 0.0
      %1319 = vmatprep.subr.mxu0 0.0
      %1320 = vmatpush2.msra.mxu0 0.0
      %1321 = vmatprep.subr.mxu0 0.0
      %1322 = vmatpush2.msra.mxu0 0.0
      %1323 = vmatprep.subr.mxu0 0.0
      %1324 = vmatpush2.msra.mxu0 0.0
      %1325 = vmatprep.mubr.f32.mxu0 0.0
      %1326 = vmatmul.mubr.f32.gmra.mxu0 %v1235
      %v1327 = vpop.f32.mrf.mxu0
      %v1328 = vadd.f32 0.0, %v1327
      %v1329 = vpop.f32.mrf.mxu0
      %1330 = vmatprep.mubr.f32.mxu0 0.0
      %1331 = vmatmul.mubr.f32.gmra.mxu0 %v1238
      %v1332 = vpop.f32.mrf.mxu0
      %v1333 = vadd.f32 0.0, %v1332
      %v1334 = vpop.f32.mrf.mxu0
      %1335 = vmatprep.mubr.f32.mxu0 0.0
      %1336 = vmatmul.mubr.f32.gmra.mxu0 %v1241
      %v1337 = vpop.f32.mrf.mxu0
      %v1338 = vadd.f32 0.0, %v1337
      %v1339 = vpop.f32.mrf.mxu0
      %1340 = vmatprep.mubr.f32.mxu0 0.0
      %1341 = vmatmul.mubr.f32.gmra.mxu0 %v1244
      %v1342 = vpop.f32.mrf.mxu0
      %v1343 = vadd.f32 0.0, %v1342
      %v1344 = vpop.f32.mrf.mxu0
      %1345 = vmatprep.mubr.f32.mxu0 0.0
      %1346 = vmatmul.mubr.f32.gmra.mxu0 %v1247
      %v1347 = vpop.f32.mrf.mxu0
      %v1348 = vadd.f32 0.0, %v1347
      %v1349 = vpop.f32.mrf.mxu0
      %1350 = vmatprep.mubr.f32.mxu0 0.0
      %1351 = vmatmul.mubr.f32.gmra.mxu0 %v1250
      %v1352 = vpop.f32.mrf.mxu0
      %v1353 = vadd.f32 0.0, %v1352
      %v1354 = vpop.f32.mrf.mxu0
      %1355 = vmatprep.mubr.f32.mxu0 0.0
      %1356 = vmatmul.mubr.f32.gmra.mxu0 %v1253
      %v1357 = vpop.f32.mrf.mxu0
      %v1358 = vadd.f32 0.0, %v1357
      %v1359 = vpop.f32.mrf.mxu0
      %1360 = vmatprep.mubr.f32.mxu0 0.0
      %1361 = vmatmul.mubr.f32.gmra.mxu0 %v1256
      %v1362 = vpop.f32.mrf.mxu0
      %v1363 = vadd.f32 0.0, %v1362
      %v1364 = vpop.f32.mrf.mxu0
      %1365 = vdwg.mxu0
      %v1366 = vadd.f32 %v1224, %v1328
      %v1367 = vadd.f32 %v1225, %v1333
      %v1368 = vadd.f32 %v1226, %v1338
      %v1369 = vadd.f32 %v1227, %v1343
      %v1370 = vadd.f32 %v1228, %v1348
      %v1371 = vadd.f32 %v1229, %v1353
      %v1372 = vadd.f32 %v1230, %v1358
      %v1373 = vadd.f32 %v1231, %v1363
      %v1374 = vld [vmem:[%s639 + $0x2] sm:$0xff]
      %v1375 = vld [vmem:[%s639 + $0x12] sm:$0xff]
      %v1376 = vld [vmem:[%s639 + $0x22] sm:$0xff]
      %v1377 = vld [vmem:[%s639 + $0x32] sm:$0xff]
      %v1378 = vld [vmem:[%s639 + $0x42] sm:$0xff]
      %v1379 = vld [vmem:[%s639 + $0x52] sm:$0xff]
      %v1380 = vld [vmem:[%s639 + $0x62] sm:$0xff]
      %v1381 = vld [vmem:[%s639 + $0x72] sm:$0xff]
      %s1382 = scalar_lea.vmem %s2, 20
      %v1383 = vld [vmem:[%s1382] sm:$0xf]
      %v1385 = vsel %vm539, %v1374, 0
      %v1388 = vsel %vm539, %v1375, 0
      %v1391 = vsel %vm539, %v1376, 0
      %v1394 = vsel %vm539, %v1377, 0
      %v1397 = vsel %vm539, %v1378, 0
      %v1400 = vsel %vm539, %v1379, 0
      %v1403 = vsel %vm539, %v1380, 0
      %v1406 = vsel %vm539, %v1381, 0
      %v1409 = vsel %vm691, %v1383, 0
      %1411 = vmatprep.subr.mxu0 0.0
      %1412 = vmatpush1.msra.mxu0 0.0
      %1413 = vmatprep.subr.mxu0 0.0
      %1414 = vmatpush1.msra.mxu0 0.0
      %1415 = vmatprep.subr.mxu0 0.0
      %1416 = vmatpush1.msra.mxu0 0.0
      %1417 = vmatprep.subr.mxu0 0.0
      %1418 = vmatpush1.msra.mxu0 0.0
      %1419 = vmatprep.subr.mxu0 0.0
      %1420 = vmatpush1.msra.mxu0 0.0
      %1421 = vmatprep.subr.mxu0 0.0
      %1422 = vmatpush1.msra.mxu0 0.0
      %1423 = vmatprep.subr.mxu0 0.0
      %1424 = vmatpush1.msra.mxu0 0.0
      %1425 = vmatprep.subr.mxu0 0.0
      %1426 = vmatpush1.msra.mxu0 0.0
      %1427 = vmatprep.subr.mxu0 0.0
      %1428 = vmatpush1.msra.mxu0 0.0
      %1429 = vmatprep.subr.mxu0 0.0
      %1430 = vmatpush1.msra.mxu0 0.0
      %1431 = vmatprep.subr.mxu0 0.0
      %1432 = vmatpush1.msra.mxu0 0.0
      %1433 = vmatprep.subr.mxu0 0.0
      %1434 = vmatpush1.msra.mxu0 0.0
      %1435 = vmatprep.subr.mxu0 0.0
      %1436 = vmatpush1.msra.mxu0 0.0
      %1437 = vmatprep.subr.mxu0 0.0
      %1438 = vmatpush1.msra.mxu0 0.0
      %1439 = vmatprep.subr.mxu0 0.0
      %1440 = vmatpush1.msra.mxu0 0.0
      %1441 = vmatprep.subr.mxu0 0.0
      %1442 = vmatpush1.msra.mxu0 %v1409
      %1443 = vmatprep.subr.mxu0 0.0
      %1444 = vmatpush2.msra.mxu0 0.0
      %1445 = vmatprep.subr.mxu0 0.0
      %1446 = vmatpush2.msra.mxu0 0.0
      %1447 = vmatprep.subr.mxu0 0.0
      %1448 = vmatpush2.msra.mxu0 0.0
      %1449 = vmatprep.subr.mxu0 0.0
      %1450 = vmatpush2.msra.mxu0 0.0
      %1451 = vmatprep.subr.mxu0 0.0
      %1452 = vmatpush2.msra.mxu0 0.0
      %1453 = vmatprep.subr.mxu0 0.0
      %1454 = vmatpush2.msra.mxu0 0.0
      %1455 = vmatprep.subr.mxu0 0.0
      %1456 = vmatpush2.msra.mxu0 0.0
      %1457 = vmatprep.subr.mxu0 0.0
      %1458 = vmatpush2.msra.mxu0 0.0
      %1459 = vmatprep.subr.mxu0 0.0
      %1460 = vmatpush2.msra.mxu0 0.0
      %1461 = vmatprep.subr.mxu0 0.0
      %1462 = vmatpush2.msra.mxu0 0.0
      %1463 = vmatprep.subr.mxu0 0.0
      %1464 = vmatpush2.msra.mxu0 0.0
      %1465 = vmatprep.subr.mxu0 0.0
      %1466 = vmatpush2.msra.mxu0 0.0
      %1467 = vmatprep.subr.mxu0 0.0
      %1468 = vmatpush2.msra.mxu0 0.0
      %1469 = vmatprep.subr.mxu0 0.0
      %1470 = vmatpush2.msra.mxu0 0.0
      %1471 = vmatprep.subr.mxu0 0.0
      %1472 = vmatpush2.msra.mxu0 0.0
      %1473 = vmatprep.subr.mxu0 0.0
      %1474 = vmatpush2.msra.mxu0 0.0
      %1475 = vmatprep.mubr.f32.mxu0 0.0
      %1476 = vmatmul.mubr.f32.gmra.mxu0 %v1385
      %v1477 = vpop.f32.mrf.mxu0
      %v1478 = vadd.f32 0.0, %v1477
      %v1479 = vpop.f32.mrf.mxu0
      %1480 = vmatprep.mubr.f32.mxu0 0.0
      %1481 = vmatmul.mubr.f32.gmra.mxu0 %v1388
      %v1482 = vpop.f32.mrf.mxu0
      %v1483 = vadd.f32 0.0, %v1482
      %v1484 = vpop.f32.mrf.mxu0
      %1485 = vmatprep.mubr.f32.mxu0 0.0
      %1486 = vmatmul.mubr.f32.gmra.mxu0 %v1391
      %v1487 = vpop.f32.mrf.mxu0
      %v1488 = vadd.f32 0.0, %v1487
      %v1489 = vpop.f32.mrf.mxu0
      %1490 = vmatprep.mubr.f32.mxu0 0.0
      %1491 = vmatmul.mubr.f32.gmra.mxu0 %v1394
      %v1492 = vpop.f32.mrf.mxu0
      %v1493 = vadd.f32 0.0, %v1492
      %v1494 = vpop.f32.mrf.mxu0
      %1495 = vmatprep.mubr.f32.mxu0 0.0
      %1496 = vmatmul.mubr.f32.gmra.mxu0 %v1397
      %v1497 = vpop.f32.mrf.mxu0
      %v1498 = vadd.f32 0.0, %v1497
      %v1499 = vpop.f32.mrf.mxu0
      %1500 = vmatprep.mubr.f32.mxu0 0.0
      %1501 = vmatmul.mubr.f32.gmra.mxu0 %v1400
      %v1502 = vpop.f32.mrf.mxu0
      %v1503 = vadd.f32 0.0, %v1502
      %v1504 = vpop.f32.mrf.mxu0
      %1505 = vmatprep.mubr.f32.mxu0 0.0
      %1506 = vmatmul.mubr.f32.gmra.mxu0 %v1403
      %v1507 = vpop.f32.mrf.mxu0
      %v1508 = vadd.f32 0.0, %v1507
      %v1509 = vpop.f32.mrf.mxu0
      %1510 = vmatprep.mubr.f32.mxu0 0.0
      %1511 = vmatmul.mubr.f32.gmra.mxu0 %v1406
      %v1512 = vpop.f32.mrf.mxu0
      %v1513 = vadd.f32 0.0, %v1512
      %v1514 = vpop.f32.mrf.mxu0
      %1515 = vdwg.mxu0
      %v1516 = vadd.f32 %v1366, %v1478
      %v1517 = vadd.f32 %v1367, %v1483
      %v1518 = vadd.f32 %v1368, %v1488
      %v1519 = vadd.f32 %v1369, %v1493
      %v1520 = vadd.f32 %v1370, %v1498
      %v1521 = vadd.f32 %v1371, %v1503
      %v1522 = vadd.f32 %v1372, %v1508
      %v1523 = vadd.f32 %v1373, %v1513
      %s1524 = scalar_lea.vmem [#allocation2], 32
      %v1525 = vld [vmem:[%s1524] sm:$0xff]
      %v1526 = vld [vmem:[%s1524 + $0x10] sm:$0xff]
      %v1527 = vld [vmem:[%s1524 + $0x20] sm:$0xff]
      %v1528 = vld [vmem:[%s1524 + $0x30] sm:$0xff]
      %v1529 = vld [vmem:[%s1524 + $0x40] sm:$0xff]
      %v1530 = vld [vmem:[%s1524 + $0x50] sm:$0xff]
      %v1531 = vld [vmem:[%s1524 + $0x60] sm:$0xff]
      %v1532 = vld [vmem:[%s1524 + $0x70] sm:$0xff]
      %s1533 = scalar_lea.vmem %s2, 24
      %v1534 = vld [vmem:[%s1533] sm:$0xf]
      %v1536 = vsel %vm539, %v1525, 0
      %v1539 = vsel %vm539, %v1526, 0
      %v1542 = vsel %vm539, %v1527, 0
      %v1545 = vsel %vm539, %v1528, 0
      %v1548 = vsel %vm539, %v1529, 0
      %v1551 = vsel %vm539, %v1530, 0
      %v1554 = vsel %vm539, %v1531, 0
      %v1557 = vsel %vm539, %v1532, 0
      %v1560 = vsel %vm691, %v1534, 0
      %1562 = vmatprep.subr.mxu0 0.0
      %1563 = vmatpush1.msra.mxu0 0.0
      %1564 = vmatprep.subr.mxu0 0.0
      %1565 = vmatpush1.msra.mxu0 0.0
      %1566 = vmatprep.subr.mxu0 0.0
      %1567 = vmatpush1.msra.mxu0 0.0
      %1568 = vmatprep.subr.mxu0 0.0
      %1569 = vmatpush1.msra.mxu0 0.0
      %1570 = vmatprep.subr.mxu0 0.0
      %1571 = vmatpush1.msra.mxu0 0.0
      %1572 = vmatprep.subr.mxu0 0.0
      %1573 = vmatpush1.msra.mxu0 0.0
      %1574 = vmatprep.subr.mxu0 0.0
      %1575 = vmatpush1.msra.mxu0 0.0
      %1576 = vmatprep.subr.mxu0 0.0
      %1577 = vmatpush1.msra.mxu0 0.0
      %1578 = vmatprep.subr.mxu0 0.0
      %1579 = vmatpush1.msra.mxu0 0.0
      %1580 = vmatprep.subr.mxu0 0.0
      %1581 = vmatpush1.msra.mxu0 0.0
      %1582 = vmatprep.subr.mxu0 0.0
      %1583 = vmatpush1.msra.mxu0 0.0
      %1584 = vmatprep.subr.mxu0 0.0
      %1585 = vmatpush1.msra.mxu0 0.0
      %1586 = vmatprep.subr.mxu0 0.0
      %1587 = vmatpush1.msra.mxu0 0.0
      %1588 = vmatprep.subr.mxu0 0.0
      %1589 = vmatpush1.msra.mxu0 0.0
      %1590 = vmatprep.subr.mxu0 0.0
      %1591 = vmatpush1.msra.mxu0 0.0
      %1592 = vmatprep.subr.mxu0 0.0
      %1593 = vmatpush1.msra.mxu0 %v1560
      %1594 = vmatprep.subr.mxu0 0.0
      %1595 = vmatpush2.msra.mxu0 0.0
      %1596 = vmatprep.subr.mxu0 0.0
      %1597 = vmatpush2.msra.mxu0 0.0
      %1598 = vmatprep.subr.mxu0 0.0
      %1599 = vmatpush2.msra.mxu0 0.0
      %1600 = vmatprep.subr.mxu0 0.0
      %1601 = vmatpush2.msra.mxu0 0.0
      %1602 = vmatprep.subr.mxu0 0.0
      %1603 = vmatpush2.msra.mxu0 0.0
      %1604 = vmatprep.subr.mxu0 0.0
      %1605 = vmatpush2.msra.mxu0 0.0
      %1606 = vmatprep.subr.mxu0 0.0
      %1607 = vmatpush2.msra.mxu0 0.0
      %1608 = vmatprep.subr.mxu0 0.0
      %1609 = vmatpush2.msra.mxu0 0.0
      %1610 = vmatprep.subr.mxu0 0.0
      %1611 = vmatpush2.msra.mxu0 0.0
      %1612 = vmatprep.subr.mxu0 0.0
      %1613 = vmatpush2.msra.mxu0 0.0
      %1614 = vmatprep.subr.mxu0 0.0
      %1615 = vmatpush2.msra.mxu0 0.0
      %1616 = vmatprep.subr.mxu0 0.0
      %1617 = vmatpush2.msra.mxu0 0.0
      %1618 = vmatprep.subr.mxu0 0.0
      %1619 = vmatpush2.msra.mxu0 0.0
      %1620 = vmatprep.subr.mxu0 0.0
      %1621 = vmatpush2.msra.mxu0 0.0
      %1622 = vmatprep.subr.mxu0 0.0
      %1623 = vmatpush2.msra.mxu0 0.0
      %1624 = vmatprep.subr.mxu0 0.0
      %1625 = vmatpush2.msra.mxu0 0.0
      %1626 = vmatprep.mubr.f32.mxu0 0.0
      %1627 = vmatmul.mubr.f32.gmra.mxu0 %v1536
      %v1628 = vpop.f32.mrf.mxu0
      %v1629 = vadd.f32 0.0, %v1628
      %v1630 = vpop.f32.mrf.mxu0
      %1631 = vmatprep.mubr.f32.mxu0 0.0
      %1632 = vmatmul.mubr.f32.gmra.mxu0 %v1539
      %v1633 = vpop.f32.mrf.mxu0
      %v1634 = vadd.f32 0.0, %v1633
      %v1635 = vpop.f32.mrf.mxu0
      %1636 = vmatprep.mubr.f32.mxu0 0.0
      %1637 = vmatmul.mubr.f32.gmra.mxu0 %v1542
      %v1638 = vpop.f32.mrf.mxu0
      %v1639 = vadd.f32 0.0, %v1638
      %v1640 = vpop.f32.mrf.mxu0
      %1641 = vmatprep.mubr.f32.mxu0 0.0
      %1642 = vmatmul.mubr.f32.gmra.mxu0 %v1545
      %v1643 = vpop.f32.mrf.mxu0
      %v1644 = vadd.f32 0.0, %v1643
      %v1645 = vpop.f32.mrf.mxu0
      %1646 = vmatprep.mubr.f32.mxu0 0.0
      %1647 = vmatmul.mubr.f32.gmra.mxu0 %v1548
      %v1648 = vpop.f32.mrf.mxu0
      %v1649 = vadd.f32 0.0, %v1648
      %v1650 = vpop.f32.mrf.mxu0
      %1651 = vmatprep.mubr.f32.mxu0 0.0
      %1652 = vmatmul.mubr.f32.gmra.mxu0 %v1551
      %v1653 = vpop.f32.mrf.mxu0
      %v1654 = vadd.f32 0.0, %v1653
      %v1655 = vpop.f32.mrf.mxu0
      %1656 = vmatprep.mubr.f32.mxu0 0.0
      %1657 = vmatmul.mubr.f32.gmra.mxu0 %v1554
      %v1658 = vpop.f32.mrf.mxu0
      %v1659 = vadd.f32 0.0, %v1658
      %v1660 = vpop.f32.mrf.mxu0
      %1661 = vmatprep.mubr.f32.mxu0 0.0
      %1662 = vmatmul.mubr.f32.gmra.mxu0 %v1557
      %v1663 = vpop.f32.mrf.mxu0
      %v1664 = vadd.f32 0.0, %v1663
      %v1665 = vpop.f32.mrf.mxu0
      %1666 = vdwg.mxu0
      %v1667 = vadd.f32 %v1516, %v1629
      %v1668 = vadd.f32 %v1517, %v1634
      %v1669 = vadd.f32 %v1518, %v1639
      %v1670 = vadd.f32 %v1519, %v1644
      %v1671 = vadd.f32 %v1520, %v1649
      %v1672 = vadd.f32 %v1521, %v1654
      %v1673 = vadd.f32 %v1522, %v1659
      %v1674 = vadd.f32 %v1523, %v1664
      %v1675 = vld [vmem:[%s1524 + $0x1] sm:$0xff]
      %v1676 = vld [vmem:[%s1524 + $0x11] sm:$0xff]
      %v1677 = vld [vmem:[%s1524 + $0x21] sm:$0xff]
      %v1678 = vld [vmem:[%s1524 + $0x31] sm:$0xff]
      %v1679 = vld [vmem:[%s1524 + $0x41] sm:$0xff]
      %v1680 = vld [vmem:[%s1524 + $0x51] sm:$0xff]
      %v1681 = vld [vmem:[%s1524 + $0x61] sm:$0xff]
      %v1682 = vld [vmem:[%s1524 + $0x71] sm:$0xff]
      %s1683 = scalar_lea.vmem %s2, 28
      %v1684 = vld [vmem:[%s1683] sm:$0xf]
      %v1686 = vsel %vm539, %v1675, 0
      %v1689 = vsel %vm539, %v1676, 0
      %v1692 = vsel %vm539, %v1677, 0
      %v1695 = vsel %vm539, %v1678, 0
      %v1698 = vsel %vm539, %v1679, 0
      %v1701 = vsel %vm539, %v1680, 0
      %v1704 = vsel %vm539, %v1681, 0
      %v1707 = vsel %vm539, %v1682, 0
      %v1710 = vsel %vm691, %v1684, 0
      %1712 = vmatprep.subr.mxu0 0.0
      %1713 = vmatpush1.msra.mxu0 0.0
      %1714 = vmatprep.subr.mxu0 0.0
      %1715 = vmatpush1.msra.mxu0 0.0
      %1716 = vmatprep.subr.mxu0 0.0
      %1717 = vmatpush1.msra.mxu0 0.0
      %1718 = vmatprep.subr.mxu0 0.0
      %1719 = vmatpush1.msra.mxu0 0.0
      %1720 = vmatprep.subr.mxu0 0.0
      %1721 = vmatpush1.msra.mxu0 0.0
      %1722 = vmatprep.subr.mxu0 0.0
      %1723 = vmatpush1.msra.mxu0 0.0
      %1724 = vmatprep.subr.mxu0 0.0
      %1725 = vmatpush1.msra.mxu0 0.0
      %1726 = vmatprep.subr.mxu0 0.0
      %1727 = vmatpush1.msra.mxu0 0.0
      %1728 = vmatprep.subr.mxu0 0.0
      %1729 = vmatpush1.msra.mxu0 0.0
      %1730 = vmatprep.subr.mxu0 0.0
      %1731 = vmatpush1.msra.mxu0 0.0
      %1732 = vmatprep.subr.mxu0 0.0
      %1733 = vmatpush1.msra.mxu0 0.0
      %1734 = vmatprep.subr.mxu0 0.0
      %1735 = vmatpush1.msra.mxu0 0.0
      %1736 = vmatprep.subr.mxu0 0.0
      %1737 = vmatpush1.msra.mxu0 0.0
      %1738 = vmatprep.subr.mxu0 0.0
      %1739 = vmatpush1.msra.mxu0 0.0
      %1740 = vmatprep.subr.mxu0 0.0
      %1741 = vmatpush1.msra.mxu0 0.0
      %1742 = vmatprep.subr.mxu0 0.0
      %1743 = vmatpush1.msra.mxu0 %v1710
      %1744 = vmatprep.subr.mxu0 0.0
      %1745 = vmatpush2.msra.mxu0 0.0
      %1746 = vmatprep.subr.mxu0 0.0
      %1747 = vmatpush2.msra.mxu0 0.0
      %1748 = vmatprep.subr.mxu0 0.0
      %1749 = vmatpush2.msra.mxu0 0.0
      %1750 = vmatprep.subr.mxu0 0.0
      %1751 = vmatpush2.msra.mxu0 0.0
      %1752 = vmatprep.subr.mxu0 0.0
      %1753 = vmatpush2.msra.mxu0 0.0
      %1754 = vmatprep.subr.mxu0 0.0
      %1755 = vmatpush2.msra.mxu0 0.0
      %1756 = vmatprep.subr.mxu0 0.0
      %1757 = vmatpush2.msra.mxu0 0.0
      %1758 = vmatprep.subr.mxu0 0.0
      %1759 = vmatpush2.msra.mxu0 0.0
      %1760 = vmatprep.subr.mxu0 0.0
      %1761 = vmatpush2.msra.mxu0 0.0
      %1762 = vmatprep.subr.mxu0 0.0
      %1763 = vmatpush2.msra.mxu0 0.0
      %1764 = vmatprep.subr.mxu0 0.0
      %1765 = vmatpush2.msra.mxu0 0.0
      %1766 = vmatprep.subr.mxu0 0.0
      %1767 = vmatpush2.msra.mxu0 0.0
      %1768 = vmatprep.subr.mxu0 0.0
      %1769 = vmatpush2.msra.mxu0 0.0
      %1770 = vmatprep.subr.mxu0 0.0
      %1771 = vmatpush2.msra.mxu0 0.0
      %1772 = vmatprep.subr.mxu0 0.0
      %1773 = vmatpush2.msra.mxu0 0.0
      %1774 = vmatprep.subr.mxu0 0.0
      %1775 = vmatpush2.msra.mxu0 0.0
      %1776 = vmatprep.mubr.f32.mxu0 0.0
      %1777 = vmatmul.mubr.f32.gmra.mxu0 %v1686
      %v1778 = vpop.f32.mrf.mxu0
      %v1779 = vadd.f32 0.0, %v1778
      %v1780 = vpop.f32.mrf.mxu0
      %1781 = vmatprep.mubr.f32.mxu0 0.0
      %1782 = vmatmul.mubr.f32.gmra.mxu0 %v1689
      %v1783 = vpop.f32.mrf.mxu0
      %v1784 = vadd.f32 0.0, %v1783
      %v1785 = vpop.f32.mrf.mxu0
      %1786 = vmatprep.mubr.f32.mxu0 0.0
      %1787 = vmatmul.mubr.f32.gmra.mxu0 %v1692
      %v1788 = vpop.f32.mrf.mxu0
      %v1789 = vadd.f32 0.0, %v1788
      %v1790 = vpop.f32.mrf.mxu0
      %1791 = vmatprep.mubr.f32.mxu0 0.0
      %1792 = vmatmul.mubr.f32.gmra.mxu0 %v1695
      %v1793 = vpop.f32.mrf.mxu0
      %v1794 = vadd.f32 0.0, %v1793
      %v1795 = vpop.f32.mrf.mxu0
      %1796 = vmatprep.mubr.f32.mxu0 0.0
      %1797 = vmatmul.mubr.f32.gmra.mxu0 %v1698
      %v1798 = vpop.f32.mrf.mxu0
      %v1799 = vadd.f32 0.0, %v1798
      %v1800 = vpop.f32.mrf.mxu0
      %1801 = vmatprep.mubr.f32.mxu0 0.0
      %1802 = vmatmul.mubr.f32.gmra.mxu0 %v1701
      %v1803 = vpop.f32.mrf.mxu0
      %v1804 = vadd.f32 0.0, %v1803
      %v1805 = vpop.f32.mrf.mxu0
      %1806 = vmatprep.mubr.f32.mxu0 0.0
      %1807 = vmatmul.mubr.f32.gmra.mxu0 %v1704
      %v1808 = vpop.f32.mrf.mxu0
      %v1809 = vadd.f32 0.0, %v1808
      %v1810 = vpop.f32.mrf.mxu0
      %1811 = vmatprep.mubr.f32.mxu0 0.0
      %1812 = vmatmul.mubr.f32.gmra.mxu0 %v1707
      %v1813 = vpop.f32.mrf.mxu0
      %v1814 = vadd.f32 0.0, %v1813
      %v1815 = vpop.f32.mrf.mxu0
      %1816 = vdwg.mxu0
      %v1817 = vadd.f32 %v1667, %v1779
      %v1818 = vadd.f32 %v1668, %v1784
      %v1819 = vadd.f32 %v1669, %v1789
      %v1820 = vadd.f32 %v1670, %v1794
      %v1821 = vadd.f32 %v1671, %v1799
      %v1822 = vadd.f32 %v1672, %v1804
      %v1823 = vadd.f32 %v1673, %v1809
      %v1824 = vadd.f32 %v1674, %v1814
      %v1825 = vld [vmem:[%s1524 + $0x2] sm:$0xff]
      %v1826 = vld [vmem:[%s1524 + $0x12] sm:$0xff]
      %v1827 = vld [vmem:[%s1524 + $0x22] sm:$0xff]
      %v1828 = vld [vmem:[%s1524 + $0x32] sm:$0xff]
      %v1829 = vld [vmem:[%s1524 + $0x42] sm:$0xff]
      %v1830 = vld [vmem:[%s1524 + $0x52] sm:$0xff]
      %v1831 = vld [vmem:[%s1524 + $0x62] sm:$0xff]
      %v1832 = vld [vmem:[%s1524 + $0x72] sm:$0xff]
      %s1833 = scalar_lea.vmem %s2, 32
      %v1834 = vld [vmem:[%s1833] sm:$0xf]
      %v1836 = vsel %vm539, %v1825, 0
      %v1839 = vsel %vm539, %v1826, 0
      %v1842 = vsel %vm539, %v1827, 0
      %v1845 = vsel %vm539, %v1828, 0
      %v1848 = vsel %vm539, %v1829, 0
      %v1851 = vsel %vm539, %v1830, 0
      %v1854 = vsel %vm539, %v1831, 0
      %v1857 = vsel %vm539, %v1832, 0
      %v1860 = vsel %vm691, %v1834, 0
      %1862 = vmatprep.subr.mxu0 0.0
      %1863 = vmatpush1.msra.mxu0 0.0
      %1864 = vmatprep.subr.mxu0 0.0
      %1865 = vmatpush1.msra.mxu0 0.0
      %1866 = vmatprep.subr.mxu0 0.0
      %1867 = vmatpush1.msra.mxu0 0.0
      %1868 = vmatprep.subr.mxu0 0.0
      %1869 = vmatpush1.msra.mxu0 0.0
      %1870 = vmatprep.subr.mxu0 0.0
      %1871 = vmatpush1.msra.mxu0 0.0
      %1872 = vmatprep.subr.mxu0 0.0
      %1873 = vmatpush1.msra.mxu0 0.0
      %1874 = vmatprep.subr.mxu0 0.0
      %1875 = vmatpush1.msra.mxu0 0.0
      %1876 = vmatprep.subr.mxu0 0.0
      %1877 = vmatpush1.msra.mxu0 0.0
      %1878 = vmatprep.subr.mxu0 0.0
      %1879 = vmatpush1.msra.mxu0 0.0
      %1880 = vmatprep.subr.mxu0 0.0
      %1881 = vmatpush1.msra.mxu0 0.0
      %1882 = vmatprep.subr.mxu0 0.0
      %1883 = vmatpush1.msra.mxu0 0.0
      %1884 = vmatprep.subr.mxu0 0.0
      %1885 = vmatpush1.msra.mxu0 0.0
      %1886 = vmatprep.subr.mxu0 0.0
      %1887 = vmatpush1.msra.mxu0 0.0
      %1888 = vmatprep.subr.mxu0 0.0
      %1889 = vmatpush1.msra.mxu0 0.0
      %1890 = vmatprep.subr.mxu0 0.0
      %1891 = vmatpush1.msra.mxu0 0.0
      %1892 = vmatprep.subr.mxu0 0.0
      %1893 = vmatpush1.msra.mxu0 %v1860
      %1894 = vmatprep.subr.mxu0 0.0
      %1895 = vmatpush2.msra.mxu0 0.0
      %1896 = vmatprep.subr.mxu0 0.0
      %1897 = vmatpush2.msra.mxu0 0.0
      %1898 = vmatprep.subr.mxu0 0.0
      %1899 = vmatpush2.msra.mxu0 0.0
      %1900 = vmatprep.subr.mxu0 0.0
      %1901 = vmatpush2.msra.mxu0 0.0
      %1902 = vmatprep.subr.mxu0 0.0
      %1903 = vmatpush2.msra.mxu0 0.0
      %1904 = vmatprep.subr.mxu0 0.0
      %1905 = vmatpush2.msra.mxu0 0.0
      %1906 = vmatprep.subr.mxu0 0.0
      %1907 = vmatpush2.msra.mxu0 0.0
      %1908 = vmatprep.subr.mxu0 0.0
      %1909 = vmatpush2.msra.mxu0 0.0
      %1910 = vmatprep.subr.mxu0 0.0
      %1911 = vmatpush2.msra.mxu0 0.0
      %1912 = vmatprep.subr.mxu0 0.0
      %1913 = vmatpush2.msra.mxu0 0.0
      %1914 = vmatprep.subr.mxu0 0.0
      %1915 = vmatpush2.msra.mxu0 0.0
      %1916 = vmatprep.subr.mxu0 0.0
      %1917 = vmatpush2.msra.mxu0 0.0
      %1918 = vmatprep.subr.mxu0 0.0
      %1919 = vmatpush2.msra.mxu0 0.0
      %1920 = vmatprep.subr.mxu0 0.0
      %1921 = vmatpush2.msra.mxu0 0.0
      %1922 = vmatprep.subr.mxu0 0.0
      %1923 = vmatpush2.msra.mxu0 0.0
      %1924 = vmatprep.subr.mxu0 0.0
      %1925 = vmatpush2.msra.mxu0 0.0
      %1926 = vmatprep.mubr.f32.mxu0 0.0
      %1927 = vmatmul.mubr.f32.gmra.mxu0 %v1836
      %v1928 = vpop.f32.mrf.mxu0
      %v1929 = vadd.f32 0.0, %v1928
      %v1930 = vpop.f32.mrf.mxu0
      %1931 = vmatprep.mubr.f32.mxu0 0.0
      %1932 = vmatmul.mubr.f32.gmra.mxu0 %v1839
      %v1933 = vpop.f32.mrf.mxu0
      %v1934 = vadd.f32 0.0, %v1933
      %v1935 = vpop.f32.mrf.mxu0
      %1936 = vmatprep.mubr.f32.mxu0 0.0
      %1937 = vmatmul.mubr.f32.gmra.mxu0 %v1842
      %v1938 = vpop.f32.mrf.mxu0
      %v1939 = vadd.f32 0.0, %v1938
      %v1940 = vpop.f32.mrf.mxu0
      %1941 = vmatprep.mubr.f32.mxu0 0.0
      %1942 = vmatmul.mubr.f32.gmra.mxu0 %v1845
      %v1943 = vpop.f32.mrf.mxu0
      %v1944 = vadd.f32 0.0, %v1943
      %v1945 = vpop.f32.mrf.mxu0
      %1946 = vmatprep.mubr.f32.mxu0 0.0
      %1947 = vmatmul.mubr.f32.gmra.mxu0 %v1848
      %v1948 = vpop.f32.mrf.mxu0
      %v1949 = vadd.f32 0.0, %v1948
      %v1950 = vpop.f32.mrf.mxu0
      %1951 = vmatprep.mubr.f32.mxu0 0.0
      %1952 = vmatmul.mubr.f32.gmra.mxu0 %v1851
      %v1953 = vpop.f32.mrf.mxu0
      %v1954 = vadd.f32 0.0, %v1953
      %v1955 = vpop.f32.mrf.mxu0
      %1956 = vmatprep.mubr.f32.mxu0 0.0
      %1957 = vmatmul.mubr.f32.gmra.mxu0 %v1854
      %v1958 = vpop.f32.mrf.mxu0
      %v1959 = vadd.f32 0.0, %v1958
      %v1960 = vpop.f32.mrf.mxu0
      %1961 = vmatprep.mubr.f32.mxu0 0.0
      %1962 = vmatmul.mubr.f32.gmra.mxu0 %v1857
      %v1963 = vpop.f32.mrf.mxu0
      %v1964 = vadd.f32 0.0, %v1963
      %v1965 = vpop.f32.mrf.mxu0
      %1966 = vdwg.mxu0
      %v1967 = vadd.f32 %v1817, %v1929
      %v1968 = vadd.f32 %v1818, %v1934
      %v1969 = vadd.f32 %v1819, %v1939
      %v1970 = vadd.f32 %v1820, %v1944
      %v1971 = vadd.f32 %v1821, %v1949
      %v1972 = vadd.f32 %v1822, %v1954
      %v1973 = vadd.f32 %v1823, %v1959
      %v1974 = vadd.f32 %v1824, %v1964
      %v1975 = vsel %vm539, %v1967, 0.0
      %v1976 = vsel %vm539, %v1968, 0.0
      %v1977 = vadd.f32 %v1975, %v1976
      %v1978 = vsel %vm539, %v1969, 0.0
      %v1979 = vadd.f32 %v1977, %v1978
      %v1980 = vsel %vm539, %v1970, 0.0
      %v1981 = vadd.f32 %v1979, %v1980
      %v1982 = vsel %vm539, %v1971, 0.0
      %v1983 = vadd.f32 %v1981, %v1982
      %v1984 = vsel %vm539, %v1972, 0.0
      %v1985 = vadd.f32 %v1983, %v1984
      %v1986 = vsel %vm539, %v1973, 0.0
      %v1987 = vadd.f32 %v1985, %v1986
      %v1988 = vsel %vm539, %v1974, 0.0
      %v1989 = vadd.f32 %v1987, %v1988
      %1990 = vadd.xlane.f32.xlu0 %v1989
      %v1991 = vpop.xlane.xlu0 %1990
      %v1992 = vrot.slane %v1991, 4
      %v1993 = vadd.f32 %v1991, %v1992
      %v1994 = vrot.slane %v1993, 2
      %v1995 = vadd.f32 %v1993, %v1994
      %v1996 = vrot.slane %v1995, 1
      %v1997 = vadd.f32 %v1995, %v1996
      %s1998 = vtos %v1997
      %v1999 = vmul.f32 %v1967, %v1967
      %v2000 = vmul.f32 %v1968, %v1968
      %v2001 = vmul.f32 %v1969, %v1969
      %v2002 = vmul.f32 %v1970, %v1970
      %v2003 = vmul.f32 %v1971, %v1971
      %v2004 = vmul.f32 %v1972, %v1972
      %v2005 = vmul.f32 %v1973, %v1973
      %v2006 = vmul.f32 %v1974, %v1974
      %v2007 = vsel %vm539, %v1999, 0.0
      %v2008 = vsel %vm539, %v2000, 0.0
      %v2009 = vadd.f32 %v2007, %v2008
      %v2010 = vsel %vm539, %v2001, 0.0
      %v2011 = vadd.f32 %v2009, %v2010
      %v2012 = vsel %vm539, %v2002, 0.0
      %v2013 = vadd.f32 %v2011, %v2012
      %v2014 = vsel %vm539, %v2003, 0.0
      %v2015 = vadd.f32 %v2013, %v2014
      %v2016 = vsel %vm539, %v2004, 0.0
      %v2017 = vadd.f32 %v2015, %v2016
      %v2018 = vsel %vm539, %v2005, 0.0
      %v2019 = vadd.f32 %v2017, %v2018
      %v2020 = vsel %vm539, %v2006, 0.0
      %v2021 = vadd.f32 %v2019, %v2020
      %2022 = vadd.xlane.f32.xlu0 %v2021
      %v2023 = vpop.xlane.xlu0 %2022
      %v2024 = vrot.slane %v2023, 4
      %v2025 = vadd.f32 %v2023, %v2024
      %v2026 = vrot.slane %v2025, 2
      %v2027 = vadd.f32 %v2025, %v2026
      %v2028 = vrot.slane %v2027, 1
      %v2029 = vadd.f32 %v2027, %v2028
      %s2030 = vtos %v2029
      %s2031 = smul.f32 %s1998, 0.00390625
      %s2032 = smul.f32 %s2030, 0.00390625
      %s2033 = smul.f32 %s2031, %s2031
      %s2034 = ssub.f32 %s2032, %s2033
      %v2035 = vstv %s2031
      %v2036 = vsub.f32 %v1967, %v2035
      %v2037 = vsub.f32 %v1968, %v2035
      %v2038 = vsub.f32 %v1969, %v2035
      %v2039 = vsub.f32 %v1970, %v2035
      %v2040 = vsub.f32 %v1971, %v2035
      %v2041 = vsub.f32 %v1972, %v2035
      %v2042 = vsub.f32 %v1973, %v2035
      %v2043 = vsub.f32 %v1974, %v2035
      %s2044 = sadd.f32 %s2034, 1e-05
      %v2045 = vstv %s2044
      %v2046 = vrsqrt.pop %v2045
      %s2047 = vtos %v2046
      %v2048 = vstv %s2047
      %v2049 = vmul.f32 %v2036, %v2048
      %v2050 = vmul.f32 %v2037, %v2048
      %v2051 = vmul.f32 %v2038, %v2048
      %v2052 = vmul.f32 %v2039, %v2048
      %v2053 = vmul.f32 %v2040, %v2048
      %v2054 = vmul.f32 %v2041, %v2048
      %v2055 = vmul.f32 %v2042, %v2048
      %v2056 = vmul.f32 %v2043, %v2048
      %v2057 = vld [vmem:[%s3] sm:$0x1]
      %v2059 = vlaneseq
      %v2060 = vshrl.u32 %v2059, 7
      %v2061 = vsub.s32 0, %v2060
      %v2062 = vrot.slane %v2057, %v2061
      %v2064 = vmul.f32 %v2049, %v2062
      %v2065 = vmul.f32 %v2050, %v2062
      %v2066 = vmul.f32 %v2051, %v2062
      %v2067 = vmul.f32 %v2052, %v2062
      %v2068 = vmul.f32 %v2053, %v2062
      %v2069 = vmul.f32 %v2054, %v2062
      %v2070 = vmul.f32 %v2055, %v2062
      %v2071 = vmul.f32 %v2056, %v2062
      %v2072 = vld [vmem:[%s4] sm:$0x1]
      %v2074 = vlaneseq
      %v2075 = vshrl.u32 %v2074, 7
      %v2076 = vsub.s32 0, %v2075
      %v2077 = vrot.slane %v2072, %v2076
      %v2079 = vadd.f32 %v2064, %v2077
      %v2080 = vadd.f32 %v2065, %v2077
      %v2081 = vadd.f32 %v2066, %v2077
      %v2082 = vadd.f32 %v2067, %v2077
      %v2083 = vadd.f32 %v2068, %v2077
      %v2084 = vadd.f32 %v2069, %v2077
      %v2085 = vadd.f32 %v2070, %v2077
      %v2086 = vadd.f32 %v2071, %v2077
      %v2087 = vmul.f32 %v2079, 0.5
      %v2088 = vmul.f32 %v2080, 0.5
      %v2089 = vmul.f32 %v2081, 0.5
      %v2090 = vmul.f32 %v2082, 0.5
      %v2091 = vmul.f32 %v2083, 0.5
      %v2092 = vmul.f32 %v2084, 0.5
      %v2093 = vmul.f32 %v2085, 0.5
      %v2094 = vmul.f32 %v2086, 0.5
      %v2095 = vmul.f32 %v2079, 0.70710677
      %v2096 = vmul.f32 %v2080, 0.70710677
      %v2097 = vmul.f32 %v2081, 0.70710677
      %v2098 = vmul.f32 %v2082, 0.70710677
      %v2099 = vmul.f32 %v2083, 0.70710677
      %v2100 = vmul.f32 %v2084, 0.70710677
      %v2101 = vmul.f32 %v2085, 0.70710677
      %v2102 = vmul.f32 %v2086, 0.70710677
      %v2103 = verf.f32.pop %v2095
      %v2104 = verf.f32.pop %v2096
      %v2105 = verf.f32.pop %v2097
      %v2106 = verf.f32.pop %v2098
      %v2107 = verf.f32.pop %v2099
      %v2108 = verf.f32.pop %v2100
      %v2109 = verf.f32.pop %v2101
      %v2110 = verf.f32.pop %v2102
      %v2111 = vadd.f32 %v2103, 1.0
      %v2112 = vadd.f32 %v2104, 1.0
      %v2113 = vadd.f32 %v2105, 1.0
      %v2114 = vadd.f32 %v2106, 1.0
      %v2115 = vadd.f32 %v2107, 1.0
      %v2116 = vadd.f32 %v2108, 1.0
      %v2117 = vadd.f32 %v2109, 1.0
      %v2118 = vadd.f32 %v2110, 1.0
      %v2119 = vmul.f32 %v2087, %v2111
      %v2120 = vmul.f32 %v2088, %v2112
      %v2121 = vmul.f32 %v2089, %v2113
      %v2122 = vmul.f32 %v2090, %v2114
      %v2123 = vmul.f32 %v2091, %v2115
      %v2124 = vmul.f32 %v2092, %v2116
      %v2125 = vmul.f32 %v2093, %v2117
      %v2126 = vmul.f32 %v2094, %v2118
      %2127 = vst.msk [vmem:[%s639 + $0x1] sm:$0xff] %vm539, %v2119
      %2128 = vst.msk [vmem:[%s639 + $0x11] sm:$0xff] %vm539, %v2120
      %2129 = vst.msk [vmem:[%s639 + $0x21] sm:$0xff] %vm539, %v2121
      %2130 = vst.msk [vmem:[%s639 + $0x31] sm:$0xff] %vm539, %v2122
      %2131 = vst.msk [vmem:[%s639 + $0x41] sm:$0xff] %vm539, %v2123
      %2132 = vst.msk [vmem:[%s639 + $0x51] sm:$0xff] %vm539, %v2124
      %2133 = vst.msk [vmem:[%s639 + $0x61] sm:$0xff] %vm539, %v2125
      %2134 = vst.msk [vmem:[%s639 + $0x71] sm:$0xff] %vm539, %v2126
      %v2135 = vld [vmem:[#allocation2] sm:$0xff]
      %v2136 = vld [vmem:[#allocation2 + $0x10] sm:$0xff]
      %v2137 = vld [vmem:[#allocation2 + $0x20] sm:$0xff]
      %v2138 = vld [vmem:[#allocation2 + $0x30] sm:$0xff]
      %v2139 = vld [vmem:[#allocation2 + $0x40] sm:$0xff]
      %v2140 = vld [vmem:[#allocation2 + $0x50] sm:$0xff]
      %v2141 = vld [vmem:[#allocation2 + $0x60] sm:$0xff]
      %v2142 = vld [vmem:[#allocation2 + $0x70] sm:$0xff]
      %v2143 = vld [vmem:[%s5] sm:$0xf]
      %v2144 = vld [vmem:[#allocation2 + $0x1] sm:$0xff]
      %v2145 = vld [vmem:[#allocation2 + $0x11] sm:$0xff]
      %v2146 = vld [vmem:[#allocation2 + $0x21] sm:$0xff]
      %v2147 = vld [vmem:[#allocation2 + $0x31] sm:$0xff]
      %v2148 = vld [vmem:[#allocation2 + $0x41] sm:$0xff]
      %v2149 = vld [vmem:[#allocation2 + $0x51] sm:$0xff]
      %v2150 = vld [vmem:[#allocation2 + $0x61] sm:$0xff]
      %v2151 = vld [vmem:[#allocation2 + $0x71] sm:$0xff]
      %s2152 = scalar_lea.vmem %s5, 4
      %v2153 = vld [vmem:[%s2152] sm:$0xf]
      %v2155 = vsel %vm539, %v2144, 0
      %v2158 = vsel %vm539, %v2145, 0
      %v2161 = vsel %vm539, %v2146, 0
      %v2164 = vsel %vm539, %v2147, 0
      %v2167 = vsel %vm539, %v2148, 0
      %v2170 = vsel %vm539, %v2149, 0
      %v2173 = vsel %vm539, %v2150, 0
      %v2176 = vsel %vm539, %v2151, 0
      %v2179 = vsel %vm691, %v2153, 0
      %2181 = vmatprep.subr.mxu0 0.0
      %2182 = vmatpush1.msra.mxu0 0.0
      %2183 = vmatprep.subr.mxu0 0.0
      %2184 = vmatpush1.msra.mxu0 0.0
      %2185 = vmatprep.subr.mxu0 0.0
      %2186 = vmatpush1.msra.mxu0 0.0
      %2187 = vmatprep.subr.mxu0 0.0
      %2188 = vmatpush1.msra.mxu0 0.0
      %2189 = vmatprep.subr.mxu0 0.0
      %2190 = vmatpush1.msra.mxu0 0.0
      %2191 = vmatprep.subr.mxu0 0.0
      %2192 = vmatpush1.msra.mxu0 0.0
      %2193 = vmatprep.subr.mxu0 0.0
      %2194 = vmatpush1.msra.mxu0 0.0
      %2195 = vmatprep.subr.mxu0 0.0
      %2196 = vmatpush1.msra.mxu0 0.0
      %2197 = vmatprep.subr.mxu0 0.0
      %2198 = vmatpush1.msra.mxu0 0.0
      %2199 = vmatprep.subr.mxu0 0.0
      %2200 = vmatpush1.msra.mxu0 0.0
      %2201 = vmatprep.subr.mxu0 0.0
      %2202 = vmatpush1.msra.mxu0 0.0
      %2203 = vmatprep.subr.mxu0 0.0
      %2204 = vmatpush1.msra.mxu0 0.0
      %2205 = vmatprep.subr.mxu0 0.0
      %2206 = vmatpush1.msra.mxu0 0.0
      %2207 = vmatprep.subr.mxu0 0.0
      %2208 = vmatpush1.msra.mxu0 0.0
      %2209 = vmatprep.subr.mxu0 0.0
      %2210 = vmatpush1.msra.mxu0 0.0
      %2211 = vmatprep.subr.mxu0 0.0
      %2212 = vmatpush1.msra.mxu0 %v2179
      %2213 = vmatprep.subr.mxu0 0.0
      %2214 = vmatpush2.msra.mxu0 0.0
      %2215 = vmatprep.subr.mxu0 0.0
      %2216 = vmatpush2.msra.mxu0 0.0
      %2217 = vmatprep.subr.mxu0 0.0
      %2218 = vmatpush2.msra.mxu0 0.0
      %2219 = vmatprep.subr.mxu0 0.0
      %2220 = vmatpush2.msra.mxu0 0.0
      %2221 = vmatprep.subr.mxu0 0.0
      %2222 = vmatpush2.msra.mxu0 0.0
      %2223 = vmatprep.subr.mxu0 0.0
      %2224 = vmatpush2.msra.mxu0 0.0
      %2225 = vmatprep.subr.mxu0 0.0
      %2226 = vmatpush2.msra.mxu0 0.0
      %2227 = vmatprep.subr.mxu0 0.0
      %2228 = vmatpush2.msra.mxu0 0.0
      %2229 = vmatprep.subr.mxu0 0.0
      %2230 = vmatpush2.msra.mxu0 0.0
      %2231 = vmatprep.subr.mxu0 0.0
      %2232 = vmatpush2.msra.mxu0 0.0
      %2233 = vmatprep.subr.mxu0 0.0
      %2234 = vmatpush2.msra.mxu0 0.0
      %2235 = vmatprep.subr.mxu0 0.0
      %2236 = vmatpush2.msra.mxu0 0.0
      %2237 = vmatprep.subr.mxu0 0.0
      %2238 = vmatpush2.msra.mxu0 0.0
      %2239 = vmatprep.subr.mxu0 0.0
      %2240 = vmatpush2.msra.mxu0 0.0
      %2241 = vmatprep.subr.mxu0 0.0
      %2242 = vmatpush2.msra.mxu0 0.0
      %2243 = vmatprep.subr.mxu0 0.0
      %2244 = vmatpush2.msra.mxu0 0.0
      %2245 = vmatprep.mubr.f32.mxu0 0.0
      %2246 = vmatmul.mubr.f32.gmra.mxu0 %v2155
      %v2247 = vpop.f32.mrf.mxu0
      %v2248 = vadd.f32 0.0, %v2247
      %v2249 = vpop.f32.mrf.mxu0
      %2250 = vmatprep.mubr.f32.mxu0 0.0
      %2251 = vmatmul.mubr.f32.gmra.mxu0 %v2158
      %v2252 = vpop.f32.mrf.mxu0
      %v2253 = vadd.f32 0.0, %v2252
      %v2254 = vpop.f32.mrf.mxu0
      %2255 = vmatprep.mubr.f32.mxu0 0.0
      %2256 = vmatmul.mubr.f32.gmra.mxu0 %v2161
      %v2257 = vpop.f32.mrf.mxu0
      %v2258 = vadd.f32 0.0, %v2257
      %v2259 = vpop.f32.mrf.mxu0
      %2260 = vmatprep.mubr.f32.mxu0 0.0
      %2261 = vmatmul.mubr.f32.gmra.mxu0 %v2164
      %v2262 = vpop.f32.mrf.mxu0
      %v2263 = vadd.f32 0.0, %v2262
      %v2264 = vpop.f32.mrf.mxu0
      %2265 = vmatprep.mubr.f32.mxu0 0.0
      %2266 = vmatmul.mubr.f32.gmra.mxu0 %v2167
      %v2267 = vpop.f32.mrf.mxu0
      %v2268 = vadd.f32 0.0, %v2267
      %v2269 = vpop.f32.mrf.mxu0
      %2270 = vmatprep.mubr.f32.mxu0 0.0
      %2271 = vmatmul.mubr.f32.gmra.mxu0 %v2170
      %v2272 = vpop.f32.mrf.mxu0
      %v2273 = vadd.f32 0.0, %v2272
      %v2274 = vpop.f32.mrf.mxu0
      %2275 = vmatprep.mubr.f32.mxu0 0.0
      %2276 = vmatmul.mubr.f32.gmra.mxu0 %v2173
      %v2277 = vpop.f32.mrf.mxu0
      %v2278 = vadd.f32 0.0, %v2277
      %v2279 = vpop.f32.mrf.mxu0
      %2280 = vmatprep.mubr.f32.mxu0 0.0
      %2281 = vmatmul.mubr.f32.gmra.mxu0 %v2176
      %v2282 = vpop.f32.mrf.mxu0
      %v2283 = vadd.f32 0.0, %v2282
      %v2284 = vpop.f32.mrf.mxu0
      %2285 = vdwg.mxu0
      %v2287 = vsel %vm539, %v2135, 0
      %v2290 = vsel %vm539, %v2136, 0
      %v2293 = vsel %vm539, %v2137, 0
      %v2296 = vsel %vm539, %v2138, 0
      %v2299 = vsel %vm539, %v2139, 0
      %v2302 = vsel %vm539, %v2140, 0
      %v2305 = vsel %vm539, %v2141, 0
      %v2308 = vsel %vm539, %v2142, 0
      %v2311 = vsel %vm691, %v2143, 0
      %2313 = vmatprep.subr.mxu0 0.0
      %2314 = vmatpush1.msra.mxu0 0.0
      %2315 = vmatprep.subr.mxu0 0.0
      %2316 = vmatpush1.msra.mxu0 0.0
      %2317 = vmatprep.subr.mxu0 0.0
      %2318 = vmatpush1.msra.mxu0 0.0
      %2319 = vmatprep.subr.mxu0 0.0
      %2320 = vmatpush1.msra.mxu0 0.0
      %2321 = vmatprep.subr.mxu0 0.0
      %2322 = vmatpush1.msra.mxu0 0.0
      %2323 = vmatprep.subr.mxu0 0.0
      %2324 = vmatpush1.msra.mxu0 0.0
      %2325 = vmatprep.subr.mxu0 0.0
      %2326 = vmatpush1.msra.mxu0 0.0
      %2327 = vmatprep.subr.mxu0 0.0
      %2328 = vmatpush1.msra.mxu0 0.0
      %2329 = vmatprep.subr.mxu0 0.0
      %2330 = vmatpush1.msra.mxu0 0.0
      %2331 = vmatprep.subr.mxu0 0.0
      %2332 = vmatpush1.msra.mxu0 0.0
      %2333 = vmatprep.subr.mxu0 0.0
      %2334 = vmatpush1.msra.mxu0 0.0
      %2335 = vmatprep.subr.mxu0 0.0
      %2336 = vmatpush1.msra.mxu0 0.0
      %2337 = vmatprep.subr.mxu0 0.0
      %2338 = vmatpush1.msra.mxu0 0.0
      %2339 = vmatprep.subr.mxu0 0.0
      %2340 = vmatpush1.msra.mxu0 0.0
      %2341 = vmatprep.subr.mxu0 0.0
      %2342 = vmatpush1.msra.mxu0 0.0
      %2343 = vmatprep.subr.mxu0 0.0
      %2344 = vmatpush1.msra.mxu0 %v2311
      %2345 = vmatprep.subr.mxu0 0.0
      %2346 = vmatpush2.msra.mxu0 0.0
      %2347 = vmatprep.subr.mxu0 0.0
      %2348 = vmatpush2.msra.mxu0 0.0
      %2349 = vmatprep.subr.mxu0 0.0
      %2350 = vmatpush2.msra.mxu0 0.0
      %2351 = vmatprep.subr.mxu0 0.0
      %2352 = vmatpush2.msra.mxu0 0.0
      %2353 = vmatprep.subr.mxu0 0.0
      %2354 = vmatpush2.msra.mxu0 0.0
      %2355 = vmatprep.subr.mxu0 0.0
      %2356 = vmatpush2.msra.mxu0 0.0
      %2357 = vmatprep.subr.mxu0 0.0
      %2358 = vmatpush2.msra.mxu0 0.0
      %2359 = vmatprep.subr.mxu0 0.0
      %2360 = vmatpush2.msra.mxu0 0.0
      %2361 = vmatprep.subr.mxu0 0.0
      %2362 = vmatpush2.msra.mxu0 0.0
      %2363 = vmatprep.subr.mxu0 0.0
      %2364 = vmatpush2.msra.mxu0 0.0
      %2365 = vmatprep.subr.mxu0 0.0
      %2366 = vmatpush2.msra.mxu0 0.0
      %2367 = vmatprep.subr.mxu0 0.0
      %2368 = vmatpush2.msra.mxu0 0.0
      %2369 = vmatprep.subr.mxu0 0.0
      %2370 = vmatpush2.msra.mxu0 0.0
      %2371 = vmatprep.subr.mxu0 0.0
      %2372 = vmatpush2.msra.mxu0 0.0
      %2373 = vmatprep.subr.mxu0 0.0
      %2374 = vmatpush2.msra.mxu0 0.0
      %2375 = vmatprep.subr.mxu0 0.0
      %2376 = vmatpush2.msra.mxu0 0.0
      %2377 = vmatprep.mubr.f32.mxu0 0.0
      %2378 = vmatmul.mubr.f32.gmra.mxu0 %v2287
      %v2379 = vpop.f32.mrf.mxu0
      %v2380 = vadd.f32 %v2248, %v2379
      %v2381 = vpop.f32.mrf.mxu0
      %2382 = vmatprep.mubr.f32.mxu0 0.0
      %2383 = vmatmul.mubr.f32.gmra.mxu0 %v2290
      %v2384 = vpop.f32.mrf.mxu0
      %v2385 = vadd.f32 %v2253, %v2384
      %v2386 = vpop.f32.mrf.mxu0
      %2387 = vmatprep.mubr.f32.mxu0 0.0
      %2388 = vmatmul.mubr.f32.gmra.mxu0 %v2293
      %v2389 = vpop.f32.mrf.mxu0
      %v2390 = vadd.f32 %v2258, %v2389
      %v2391 = vpop.f32.mrf.mxu0
      %2392 = vmatprep.mubr.f32.mxu0 0.0
      %2393 = vmatmul.mubr.f32.gmra.mxu0 %v2296
      %v2394 = vpop.f32.mrf.mxu0
      %v2395 = vadd.f32 %v2263, %v2394
      %v2396 = vpop.f32.mrf.mxu0
      %2397 = vmatprep.mubr.f32.mxu0 0.0
      %2398 = vmatmul.mubr.f32.gmra.mxu0 %v2299
      %v2399 = vpop.f32.mrf.mxu0
      %v2400 = vadd.f32 %v2268, %v2399
      %v2401 = vpop.f32.mrf.mxu0
      %2402 = vmatprep.mubr.f32.mxu0 0.0
      %2403 = vmatmul.mubr.f32.gmra.mxu0 %v2302
      %v2404 = vpop.f32.mrf.mxu0
      %v2405 = vadd.f32 %v2273, %v2404
      %v2406 = vpop.f32.mrf.mxu0
      %2407 = vmatprep.mubr.f32.mxu0 0.0
      %2408 = vmatmul.mubr.f32.gmra.mxu0 %v2305
      %v2409 = vpop.f32.mrf.mxu0
      %v2410 = vadd.f32 %v2278, %v2409
      %v2411 = vpop.f32.mrf.mxu0
      %2412 = vmatprep.mubr.f32.mxu0 0.0
      %2413 = vmatmul.mubr.f32.gmra.mxu0 %v2308
      %v2414 = vpop.f32.mrf.mxu0
      %v2415 = vadd.f32 %v2283, %v2414
      %v2416 = vpop.f32.mrf.mxu0
      %2417 = vdwg.mxu0
      %v2418 = vld [vmem:[#allocation2 + $0x2] sm:$0xff]
      %v2419 = vld [vmem:[#allocation2 + $0x12] sm:$0xff]
      %v2420 = vld [vmem:[#allocation2 + $0x22] sm:$0xff]
      %v2421 = vld [vmem:[#allocation2 + $0x32] sm:$0xff]
      %v2422 = vld [vmem:[#allocation2 + $0x42] sm:$0xff]
      %v2423 = vld [vmem:[#allocation2 + $0x52] sm:$0xff]
      %v2424 = vld [vmem:[#allocation2 + $0x62] sm:$0xff]
      %v2425 = vld [vmem:[#allocation2 + $0x72] sm:$0xff]
      %s2426 = scalar_lea.vmem %s5, 8
      %v2427 = vld [vmem:[%s2426] sm:$0xf]
      %v2429 = vsel %vm539, %v2418, 0
      %v2432 = vsel %vm539, %v2419, 0
      %v2435 = vsel %vm539, %v2420, 0
      %v2438 = vsel %vm539, %v2421, 0
      %v2441 = vsel %vm539, %v2422, 0
      %v2444 = vsel %vm539, %v2423, 0
      %v2447 = vsel %vm539, %v2424, 0
      %v2450 = vsel %vm539, %v2425, 0
      %v2453 = vsel %vm691, %v2427, 0
      %2455 = vmatprep.subr.mxu0 0.0
      %2456 = vmatpush1.msra.mxu0 0.0
      %2457 = vmatprep.subr.mxu0 0.0
      %2458 = vmatpush1.msra.mxu0 0.0
      %2459 = vmatprep.subr.mxu0 0.0
      %2460 = vmatpush1.msra.mxu0 0.0
      %2461 = vmatprep.subr.mxu0 0.0
      %2462 = vmatpush1.msra.mxu0 0.0
      %2463 = vmatprep.subr.mxu0 0.0
      %2464 = vmatpush1.msra.mxu0 0.0
      %2465 = vmatprep.subr.mxu0 0.0
      %2466 = vmatpush1.msra.mxu0 0.0
      %2467 = vmatprep.subr.mxu0 0.0
      %2468 = vmatpush1.msra.mxu0 0.0
      %2469 = vmatprep.subr.mxu0 0.0
      %2470 = vmatpush1.msra.mxu0 0.0
      %2471 = vmatprep.subr.mxu0 0.0
      %2472 = vmatpush1.msra.mxu0 0.0
      %2473 = vmatprep.subr.mxu0 0.0
      %2474 = vmatpush1.msra.mxu0 0.0
      %2475 = vmatprep.subr.mxu0 0.0
      %2476 = vmatpush1.msra.mxu0 0.0
      %2477 = vmatprep.subr.mxu0 0.0
      %2478 = vmatpush1.msra.mxu0 0.0
      %2479 = vmatprep.subr.mxu0 0.0
      %2480 = vmatpush1.msra.mxu0 0.0
      %2481 = vmatprep.subr.mxu0 0.0
      %2482 = vmatpush1.msra.mxu0 0.0
      %2483 = vmatprep.subr.mxu0 0.0
      %2484 = vmatpush1.msra.mxu0 0.0
      %2485 = vmatprep.subr.mxu0 0.0
      %2486 = vmatpush1.msra.mxu0 %v2453
      %2487 = vmatprep.subr.mxu0 0.0
      %2488 = vmatpush2.msra.mxu0 0.0
      %2489 = vmatprep.subr.mxu0 0.0
      %2490 = vmatpush2.msra.mxu0 0.0
      %2491 = vmatprep.subr.mxu0 0.0
      %2492 = vmatpush2.msra.mxu0 0.0
      %2493 = vmatprep.subr.mxu0 0.0
      %2494 = vmatpush2.msra.mxu0 0.0
      %2495 = vmatprep.subr.mxu0 0.0
      %2496 = vmatpush2.msra.mxu0 0.0
      %2497 = vmatprep.subr.mxu0 0.0
      %2498 = vmatpush2.msra.mxu0 0.0
      %2499 = vmatprep.subr.mxu0 0.0
      %2500 = vmatpush2.msra.mxu0 0.0
      %2501 = vmatprep.subr.mxu0 0.0
      %2502 = vmatpush2.msra.mxu0 0.0
      %2503 = vmatprep.subr.mxu0 0.0
      %2504 = vmatpush2.msra.mxu0 0.0
      %2505 = vmatprep.subr.mxu0 0.0
      %2506 = vmatpush2.msra.mxu0 0.0
      %2507 = vmatprep.subr.mxu0 0.0
      %2508 = vmatpush2.msra.mxu0 0.0
      %2509 = vmatprep.subr.mxu0 0.0
      %2510 = vmatpush2.msra.mxu0 0.0
      %2511 = vmatprep.subr.mxu0 0.0
      %2512 = vmatpush2.msra.mxu0 0.0
      %2513 = vmatprep.subr.mxu0 0.0
      %2514 = vmatpush2.msra.mxu0 0.0
      %2515 = vmatprep.subr.mxu0 0.0
      %2516 = vmatpush2.msra.mxu0 0.0
      %2517 = vmatprep.subr.mxu0 0.0
      %2518 = vmatpush2.msra.mxu0 0.0
      %2519 = vmatprep.mubr.f32.mxu0 0.0
      %2520 = vmatmul.mubr.f32.gmra.mxu0 %v2429
      %v2521 = vpop.f32.mrf.mxu0
      %v2522 = vadd.f32 0.0, %v2521
      %v2523 = vpop.f32.mrf.mxu0
      %2524 = vmatprep.mubr.f32.mxu0 0.0
      %2525 = vmatmul.mubr.f32.gmra.mxu0 %v2432
      %v2526 = vpop.f32.mrf.mxu0
      %v2527 = vadd.f32 0.0, %v2526
      %v2528 = vpop.f32.mrf.mxu0
      %2529 = vmatprep.mubr.f32.mxu0 0.0
      %2530 = vmatmul.mubr.f32.gmra.mxu0 %v2435
      %v2531 = vpop.f32.mrf.mxu0
      %v2532 = vadd.f32 0.0, %v2531
      %v2533 = vpop.f32.mrf.mxu0
      %2534 = vmatprep.mubr.f32.mxu0 0.0
      %2535 = vmatmul.mubr.f32.gmra.mxu0 %v2438
      %v2536 = vpop.f32.mrf.mxu0
      %v2537 = vadd.f32 0.0, %v2536
      %v2538 = vpop.f32.mrf.mxu0
      %2539 = vmatprep.mubr.f32.mxu0 0.0
      %2540 = vmatmul.mubr.f32.gmra.mxu0 %v2441
      %v2541 = vpop.f32.mrf.mxu0
      %v2542 = vadd.f32 0.0, %v2541
      %v2543 = vpop.f32.mrf.mxu0
      %2544 = vmatprep.mubr.f32.mxu0 0.0
      %2545 = vmatmul.mubr.f32.gmra.mxu0 %v2444
      %v2546 = vpop.f32.mrf.mxu0
      %v2547 = vadd.f32 0.0, %v2546
      %v2548 = vpop.f32.mrf.mxu0
      %2549 = vmatprep.mubr.f32.mxu0 0.0
      %2550 = vmatmul.mubr.f32.gmra.mxu0 %v2447
      %v2551 = vpop.f32.mrf.mxu0
      %v2552 = vadd.f32 0.0, %v2551
      %v2553 = vpop.f32.mrf.mxu0
      %2554 = vmatprep.mubr.f32.mxu0 0.0
      %2555 = vmatmul.mubr.f32.gmra.mxu0 %v2450
      %v2556 = vpop.f32.mrf.mxu0
      %v2557 = vadd.f32 0.0, %v2556
      %v2558 = vpop.f32.mrf.mxu0
      %2559 = vdwg.mxu0
      %v2560 = vadd.f32 %v2380, %v2522
      %v2561 = vadd.f32 %v2385, %v2527
      %v2562 = vadd.f32 %v2390, %v2532
      %v2563 = vadd.f32 %v2395, %v2537
      %v2564 = vadd.f32 %v2400, %v2542
      %v2565 = vadd.f32 %v2405, %v2547
      %v2566 = vadd.f32 %v2410, %v2552
      %v2567 = vadd.f32 %v2415, %v2557
      %v2568 = vld [vmem:[%s639] sm:$0xff]
      %v2569 = vld [vmem:[%s639 + $0x10] sm:$0xff]
      %v2570 = vld [vmem:[%s639 + $0x20] sm:$0xff]
      %v2571 = vld [vmem:[%s639 + $0x30] sm:$0xff]
      %v2572 = vld [vmem:[%s639 + $0x40] sm:$0xff]
      %v2573 = vld [vmem:[%s639 + $0x50] sm:$0xff]
      %v2574 = vld [vmem:[%s639 + $0x60] sm:$0xff]
      %v2575 = vld [vmem:[%s639 + $0x70] sm:$0xff]
      %s2576 = scalar_lea.vmem %s5, 12
      %v2577 = vld [vmem:[%s2576] sm:$0xf]
      %v2579 = vsel %vm539, %v2568, 0
      %v2582 = vsel %vm539, %v2569, 0
      %v2585 = vsel %vm539, %v2570, 0
      %v2588 = vsel %vm539, %v2571, 0
      %v2591 = vsel %vm539, %v2572, 0
      %v2594 = vsel %vm539, %v2573, 0
      %v2597 = vsel %vm539, %v2574, 0
      %v2600 = vsel %vm539, %v2575, 0
      %v2603 = vsel %vm691, %v2577, 0
      %2605 = vmatprep.subr.mxu0 0.0
      %2606 = vmatpush1.msra.mxu0 0.0
      %2607 = vmatprep.subr.mxu0 0.0
      %2608 = vmatpush1.msra.mxu0 0.0
      %2609 = vmatprep.subr.mxu0 0.0
      %2610 = vmatpush1.msra.mxu0 0.0
      %2611 = vmatprep.subr.mxu0 0.0
      %2612 = vmatpush1.msra.mxu0 0.0
      %2613 = vmatprep.subr.mxu0 0.0
      %2614 = vmatpush1.msra.mxu0 0.0
      %2615 = vmatprep.subr.mxu0 0.0
      %2616 = vmatpush1.msra.mxu0 0.0
      %2617 = vmatprep.subr.mxu0 0.0
      %2618 = vmatpush1.msra.mxu0 0.0
      %2619 = vmatprep.subr.mxu0 0.0
      %2620 = vmatpush1.msra.mxu0 0.0
      %2621 = vmatprep.subr.mxu0 0.0
      %2622 = vmatpush1.msra.mxu0 0.0
      %2623 = vmatprep.subr.mxu0 0.0
      %2624 = vmatpush1.msra.mxu0 0.0
      %2625 = vmatprep.subr.mxu0 0.0
      %2626 = vmatpush1.msra.mxu0 0.0
      %2627 = vmatprep.subr.mxu0 0.0
      %2628 = vmatpush1.msra.mxu0 0.0
      %2629 = vmatprep.subr.mxu0 0.0
      %2630 = vmatpush1.msra.mxu0 0.0
      %2631 = vmatprep.subr.mxu0 0.0
      %2632 = vmatpush1.msra.mxu0 0.0
      %2633 = vmatprep.subr.mxu0 0.0
      %2634 = vmatpush1.msra.mxu0 0.0
      %2635 = vmatprep.subr.mxu0 0.0
      %2636 = vmatpush1.msra.mxu0 %v2603
      %2637 = vmatprep.subr.mxu0 0.0
      %2638 = vmatpush2.msra.mxu0 0.0
      %2639 = vmatprep.subr.mxu0 0.0
      %2640 = vmatpush2.msra.mxu0 0.0
      %2641 = vmatprep.subr.mxu0 0.0
      %2642 = vmatpush2.msra.mxu0 0.0
      %2643 = vmatprep.subr.mxu0 0.0
      %2644 = vmatpush2.msra.mxu0 0.0
      %2645 = vmatprep.subr.mxu0 0.0
      %2646 = vmatpush2.msra.mxu0 0.0
      %2647 = vmatprep.subr.mxu0 0.0
      %2648 = vmatpush2.msra.mxu0 0.0
      %2649 = vmatprep.subr.mxu0 0.0
      %2650 = vmatpush2.msra.mxu0 0.0
      %2651 = vmatprep.subr.mxu0 0.0
      %2652 = vmatpush2.msra.mxu0 0.0
      %2653 = vmatprep.subr.mxu0 0.0
      %2654 = vmatpush2.msra.mxu0 0.0
      %2655 = vmatprep.subr.mxu0 0.0
      %2656 = vmatpush2.msra.mxu0 0.0
      %2657 = vmatprep.subr.mxu0 0.0
      %2658 = vmatpush2.msra.mxu0 0.0
      %2659 = vmatprep.subr.mxu0 0.0
      %2660 = vmatpush2.msra.mxu0 0.0
      %2661 = vmatprep.subr.mxu0 0.0
      %2662 = vmatpush2.msra.mxu0 0.0
      %2663 = vmatprep.subr.mxu0 0.0
      %2664 = vmatpush2.msra.mxu0 0.0
      %2665 = vmatprep.subr.mxu0 0.0
      %2666 = vmatpush2.msra.mxu0 0.0
      %2667 = vmatprep.subr.mxu0 0.0
      %2668 = vmatpush2.msra.mxu0 0.0
      %2669 = vmatprep.mubr.f32.mxu0 0.0
      %2670 = vmatmul.mubr.f32.gmra.mxu0 %v2579
      %v2671 = vpop.f32.mrf.mxu0
      %v2672 = vadd.f32 0.0, %v2671
      %v2673 = vpop.f32.mrf.mxu0
      %2674 = vmatprep.mubr.f32.mxu0 0.0
      %2675 = vmatmul.mubr.f32.gmra.mxu0 %v2582
      %v2676 = vpop.f32.mrf.mxu0
      %v2677 = vadd.f32 0.0, %v2676
      %v2678 = vpop.f32.mrf.mxu0
      %2679 = vmatprep.mubr.f32.mxu0 0.0
      %2680 = vmatmul.mubr.f32.gmra.mxu0 %v2585
      %v2681 = vpop.f32.mrf.mxu0
      %v2682 = vadd.f32 0.0, %v2681
      %v2683 = vpop.f32.mrf.mxu0
      %2684 = vmatprep.mubr.f32.mxu0 0.0
      %2685 = vmatmul.mubr.f32.gmra.mxu0 %v2588
      %v2686 = vpop.f32.mrf.mxu0
      %v2687 = vadd.f32 0.0, %v2686
      %v2688 = vpop.f32.mrf.mxu0
      %2689 = vmatprep.mubr.f32.mxu0 0.0
      %2690 = vmatmul.mubr.f32.gmra.mxu0 %v2591
      %v2691 = vpop.f32.mrf.mxu0
      %v2692 = vadd.f32 0.0, %v2691
      %v2693 = vpop.f32.mrf.mxu0
      %2694 = vmatprep.mubr.f32.mxu0 0.0
      %2695 = vmatmul.mubr.f32.gmra.mxu0 %v2594
      %v2696 = vpop.f32.mrf.mxu0
      %v2697 = vadd.f32 0.0, %v2696
      %v2698 = vpop.f32.mrf.mxu0
      %2699 = vmatprep.mubr.f32.mxu0 0.0
      %2700 = vmatmul.mubr.f32.gmra.mxu0 %v2597
      %v2701 = vpop.f32.mrf.mxu0
      %v2702 = vadd.f32 0.0, %v2701
      %v2703 = vpop.f32.mrf.mxu0
      %2704 = vmatprep.mubr.f32.mxu0 0.0
      %2705 = vmatmul.mubr.f32.gmra.mxu0 %v2600
      %v2706 = vpop.f32.mrf.mxu0
      %v2707 = vadd.f32 0.0, %v2706
      %v2708 = vpop.f32.mrf.mxu0
      %2709 = vdwg.mxu0
      %v2710 = vadd.f32 %v2560, %v2672
      %v2711 = vadd.f32 %v2561, %v2677
      %v2712 = vadd.f32 %v2562, %v2682
      %v2713 = vadd.f32 %v2563, %v2687
      %v2714 = vadd.f32 %v2564, %v2692
      %v2715 = vadd.f32 %v2565, %v2697
      %v2716 = vadd.f32 %v2566, %v2702
      %v2717 = vadd.f32 %v2567, %v2707
      %s2718 = scalar_lea.vmem %s5, 16
      %v2719 = vld [vmem:[%s2718] sm:$0xf]
      %v2721 = vsel %vm539, %v2119, 0
      %v2724 = vsel %vm539, %v2120, 0
      %v2727 = vsel %vm539, %v2121, 0
      %v2730 = vsel %vm539, %v2122, 0
      %v2733 = vsel %vm539, %v2123, 0
      %v2736 = vsel %vm539, %v2124, 0
      %v2739 = vsel %vm539, %v2125, 0
      %v2742 = vsel %vm539, %v2126, 0
      %v2745 = vsel %vm691, %v2719, 0
      %2747 = vmatprep.subr.mxu0 0.0
      %2748 = vmatpush1.msra.mxu0 0.0
      %2749 = vmatprep.subr.mxu0 0.0
      %2750 = vmatpush1.msra.mxu0 0.0
      %2751 = vmatprep.subr.mxu0 0.0
      %2752 = vmatpush1.msra.mxu0 0.0
      %2753 = vmatprep.subr.mxu0 0.0
      %2754 = vmatpush1.msra.mxu0 0.0
      %2755 = vmatprep.subr.mxu0 0.0
      %2756 = vmatpush1.msra.mxu0 0.0
      %2757 = vmatprep.subr.mxu0 0.0
      %2758 = vmatpush1.msra.mxu0 0.0
      %2759 = vmatprep.subr.mxu0 0.0
      %2760 = vmatpush1.msra.mxu0 0.0
      %2761 = vmatprep.subr.mxu0 0.0
      %2762 = vmatpush1.msra.mxu0 0.0
      %2763 = vmatprep.subr.mxu0 0.0
      %2764 = vmatpush1.msra.mxu0 0.0
      %2765 = vmatprep.subr.mxu0 0.0
      %2766 = vmatpush1.msra.mxu0 0.0
      %2767 = vmatprep.subr.mxu0 0.0
      %2768 = vmatpush1.msra.mxu0 0.0
      %2769 = vmatprep.subr.mxu0 0.0
      %2770 = vmatpush1.msra.mxu0 0.0
      %2771 = vmatprep.subr.mxu0 0.0
      %2772 = vmatpush1.msra.mxu0 0.0
      %2773 = vmatprep.subr.mxu0 0.0
      %2774 = vmatpush1.msra.mxu0 0.0
      %2775 = vmatprep.subr.mxu0 0.0
      %2776 = vmatpush1.msra.mxu0 0.0
      %2777 = vmatprep.subr.mxu0 0.0
      %2778 = vmatpush1.msra.mxu0 %v2745
      %2779 = vmatprep.subr.mxu0 0.0
      %2780 = vmatpush2.msra.mxu0 0.0
      %2781 = vmatprep.subr.mxu0 0.0
      %2782 = vmatpush2.msra.mxu0 0.0
      %2783 = vmatprep.subr.mxu0 0.0
      %2784 = vmatpush2.msra.mxu0 0.0
      %2785 = vmatprep.subr.mxu0 0.0
      %2786 = vmatpush2.msra.mxu0 0.0
      %2787 = vmatprep.subr.mxu0 0.0
      %2788 = vmatpush2.msra.mxu0 0.0
      %2789 = vmatprep.subr.mxu0 0.0
      %2790 = vmatpush2.msra.mxu0 0.0
      %2791 = vmatprep.subr.mxu0 0.0
      %2792 = vmatpush2.msra.mxu0 0.0
      %2793 = vmatprep.subr.mxu0 0.0
      %2794 = vmatpush2.msra.mxu0 0.0
      %2795 = vmatprep.subr.mxu0 0.0
      %2796 = vmatpush2.msra.mxu0 0.0
      %2797 = vmatprep.subr.mxu0 0.0
      %2798 = vmatpush2.msra.mxu0 0.0
      %2799 = vmatprep.subr.mxu0 0.0
      %2800 = vmatpush2.msra.mxu0 0.0
      %2801 = vmatprep.subr.mxu0 0.0
      %2802 = vmatpush2.msra.mxu0 0.0
      %2803 = vmatprep.subr.mxu0 0.0
      %2804 = vmatpush2.msra.mxu0 0.0
      %2805 = vmatprep.subr.mxu0 0.0
      %2806 = vmatpush2.msra.mxu0 0.0
      %2807 = vmatprep.subr.mxu0 0.0
      %2808 = vmatpush2.msra.mxu0 0.0
      %2809 = vmatprep.subr.mxu0 0.0
      %2810 = vmatpush2.msra.mxu0 0.0
      %2811 = vmatprep.mubr.f32.mxu0 0.0
      %2812 = vmatmul.mubr.f32.gmra.mxu0 %v2721
      %v2813 = vpop.f32.mrf.mxu0
      %v2814 = vadd.f32 0.0, %v2813
      %v2815 = vpop.f32.mrf.mxu0
      %2816 = vmatprep.mubr.f32.mxu0 0.0
      %2817 = vmatmul.mubr.f32.gmra.mxu0 %v2724
      %v2818 = vpop.f32.mrf.mxu0
      %v2819 = vadd.f32 0.0, %v2818
      %v2820 = vpop.f32.mrf.mxu0
      %2821 = vmatprep.mubr.f32.mxu0 0.0
      %2822 = vmatmul.mubr.f32.gmra.mxu0 %v2727
      %v2823 = vpop.f32.mrf.mxu0
      %v2824 = vadd.f32 0.0, %v2823
      %v2825 = vpop.f32.mrf.mxu0
      %2826 = vmatprep.mubr.f32.mxu0 0.0
      %2827 = vmatmul.mubr.f32.gmra.mxu0 %v2730
      %v2828 = vpop.f32.mrf.mxu0
      %v2829 = vadd.f32 0.0, %v2828
      %v2830 = vpop.f32.mrf.mxu0
      %2831 = vmatprep.mubr.f32.mxu0 0.0
      %2832 = vmatmul.mubr.f32.gmra.mxu0 %v2733
      %v2833 = vpop.f32.mrf.mxu0
      %v2834 = vadd.f32 0.0, %v2833
      %v2835 = vpop.f32.mrf.mxu0
      %2836 = vmatprep.mubr.f32.mxu0 0.0
      %2837 = vmatmul.mubr.f32.gmra.mxu0 %v2736
      %v2838 = vpop.f32.mrf.mxu0
      %v2839 = vadd.f32 0.0, %v2838
      %v2840 = vpop.f32.mrf.mxu0
      %2841 = vmatprep.mubr.f32.mxu0 0.0
      %2842 = vmatmul.mubr.f32.gmra.mxu0 %v2739
      %v2843 = vpop.f32.mrf.mxu0
      %v2844 = vadd.f32 0.0, %v2843
      %v2845 = vpop.f32.mrf.mxu0
      %2846 = vmatprep.mubr.f32.mxu0 0.0
      %2847 = vmatmul.mubr.f32.gmra.mxu0 %v2742
      %v2848 = vpop.f32.mrf.mxu0
      %v2849 = vadd.f32 0.0, %v2848
      %v2850 = vpop.f32.mrf.mxu0
      %2851 = vdwg.mxu0
      %v2852 = vadd.f32 %v2710, %v2814
      %v2853 = vadd.f32 %v2711, %v2819
      %v2854 = vadd.f32 %v2712, %v2824
      %v2855 = vadd.f32 %v2713, %v2829
      %v2856 = vadd.f32 %v2714, %v2834
      %v2857 = vadd.f32 %v2715, %v2839
      %v2858 = vadd.f32 %v2716, %v2844
      %v2859 = vadd.f32 %v2717, %v2849
      %v2860 = vld [vmem:[%s639 + $0x2] sm:$0xff]
      %v2861 = vld [vmem:[%s639 + $0x12] sm:$0xff]
      %v2862 = vld [vmem:[%s639 + $0x22] sm:$0xff]
      %v2863 = vld [vmem:[%s639 + $0x32] sm:$0xff]
      %v2864 = vld [vmem:[%s639 + $0x42] sm:$0xff]
      %v2865 = vld [vmem:[%s639 + $0x52] sm:$0xff]
      %v2866 = vld [vmem:[%s639 + $0x62] sm:$0xff]
      %v2867 = vld [vmem:[%s639 + $0x72] sm:$0xff]
      %s2868 = scalar_lea.vmem %s5, 20
      %v2869 = vld [vmem:[%s2868] sm:$0xf]
      %v2871 = vsel %vm539, %v2860, 0
      %v2874 = vsel %vm539, %v2861, 0
      %v2877 = vsel %vm539, %v2862, 0
      %v2880 = vsel %vm539, %v2863, 0
      %v2883 = vsel %vm539, %v2864, 0
      %v2886 = vsel %vm539, %v2865, 0
      %v2889 = vsel %vm539, %v2866, 0
      %v2892 = vsel %vm539, %v2867, 0
      %v2895 = vsel %vm691, %v2869, 0
      %2897 = vmatprep.subr.mxu0 0.0
      %2898 = vmatpush1.msra.mxu0 0.0
      %2899 = vmatprep.subr.mxu0 0.0
      %2900 = vmatpush1.msra.mxu0 0.0
      %2901 = vmatprep.subr.mxu0 0.0
      %2902 = vmatpush1.msra.mxu0 0.0
      %2903 = vmatprep.subr.mxu0 0.0
      %2904 = vmatpush1.msra.mxu0 0.0
      %2905 = vmatprep.subr.mxu0 0.0
      %2906 = vmatpush1.msra.mxu0 0.0
      %2907 = vmatprep.subr.mxu0 0.0
      %2908 = vmatpush1.msra.mxu0 0.0
      %2909 = vmatprep.subr.mxu0 0.0
      %2910 = vmatpush1.msra.mxu0 0.0
      %2911 = vmatprep.subr.mxu0 0.0
      %2912 = vmatpush1.msra.mxu0 0.0
      %2913 = vmatprep.subr.mxu0 0.0
      %2914 = vmatpush1.msra.mxu0 0.0
      %2915 = vmatprep.subr.mxu0 0.0
      %2916 = vmatpush1.msra.mxu0 0.0
      %2917 = vmatprep.subr.mxu0 0.0
      %2918 = vmatpush1.msra.mxu0 0.0
      %2919 = vmatprep.subr.mxu0 0.0
      %2920 = vmatpush1.msra.mxu0 0.0
      %2921 = vmatprep.subr.mxu0 0.0
      %2922 = vmatpush1.msra.mxu0 0.0
      %2923 = vmatprep.subr.mxu0 0.0
      %2924 = vmatpush1.msra.mxu0 0.0
      %2925 = vmatprep.subr.mxu0 0.0
      %2926 = vmatpush1.msra.mxu0 0.0
      %2927 = vmatprep.subr.mxu0 0.0
      %2928 = vmatpush1.msra.mxu0 %v2895
      %2929 = vmatprep.subr.mxu0 0.0
      %2930 = vmatpush2.msra.mxu0 0.0
      %2931 = vmatprep.subr.mxu0 0.0
      %2932 = vmatpush2.msra.mxu0 0.0
      %2933 = vmatprep.subr.mxu0 0.0
      %2934 = vmatpush2.msra.mxu0 0.0
      %2935 = vmatprep.subr.mxu0 0.0
      %2936 = vmatpush2.msra.mxu0 0.0
      %2937 = vmatprep.subr.mxu0 0.0
      %2938 = vmatpush2.msra.mxu0 0.0
      %2939 = vmatprep.subr.mxu0 0.0
      %2940 = vmatpush2.msra.mxu0 0.0
      %2941 = vmatprep.subr.mxu0 0.0
      %2942 = vmatpush2.msra.mxu0 0.0
      %2943 = vmatprep.subr.mxu0 0.0
      %2944 = vmatpush2.msra.mxu0 0.0
      %2945 = vmatprep.subr.mxu0 0.0
      %2946 = vmatpush2.msra.mxu0 0.0
      %2947 = vmatprep.subr.mxu0 0.0
      %2948 = vmatpush2.msra.mxu0 0.0
      %2949 = vmatprep.subr.mxu0 0.0
      %2950 = vmatpush2.msra.mxu0 0.0
      %2951 = vmatprep.subr.mxu0 0.0
      %2952 = vmatpush2.msra.mxu0 0.0
      %2953 = vmatprep.subr.mxu0 0.0
      %2954 = vmatpush2.msra.mxu0 0.0
      %2955 = vmatprep.subr.mxu0 0.0
      %2956 = vmatpush2.msra.mxu0 0.0
      %2957 = vmatprep.subr.mxu0 0.0
      %2958 = vmatpush2.msra.mxu0 0.0
      %2959 = vmatprep.subr.mxu0 0.0
      %2960 = vmatpush2.msra.mxu0 0.0
      %2961 = vmatprep.mubr.f32.mxu0 0.0
      %2962 = vmatmul.mubr.f32.gmra.mxu0 %v2871
      %v2963 = vpop.f32.mrf.mxu0
      %v2964 = vadd.f32 0.0, %v2963
      %v2965 = vpop.f32.mrf.mxu0
      %2966 = vmatprep.mubr.f32.mxu0 0.0
      %2967 = vmatmul.mubr.f32.gmra.mxu0 %v2874
      %v2968 = vpop.f32.mrf.mxu0
      %v2969 = vadd.f32 0.0, %v2968
      %v2970 = vpop.f32.mrf.mxu0
      %2971 = vmatprep.mubr.f32.mxu0 0.0
      %2972 = vmatmul.mubr.f32.gmra.mxu0 %v2877
      %v2973 = vpop.f32.mrf.mxu0
      %v2974 = vadd.f32 0.0, %v2973
      %v2975 = vpop.f32.mrf.mxu0
      %2976 = vmatprep.mubr.f32.mxu0 0.0
      %2977 = vmatmul.mubr.f32.gmra.mxu0 %v2880
      %v2978 = vpop.f32.mrf.mxu0
      %v2979 = vadd.f32 0.0, %v2978
      %v2980 = vpop.f32.mrf.mxu0
      %2981 = vmatprep.mubr.f32.mxu0 0.0
      %2982 = vmatmul.mubr.f32.gmra.mxu0 %v2883
      %v2983 = vpop.f32.mrf.mxu0
      %v2984 = vadd.f32 0.0, %v2983
      %v2985 = vpop.f32.mrf.mxu0
      %2986 = vmatprep.mubr.f32.mxu0 0.0
      %2987 = vmatmul.mubr.f32.gmra.mxu0 %v2886
      %v2988 = vpop.f32.mrf.mxu0
      %v2989 = vadd.f32 0.0, %v2988
      %v2990 = vpop.f32.mrf.mxu0
      %2991 = vmatprep.mubr.f32.mxu0 0.0
      %2992 = vmatmul.mubr.f32.gmra.mxu0 %v2889
      %v2993 = vpop.f32.mrf.mxu0
      %v2994 = vadd.f32 0.0, %v2993
      %v2995 = vpop.f32.mrf.mxu0
      %2996 = vmatprep.mubr.f32.mxu0 0.0
      %2997 = vmatmul.mubr.f32.gmra.mxu0 %v2892
      %v2998 = vpop.f32.mrf.mxu0
      %v2999 = vadd.f32 0.0, %v2998
      %v3000 = vpop.f32.mrf.mxu0
      %3001 = vdwg.mxu0
      %v3002 = vadd.f32 %v2852, %v2964
      %v3003 = vadd.f32 %v2853, %v2969
      %v3004 = vadd.f32 %v2854, %v2974
      %v3005 = vadd.f32 %v2855, %v2979
      %v3006 = vadd.f32 %v2856, %v2984
      %v3007 = vadd.f32 %v2857, %v2989
      %v3008 = vadd.f32 %v2858, %v2994
      %v3009 = vadd.f32 %v2859, %v2999
      %v3010 = vld [vmem:[%s1524] sm:$0xff]
      %v3011 = vld [vmem:[%s1524 + $0x10] sm:$0xff]
      %v3012 = vld [vmem:[%s1524 + $0x20] sm:$0xff]
      %v3013 = vld [vmem:[%s1524 + $0x30] sm:$0xff]
      %v3014 = vld [vmem:[%s1524 + $0x40] sm:$0xff]
      %v3015 = vld [vmem:[%s1524 + $0x50] sm:$0xff]
      %v3016 = vld [vmem:[%s1524 + $0x60] sm:$0xff]
      %v3017 = vld [vmem:[%s1524 + $0x70] sm:$0xff]
      %s3018 = scalar_lea.vmem %s5, 24
      %v3019 = vld [vmem:[%s3018] sm:$0xf]
      %v3021 = vsel %vm539, %v3010, 0
      %v3024 = vsel %vm539, %v3011, 0
      %v3027 = vsel %vm539, %v3012, 0
      %v3030 = vsel %vm539, %v3013, 0
      %v3033 = vsel %vm539, %v3014, 0
      %v3036 = vsel %vm539, %v3015, 0
      %v3039 = vsel %vm539, %v3016, 0
      %v3042 = vsel %vm539, %v3017, 0
      %v3045 = vsel %vm691, %v3019, 0
      %3047 = vmatprep.subr.mxu0 0.0
      %3048 = vmatpush1.msra.mxu0 0.0
      %3049 = vmatprep.subr.mxu0 0.0
      %3050 = vmatpush1.msra.mxu0 0.0
      %3051 = vmatprep.subr.mxu0 0.0
      %3052 = vmatpush1.msra.mxu0 0.0
      %3053 = vmatprep.subr.mxu0 0.0
      %3054 = vmatpush1.msra.mxu0 0.0
      %3055 = vmatprep.subr.mxu0 0.0
      %3056 = vmatpush1.msra.mxu0 0.0
      %3057 = vmatprep.subr.mxu0 0.0
      %3058 = vmatpush1.msra.mxu0 0.0
      %3059 = vmatprep.subr.mxu0 0.0
      %3060 = vmatpush1.msra.mxu0 0.0
      %3061 = vmatprep.subr.mxu0 0.0
      %3062 = vmatpush1.msra.mxu0 0.0
      %3063 = vmatprep.subr.mxu0 0.0
      %3064 = vmatpush1.msra.mxu0 0.0
      %3065 = vmatprep.subr.mxu0 0.0
      %3066 = vmatpush1.msra.mxu0 0.0
      %3067 = vmatprep.subr.mxu0 0.0
      %3068 = vmatpush1.msra.mxu0 0.0
      %3069 = vmatprep.subr.mxu0 0.0
      %3070 = vmatpush1.msra.mxu0 0.0
      %3071 = vmatprep.subr.mxu0 0.0
      %3072 = vmatpush1.msra.mxu0 0.0
      %3073 = vmatprep.subr.mxu0 0.0
      %3074 = vmatpush1.msra.mxu0 0.0
      %3075 = vmatprep.subr.mxu0 0.0
      %3076 = vmatpush1.msra.mxu0 0.0
      %3077 = vmatprep.subr.mxu0 0.0
      %3078 = vmatpush1.msra.mxu0 %v3045
      %3079 = vmatprep.subr.mxu0 0.0
      %3080 = vmatpush2.msra.mxu0 0.0
      %3081 = vmatprep.subr.mxu0 0.0
      %3082 = vmatpush2.msra.mxu0 0.0
      %3083 = vmatprep.subr.mxu0 0.0
      %3084 = vmatpush2.msra.mxu0 0.0
      %3085 = vmatprep.subr.mxu0 0.0
      %3086 = vmatpush2.msra.mxu0 0.0
      %3087 = vmatprep.subr.mxu0 0.0
      %3088 = vmatpush2.msra.mxu0 0.0
      %3089 = vmatprep.subr.mxu0 0.0
      %3090 = vmatpush2.msra.mxu0 0.0
      %3091 = vmatprep.subr.mxu0 0.0
      %3092 = vmatpush2.msra.mxu0 0.0
      %3093 = vmatprep.subr.mxu0 0.0
      %3094 = vmatpush2.msra.mxu0 0.0
      %3095 = vmatprep.subr.mxu0 0.0
      %3096 = vmatpush2.msra.mxu0 0.0
      %3097 = vmatprep.subr.mxu0 0.0
      %3098 = vmatpush2.msra.mxu0 0.0
      %3099 = vmatprep.subr.mxu0 0.0
      %3100 = vmatpush2.msra.mxu0 0.0
      %3101 = vmatprep.subr.mxu0 0.0
      %3102 = vmatpush2.msra.mxu0 0.0
      %3103 = vmatprep.subr.mxu0 0.0
      %3104 = vmatpush2.msra.mxu0 0.0
      %3105 = vmatprep.subr.mxu0 0.0
      %3106 = vmatpush2.msra.mxu0 0.0
      %3107 = vmatprep.subr.mxu0 0.0
      %3108 = vmatpush2.msra.mxu0 0.0
      %3109 = vmatprep.subr.mxu0 0.0
      %3110 = vmatpush2.msra.mxu0 0.0
      %3111 = vmatprep.mubr.f32.mxu0 0.0
      %3112 = vmatmul.mubr.f32.gmra.mxu0 %v3021
      %v3113 = vpop.f32.mrf.mxu0
      %v3114 = vadd.f32 0.0, %v3113
      %v3115 = vpop.f32.mrf.mxu0
      %3116 = vmatprep.mubr.f32.mxu0 0.0
      %3117 = vmatmul.mubr.f32.gmra.mxu0 %v3024
      %v3118 = vpop.f32.mrf.mxu0
      %v3119 = vadd.f32 0.0, %v3118
      %v3120 = vpop.f32.mrf.mxu0
      %3121 = vmatprep.mubr.f32.mxu0 0.0
      %3122 = vmatmul.mubr.f32.gmra.mxu0 %v3027
      %v3123 = vpop.f32.mrf.mxu0
      %v3124 = vadd.f32 0.0, %v3123
      %v3125 = vpop.f32.mrf.mxu0
      %3126 = vmatprep.mubr.f32.mxu0 0.0
      %3127 = vmatmul.mubr.f32.gmra.mxu0 %v3030
      %v3128 = vpop.f32.mrf.mxu0
      %v3129 = vadd.f32 0.0, %v3128
      %v3130 = vpop.f32.mrf.mxu0
      %3131 = vmatprep.mubr.f32.mxu0 0.0
      %3132 = vmatmul.mubr.f32.gmra.mxu0 %v3033
      %v3133 = vpop.f32.mrf.mxu0
      %v3134 = vadd.f32 0.0, %v3133
      %v3135 = vpop.f32.mrf.mxu0
      %3136 = vmatprep.mubr.f32.mxu0 0.0
      %3137 = vmatmul.mubr.f32.gmra.mxu0 %v3036
      %v3138 = vpop.f32.mrf.mxu0
      %v3139 = vadd.f32 0.0, %v3138
      %v3140 = vpop.f32.mrf.mxu0
      %3141 = vmatprep.mubr.f32.mxu0 0.0
      %3142 = vmatmul.mubr.f32.gmra.mxu0 %v3039
      %v3143 = vpop.f32.mrf.mxu0
      %v3144 = vadd.f32 0.0, %v3143
      %v3145 = vpop.f32.mrf.mxu0
      %3146 = vmatprep.mubr.f32.mxu0 0.0
      %3147 = vmatmul.mubr.f32.gmra.mxu0 %v3042
      %v3148 = vpop.f32.mrf.mxu0
      %v3149 = vadd.f32 0.0, %v3148
      %v3150 = vpop.f32.mrf.mxu0
      %3151 = vdwg.mxu0
      %v3152 = vadd.f32 %v3002, %v3114
      %v3153 = vadd.f32 %v3003, %v3119
      %v3154 = vadd.f32 %v3004, %v3124
      %v3155 = vadd.f32 %v3005, %v3129
      %v3156 = vadd.f32 %v3006, %v3134
      %v3157 = vadd.f32 %v3007, %v3139
      %v3158 = vadd.f32 %v3008, %v3144
      %v3159 = vadd.f32 %v3009, %v3149
      %v3160 = vld [vmem:[%s1524 + $0x1] sm:$0xff]
      %v3161 = vld [vmem:[%s1524 + $0x11] sm:$0xff]
      %v3162 = vld [vmem:[%s1524 + $0x21] sm:$0xff]
      %v3163 = vld [vmem:[%s1524 + $0x31] sm:$0xff]
      %v3164 = vld [vmem:[%s1524 + $0x41] sm:$0xff]
      %v3165 = vld [vmem:[%s1524 + $0x51] sm:$0xff]
      %v3166 = vld [vmem:[%s1524 + $0x61] sm:$0xff]
      %v3167 = vld [vmem:[%s1524 + $0x71] sm:$0xff]
      %s3168 = scalar_lea.vmem %s5, 28
      %v3169 = vld [vmem:[%s3168] sm:$0xf]
      %v3171 = vsel %vm539, %v3160, 0
      %v3174 = vsel %vm539, %v3161, 0
      %v3177 = vsel %vm539, %v3162, 0
      %v3180 = vsel %vm539, %v3163, 0
      %v3183 = vsel %vm539, %v3164, 0
      %v3186 = vsel %vm539, %v3165, 0
      %v3189 = vsel %vm539, %v3166, 0
      %v3192 = vsel %vm539, %v3167, 0
      %v3195 = vsel %vm691, %v3169, 0
      %3197 = vmatprep.subr.mxu0 0.0
      %3198 = vmatpush1.msra.mxu0 0.0
      %3199 = vmatprep.subr.mxu0 0.0
      %3200 = vmatpush1.msra.mxu0 0.0
      %3201 = vmatprep.subr.mxu0 0.0
      %3202 = vmatpush1.msra.mxu0 0.0
      %3203 = vmatprep.subr.mxu0 0.0
      %3204 = vmatpush1.msra.mxu0 0.0
      %3205 = vmatprep.subr.mxu0 0.0
      %3206 = vmatpush1.msra.mxu0 0.0
      %3207 = vmatprep.subr.mxu0 0.0
      %3208 = vmatpush1.msra.mxu0 0.0
      %3209 = vmatprep.subr.mxu0 0.0
      %3210 = vmatpush1.msra.mxu0 0.0
      %3211 = vmatprep.subr.mxu0 0.0
      %3212 = vmatpush1.msra.mxu0 0.0
      %3213 = vmatprep.subr.mxu0 0.0
      %3214 = vmatpush1.msra.mxu0 0.0
      %3215 = vmatprep.subr.mxu0 0.0
      %3216 = vmatpush1.msra.mxu0 0.0
      %3217 = vmatprep.subr.mxu0 0.0
      %3218 = vmatpush1.msra.mxu0 0.0
      %3219 = vmatprep.subr.mxu0 0.0
      %3220 = vmatpush1.msra.mxu0 0.0
      %3221 = vmatprep.subr.mxu0 0.0
      %3222 = vmatpush1.msra.mxu0 0.0
      %3223 = vmatprep.subr.mxu0 0.0
      %3224 = vmatpush1.msra.mxu0 0.0
      %3225 = vmatprep.subr.mxu0 0.0
      %3226 = vmatpush1.msra.mxu0 0.0
      %3227 = vmatprep.subr.mxu0 0.0
      %3228 = vmatpush1.msra.mxu0 %v3195
      %3229 = vmatprep.subr.mxu0 0.0
      %3230 = vmatpush2.msra.mxu0 0.0
      %3231 = vmatprep.subr.mxu0 0.0
      %3232 = vmatpush2.msra.mxu0 0.0
      %3233 = vmatprep.subr.mxu0 0.0
      %3234 = vmatpush2.msra.mxu0 0.0
      %3235 = vmatprep.subr.mxu0 0.0
      %3236 = vmatpush2.msra.mxu0 0.0
      %3237 = vmatprep.subr.mxu0 0.0
      %3238 = vmatpush2.msra.mxu0 0.0
      %3239 = vmatprep.subr.mxu0 0.0
      %3240 = vmatpush2.msra.mxu0 0.0
      %3241 = vmatprep.subr.mxu0 0.0
      %3242 = vmatpush2.msra.mxu0 0.0
      %3243 = vmatprep.subr.mxu0 0.0
      %3244 = vmatpush2.msra.mxu0 0.0
      %3245 = vmatprep.subr.mxu0 0.0
      %3246 = vmatpush2.msra.mxu0 0.0
      %3247 = vmatprep.subr.mxu0 0.0
      %3248 = vmatpush2.msra.mxu0 0.0
      %3249 = vmatprep.subr.mxu0 0.0
      %3250 = vmatpush2.msra.mxu0 0.0
      %3251 = vmatprep.subr.mxu0 0.0
      %3252 = vmatpush2.msra.mxu0 0.0
      %3253 = vmatprep.subr.mxu0 0.0
      %3254 = vmatpush2.msra.mxu0 0.0
      %3255 = vmatprep.subr.mxu0 0.0
      %3256 = vmatpush2.msra.mxu0 0.0
      %3257 = vmatprep.subr.mxu0 0.0
      %3258 = vmatpush2.msra.mxu0 0.0
      %3259 = vmatprep.subr.mxu0 0.0
      %3260 = vmatpush2.msra.mxu0 0.0
      %3261 = vmatprep.mubr.f32.mxu0 0.0
      %3262 = vmatmul.mubr.f32.gmra.mxu0 %v3171
      %v3263 = vpop.f32.mrf.mxu0
      %v3264 = vadd.f32 0.0, %v3263
      %v3265 = vpop.f32.mrf.mxu0
      %3266 = vmatprep.mubr.f32.mxu0 0.0
      %3267 = vmatmul.mubr.f32.gmra.mxu0 %v3174
      %v3268 = vpop.f32.mrf.mxu0
      %v3269 = vadd.f32 0.0, %v3268
      %v3270 = vpop.f32.mrf.mxu0
      %3271 = vmatprep.mubr.f32.mxu0 0.0
      %3272 = vmatmul.mubr.f32.gmra.mxu0 %v3177
      %v3273 = vpop.f32.mrf.mxu0
      %v3274 = vadd.f32 0.0, %v3273
      %v3275 = vpop.f32.mrf.mxu0
      %3276 = vmatprep.mubr.f32.mxu0 0.0
      %3277 = vmatmul.mubr.f32.gmra.mxu0 %v3180
      %v3278 = vpop.f32.mrf.mxu0
      %v3279 = vadd.f32 0.0, %v3278
      %v3280 = vpop.f32.mrf.mxu0
      %3281 = vmatprep.mubr.f32.mxu0 0.0
      %3282 = vmatmul.mubr.f32.gmra.mxu0 %v3183
      %v3283 = vpop.f32.mrf.mxu0
      %v3284 = vadd.f32 0.0, %v3283
      %v3285 = vpop.f32.mrf.mxu0
      %3286 = vmatprep.mubr.f32.mxu0 0.0
      %3287 = vmatmul.mubr.f32.gmra.mxu0 %v3186
      %v3288 = vpop.f32.mrf.mxu0
      %v3289 = vadd.f32 0.0, %v3288
      %v3290 = vpop.f32.mrf.mxu0
      %3291 = vmatprep.mubr.f32.mxu0 0.0
      %3292 = vmatmul.mubr.f32.gmra.mxu0 %v3189
      %v3293 = vpop.f32.mrf.mxu0
      %v3294 = vadd.f32 0.0, %v3293
      %v3295 = vpop.f32.mrf.mxu0
      %3296 = vmatprep.mubr.f32.mxu0 0.0
      %3297 = vmatmul.mubr.f32.gmra.mxu0 %v3192
      %v3298 = vpop.f32.mrf.mxu0
      %v3299 = vadd.f32 0.0, %v3298
      %v3300 = vpop.f32.mrf.mxu0
      %3301 = vdwg.mxu0
      %v3302 = vadd.f32 %v3152, %v3264
      %v3303 = vadd.f32 %v3153, %v3269
      %v3304 = vadd.f32 %v3154, %v3274
      %v3305 = vadd.f32 %v3155, %v3279
      %v3306 = vadd.f32 %v3156, %v3284
      %v3307 = vadd.f32 %v3157, %v3289
      %v3308 = vadd.f32 %v3158, %v3294
      %v3309 = vadd.f32 %v3159, %v3299
      %v3310 = vld [vmem:[%s1524 + $0x2] sm:$0xff]
      %v3311 = vld [vmem:[%s1524 + $0x12] sm:$0xff]
      %v3312 = vld [vmem:[%s1524 + $0x22] sm:$0xff]
      %v3313 = vld [vmem:[%s1524 + $0x32] sm:$0xff]
      %v3314 = vld [vmem:[%s1524 + $0x42] sm:$0xff]
      %v3315 = vld [vmem:[%s1524 + $0x52] sm:$0xff]
      %v3316 = vld [vmem:[%s1524 + $0x62] sm:$0xff]
      %v3317 = vld [vmem:[%s1524 + $0x72] sm:$0xff]
      %s3318 = scalar_lea.vmem %s5, 32
      %v3319 = vld [vmem:[%s3318] sm:$0xf]
      %v3321 = vsel %vm539, %v3310, 0
      %v3324 = vsel %vm539, %v3311, 0
      %v3327 = vsel %vm539, %v3312, 0
      %v3330 = vsel %vm539, %v3313, 0
      %v3333 = vsel %vm539, %v3314, 0
      %v3336 = vsel %vm539, %v3315, 0
      %v3339 = vsel %vm539, %v3316, 0
      %v3342 = vsel %vm539, %v3317, 0
      %v3345 = vsel %vm691, %v3319, 0
      %3347 = vmatprep.subr.mxu0 0.0
      %3348 = vmatpush1.msra.mxu0 0.0
      %3349 = vmatprep.subr.mxu0 0.0
      %3350 = vmatpush1.msra.mxu0 0.0
      %3351 = vmatprep.subr.mxu0 0.0
      %3352 = vmatpush1.msra.mxu0 0.0
      %3353 = vmatprep.subr.mxu0 0.0
      %3354 = vmatpush1.msra.mxu0 0.0
      %3355 = vmatprep.subr.mxu0 0.0
      %3356 = vmatpush1.msra.mxu0 0.0
      %3357 = vmatprep.subr.mxu0 0.0
      %3358 = vmatpush1.msra.mxu0 0.0
      %3359 = vmatprep.subr.mxu0 0.0
      %3360 = vmatpush1.msra.mxu0 0.0
      %3361 = vmatprep.subr.mxu0 0.0
      %3362 = vmatpush1.msra.mxu0 0.0
      %3363 = vmatprep.subr.mxu0 0.0
      %3364 = vmatpush1.msra.mxu0 0.0
      %3365 = vmatprep.subr.mxu0 0.0
      %3366 = vmatpush1.msra.mxu0 0.0
      %3367 = vmatprep.subr.mxu0 0.0
      %3368 = vmatpush1.msra.mxu0 0.0
      %3369 = vmatprep.subr.mxu0 0.0
      %3370 = vmatpush1.msra.mxu0 0.0
      %3371 = vmatprep.subr.mxu0 0.0
      %3372 = vmatpush1.msra.mxu0 0.0
      %3373 = vmatprep.subr.mxu0 0.0
      %3374 = vmatpush1.msra.mxu0 0.0
      %3375 = vmatprep.subr.mxu0 0.0
      %3376 = vmatpush1.msra.mxu0 0.0
      %3377 = vmatprep.subr.mxu0 0.0
      %3378 = vmatpush1.msra.mxu0 %v3345
      %3379 = vmatprep.subr.mxu0 0.0
      %3380 = vmatpush2.msra.mxu0 0.0
      %3381 = vmatprep.subr.mxu0 0.0
      %3382 = vmatpush2.msra.mxu0 0.0
      %3383 = vmatprep.subr.mxu0 0.0
      %3384 = vmatpush2.msra.mxu0 0.0
      %3385 = vmatprep.subr.mxu0 0.0
      %3386 = vmatpush2.msra.mxu0 0.0
      %3387 = vmatprep.subr.mxu0 0.0
      %3388 = vmatpush2.msra.mxu0 0.0
      %3389 = vmatprep.subr.mxu0 0.0
      %3390 = vmatpush2.msra.mxu0 0.0
      %3391 = vmatprep.subr.mxu0 0.0
      %3392 = vmatpush2.msra.mxu0 0.0
      %3393 = vmatprep.subr.mxu0 0.0
      %3394 = vmatpush2.msra.mxu0 0.0
      %3395 = vmatprep.subr.mxu0 0.0
      %3396 = vmatpush2.msra.mxu0 0.0
      %3397 = vmatprep.subr.mxu0 0.0
      %3398 = vmatpush2.msra.mxu0 0.0
      %3399 = vmatprep.subr.mxu0 0.0
      %3400 = vmatpush2.msra.mxu0 0.0
      %3401 = vmatprep.subr.mxu0 0.0
      %3402 = vmatpush2.msra.mxu0 0.0
      %3403 = vmatprep.subr.mxu0 0.0
      %3404 = vmatpush2.msra.mxu0 0.0
      %3405 = vmatprep.subr.mxu0 0.0
      %3406 = vmatpush2.msra.mxu0 0.0
      %3407 = vmatprep.subr.mxu0 0.0
      %3408 = vmatpush2.msra.mxu0 0.0
      %3409 = vmatprep.subr.mxu0 0.0
      %3410 = vmatpush2.msra.mxu0 0.0
      %3411 = vmatprep.mubr.f32.mxu0 0.0
      %3412 = vmatmul.mubr.f32.gmra.mxu0 %v3321
      %v3413 = vpop.f32.mrf.mxu0
      %v3414 = vadd.f32 0.0, %v3413
      %v3415 = vpop.f32.mrf.mxu0
      %3416 = vmatprep.mubr.f32.mxu0 0.0
      %3417 = vmatmul.mubr.f32.gmra.mxu0 %v3324
      %v3418 = vpop.f32.mrf.mxu0
      %v3419 = vadd.f32 0.0, %v3418
      %v3420 = vpop.f32.mrf.mxu0
      %3421 = vmatprep.mubr.f32.mxu0 0.0
      %3422 = vmatmul.mubr.f32.gmra.mxu0 %v3327
      %v3423 = vpop.f32.mrf.mxu0
      %v3424 = vadd.f32 0.0, %v3423
      %v3425 = vpop.f32.mrf.mxu0
      %3426 = vmatprep.mubr.f32.mxu0 0.0
      %3427 = vmatmul.mubr.f32.gmra.mxu0 %v3330
      %v3428 = vpop.f32.mrf.mxu0
      %v3429 = vadd.f32 0.0, %v3428
      %v3430 = vpop.f32.mrf.mxu0
      %3431 = vmatprep.mubr.f32.mxu0 0.0
      %3432 = vmatmul.mubr.f32.gmra.mxu0 %v3333
      %v3433 = vpop.f32.mrf.mxu0
      %v3434 = vadd.f32 0.0, %v3433
      %v3435 = vpop.f32.mrf.mxu0
      %3436 = vmatprep.mubr.f32.mxu0 0.0
      %3437 = vmatmul.mubr.f32.gmra.mxu0 %v3336
      %v3438 = vpop.f32.mrf.mxu0
      %v3439 = vadd.f32 0.0, %v3438
      %v3440 = vpop.f32.mrf.mxu0
      %3441 = vmatprep.mubr.f32.mxu0 0.0
      %3442 = vmatmul.mubr.f32.gmra.mxu0 %v3339
      %v3443 = vpop.f32.mrf.mxu0
      %v3444 = vadd.f32 0.0, %v3443
      %v3445 = vpop.f32.mrf.mxu0
      %3446 = vmatprep.mubr.f32.mxu0 0.0
      %3447 = vmatmul.mubr.f32.gmra.mxu0 %v3342
      %v3448 = vpop.f32.mrf.mxu0
      %v3449 = vadd.f32 0.0, %v3448
      %v3450 = vpop.f32.mrf.mxu0
      %3451 = vdwg.mxu0
      %v3452 = vadd.f32 %v3302, %v3414
      %v3453 = vadd.f32 %v3303, %v3419
      %v3454 = vadd.f32 %v3304, %v3424
      %v3455 = vadd.f32 %v3305, %v3429
      %v3456 = vadd.f32 %v3306, %v3434
      %v3457 = vadd.f32 %v3307, %v3439
      %v3458 = vadd.f32 %v3308, %v3444
      %v3459 = vadd.f32 %v3309, %v3449
      %v3460 = vsel %vm539, %v3452, 0.0
      %v3461 = vsel %vm539, %v3453, 0.0
      %v3462 = vadd.f32 %v3460, %v3461
      %v3463 = vsel %vm539, %v3454, 0.0
      %v3464 = vadd.f32 %v3462, %v3463
      %v3465 = vsel %vm539, %v3455, 0.0
      %v3466 = vadd.f32 %v3464, %v3465
      %v3467 = vsel %vm539, %v3456, 0.0
      %v3468 = vadd.f32 %v3466, %v3467
      %v3469 = vsel %vm539, %v3457, 0.0
      %v3470 = vadd.f32 %v3468, %v3469
      %v3471 = vsel %vm539, %v3458, 0.0
      %v3472 = vadd.f32 %v3470, %v3471
      %v3473 = vsel %vm539, %v3459, 0.0
      %v3474 = vadd.f32 %v3472, %v3473
      %3475 = vadd.xlane.f32.xlu0 %v3474
      %v3476 = vpop.xlane.xlu0 %3475
      %v3477 = vrot.slane %v3476, 4
      %v3478 = vadd.f32 %v3476, %v3477
      %v3479 = vrot.slane %v3478, 2
      %v3480 = vadd.f32 %v3478, %v3479
      %v3481 = vrot.slane %v3480, 1
      %v3482 = vadd.f32 %v3480, %v3481
      %s3483 = vtos %v3482
      %v3484 = vmul.f32 %v3452, %v3452
      %v3485 = vmul.f32 %v3453, %v3453
      %v3486 = vmul.f32 %v3454, %v3454
      %v3487 = vmul.f32 %v3455, %v3455
      %v3488 = vmul.f32 %v3456, %v3456
      %v3489 = vmul.f32 %v3457, %v3457
      %v3490 = vmul.f32 %v3458, %v3458
      %v3491 = vmul.f32 %v3459, %v3459
      %v3492 = vsel %vm539, %v3484, 0.0
      %v3493 = vsel %vm539, %v3485, 0.0
      %v3494 = vadd.f32 %v3492, %v3493
      %v3495 = vsel %vm539, %v3486, 0.0
      %v3496 = vadd.f32 %v3494, %v3495
      %v3497 = vsel %vm539, %v3487, 0.0
      %v3498 = vadd.f32 %v3496, %v3497
      %v3499 = vsel %vm539, %v3488, 0.0
      %v3500 = vadd.f32 %v3498, %v3499
      %v3501 = vsel %vm539, %v3489, 0.0
      %v3502 = vadd.f32 %v3500, %v3501
      %v3503 = vsel %vm539, %v3490, 0.0
      %v3504 = vadd.f32 %v3502, %v3503
      %v3505 = vsel %vm539, %v3491, 0.0
      %v3506 = vadd.f32 %v3504, %v3505
      %3507 = vadd.xlane.f32.xlu0 %v3506
      %v3508 = vpop.xlane.xlu0 %3507
      %v3509 = vrot.slane %v3508, 4
      %v3510 = vadd.f32 %v3508, %v3509
      %v3511 = vrot.slane %v3510, 2
      %v3512 = vadd.f32 %v3510, %v3511
      %v3513 = vrot.slane %v3512, 1
      %v3514 = vadd.f32 %v3512, %v3513
      %s3515 = vtos %v3514
      %s3516 = smul.f32 %s3483, 0.00390625
      %s3517 = smul.f32 %s3515, 0.00390625
      %s3518 = smul.f32 %s3516, %s3516
      %s3519 = ssub.f32 %s3517, %s3518
      %v3520 = vstv %s3516
      %v3521 = vsub.f32 %v3452, %v3520
      %v3522 = vsub.f32 %v3453, %v3520
      %v3523 = vsub.f32 %v3454, %v3520
      %v3524 = vsub.f32 %v3455, %v3520
      %v3525 = vsub.f32 %v3456, %v3520
      %v3526 = vsub.f32 %v3457, %v3520
      %v3527 = vsub.f32 %v3458, %v3520
      %v3528 = vsub.f32 %v3459, %v3520
      %s3529 = sadd.f32 %s3519, 1e-05
      %v3530 = vstv %s3529
      %v3531 = vrsqrt.pop %v3530
      %s3532 = vtos %v3531
      %v3533 = vstv %s3532
      %v3534 = vmul.f32 %v3521, %v3533
      %v3535 = vmul.f32 %v3522, %v3533
      %v3536 = vmul.f32 %v3523, %v3533
      %v3537 = vmul.f32 %v3524, %v3533
      %v3538 = vmul.f32 %v3525, %v3533
      %v3539 = vmul.f32 %v3526, %v3533
      %v3540 = vmul.f32 %v3527, %v3533
      %v3541 = vmul.f32 %v3528, %v3533
      %v3542 = vld [vmem:[%s6] sm:$0x1]
      %v3544 = vlaneseq
      %v3545 = vshrl.u32 %v3544, 7
      %v3546 = vsub.s32 0, %v3545
      %v3547 = vrot.slane %v3542, %v3546
      %v3549 = vmul.f32 %v3534, %v3547
      %v3550 = vmul.f32 %v3535, %v3547
      %v3551 = vmul.f32 %v3536, %v3547
      %v3552 = vmul.f32 %v3537, %v3547
      %v3553 = vmul.f32 %v3538, %v3547
      %v3554 = vmul.f32 %v3539, %v3547
      %v3555 = vmul.f32 %v3540, %v3547
      %v3556 = vmul.f32 %v3541, %v3547
      %v3557 = vld [vmem:[%s7] sm:$0x1]
      %v3559 = vlaneseq
      %v3560 = vshrl.u32 %v3559, 7
      %v3561 = vsub.s32 0, %v3560
      %v3562 = vrot.slane %v3557, %v3561
      %v3564 = vadd.f32 %v3549, %v3562
      %v3565 = vadd.f32 %v3550, %v3562
      %v3566 = vadd.f32 %v3551, %v3562
      %v3567 = vadd.f32 %v3552, %v3562
      %v3568 = vadd.f32 %v3553, %v3562
      %v3569 = vadd.f32 %v3554, %v3562
      %v3570 = vadd.f32 %v3555, %v3562
      %v3571 = vadd.f32 %v3556, %v3562
      %v3572 = vadd.f32 %v631, %v3564
      %v3573 = vadd.f32 %v632, %v3565
      %v3574 = vadd.f32 %v633, %v3566
      %v3575 = vadd.f32 %v634, %v3567
      %v3576 = vadd.f32 %v635, %v3568
      %v3577 = vadd.f32 %v636, %v3569
      %v3578 = vadd.f32 %v637, %v3570
      %v3579 = vadd.f32 %v638, %v3571
      %v3580 = vmul.f32 %v3572, 0.5
      %v3581 = vmul.f32 %v3573, 0.5
      %v3582 = vmul.f32 %v3574, 0.5
      %v3583 = vmul.f32 %v3575, 0.5
      %v3584 = vmul.f32 %v3576, 0.5
      %v3585 = vmul.f32 %v3577, 0.5
      %v3586 = vmul.f32 %v3578, 0.5
      %v3587 = vmul.f32 %v3579, 0.5
      %v3588 = vmul.f32 %v3572, 0.70710677
      %v3589 = vmul.f32 %v3573, 0.70710677
      %v3590 = vmul.f32 %v3574, 0.70710677
      %v3591 = vmul.f32 %v3575, 0.70710677
      %v3592 = vmul.f32 %v3576, 0.70710677
      %v3593 = vmul.f32 %v3577, 0.70710677
      %v3594 = vmul.f32 %v3578, 0.70710677
      %v3595 = vmul.f32 %v3579, 0.70710677
      %v3596 = verf.f32.pop %v3588
      %v3597 = verf.f32.pop %v3589
      %v3598 = verf.f32.pop %v3590
      %v3599 = verf.f32.pop %v3591
      %v3600 = verf.f32.pop %v3592
      %v3601 = verf.f32.pop %v3593
      %v3602 = verf.f32.pop %v3594
      %v3603 = verf.f32.pop %v3595
      %v3604 = vadd.f32 %v3596, 1.0
      %v3605 = vadd.f32 %v3597, 1.0
      %v3606 = vadd.f32 %v3598, 1.0
      %v3607 = vadd.f32 %v3599, 1.0
      %v3608 = vadd.f32 %v3600, 1.0
      %v3609 = vadd.f32 %v3601, 1.0
      %v3610 = vadd.f32 %v3602, 1.0
      %v3611 = vadd.f32 %v3603, 1.0
      %v3612 = vmul.f32 %v3580, %v3604
      %v3613 = vmul.f32 %v3581, %v3605
      %v3614 = vmul.f32 %v3582, %v3606
      %v3615 = vmul.f32 %v3583, %v3607
      %v3616 = vmul.f32 %v3584, %v3608
      %v3617 = vmul.f32 %v3585, %v3609
      %v3618 = vmul.f32 %v3586, %v3610
      %v3619 = vmul.f32 %v3587, %v3611
      %3620 = vst.msk [vmem:[%s639 + $0x1] sm:$0xff] %vm539, %v3612
      %3621 = vst.msk [vmem:[%s639 + $0x11] sm:$0xff] %vm539, %v3613
      %3622 = vst.msk [vmem:[%s639 + $0x21] sm:$0xff] %vm539, %v3614
      %3623 = vst.msk [vmem:[%s639 + $0x31] sm:$0xff] %vm539, %v3615
      %3624 = vst.msk [vmem:[%s639 + $0x41] sm:$0xff] %vm539, %v3616
      %3625 = vst.msk [vmem:[%s639 + $0x51] sm:$0xff] %vm539, %v3617
      %3626 = vst.msk [vmem:[%s639 + $0x61] sm:$0xff] %vm539, %v3618
      %3627 = vst.msk [vmem:[%s639 + $0x71] sm:$0xff] %vm539, %v3619
      %v3628 = vld [vmem:[#allocation2] sm:$0xff]
      %v3629 = vld [vmem:[#allocation2 + $0x10] sm:$0xff]
      %v3630 = vld [vmem:[#allocation2 + $0x20] sm:$0xff]
      %v3631 = vld [vmem:[#allocation2 + $0x30] sm:$0xff]
      %v3632 = vld [vmem:[#allocation2 + $0x40] sm:$0xff]
      %v3633 = vld [vmem:[#allocation2 + $0x50] sm:$0xff]
      %v3634 = vld [vmem:[#allocation2 + $0x60] sm:$0xff]
      %v3635 = vld [vmem:[#allocation2 + $0x70] sm:$0xff]
      %v3636 = vld [vmem:[%s8] sm:$0xf]
      %v3637 = vld [vmem:[#allocation2 + $0x1] sm:$0xff]
      %v3638 = vld [vmem:[#allocation2 + $0x11] sm:$0xff]
      %v3639 = vld [vmem:[#allocation2 + $0x21] sm:$0xff]
      %v3640 = vld [vmem:[#allocation2 + $0x31] sm:$0xff]
      %v3641 = vld [vmem:[#allocation2 + $0x41] sm:$0xff]
      %v3642 = vld [vmem:[#allocation2 + $0x51] sm:$0xff]
      %v3643 = vld [vmem:[#allocation2 + $0x61] sm:$0xff]
      %v3644 = vld [vmem:[#allocation2 + $0x71] sm:$0xff]
      %s3645 = scalar_lea.vmem %s8, 4
      %v3646 = vld [vmem:[%s3645] sm:$0xf]
      %v3648 = vsel %vm539, %v3637, 0
      %v3651 = vsel %vm539, %v3638, 0
      %v3654 = vsel %vm539, %v3639, 0
      %v3657 = vsel %vm539, %v3640, 0
      %v3660 = vsel %vm539, %v3641, 0
      %v3663 = vsel %vm539, %v3642, 0
      %v3666 = vsel %vm539, %v3643, 0
      %v3669 = vsel %vm539, %v3644, 0
      %v3672 = vsel %vm691, %v3646, 0
      %3674 = vmatprep.subr.mxu0 0.0
      %3675 = vmatpush1.msra.mxu0 0.0
      %3676 = vmatprep.subr.mxu0 0.0
      %3677 = vmatpush1.msra.mxu0 0.0
      %3678 = vmatprep.subr.mxu0 0.0
      %3679 = vmatpush1.msra.mxu0 0.0
      %3680 = vmatprep.subr.mxu0 0.0
      %3681 = vmatpush1.msra.mxu0 0.0
      %3682 = vmatprep.subr.mxu0 0.0
      %3683 = vmatpush1.msra.mxu0 0.0
      %3684 = vmatprep.subr.mxu0 0.0
      %3685 = vmatpush1.msra.mxu0 0.0
      %3686 = vmatprep.subr.mxu0 0.0
      %3687 = vmatpush1.msra.mxu0 0.0
      %3688 = vmatprep.subr.mxu0 0.0
      %3689 = vmatpush1.msra.mxu0 0.0
      %3690 = vmatprep.subr.mxu0 0.0
      %3691 = vmatpush1.msra.mxu0 0.0
      %3692 = vmatprep.subr.mxu0 0.0
      %3693 = vmatpush1.msra.mxu0 0.0
      %3694 = vmatprep.subr.mxu0 0.0
      %3695 = vmatpush1.msra.mxu0 0.0
      %3696 = vmatprep.subr.mxu0 0.0
      %3697 = vmatpush1.msra.mxu0 0.0
      %3698 = vmatprep.subr.mxu0 0.0
      %3699 = vmatpush1.msra.mxu0 0.0
      %3700 = vmatprep.subr.mxu0 0.0
      %3701 = vmatpush1.msra.mxu0 0.0
      %3702 = vmatprep.subr.mxu0 0.0
      %3703 = vmatpush1.msra.mxu0 0.0
      %3704 = vmatprep.subr.mxu0 0.0
      %3705 = vmatpush1.msra.mxu0 %v3672
      %3706 = vmatprep.subr.mxu0 0.0
      %3707 = vmatpush2.msra.mxu0 0.0
      %3708 = vmatprep.subr.mxu0 0.0
      %3709 = vmatpush2.msra.mxu0 0.0
      %3710 = vmatprep.subr.mxu0 0.0
      %3711 = vmatpush2.msra.mxu0 0.0
      %3712 = vmatprep.subr.mxu0 0.0
      %3713 = vmatpush2.msra.mxu0 0.0
      %3714 = vmatprep.subr.mxu0 0.0
      %3715 = vmatpush2.msra.mxu0 0.0
      %3716 = vmatprep.subr.mxu0 0.0
      %3717 = vmatpush2.msra.mxu0 0.0
      %3718 = vmatprep.subr.mxu0 0.0
      %3719 = vmatpush2.msra.mxu0 0.0
      %3720 = vmatprep.subr.mxu0 0.0
      %3721 = vmatpush2.msra.mxu0 0.0
      %3722 = vmatprep.subr.mxu0 0.0
      %3723 = vmatpush2.msra.mxu0 0.0
      %3724 = vmatprep.subr.mxu0 0.0
      %3725 = vmatpush2.msra.mxu0 0.0
      %3726 = vmatprep.subr.mxu0 0.0
      %3727 = vmatpush2.msra.mxu0 0.0
      %3728 = vmatprep.subr.mxu0 0.0
      %3729 = vmatpush2.msra.mxu0 0.0
      %3730 = vmatprep.subr.mxu0 0.0
      %3731 = vmatpush2.msra.mxu0 0.0
      %3732 = vmatprep.subr.mxu0 0.0
      %3733 = vmatpush2.msra.mxu0 0.0
      %3734 = vmatprep.subr.mxu0 0.0
      %3735 = vmatpush2.msra.mxu0 0.0
      %3736 = vmatprep.subr.mxu0 0.0
      %3737 = vmatpush2.msra.mxu0 0.0
      %3738 = vmatprep.mubr.f32.mxu0 0.0
      %3739 = vmatmul.mubr.f32.gmra.mxu0 %v3648
      %v3740 = vpop.f32.mrf.mxu0
      %v3741 = vadd.f32 0.0, %v3740
      %v3742 = vpop.f32.mrf.mxu0
      %3743 = vmatprep.mubr.f32.mxu0 0.0
      %3744 = vmatmul.mubr.f32.gmra.mxu0 %v3651
      %v3745 = vpop.f32.mrf.mxu0
      %v3746 = vadd.f32 0.0, %v3745
      %v3747 = vpop.f32.mrf.mxu0
      %3748 = vmatprep.mubr.f32.mxu0 0.0
      %3749 = vmatmul.mubr.f32.gmra.mxu0 %v3654
      %v3750 = vpop.f32.mrf.mxu0
      %v3751 = vadd.f32 0.0, %v3750
      %v3752 = vpop.f32.mrf.mxu0
      %3753 = vmatprep.mubr.f32.mxu0 0.0
      %3754 = vmatmul.mubr.f32.gmra.mxu0 %v3657
      %v3755 = vpop.f32.mrf.mxu0
      %v3756 = vadd.f32 0.0, %v3755
      %v3757 = vpop.f32.mrf.mxu0
      %3758 = vmatprep.mubr.f32.mxu0 0.0
      %3759 = vmatmul.mubr.f32.gmra.mxu0 %v3660
      %v3760 = vpop.f32.mrf.mxu0
      %v3761 = vadd.f32 0.0, %v3760
      %v3762 = vpop.f32.mrf.mxu0
      %3763 = vmatprep.mubr.f32.mxu0 0.0
      %3764 = vmatmul.mubr.f32.gmra.mxu0 %v3663
      %v3765 = vpop.f32.mrf.mxu0
      %v3766 = vadd.f32 0.0, %v3765
      %v3767 = vpop.f32.mrf.mxu0
      %3768 = vmatprep.mubr.f32.mxu0 0.0
      %3769 = vmatmul.mubr.f32.gmra.mxu0 %v3666
      %v3770 = vpop.f32.mrf.mxu0
      %v3771 = vadd.f32 0.0, %v3770
      %v3772 = vpop.f32.mrf.mxu0
      %3773 = vmatprep.mubr.f32.mxu0 0.0
      %3774 = vmatmul.mubr.f32.gmra.mxu0 %v3669
      %v3775 = vpop.f32.mrf.mxu0
      %v3776 = vadd.f32 0.0, %v3775
      %v3777 = vpop.f32.mrf.mxu0
      %3778 = vdwg.mxu0
      %v3780 = vsel %vm539, %v3628, 0
      %v3783 = vsel %vm539, %v3629, 0
      %v3786 = vsel %vm539, %v3630, 0
      %v3789 = vsel %vm539, %v3631, 0
      %v3792 = vsel %vm539, %v3632, 0
      %v3795 = vsel %vm539, %v3633, 0
      %v3798 = vsel %vm539, %v3634, 0
      %v3801 = vsel %vm539, %v3635, 0
      %v3804 = vsel %vm691, %v3636, 0
      %3806 = vmatprep.subr.mxu0 0.0
      %3807 = vmatpush1.msra.mxu0 0.0
      %3808 = vmatprep.subr.mxu0 0.0
      %3809 = vmatpush1.msra.mxu0 0.0
      %3810 = vmatprep.subr.mxu0 0.0
      %3811 = vmatpush1.msra.mxu0 0.0
      %3812 = vmatprep.subr.mxu0 0.0
      %3813 = vmatpush1.msra.mxu0 0.0
      %3814 = vmatprep.subr.mxu0 0.0
      %3815 = vmatpush1.msra.mxu0 0.0
      %3816 = vmatprep.subr.mxu0 0.0
      %3817 = vmatpush1.msra.mxu0 0.0
      %3818 = vmatprep.subr.mxu0 0.0
      %3819 = vmatpush1.msra.mxu0 0.0
      %3820 = vmatprep.subr.mxu0 0.0
      %3821 = vmatpush1.msra.mxu0 0.0
      %3822 = vmatprep.subr.mxu0 0.0
      %3823 = vmatpush1.msra.mxu0 0.0
      %3824 = vmatprep.subr.mxu0 0.0
      %3825 = vmatpush1.msra.mxu0 0.0
      %3826 = vmatprep.subr.mxu0 0.0
      %3827 = vmatpush1.msra.mxu0 0.0
      %3828 = vmatprep.subr.mxu0 0.0
      %3829 = vmatpush1.msra.mxu0 0.0
      %3830 = vmatprep.subr.mxu0 0.0
      %3831 = vmatpush1.msra.mxu0 0.0
      %3832 = vmatprep.subr.mxu0 0.0
      %3833 = vmatpush1.msra.mxu0 0.0
      %3834 = vmatprep.subr.mxu0 0.0
      %3835 = vmatpush1.msra.mxu0 0.0
      %3836 = vmatprep.subr.mxu0 0.0
      %3837 = vmatpush1.msra.mxu0 %v3804
      %3838 = vmatprep.subr.mxu0 0.0
      %3839 = vmatpush2.msra.mxu0 0.0
      %3840 = vmatprep.subr.mxu0 0.0
      %3841 = vmatpush2.msra.mxu0 0.0
      %3842 = vmatprep.subr.mxu0 0.0
      %3843 = vmatpush2.msra.mxu0 0.0
      %3844 = vmatprep.subr.mxu0 0.0
      %3845 = vmatpush2.msra.mxu0 0.0
      %3846 = vmatprep.subr.mxu0 0.0
      %3847 = vmatpush2.msra.mxu0 0.0
      %3848 = vmatprep.subr.mxu0 0.0
      %3849 = vmatpush2.msra.mxu0 0.0
      %3850 = vmatprep.subr.mxu0 0.0
      %3851 = vmatpush2.msra.mxu0 0.0
      %3852 = vmatprep.subr.mxu0 0.0
      %3853 = vmatpush2.msra.mxu0 0.0
      %3854 = vmatprep.subr.mxu0 0.0
      %3855 = vmatpush2.msra.mxu0 0.0
      %3856 = vmatprep.subr.mxu0 0.0
      %3857 = vmatpush2.msra.mxu0 0.0
      %3858 = vmatprep.subr.mxu0 0.0
      %3859 = vmatpush2.msra.mxu0 0.0
      %3860 = vmatprep.subr.mxu0 0.0
      %3861 = vmatpush2.msra.mxu0 0.0
      %3862 = vmatprep.subr.mxu0 0.0
      %3863 = vmatpush2.msra.mxu0 0.0
      %3864 = vmatprep.subr.mxu0 0.0
      %3865 = vmatpush2.msra.mxu0 0.0
      %3866 = vmatprep.subr.mxu0 0.0
      %3867 = vmatpush2.msra.mxu0 0.0
      %3868 = vmatprep.subr.mxu0 0.0
      %3869 = vmatpush2.msra.mxu0 0.0
      %3870 = vmatprep.mubr.f32.mxu0 0.0
      %3871 = vmatmul.mubr.f32.gmra.mxu0 %v3780
      %v3872 = vpop.f32.mrf.mxu0
      %v3873 = vadd.f32 %v3741, %v3872
      %v3874 = vpop.f32.mrf.mxu0
      %3875 = vmatprep.mubr.f32.mxu0 0.0
      %3876 = vmatmul.mubr.f32.gmra.mxu0 %v3783
      %v3877 = vpop.f32.mrf.mxu0
      %v3878 = vadd.f32 %v3746, %v3877
      %v3879 = vpop.f32.mrf.mxu0
      %3880 = vmatprep.mubr.f32.mxu0 0.0
      %3881 = vmatmul.mubr.f32.gmra.mxu0 %v3786
      %v3882 = vpop.f32.mrf.mxu0
      %v3883 = vadd.f32 %v3751, %v3882
      %v3884 = vpop.f32.mrf.mxu0
      %3885 = vmatprep.mubr.f32.mxu0 0.0
      %3886 = vmatmul.mubr.f32.gmra.mxu0 %v3789
      %v3887 = vpop.f32.mrf.mxu0
      %v3888 = vadd.f32 %v3756, %v3887
      %v3889 = vpop.f32.mrf.mxu0
      %3890 = vmatprep.mubr.f32.mxu0 0.0
      %3891 = vmatmul.mubr.f32.gmra.mxu0 %v3792
      %v3892 = vpop.f32.mrf.mxu0
      %v3893 = vadd.f32 %v3761, %v3892
      %v3894 = vpop.f32.mrf.mxu0
      %3895 = vmatprep.mubr.f32.mxu0 0.0
      %3896 = vmatmul.mubr.f32.gmra.mxu0 %v3795
      %v3897 = vpop.f32.mrf.mxu0
      %v3898 = vadd.f32 %v3766, %v3897
      %v3899 = vpop.f32.mrf.mxu0
      %3900 = vmatprep.mubr.f32.mxu0 0.0
      %3901 = vmatmul.mubr.f32.gmra.mxu0 %v3798
      %v3902 = vpop.f32.mrf.mxu0
      %v3903 = vadd.f32 %v3771, %v3902
      %v3904 = vpop.f32.mrf.mxu0
      %3905 = vmatprep.mubr.f32.mxu0 0.0
      %3906 = vmatmul.mubr.f32.gmra.mxu0 %v3801
      %v3907 = vpop.f32.mrf.mxu0
      %v3908 = vadd.f32 %v3776, %v3907
      %v3909 = vpop.f32.mrf.mxu0
      %3910 = vdwg.mxu0
      %v3911 = vld [vmem:[#allocation2 + $0x2] sm:$0xff]
      %v3912 = vld [vmem:[#allocation2 + $0x12] sm:$0xff]
      %v3913 = vld [vmem:[#allocation2 + $0x22] sm:$0xff]
      %v3914 = vld [vmem:[#allocation2 + $0x32] sm:$0xff]
      %v3915 = vld [vmem:[#allocation2 + $0x42] sm:$0xff]
      %v3916 = vld [vmem:[#allocation2 + $0x52] sm:$0xff]
      %v3917 = vld [vmem:[#allocation2 + $0x62] sm:$0xff]
      %v3918 = vld [vmem:[#allocation2 + $0x72] sm:$0xff]
      %s3919 = scalar_lea.vmem %s8, 8
      %v3920 = vld [vmem:[%s3919] sm:$0xf]
      %v3922 = vsel %vm539, %v3911, 0
      %v3925 = vsel %vm539, %v3912, 0
      %v3928 = vsel %vm539, %v3913, 0
      %v3931 = vsel %vm539, %v3914, 0
      %v3934 = vsel %vm539, %v3915, 0
      %v3937 = vsel %vm539, %v3916, 0
      %v3940 = vsel %vm539, %v3917, 0
      %v3943 = vsel %vm539, %v3918, 0
      %v3946 = vsel %vm691, %v3920, 0
      %3948 = vmatprep.subr.mxu0 0.0
      %3949 = vmatpush1.msra.mxu0 0.0
      %3950 = vmatprep.subr.mxu0 0.0
      %3951 = vmatpush1.msra.mxu0 0.0
      %3952 = vmatprep.subr.mxu0 0.0
      %3953 = vmatpush1.msra.mxu0 0.0
      %3954 = vmatprep.subr.mxu0 0.0
      %3955 = vmatpush1.msra.mxu0 0.0
      %3956 = vmatprep.subr.mxu0 0.0
      %3957 = vmatpush1.msra.mxu0 0.0
      %3958 = vmatprep.subr.mxu0 0.0
      %3959 = vmatpush1.msra.mxu0 0.0
      %3960 = vmatprep.subr.mxu0 0.0
      %3961 = vmatpush1.msra.mxu0 0.0
      %3962 = vmatprep.subr.mxu0 0.0
      %3963 = vmatpush1.msra.mxu0 0.0
      %3964 = vmatprep.subr.mxu0 0.0
      %3965 = vmatpush1.msra.mxu0 0.0
      %3966 = vmatprep.subr.mxu0 0.0
      %3967 = vmatpush1.msra.mxu0 0.0
      %3968 = vmatprep.subr.mxu0 0.0
      %3969 = vmatpush1.msra.mxu0 0.0
      %3970 = vmatprep.subr.mxu0 0.0
      %3971 = vmatpush1.msra.mxu0 0.0
      %3972 = vmatprep.subr.mxu0 0.0
      %3973 = vmatpush1.msra.mxu0 0.0
      %3974 = vmatprep.subr.mxu0 0.0
      %3975 = vmatpush1.msra.mxu0 0.0
      %3976 = vmatprep.subr.mxu0 0.0
      %3977 = vmatpush1.msra.mxu0 0.0
      %3978 = vmatprep.subr.mxu0 0.0
      %3979 = vmatpush1.msra.mxu0 %v3946
      %3980 = vmatprep.subr.mxu0 0.0
      %3981 = vmatpush2.msra.mxu0 0.0
      %3982 = vmatprep.subr.mxu0 0.0
      %3983 = vmatpush2.msra.mxu0 0.0
      %3984 = vmatprep.subr.mxu0 0.0
      %3985 = vmatpush2.msra.mxu0 0.0
      %3986 = vmatprep.subr.mxu0 0.0
      %3987 = vmatpush2.msra.mxu0 0.0
      %3988 = vmatprep.subr.mxu0 0.0
      %3989 = vmatpush2.msra.mxu0 0.0
      %3990 = vmatprep.subr.mxu0 0.0
      %3991 = vmatpush2.msra.mxu0 0.0
      %3992 = vmatprep.subr.mxu0 0.0
      %3993 = vmatpush2.msra.mxu0 0.0
      %3994 = vmatprep.subr.mxu0 0.0
      %3995 = vmatpush2.msra.mxu0 0.0
      %3996 = vmatprep.subr.mxu0 0.0
      %3997 = vmatpush2.msra.mxu0 0.0
      %3998 = vmatprep.subr.mxu0 0.0
      %3999 = vmatpush2.msra.mxu0 0.0
      %4000 = vmatprep.subr.mxu0 0.0
      %4001 = vmatpush2.msra.mxu0 0.0
      %4002 = vmatprep.subr.mxu0 0.0
      %4003 = vmatpush2.msra.mxu0 0.0
      %4004 = vmatprep.subr.mxu0 0.0
      %4005 = vmatpush2.msra.mxu0 0.0
      %4006 = vmatprep.subr.mxu0 0.0
      %4007 = vmatpush2.msra.mxu0 0.0
      %4008 = vmatprep.subr.mxu0 0.0
      %4009 = vmatpush2.msra.mxu0 0.0
      %4010 = vmatprep.subr.mxu0 0.0
      %4011 = vmatpush2.msra.mxu0 0.0
      %4012 = vmatprep.mubr.f32.mxu0 0.0
      %4013 = vmatmul.mubr.f32.gmra.mxu0 %v3922
      %v4014 = vpop.f32.mrf.mxu0
      %v4015 = vadd.f32 0.0, %v4014
      %v4016 = vpop.f32.mrf.mxu0
      %4017 = vmatprep.mubr.f32.mxu0 0.0
      %4018 = vmatmul.mubr.f32.gmra.mxu0 %v3925
      %v4019 = vpop.f32.mrf.mxu0
      %v4020 = vadd.f32 0.0, %v4019
      %v4021 = vpop.f32.mrf.mxu0
      %4022 = vmatprep.mubr.f32.mxu0 0.0
      %4023 = vmatmul.mubr.f32.gmra.mxu0 %v3928
      %v4024 = vpop.f32.mrf.mxu0
      %v4025 = vadd.f32 0.0, %v4024
      %v4026 = vpop.f32.mrf.mxu0
      %4027 = vmatprep.mubr.f32.mxu0 0.0
      %4028 = vmatmul.mubr.f32.gmra.mxu0 %v3931
      %v4029 = vpop.f32.mrf.mxu0
      %v4030 = vadd.f32 0.0, %v4029
      %v4031 = vpop.f32.mrf.mxu0
      %4032 = vmatprep.mubr.f32.mxu0 0.0
      %4033 = vmatmul.mubr.f32.gmra.mxu0 %v3934
      %v4034 = vpop.f32.mrf.mxu0
      %v4035 = vadd.f32 0.0, %v4034
      %v4036 = vpop.f32.mrf.mxu0
      %4037 = vmatprep.mubr.f32.mxu0 0.0
      %4038 = vmatmul.mubr.f32.gmra.mxu0 %v3937
      %v4039 = vpop.f32.mrf.mxu0
      %v4040 = vadd.f32 0.0, %v4039
      %v4041 = vpop.f32.mrf.mxu0
      %4042 = vmatprep.mubr.f32.mxu0 0.0
      %4043 = vmatmul.mubr.f32.gmra.mxu0 %v3940
      %v4044 = vpop.f32.mrf.mxu0
      %v4045 = vadd.f32 0.0, %v4044
      %v4046 = vpop.f32.mrf.mxu0
      %4047 = vmatprep.mubr.f32.mxu0 0.0
      %4048 = vmatmul.mubr.f32.gmra.mxu0 %v3943
      %v4049 = vpop.f32.mrf.mxu0
      %v4050 = vadd.f32 0.0, %v4049
      %v4051 = vpop.f32.mrf.mxu0
      %4052 = vdwg.mxu0
      %v4053 = vadd.f32 %v3873, %v4015
      %v4054 = vadd.f32 %v3878, %v4020
      %v4055 = vadd.f32 %v3883, %v4025
      %v4056 = vadd.f32 %v3888, %v4030
      %v4057 = vadd.f32 %v3893, %v4035
      %v4058 = vadd.f32 %v3898, %v4040
      %v4059 = vadd.f32 %v3903, %v4045
      %v4060 = vadd.f32 %v3908, %v4050
      %v4061 = vld [vmem:[%s639] sm:$0xff]
      %v4062 = vld [vmem:[%s639 + $0x10] sm:$0xff]
      %v4063 = vld [vmem:[%s639 + $0x20] sm:$0xff]
      %v4064 = vld [vmem:[%s639 + $0x30] sm:$0xff]
      %v4065 = vld [vmem:[%s639 + $0x40] sm:$0xff]
      %v4066 = vld [vmem:[%s639 + $0x50] sm:$0xff]
      %v4067 = vld [vmem:[%s639 + $0x60] sm:$0xff]
      %v4068 = vld [vmem:[%s639 + $0x70] sm:$0xff]
      %s4069 = scalar_lea.vmem %s8, 12
      %v4070 = vld [vmem:[%s4069] sm:$0xf]
      %v4072 = vsel %vm539, %v4061, 0
      %v4075 = vsel %vm539, %v4062, 0
      %v4078 = vsel %vm539, %v4063, 0
      %v4081 = vsel %vm539, %v4064, 0
      %v4084 = vsel %vm539, %v4065, 0
      %v4087 = vsel %vm539, %v4066, 0
      %v4090 = vsel %vm539, %v4067, 0
      %v4093 = vsel %vm539, %v4068, 0
      %v4096 = vsel %vm691, %v4070, 0
      %4098 = vmatprep.subr.mxu0 0.0
      %4099 = vmatpush1.msra.mxu0 0.0
      %4100 = vmatprep.subr.mxu0 0.0
      %4101 = vmatpush1.msra.mxu0 0.0
      %4102 = vmatprep.subr.mxu0 0.0
      %4103 = vmatpush1.msra.mxu0 0.0
      %4104 = vmatprep.subr.mxu0 0.0
      %4105 = vmatpush1.msra.mxu0 0.0
      %4106 = vmatprep.subr.mxu0 0.0
      %4107 = vmatpush1.msra.mxu0 0.0
      %4108 = vmatprep.subr.mxu0 0.0
      %4109 = vmatpush1.msra.mxu0 0.0
      %4110 = vmatprep.subr.mxu0 0.0
      %4111 = vmatpush1.msra.mxu0 0.0
      %4112 = vmatprep.subr.mxu0 0.0
      %4113 = vmatpush1.msra.mxu0 0.0
      %4114 = vmatprep.subr.mxu0 0.0
      %4115 = vmatpush1.msra.mxu0 0.0
      %4116 = vmatprep.subr.mxu0 0.0
      %4117 = vmatpush1.msra.mxu0 0.0
      %4118 = vmatprep.subr.mxu0 0.0
      %4119 = vmatpush1.msra.mxu0 0.0
      %4120 = vmatprep.subr.mxu0 0.0
      %4121 = vmatpush1.msra.mxu0 0.0
      %4122 = vmatprep.subr.mxu0 0.0
      %4123 = vmatpush1.msra.mxu0 0.0
      %4124 = vmatprep.subr.mxu0 0.0
      %4125 = vmatpush1.msra.mxu0 0.0
      %4126 = vmatprep.subr.mxu0 0.0
      %4127 = vmatpush1.msra.mxu0 0.0
      %4128 = vmatprep.subr.mxu0 0.0
      %4129 = vmatpush1.msra.mxu0 %v4096
      %4130 = vmatprep.subr.mxu0 0.0
      %4131 = vmatpush2.msra.mxu0 0.0
      %4132 = vmatprep.subr.mxu0 0.0
      %4133 = vmatpush2.msra.mxu0 0.0
      %4134 = vmatprep.subr.mxu0 0.0
      %4135 = vmatpush2.msra.mxu0 0.0
      %4136 = vmatprep.subr.mxu0 0.0
      %4137 = vmatpush2.msra.mxu0 0.0
      %4138 = vmatprep.subr.mxu0 0.0
      %4139 = vmatpush2.msra.mxu0 0.0
      %4140 = vmatprep.subr.mxu0 0.0
      %4141 = vmatpush2.msra.mxu0 0.0
      %4142 = vmatprep.subr.mxu0 0.0
      %4143 = vmatpush2.msra.mxu0 0.0
      %4144 = vmatprep.subr.mxu0 0.0
      %4145 = vmatpush2.msra.mxu0 0.0
      %4146 = vmatprep.subr.mxu0 0.0
      %4147 = vmatpush2.msra.mxu0 0.0
      %4148 = vmatprep.subr.mxu0 0.0
      %4149 = vmatpush2.msra.mxu0 0.0
      %4150 = vmatprep.subr.mxu0 0.0
      %4151 = vmatpush2.msra.mxu0 0.0
      %4152 = vmatprep.subr.mxu0 0.0
      %4153 = vmatpush2.msra.mxu0 0.0
      %4154 = vmatprep.subr.mxu0 0.0
      %4155 = vmatpush2.msra.mxu0 0.0
      %4156 = vmatprep.subr.mxu0 0.0
      %4157 = vmatpush2.msra.mxu0 0.0
      %4158 = vmatprep.subr.mxu0 0.0
      %4159 = vmatpush2.msra.mxu0 0.0
      %4160 = vmatprep.subr.mxu0 0.0
      %4161 = vmatpush2.msra.mxu0 0.0
      %4162 = vmatprep.mubr.f32.mxu0 0.0
      %4163 = vmatmul.mubr.f32.gmra.mxu0 %v4072
      %v4164 = vpop.f32.mrf.mxu0
      %v4165 = vadd.f32 0.0, %v4164
      %v4166 = vpop.f32.mrf.mxu0
      %4167 = vmatprep.mubr.f32.mxu0 0.0
      %4168 = vmatmul.mubr.f32.gmra.mxu0 %v4075
      %v4169 = vpop.f32.mrf.mxu0
      %v4170 = vadd.f32 0.0, %v4169
      %v4171 = vpop.f32.mrf.mxu0
      %4172 = vmatprep.mubr.f32.mxu0 0.0
      %4173 = vmatmul.mubr.f32.gmra.mxu0 %v4078
      %v4174 = vpop.f32.mrf.mxu0
      %v4175 = vadd.f32 0.0, %v4174
      %v4176 = vpop.f32.mrf.mxu0
      %4177 = vmatprep.mubr.f32.mxu0 0.0
      %4178 = vmatmul.mubr.f32.gmra.mxu0 %v4081
      %v4179 = vpop.f32.mrf.mxu0
      %v4180 = vadd.f32 0.0, %v4179
      %v4181 = vpop.f32.mrf.mxu0
      %4182 = vmatprep.mubr.f32.mxu0 0.0
      %4183 = vmatmul.mubr.f32.gmra.mxu0 %v4084
      %v4184 = vpop.f32.mrf.mxu0
      %v4185 = vadd.f32 0.0, %v4184
      %v4186 = vpop.f32.mrf.mxu0
      %4187 = vmatprep.mubr.f32.mxu0 0.0
      %4188 = vmatmul.mubr.f32.gmra.mxu0 %v4087
      %v4189 = vpop.f32.mrf.mxu0
      %v4190 = vadd.f32 0.0, %v4189
      %v4191 = vpop.f32.mrf.mxu0
      %4192 = vmatprep.mubr.f32.mxu0 0.0
      %4193 = vmatmul.mubr.f32.gmra.mxu0 %v4090
      %v4194 = vpop.f32.mrf.mxu0
      %v4195 = vadd.f32 0.0, %v4194
      %v4196 = vpop.f32.mrf.mxu0
      %4197 = vmatprep.mubr.f32.mxu0 0.0
      %4198 = vmatmul.mubr.f32.gmra.mxu0 %v4093
      %v4199 = vpop.f32.mrf.mxu0
      %v4200 = vadd.f32 0.0, %v4199
      %v4201 = vpop.f32.mrf.mxu0
      %4202 = vdwg.mxu0
      %v4203 = vadd.f32 %v4053, %v4165
      %v4204 = vadd.f32 %v4054, %v4170
      %v4205 = vadd.f32 %v4055, %v4175
      %v4206 = vadd.f32 %v4056, %v4180
      %v4207 = vadd.f32 %v4057, %v4185
      %v4208 = vadd.f32 %v4058, %v4190
      %v4209 = vadd.f32 %v4059, %v4195
      %v4210 = vadd.f32 %v4060, %v4200
      %s4211 = scalar_lea.vmem %s8, 16
      %v4212 = vld [vmem:[%s4211] sm:$0xf]
      %v4214 = vsel %vm539, %v3612, 0
      %v4217 = vsel %vm539, %v3613, 0
      %v4220 = vsel %vm539, %v3614, 0
      %v4223 = vsel %vm539, %v3615, 0
      %v4226 = vsel %vm539, %v3616, 0
      %v4229 = vsel %vm539, %v3617, 0
      %v4232 = vsel %vm539, %v3618, 0
      %v4235 = vsel %vm539, %v3619, 0
      %v4238 = vsel %vm691, %v4212, 0
      %4240 = vmatprep.subr.mxu0 0.0
      %4241 = vmatpush1.msra.mxu0 0.0
      %4242 = vmatprep.subr.mxu0 0.0
      %4243 = vmatpush1.msra.mxu0 0.0
      %4244 = vmatprep.subr.mxu0 0.0
      %4245 = vmatpush1.msra.mxu0 0.0
      %4246 = vmatprep.subr.mxu0 0.0
      %4247 = vmatpush1.msra.mxu0 0.0
      %4248 = vmatprep.subr.mxu0 0.0
      %4249 = vmatpush1.msra.mxu0 0.0
      %4250 = vmatprep.subr.mxu0 0.0
      %4251 = vmatpush1.msra.mxu0 0.0
      %4252 = vmatprep.subr.mxu0 0.0
      %4253 = vmatpush1.msra.mxu0 0.0
      %4254 = vmatprep.subr.mxu0 0.0
      %4255 = vmatpush1.msra.mxu0 0.0
      %4256 = vmatprep.subr.mxu0 0.0
      %4257 = vmatpush1.msra.mxu0 0.0
      %4258 = vmatprep.subr.mxu0 0.0
      %4259 = vmatpush1.msra.mxu0 0.0
      %4260 = vmatprep.subr.mxu0 0.0
      %4261 = vmatpush1.msra.mxu0 0.0
      %4262 = vmatprep.subr.mxu0 0.0
      %4263 = vmatpush1.msra.mxu0 0.0
      %4264 = vmatprep.subr.mxu0 0.0
      %4265 = vmatpush1.msra.mxu0 0.0
      %4266 = vmatprep.subr.mxu0 0.0
      %4267 = vmatpush1.msra.mxu0 0.0
      %4268 = vmatprep.subr.mxu0 0.0
      %4269 = vmatpush1.msra.mxu0 0.0
      %4270 = vmatprep.subr.mxu0 0.0
      %4271 = vmatpush1.msra.mxu0 %v4238
      %4272 = vmatprep.subr.mxu0 0.0
      %4273 = vmatpush2.msra.mxu0 0.0
      %4274 = vmatprep.subr.mxu0 0.0
      %4275 = vmatpush2.msra.mxu0 0.0
      %4276 = vmatprep.subr.mxu0 0.0
      %4277 = vmatpush2.msra.mxu0 0.0
      %4278 = vmatprep.subr.mxu0 0.0
      %4279 = vmatpush2.msra.mxu0 0.0
      %4280 = vmatprep.subr.mxu0 0.0
      %4281 = vmatpush2.msra.mxu0 0.0
      %4282 = vmatprep.subr.mxu0 0.0
      %4283 = vmatpush2.msra.mxu0 0.0
      %4284 = vmatprep.subr.mxu0 0.0
      %4285 = vmatpush2.msra.mxu0 0.0
      %4286 = vmatprep.subr.mxu0 0.0
      %4287 = vmatpush2.msra.mxu0 0.0
      %4288 = vmatprep.subr.mxu0 0.0
      %4289 = vmatpush2.msra.mxu0 0.0
      %4290 = vmatprep.subr.mxu0 0.0
      %4291 = vmatpush2.msra.mxu0 0.0
      %4292 = vmatprep.subr.mxu0 0.0
      %4293 = vmatpush2.msra.mxu0 0.0
      %4294 = vmatprep.subr.mxu0 0.0
      %4295 = vmatpush2.msra.mxu0 0.0
      %4296 = vmatprep.subr.mxu0 0.0
      %4297 = vmatpush2.msra.mxu0 0.0
      %4298 = vmatprep.subr.mxu0 0.0
      %4299 = vmatpush2.msra.mxu0 0.0
      %4300 = vmatprep.subr.mxu0 0.0
      %4301 = vmatpush2.msra.mxu0 0.0
      %4302 = vmatprep.subr.mxu0 0.0
      %4303 = vmatpush2.msra.mxu0 0.0
      %4304 = vmatprep.mubr.f32.mxu0 0.0
      %4305 = vmatmul.mubr.f32.gmra.mxu0 %v4214
      %v4306 = vpop.f32.mrf.mxu0
      %v4307 = vadd.f32 0.0, %v4306
      %v4308 = vpop.f32.mrf.mxu0
      %4309 = vmatprep.mubr.f32.mxu0 0.0
      %4310 = vmatmul.mubr.f32.gmra.mxu0 %v4217
      %v4311 = vpop.f32.mrf.mxu0
      %v4312 = vadd.f32 0.0, %v4311
      %v4313 = vpop.f32.mrf.mxu0
      %4314 = vmatprep.mubr.f32.mxu0 0.0
      %4315 = vmatmul.mubr.f32.gmra.mxu0 %v4220
      %v4316 = vpop.f32.mrf.mxu0
      %v4317 = vadd.f32 0.0, %v4316
      %v4318 = vpop.f32.mrf.mxu0
      %4319 = vmatprep.mubr.f32.mxu0 0.0
      %4320 = vmatmul.mubr.f32.gmra.mxu0 %v4223
      %v4321 = vpop.f32.mrf.mxu0
      %v4322 = vadd.f32 0.0, %v4321
      %v4323 = vpop.f32.mrf.mxu0
      %4324 = vmatprep.mubr.f32.mxu0 0.0
      %4325 = vmatmul.mubr.f32.gmra.mxu0 %v4226
      %v4326 = vpop.f32.mrf.mxu0
      %v4327 = vadd.f32 0.0, %v4326
      %v4328 = vpop.f32.mrf.mxu0
      %4329 = vmatprep.mubr.f32.mxu0 0.0
      %4330 = vmatmul.mubr.f32.gmra.mxu0 %v4229
      %v4331 = vpop.f32.mrf.mxu0
      %v4332 = vadd.f32 0.0, %v4331
      %v4333 = vpop.f32.mrf.mxu0
      %4334 = vmatprep.mubr.f32.mxu0 0.0
      %4335 = vmatmul.mubr.f32.gmra.mxu0 %v4232
      %v4336 = vpop.f32.mrf.mxu0
      %v4337 = vadd.f32 0.0, %v4336
      %v4338 = vpop.f32.mrf.mxu0
      %4339 = vmatprep.mubr.f32.mxu0 0.0
      %4340 = vmatmul.mubr.f32.gmra.mxu0 %v4235
      %v4341 = vpop.f32.mrf.mxu0
      %v4342 = vadd.f32 0.0, %v4341
      %v4343 = vpop.f32.mrf.mxu0
      %4344 = vdwg.mxu0
      %v4345 = vadd.f32 %v4203, %v4307
      %v4346 = vadd.f32 %v4204, %v4312
      %v4347 = vadd.f32 %v4205, %v4317
      %v4348 = vadd.f32 %v4206, %v4322
      %v4349 = vadd.f32 %v4207, %v4327
      %v4350 = vadd.f32 %v4208, %v4332
      %v4351 = vadd.f32 %v4209, %v4337
      %v4352 = vadd.f32 %v4210, %v4342
      %v4353 = vld [vmem:[%s639 + $0x2] sm:$0xff]
      %v4354 = vld [vmem:[%s639 + $0x12] sm:$0xff]
      %v4355 = vld [vmem:[%s639 + $0x22] sm:$0xff]
      %v4356 = vld [vmem:[%s639 + $0x32] sm:$0xff]
      %v4357 = vld [vmem:[%s639 + $0x42] sm:$0xff]
      %v4358 = vld [vmem:[%s639 + $0x52] sm:$0xff]
      %v4359 = vld [vmem:[%s639 + $0x62] sm:$0xff]
      %v4360 = vld [vmem:[%s639 + $0x72] sm:$0xff]
      %s4361 = scalar_lea.vmem %s8, 20
      %v4362 = vld [vmem:[%s4361] sm:$0xf]
      %v4364 = vsel %vm539, %v4353, 0
      %v4367 = vsel %vm539, %v4354, 0
      %v4370 = vsel %vm539, %v4355, 0
      %v4373 = vsel %vm539, %v4356, 0
      %v4376 = vsel %vm539, %v4357, 0
      %v4379 = vsel %vm539, %v4358, 0
      %v4382 = vsel %vm539, %v4359, 0
      %v4385 = vsel %vm539, %v4360, 0
      %v4388 = vsel %vm691, %v4362, 0
      %4390 = vmatprep.subr.mxu0 0.0
      %4391 = vmatpush1.msra.mxu0 0.0
      %4392 = vmatprep.subr.mxu0 0.0
      %4393 = vmatpush1.msra.mxu0 0.0
      %4394 = vmatprep.subr.mxu0 0.0
      %4395 = vmatpush1.msra.mxu0 0.0
      %4396 = vmatprep.subr.mxu0 0.0
      %4397 = vmatpush1.msra.mxu0 0.0
      %4398 = vmatprep.subr.mxu0 0.0
      %4399 = vmatpush1.msra.mxu0 0.0
      %4400 = vmatprep.subr.mxu0 0.0
      %4401 = vmatpush1.msra.mxu0 0.0
      %4402 = vmatprep.subr.mxu0 0.0
      %4403 = vmatpush1.msra.mxu0 0.0
      %4404 = vmatprep.subr.mxu0 0.0
      %4405 = vmatpush1.msra.mxu0 0.0
      %4406 = vmatprep.subr.mxu0 0.0
      %4407 = vmatpush1.msra.mxu0 0.0
      %4408 = vmatprep.subr.mxu0 0.0
      %4409 = vmatpush1.msra.mxu0 0.0
      %4410 = vmatprep.subr.mxu0 0.0
      %4411 = vmatpush1.msra.mxu0 0.0
      %4412 = vmatprep.subr.mxu0 0.0
      %4413 = vmatpush1.msra.mxu0 0.0
      %4414 = vmatprep.subr.mxu0 0.0
      %4415 = vmatpush1.msra.mxu0 0.0
      %4416 = vmatprep.subr.mxu0 0.0
      %4417 = vmatpush1.msra.mxu0 0.0
      %4418 = vmatprep.subr.mxu0 0.0
      %4419 = vmatpush1.msra.mxu0 0.0
      %4420 = vmatprep.subr.mxu0 0.0
      %4421 = vmatpush1.msra.mxu0 %v4388
      %4422 = vmatprep.subr.mxu0 0.0
      %4423 = vmatpush2.msra.mxu0 0.0
      %4424 = vmatprep.subr.mxu0 0.0
      %4425 = vmatpush2.msra.mxu0 0.0
      %4426 = vmatprep.subr.mxu0 0.0
      %4427 = vmatpush2.msra.mxu0 0.0
      %4428 = vmatprep.subr.mxu0 0.0
      %4429 = vmatpush2.msra.mxu0 0.0
      %4430 = vmatprep.subr.mxu0 0.0
      %4431 = vmatpush2.msra.mxu0 0.0
      %4432 = vmatprep.subr.mxu0 0.0
      %4433 = vmatpush2.msra.mxu0 0.0
      %4434 = vmatprep.subr.mxu0 0.0
      %4435 = vmatpush2.msra.mxu0 0.0
      %4436 = vmatprep.subr.mxu0 0.0
      %4437 = vmatpush2.msra.mxu0 0.0
      %4438 = vmatprep.subr.mxu0 0.0
      %4439 = vmatpush2.msra.mxu0 0.0
      %4440 = vmatprep.subr.mxu0 0.0
      %4441 = vmatpush2.msra.mxu0 0.0
      %4442 = vmatprep.subr.mxu0 0.0
      %4443 = vmatpush2.msra.mxu0 0.0
      %4444 = vmatprep.subr.mxu0 0.0
      %4445 = vmatpush2.msra.mxu0 0.0
      %4446 = vmatprep.subr.mxu0 0.0
      %4447 = vmatpush2.msra.mxu0 0.0
      %4448 = vmatprep.subr.mxu0 0.0
      %4449 = vmatpush2.msra.mxu0 0.0
      %4450 = vmatprep.subr.mxu0 0.0
      %4451 = vmatpush2.msra.mxu0 0.0
      %4452 = vmatprep.subr.mxu0 0.0
      %4453 = vmatpush2.msra.mxu0 0.0
      %4454 = vmatprep.mubr.f32.mxu0 0.0
      %4455 = vmatmul.mubr.f32.gmra.mxu0 %v4364
      %v4456 = vpop.f32.mrf.mxu0
      %v4457 = vadd.f32 0.0, %v4456
      %v4458 = vpop.f32.mrf.mxu0
      %4459 = vmatprep.mubr.f32.mxu0 0.0
      %4460 = vmatmul.mubr.f32.gmra.mxu0 %v4367
      %v4461 = vpop.f32.mrf.mxu0
      %v4462 = vadd.f32 0.0, %v4461
      %v4463 = vpop.f32.mrf.mxu0
      %4464 = vmatprep.mubr.f32.mxu0 0.0
      %4465 = vmatmul.mubr.f32.gmra.mxu0 %v4370
      %v4466 = vpop.f32.mrf.mxu0
      %v4467 = vadd.f32 0.0, %v4466
      %v4468 = vpop.f32.mrf.mxu0
      %4469 = vmatprep.mubr.f32.mxu0 0.0
      %4470 = vmatmul.mubr.f32.gmra.mxu0 %v4373
      %v4471 = vpop.f32.mrf.mxu0
      %v4472 = vadd.f32 0.0, %v4471
      %v4473 = vpop.f32.mrf.mxu0
      %4474 = vmatprep.mubr.f32.mxu0 0.0
      %4475 = vmatmul.mubr.f32.gmra.mxu0 %v4376
      %v4476 = vpop.f32.mrf.mxu0
      %v4477 = vadd.f32 0.0, %v4476
      %v4478 = vpop.f32.mrf.mxu0
      %4479 = vmatprep.mubr.f32.mxu0 0.0
      %4480 = vmatmul.mubr.f32.gmra.mxu0 %v4379
      %v4481 = vpop.f32.mrf.mxu0
      %v4482 = vadd.f32 0.0, %v4481
      %v4483 = vpop.f32.mrf.mxu0
      %4484 = vmatprep.mubr.f32.mxu0 0.0
      %4485 = vmatmul.mubr.f32.gmra.mxu0 %v4382
      %v4486 = vpop.f32.mrf.mxu0
      %v4487 = vadd.f32 0.0, %v4486
      %v4488 = vpop.f32.mrf.mxu0
      %4489 = vmatprep.mubr.f32.mxu0 0.0
      %4490 = vmatmul.mubr.f32.gmra.mxu0 %v4385
      %v4491 = vpop.f32.mrf.mxu0
      %v4492 = vadd.f32 0.0, %v4491
      %v4493 = vpop.f32.mrf.mxu0
      %4494 = vdwg.mxu0
      %v4495 = vadd.f32 %v4345, %v4457
      %v4496 = vadd.f32 %v4346, %v4462
      %v4497 = vadd.f32 %v4347, %v4467
      %v4498 = vadd.f32 %v4348, %v4472
      %v4499 = vadd.f32 %v4349, %v4477
      %v4500 = vadd.f32 %v4350, %v4482
      %v4501 = vadd.f32 %v4351, %v4487
      %v4502 = vadd.f32 %v4352, %v4492
      %v4503 = vld [vmem:[%s1524] sm:$0xff]
      %v4504 = vld [vmem:[%s1524 + $0x10] sm:$0xff]
      %v4505 = vld [vmem:[%s1524 + $0x20] sm:$0xff]
      %v4506 = vld [vmem:[%s1524 + $0x30] sm:$0xff]
      %v4507 = vld [vmem:[%s1524 + $0x40] sm:$0xff]
      %v4508 = vld [vmem:[%s1524 + $0x50] sm:$0xff]
      %v4509 = vld [vmem:[%s1524 + $0x60] sm:$0xff]
      %v4510 = vld [vmem:[%s1524 + $0x70] sm:$0xff]
      %s4511 = scalar_lea.vmem %s8, 24
      %v4512 = vld [vmem:[%s4511] sm:$0xf]
      %v4514 = vsel %vm539, %v4503, 0
      %v4517 = vsel %vm539, %v4504, 0
      %v4520 = vsel %vm539, %v4505, 0
      %v4523 = vsel %vm539, %v4506, 0
      %v4526 = vsel %vm539, %v4507, 0
      %v4529 = vsel %vm539, %v4508, 0
      %v4532 = vsel %vm539, %v4509, 0
      %v4535 = vsel %vm539, %v4510, 0
      %v4538 = vsel %vm691, %v4512, 0
      %4540 = vmatprep.subr.mxu0 0.0
      %4541 = vmatpush1.msra.mxu0 0.0
      %4542 = vmatprep.subr.mxu0 0.0
      %4543 = vmatpush1.msra.mxu0 0.0
      %4544 = vmatprep.subr.mxu0 0.0
      %4545 = vmatpush1.msra.mxu0 0.0
      %4546 = vmatprep.subr.mxu0 0.0
      %4547 = vmatpush1.msra.mxu0 0.0
      %4548 = vmatprep.subr.mxu0 0.0
      %4549 = vmatpush1.msra.mxu0 0.0
      %4550 = vmatprep.subr.mxu0 0.0
      %4551 = vmatpush1.msra.mxu0 0.0
      %4552 = vmatprep.subr.mxu0 0.0
      %4553 = vmatpush1.msra.mxu0 0.0
      %4554 = vmatprep.subr.mxu0 0.0
      %4555 = vmatpush1.msra.mxu0 0.0
      %4556 = vmatprep.subr.mxu0 0.0
      %4557 = vmatpush1.msra.mxu0 0.0
      %4558 = vmatprep.subr.mxu0 0.0
      %4559 = vmatpush1.msra.mxu0 0.0
      %4560 = vmatprep.subr.mxu0 0.0
      %4561 = vmatpush1.msra.mxu0 0.0
      %4562 = vmatprep.subr.mxu0 0.0
      %4563 = vmatpush1.msra.mxu0 0.0
      %4564 = vmatprep.subr.mxu0 0.0
      %4565 = vmatpush1.msra.mxu0 0.0
      %4566 = vmatprep.subr.mxu0 0.0
      %4567 = vmatpush1.msra.mxu0 0.0
      %4568 = vmatprep.subr.mxu0 0.0
      %4569 = vmatpush1.msra.mxu0 0.0
      %4570 = vmatprep.subr.mxu0 0.0
      %4571 = vmatpush1.msra.mxu0 %v4538
      %4572 = vmatprep.subr.mxu0 0.0
      %4573 = vmatpush2.msra.mxu0 0.0
      %4574 = vmatprep.subr.mxu0 0.0
      %4575 = vmatpush2.msra.mxu0 0.0
      %4576 = vmatprep.subr.mxu0 0.0
      %4577 = vmatpush2.msra.mxu0 0.0
      %4578 = vmatprep.subr.mxu0 0.0
      %4579 = vmatpush2.msra.mxu0 0.0
      %4580 = vmatprep.subr.mxu0 0.0
      %4581 = vmatpush2.msra.mxu0 0.0
      %4582 = vmatprep.subr.mxu0 0.0
      %4583 = vmatpush2.msra.mxu0 0.0
      %4584 = vmatprep.subr.mxu0 0.0
      %4585 = vmatpush2.msra.mxu0 0.0
      %4586 = vmatprep.subr.mxu0 0.0
      %4587 = vmatpush2.msra.mxu0 0.0
      %4588 = vmatprep.subr.mxu0 0.0
      %4589 = vmatpush2.msra.mxu0 0.0
      %4590 = vmatprep.subr.mxu0 0.0
      %4591 = vmatpush2.msra.mxu0 0.0
      %4592 = vmatprep.subr.mxu0 0.0
      %4593 = vmatpush2.msra.mxu0 0.0
      %4594 = vmatprep.subr.mxu0 0.0
      %4595 = vmatpush2.msra.mxu0 0.0
      %4596 = vmatprep.subr.mxu0 0.0
      %4597 = vmatpush2.msra.mxu0 0.0
      %4598 = vmatprep.subr.mxu0 0.0
      %4599 = vmatpush2.msra.mxu0 0.0
      %4600 = vmatprep.subr.mxu0 0.0
      %4601 = vmatpush2.msra.mxu0 0.0
      %4602 = vmatprep.subr.mxu0 0.0
      %4603 = vmatpush2.msra.mxu0 0.0
      %4604 = vmatprep.mubr.f32.mxu0 0.0
      %4605 = vmatmul.mubr.f32.gmra.mxu0 %v4514
      %v4606 = vpop.f32.mrf.mxu0
      %v4607 = vadd.f32 0.0, %v4606
      %v4608 = vpop.f32.mrf.mxu0
      %4609 = vmatprep.mubr.f32.mxu0 0.0
      %4610 = vmatmul.mubr.f32.gmra.mxu0 %v4517
      %v4611 = vpop.f32.mrf.mxu0
      %v4612 = vadd.f32 0.0, %v4611
      %v4613 = vpop.f32.mrf.mxu0
      %4614 = vmatprep.mubr.f32.mxu0 0.0
      %4615 = vmatmul.mubr.f32.gmra.mxu0 %v4520
      %v4616 = vpop.f32.mrf.mxu0
      %v4617 = vadd.f32 0.0, %v4616
      %v4618 = vpop.f32.mrf.mxu0
      %4619 = vmatprep.mubr.f32.mxu0 0.0
      %4620 = vmatmul.mubr.f32.gmra.mxu0 %v4523
      %v4621 = vpop.f32.mrf.mxu0
      %v4622 = vadd.f32 0.0, %v4621
      %v4623 = vpop.f32.mrf.mxu0
      %4624 = vmatprep.mubr.f32.mxu0 0.0
      %4625 = vmatmul.mubr.f32.gmra.mxu0 %v4526
      %v4626 = vpop.f32.mrf.mxu0
      %v4627 = vadd.f32 0.0, %v4626
      %v4628 = vpop.f32.mrf.mxu0
      %4629 = vmatprep.mubr.f32.mxu0 0.0
      %4630 = vmatmul.mubr.f32.gmra.mxu0 %v4529
      %v4631 = vpop.f32.mrf.mxu0
      %v4632 = vadd.f32 0.0, %v4631
      %v4633 = vpop.f32.mrf.mxu0
      %4634 = vmatprep.mubr.f32.mxu0 0.0
      %4635 = vmatmul.mubr.f32.gmra.mxu0 %v4532
      %v4636 = vpop.f32.mrf.mxu0
      %v4637 = vadd.f32 0.0, %v4636
      %v4638 = vpop.f32.mrf.mxu0
      %4639 = vmatprep.mubr.f32.mxu0 0.0
      %4640 = vmatmul.mubr.f32.gmra.mxu0 %v4535
      %v4641 = vpop.f32.mrf.mxu0
      %v4642 = vadd.f32 0.0, %v4641
      %v4643 = vpop.f32.mrf.mxu0
      %4644 = vdwg.mxu0
      %v4645 = vadd.f32 %v4495, %v4607
      %v4646 = vadd.f32 %v4496, %v4612
      %v4647 = vadd.f32 %v4497, %v4617
      %v4648 = vadd.f32 %v4498, %v4622
      %v4649 = vadd.f32 %v4499, %v4627
      %v4650 = vadd.f32 %v4500, %v4632
      %v4651 = vadd.f32 %v4501, %v4637
      %v4652 = vadd.f32 %v4502, %v4642
      %v4653 = vld [vmem:[%s1524 + $0x1] sm:$0xff]
      %v4654 = vld [vmem:[%s1524 + $0x11] sm:$0xff]
      %v4655 = vld [vmem:[%s1524 + $0x21] sm:$0xff]
      %v4656 = vld [vmem:[%s1524 + $0x31] sm:$0xff]
      %v4657 = vld [vmem:[%s1524 + $0x41] sm:$0xff]
      %v4658 = vld [vmem:[%s1524 + $0x51] sm:$0xff]
      %v4659 = vld [vmem:[%s1524 + $0x61] sm:$0xff]
      %v4660 = vld [vmem:[%s1524 + $0x71] sm:$0xff]
      %s4661 = scalar_lea.vmem %s8, 28
      %v4662 = vld [vmem:[%s4661] sm:$0xf]
      %v4664 = vsel %vm539, %v4653, 0
      %v4667 = vsel %vm539, %v4654, 0
      %v4670 = vsel %vm539, %v4655, 0
      %v4673 = vsel %vm539, %v4656, 0
      %v4676 = vsel %vm539, %v4657, 0
      %v4679 = vsel %vm539, %v4658, 0
      %v4682 = vsel %vm539, %v4659, 0
      %v4685 = vsel %vm539, %v4660, 0
      %v4688 = vsel %vm691, %v4662, 0
      %4690 = vmatprep.subr.mxu0 0.0
      %4691 = vmatpush1.msra.mxu0 0.0
      %4692 = vmatprep.subr.mxu0 0.0
      %4693 = vmatpush1.msra.mxu0 0.0
      %4694 = vmatprep.subr.mxu0 0.0
      %4695 = vmatpush1.msra.mxu0 0.0
      %4696 = vmatprep.subr.mxu0 0.0
      %4697 = vmatpush1.msra.mxu0 0.0
      %4698 = vmatprep.subr.mxu0 0.0
      %4699 = vmatpush1.msra.mxu0 0.0
      %4700 = vmatprep.subr.mxu0 0.0
      %4701 = vmatpush1.msra.mxu0 0.0
      %4702 = vmatprep.subr.mxu0 0.0
      %4703 = vmatpush1.msra.mxu0 0.0
      %4704 = vmatprep.subr.mxu0 0.0
      %4705 = vmatpush1.msra.mxu0 0.0
      %4706 = vmatprep.subr.mxu0 0.0
      %4707 = vmatpush1.msra.mxu0 0.0
      %4708 = vmatprep.subr.mxu0 0.0
      %4709 = vmatpush1.msra.mxu0 0.0
      %4710 = vmatprep.subr.mxu0 0.0
      %4711 = vmatpush1.msra.mxu0 0.0
      %4712 = vmatprep.subr.mxu0 0.0
      %4713 = vmatpush1.msra.mxu0 0.0
      %4714 = vmatprep.subr.mxu0 0.0
      %4715 = vmatpush1.msra.mxu0 0.0
      %4716 = vmatprep.subr.mxu0 0.0
      %4717 = vmatpush1.msra.mxu0 0.0
      %4718 = vmatprep.subr.mxu0 0.0
      %4719 = vmatpush1.msra.mxu0 0.0
      %4720 = vmatprep.subr.mxu0 0.0
      %4721 = vmatpush1.msra.mxu0 %v4688
      %4722 = vmatprep.subr.mxu0 0.0
      %4723 = vmatpush2.msra.mxu0 0.0
      %4724 = vmatprep.subr.mxu0 0.0
      %4725 = vmatpush2.msra.mxu0 0.0
      %4726 = vmatprep.subr.mxu0 0.0
      %4727 = vmatpush2.msra.mxu0 0.0
      %4728 = vmatprep.subr.mxu0 0.0
      %4729 = vmatpush2.msra.mxu0 0.0
      %4730 = vmatprep.subr.mxu0 0.0
      %4731 = vmatpush2.msra.mxu0 0.0
      %4732 = vmatprep.subr.mxu0 0.0
      %4733 = vmatpush2.msra.mxu0 0.0
      %4734 = vmatprep.subr.mxu0 0.0
      %4735 = vmatpush2.msra.mxu0 0.0
      %4736 = vmatprep.subr.mxu0 0.0
      %4737 = vmatpush2.msra.mxu0 0.0
      %4738 = vmatprep.subr.mxu0 0.0
      %4739 = vmatpush2.msra.mxu0 0.0
      %4740 = vmatprep.subr.mxu0 0.0
      %4741 = vmatpush2.msra.mxu0 0.0
      %4742 = vmatprep.subr.mxu0 0.0
      %4743 = vmatpush2.msra.mxu0 0.0
      %4744 = vmatprep.subr.mxu0 0.0
      %4745 = vmatpush2.msra.mxu0 0.0
      %4746 = vmatprep.subr.mxu0 0.0
      %4747 = vmatpush2.msra.mxu0 0.0
      %4748 = vmatprep.subr.mxu0 0.0
      %4749 = vmatpush2.msra.mxu0 0.0
      %4750 = vmatprep.subr.mxu0 0.0
      %4751 = vmatpush2.msra.mxu0 0.0
      %4752 = vmatprep.subr.mxu0 0.0
      %4753 = vmatpush2.msra.mxu0 0.0
      %4754 = vmatprep.mubr.f32.mxu0 0.0
      %4755 = vmatmul.mubr.f32.gmra.mxu0 %v4664
      %v4756 = vpop.f32.mrf.mxu0
      %v4757 = vadd.f32 0.0, %v4756
      %v4758 = vpop.f32.mrf.mxu0
      %4759 = vmatprep.mubr.f32.mxu0 0.0
      %4760 = vmatmul.mubr.f32.gmra.mxu0 %v4667
      %v4761 = vpop.f32.mrf.mxu0
      %v4762 = vadd.f32 0.0, %v4761
      %v4763 = vpop.f32.mrf.mxu0
      %4764 = vmatprep.mubr.f32.mxu0 0.0
      %4765 = vmatmul.mubr.f32.gmra.mxu0 %v4670
      %v4766 = vpop.f32.mrf.mxu0
      %v4767 = vadd.f32 0.0, %v4766
      %v4768 = vpop.f32.mrf.mxu0
      %4769 = vmatprep.mubr.f32.mxu0 0.0
      %4770 = vmatmul.mubr.f32.gmra.mxu0 %v4673
      %v4771 = vpop.f32.mrf.mxu0
      %v4772 = vadd.f32 0.0, %v4771
      %v4773 = vpop.f32.mrf.mxu0
      %4774 = vmatprep.mubr.f32.mxu0 0.0
      %4775 = vmatmul.mubr.f32.gmra.mxu0 %v4676
      %v4776 = vpop.f32.mrf.mxu0
      %v4777 = vadd.f32 0.0, %v4776
      %v4778 = vpop.f32.mrf.mxu0
      %4779 = vmatprep.mubr.f32.mxu0 0.0
      %4780 = vmatmul.mubr.f32.gmra.mxu0 %v4679
      %v4781 = vpop.f32.mrf.mxu0
      %v4782 = vadd.f32 0.0, %v4781
      %v4783 = vpop.f32.mrf.mxu0
      %4784 = vmatprep.mubr.f32.mxu0 0.0
      %4785 = vmatmul.mubr.f32.gmra.mxu0 %v4682
      %v4786 = vpop.f32.mrf.mxu0
      %v4787 = vadd.f32 0.0, %v4786
      %v4788 = vpop.f32.mrf.mxu0
      %4789 = vmatprep.mubr.f32.mxu0 0.0
      %4790 = vmatmul.mubr.f32.gmra.mxu0 %v4685
      %v4791 = vpop.f32.mrf.mxu0
      %v4792 = vadd.f32 0.0, %v4791
      %v4793 = vpop.f32.mrf.mxu0
      %4794 = vdwg.mxu0
      %v4795 = vadd.f32 %v4645, %v4757
      %v4796 = vadd.f32 %v4646, %v4762
      %v4797 = vadd.f32 %v4647, %v4767
      %v4798 = vadd.f32 %v4648, %v4772
      %v4799 = vadd.f32 %v4649, %v4777
      %v4800 = vadd.f32 %v4650, %v4782
      %v4801 = vadd.f32 %v4651, %v4787
      %v4802 = vadd.f32 %v4652, %v4792
      %v4803 = vld [vmem:[%s1524 + $0x2] sm:$0xff]
      %v4804 = vld [vmem:[%s1524 + $0x12] sm:$0xff]
      %v4805 = vld [vmem:[%s1524 + $0x22] sm:$0xff]
      %v4806 = vld [vmem:[%s1524 + $0x32] sm:$0xff]
      %v4807 = vld [vmem:[%s1524 + $0x42] sm:$0xff]
      %v4808 = vld [vmem:[%s1524 + $0x52] sm:$0xff]
      %v4809 = vld [vmem:[%s1524 + $0x62] sm:$0xff]
      %v4810 = vld [vmem:[%s1524 + $0x72] sm:$0xff]
      %s4811 = scalar_lea.vmem %s8, 32
      %v4812 = vld [vmem:[%s4811] sm:$0xf]
      %v4814 = vsel %vm539, %v4803, 0
      %v4817 = vsel %vm539, %v4804, 0
      %v4820 = vsel %vm539, %v4805, 0
      %v4823 = vsel %vm539, %v4806, 0
      %v4826 = vsel %vm539, %v4807, 0
      %v4829 = vsel %vm539, %v4808, 0
      %v4832 = vsel %vm539, %v4809, 0
      %v4835 = vsel %vm539, %v4810, 0
      %v4838 = vsel %vm691, %v4812, 0
      %4840 = vmatprep.subr.mxu0 0.0
      %4841 = vmatpush1.msra.mxu0 0.0
      %4842 = vmatprep.subr.mxu0 0.0
      %4843 = vmatpush1.msra.mxu0 0.0
      %4844 = vmatprep.subr.mxu0 0.0
      %4845 = vmatpush1.msra.mxu0 0.0
      %4846 = vmatprep.subr.mxu0 0.0
      %4847 = vmatpush1.msra.mxu0 0.0
      %4848 = vmatprep.subr.mxu0 0.0
      %4849 = vmatpush1.msra.mxu0 0.0
      %4850 = vmatprep.subr.mxu0 0.0
      %4851 = vmatpush1.msra.mxu0 0.0
      %4852 = vmatprep.subr.mxu0 0.0
      %4853 = vmatpush1.msra.mxu0 0.0
      %4854 = vmatprep.subr.mxu0 0.0
      %4855 = vmatpush1.msra.mxu0 0.0
      %4856 = vmatprep.subr.mxu0 0.0
      %4857 = vmatpush1.msra.mxu0 0.0
      %4858 = vmatprep.subr.mxu0 0.0
      %4859 = vmatpush1.msra.mxu0 0.0
      %4860 = vmatprep.subr.mxu0 0.0
      %4861 = vmatpush1.msra.mxu0 0.0
      %4862 = vmatprep.subr.mxu0 0.0
      %4863 = vmatpush1.msra.mxu0 0.0
      %4864 = vmatprep.subr.mxu0 0.0
      %4865 = vmatpush1.msra.mxu0 0.0
      %4866 = vmatprep.subr.mxu0 0.0
      %4867 = vmatpush1.msra.mxu0 0.0
      %4868 = vmatprep.subr.mxu0 0.0
      %4869 = vmatpush1.msra.mxu0 0.0
      %4870 = vmatprep.subr.mxu0 0.0
      %4871 = vmatpush1.msra.mxu0 %v4838
      %4872 = vmatprep.subr.mxu0 0.0
      %4873 = vmatpush2.msra.mxu0 0.0
      %4874 = vmatprep.subr.mxu0 0.0
      %4875 = vmatpush2.msra.mxu0 0.0
      %4876 = vmatprep.subr.mxu0 0.0
      %4877 = vmatpush2.msra.mxu0 0.0
      %4878 = vmatprep.subr.mxu0 0.0
      %4879 = vmatpush2.msra.mxu0 0.0
      %4880 = vmatprep.subr.mxu0 0.0
      %4881 = vmatpush2.msra.mxu0 0.0
      %4882 = vmatprep.subr.mxu0 0.0
      %4883 = vmatpush2.msra.mxu0 0.0
      %4884 = vmatprep.subr.mxu0 0.0
      %4885 = vmatpush2.msra.mxu0 0.0
      %4886 = vmatprep.subr.mxu0 0.0
      %4887 = vmatpush2.msra.mxu0 0.0
      %4888 = vmatprep.subr.mxu0 0.0
      %4889 = vmatpush2.msra.mxu0 0.0
      %4890 = vmatprep.subr.mxu0 0.0
      %4891 = vmatpush2.msra.mxu0 0.0
      %4892 = vmatprep.subr.mxu0 0.0
      %4893 = vmatpush2.msra.mxu0 0.0
      %4894 = vmatprep.subr.mxu0 0.0
      %4895 = vmatpush2.msra.mxu0 0.0
      %4896 = vmatprep.subr.mxu0 0.0
      %4897 = vmatpush2.msra.mxu0 0.0
      %4898 = vmatprep.subr.mxu0 0.0
      %4899 = vmatpush2.msra.mxu0 0.0
      %4900 = vmatprep.subr.mxu0 0.0
      %4901 = vmatpush2.msra.mxu0 0.0
      %4902 = vmatprep.subr.mxu0 0.0
      %4903 = vmatpush2.msra.mxu0 0.0
      %4904 = vmatprep.mubr.f32.mxu0 0.0
      %4905 = vmatmul.mubr.f32.gmra.mxu0 %v4814
      %v4906 = vpop.f32.mrf.mxu0
      %v4907 = vadd.f32 0.0, %v4906
      %v4908 = vpop.f32.mrf.mxu0
      %4909 = vmatprep.mubr.f32.mxu0 0.0
      %4910 = vmatmul.mubr.f32.gmra.mxu0 %v4817
      %v4911 = vpop.f32.mrf.mxu0
      %v4912 = vadd.f32 0.0, %v4911
      %v4913 = vpop.f32.mrf.mxu0
      %4914 = vmatprep.mubr.f32.mxu0 0.0
      %4915 = vmatmul.mubr.f32.gmra.mxu0 %v4820
      %v4916 = vpop.f32.mrf.mxu0
      %v4917 = vadd.f32 0.0, %v4916
      %v4918 = vpop.f32.mrf.mxu0
      %4919 = vmatprep.mubr.f32.mxu0 0.0
      %4920 = vmatmul.mubr.f32.gmra.mxu0 %v4823
      %v4921 = vpop.f32.mrf.mxu0
      %v4922 = vadd.f32 0.0, %v4921
      %v4923 = vpop.f32.mrf.mxu0
      %4924 = vmatprep.mubr.f32.mxu0 0.0
      %4925 = vmatmul.mubr.f32.gmra.mxu0 %v4826
      %v4926 = vpop.f32.mrf.mxu0
      %v4927 = vadd.f32 0.0, %v4926
      %v4928 = vpop.f32.mrf.mxu0
      %4929 = vmatprep.mubr.f32.mxu0 0.0
      %4930 = vmatmul.mubr.f32.gmra.mxu0 %v4829
      %v4931 = vpop.f32.mrf.mxu0
      %v4932 = vadd.f32 0.0, %v4931
      %v4933 = vpop.f32.mrf.mxu0
      %4934 = vmatprep.mubr.f32.mxu0 0.0
      %4935 = vmatmul.mubr.f32.gmra.mxu0 %v4832
      %v4936 = vpop.f32.mrf.mxu0
      %v4937 = vadd.f32 0.0, %v4936
      %v4938 = vpop.f32.mrf.mxu0
      %4939 = vmatprep.mubr.f32.mxu0 0.0
      %4940 = vmatmul.mubr.f32.gmra.mxu0 %v4835
      %v4941 = vpop.f32.mrf.mxu0
      %v4942 = vadd.f32 0.0, %v4941
      %v4943 = vpop.f32.mrf.mxu0
      %4944 = vdwg.mxu0
      %v4945 = vadd.f32 %v4795, %v4907
      %v4946 = vadd.f32 %v4796, %v4912
      %v4947 = vadd.f32 %v4797, %v4917
      %v4948 = vadd.f32 %v4798, %v4922
      %v4949 = vadd.f32 %v4799, %v4927
      %v4950 = vadd.f32 %v4800, %v4932
      %v4951 = vadd.f32 %v4801, %v4937
      %v4952 = vadd.f32 %v4802, %v4942
      %v4953 = vsel %vm561, %v4945, 0.0
      %v4954 = vsel %vm561, %v4946, 0.0
      %v4955 = vadd.f32 %v4953, %v4954
      %v4956 = vsel %vm561, %v4947, 0.0
      %v4957 = vadd.f32 %v4955, %v4956
      %v4958 = vsel %vm561, %v4948, 0.0
      %v4959 = vadd.f32 %v4957, %v4958
      %v4960 = vsel %vm561, %v4949, 0.0
      %v4961 = vadd.f32 %v4959, %v4960
      %v4962 = vsel %vm561, %v4950, 0.0
      %v4963 = vadd.f32 %v4961, %v4962
      %v4964 = vsel %vm561, %v4951, 0.0
      %v4965 = vadd.f32 %v4963, %v4964
      %v4966 = vsel %vm561, %v4952, 0.0
      %v4967 = vadd.f32 %v4965, %v4966
      %4968 = vadd.xlane.f32.xlu0 %v4967
      %v4969 = vpop.xlane.xlu0 %4968
      %v4970 = vrot.slane %v4969, 4
      %v4971 = vadd.f32 %v4969, %v4970
      %v4972 = vrot.slane %v4971, 2
      %v4973 = vadd.f32 %v4971, %v4972
      %v4974 = vrot.slane %v4973, 1
      %v4975 = vadd.f32 %v4973, %v4974
      %s4976 = vtos %v4975
      %v4977 = vmul.f32 %v4945, %v4945
      %v4978 = vmul.f32 %v4946, %v4946
      %v4979 = vmul.f32 %v4947, %v4947
      %v4980 = vmul.f32 %v4948, %v4948
      %v4981 = vmul.f32 %v4949, %v4949
      %v4982 = vmul.f32 %v4950, %v4950
      %v4983 = vmul.f32 %v4951, %v4951
      %v4984 = vmul.f32 %v4952, %v4952
      %v4985 = vsel %vm561, %v4977, 0.0
      %v4986 = vsel %vm561, %v4978, 0.0
      %v4987 = vadd.f32 %v4985, %v4986
      %v4988 = vsel %vm561, %v4979, 0.0
      %v4989 = vadd.f32 %v4987, %v4988
      %v4990 = vsel %vm561, %v4980, 0.0
      %v4991 = vadd.f32 %v4989, %v4990
      %v4992 = vsel %vm561, %v4981, 0.0
      %v4993 = vadd.f32 %v4991, %v4992
      %v4994 = vsel %vm561, %v4982, 0.0
      %v4995 = vadd.f32 %v4993, %v4994
      %v4996 = vsel %vm561, %v4983, 0.0
      %v4997 = vadd.f32 %v4995, %v4996
      %v4998 = vsel %vm561, %v4984, 0.0
      %v4999 = vadd.f32 %v4997, %v4998
      %5000 = vadd.xlane.f32.xlu0 %v4999
      %v5001 = vpop.xlane.xlu0 %5000
      %v5002 = vrot.slane %v5001, 4
      %v5003 = vadd.f32 %v5001, %v5002
      %v5004 = vrot.slane %v5003, 2
      %v5005 = vadd.f32 %v5003, %v5004
      %v5006 = vrot.slane %v5005, 1
      %v5007 = vadd.f32 %v5005, %v5006
      %s5008 = vtos %v5007
      %s5009 = smul.f32 %s4976, 0.001953125
      %s5010 = smul.f32 %s5008, 0.001953125
      %s5011 = smul.f32 %s5009, %s5009
      %s5012 = ssub.f32 %s5010, %s5011
      %v5013 = vstv %s5009
      %v5014 = vsub.f32 %v4945, %v5013
      %v5015 = vsub.f32 %v4946, %v5013
      %v5016 = vsub.f32 %v4947, %v5013
      %v5017 = vsub.f32 %v4948, %v5013
      %v5018 = vsub.f32 %v4949, %v5013
      %v5019 = vsub.f32 %v4950, %v5013
      %v5020 = vsub.f32 %v4951, %v5013
      %v5021 = vsub.f32 %v4952, %v5013
      %s5022 = sadd.f32 %s5012, 1e-05
      %v5023 = vstv %s5022
      %v5024 = vrsqrt.pop %v5023
      %s5025 = vtos %v5024
      %v5026 = vstv %s5025
      %v5027 = vmul.f32 %v5014, %v5026
      %v5028 = vmul.f32 %v5015, %v5026
      %v5029 = vmul.f32 %v5016, %v5026
      %v5030 = vmul.f32 %v5017, %v5026
      %v5031 = vmul.f32 %v5018, %v5026
      %v5032 = vmul.f32 %v5019, %v5026
      %v5033 = vmul.f32 %v5020, %v5026
      %v5034 = vmul.f32 %v5021, %v5026
      %v5035 = vld [vmem:[%s9] sm:$0x1]
      %v5037 = vlaneseq
      %v5038 = vshrl.u32 %v5037, 7
      %v5039 = vsub.s32 0, %v5038
      %v5040 = vrot.slane %v5035, %v5039
      %v5042 = vmul.f32 %v5027, %v5040
      %v5043 = vmul.f32 %v5028, %v5040
      %v5044 = vmul.f32 %v5029, %v5040
      %v5045 = vmul.f32 %v5030, %v5040
      %v5046 = vmul.f32 %v5031, %v5040
      %v5047 = vmul.f32 %v5032, %v5040
      %v5048 = vmul.f32 %v5033, %v5040
      %v5049 = vmul.f32 %v5034, %v5040
      %v5050 = vld [vmem:[%s10] sm:$0x1]
      %v5052 = vlaneseq
      %v5053 = vshrl.u32 %v5052, 7
      %v5054 = vsub.s32 0, %v5053
      %v5055 = vrot.slane %v5050, %v5054
      %v5057 = vadd.f32 %v5042, %v5055
      %v5058 = vadd.f32 %v5043, %v5055
      %v5059 = vadd.f32 %v5044, %v5055
      %v5060 = vadd.f32 %v5045, %v5055
      %v5061 = vadd.f32 %v5046, %v5055
      %v5062 = vadd.f32 %v5047, %v5055
      %v5063 = vadd.f32 %v5048, %v5055
      %v5064 = vadd.f32 %v5049, %v5055
      %v5065 = vmul.f32 %v5057, 0.5
      %v5066 = vmul.f32 %v5058, 0.5
      %v5067 = vmul.f32 %v5059, 0.5
      %v5068 = vmul.f32 %v5060, 0.5
      %v5069 = vmul.f32 %v5061, 0.5
      %v5070 = vmul.f32 %v5062, 0.5
      %v5071 = vmul.f32 %v5063, 0.5
      %v5072 = vmul.f32 %v5064, 0.5
      %v5073 = vmul.f32 %v5057, 0.70710677
      %v5074 = vmul.f32 %v5058, 0.70710677
      %v5075 = vmul.f32 %v5059, 0.70710677
      %v5076 = vmul.f32 %v5060, 0.70710677
      %v5077 = vmul.f32 %v5061, 0.70710677
      %v5078 = vmul.f32 %v5062, 0.70710677
      %v5079 = vmul.f32 %v5063, 0.70710677
      %v5080 = vmul.f32 %v5064, 0.70710677
      %v5081 = verf.f32.pop %v5073
      %v5082 = verf.f32.pop %v5074
      %v5083 = verf.f32.pop %v5075
      %v5084 = verf.f32.pop %v5076
      %v5085 = verf.f32.pop %v5077
      %v5086 = verf.f32.pop %v5078
      %v5087 = verf.f32.pop %v5079
      %v5088 = verf.f32.pop %v5080
      %v5089 = vadd.f32 %v5081, 1.0
      %v5090 = vadd.f32 %v5082, 1.0
      %v5091 = vadd.f32 %v5083, 1.0
      %v5092 = vadd.f32 %v5084, 1.0
      %v5093 = vadd.f32 %v5085, 1.0
      %v5094 = vadd.f32 %v5086, 1.0
      %v5095 = vadd.f32 %v5087, 1.0
      %v5096 = vadd.f32 %v5088, 1.0
      %v5097 = vmul.f32 %v5065, %v5089
      %v5098 = vmul.f32 %v5066, %v5090
      %v5099 = vmul.f32 %v5067, %v5091
      %v5100 = vmul.f32 %v5068, %v5092
      %v5101 = vmul.f32 %v5069, %v5093
      %v5102 = vmul.f32 %v5070, %v5094
      %v5103 = vmul.f32 %v5071, %v5095
      %v5104 = vmul.f32 %v5072, %v5096
      %s5105 = scalar_lea.vmem [#allocation3], 16
      %5106 = vst.msk [vmem:[%s5105 + $0x1] sm:$0xff] %vm561, %v5097
      %5107 = vst.msk [vmem:[%s5105 + $0x11] sm:$0xff] %vm561, %v5098
      %5108 = vst.msk [vmem:[%s5105 + $0x21] sm:$0xff] %vm561, %v5099
      %5109 = vst.msk [vmem:[%s5105 + $0x31] sm:$0xff] %vm561, %v5100
      %5110 = vst.msk [vmem:[%s5105 + $0x41] sm:$0xff] %vm561, %v5101
      %5111 = vst.msk [vmem:[%s5105 + $0x51] sm:$0xff] %vm561, %v5102
      %5112 = vst.msk [vmem:[%s5105 + $0x61] sm:$0xff] %vm561, %v5103
      %5113 = vst.msk [vmem:[%s5105 + $0x71] sm:$0xff] %vm561, %v5104
      %v5114 = vld [vmem:[#allocation3] sm:$0xff]
      %v5115 = vld [vmem:[#allocation3 + $0x10] sm:$0xff]
      %v5116 = vld [vmem:[#allocation3 + $0x20] sm:$0xff]
      %v5117 = vld [vmem:[#allocation3 + $0x30] sm:$0xff]
      %v5118 = vld [vmem:[#allocation3 + $0x40] sm:$0xff]
      %v5119 = vld [vmem:[#allocation3 + $0x50] sm:$0xff]
      %v5120 = vld [vmem:[#allocation3 + $0x60] sm:$0xff]
      %v5121 = vld [vmem:[#allocation3 + $0x70] sm:$0xff]
      %v5122 = vld [vmem:[%s11] sm:$0xff]
      %v5123 = vld [vmem:[#allocation3 + $0x1] sm:$0xff]
      %v5124 = vld [vmem:[#allocation3 + $0x11] sm:$0xff]
      %v5125 = vld [vmem:[#allocation3 + $0x21] sm:$0xff]
      %v5126 = vld [vmem:[#allocation3 + $0x31] sm:$0xff]
      %v5127 = vld [vmem:[#allocation3 + $0x41] sm:$0xff]
      %v5128 = vld [vmem:[#allocation3 + $0x51] sm:$0xff]
      %v5129 = vld [vmem:[#allocation3 + $0x61] sm:$0xff]
      %v5130 = vld [vmem:[#allocation3 + $0x71] sm:$0xff]
      %s5131 = scalar_lea.vmem %s11, 8
      %v5132 = vld [vmem:[%s5131] sm:$0xff]
      %v5134 = vsel %vm561, %v5123, 0
      %v5137 = vsel %vm561, %v5124, 0
      %v5140 = vsel %vm561, %v5125, 0
      %v5143 = vsel %vm561, %v5126, 0
      %v5146 = vsel %vm561, %v5127, 0
      %v5149 = vsel %vm561, %v5128, 0
      %v5152 = vsel %vm561, %v5129, 0
      %v5155 = vsel %vm561, %v5130, 0
      %5157 = vmatprep.subr.mxu0 0.0
      %5158 = vmatpush1.msra.mxu0 0.0
      %5159 = vmatprep.subr.mxu0 0.0
      %5160 = vmatpush1.msra.mxu0 0.0
      %5161 = vmatprep.subr.mxu0 0.0
      %5162 = vmatpush1.msra.mxu0 0.0
      %5163 = vmatprep.subr.mxu0 0.0
      %5164 = vmatpush1.msra.mxu0 0.0
      %5165 = vmatprep.subr.mxu0 0.0
      %5166 = vmatpush1.msra.mxu0 0.0
      %5167 = vmatprep.subr.mxu0 0.0
      %5168 = vmatpush1.msra.mxu0 0.0
      %5169 = vmatprep.subr.mxu0 0.0
      %5170 = vmatpush1.msra.mxu0 0.0
      %5171 = vmatprep.subr.mxu0 0.0
      %5172 = vmatpush1.msra.mxu0 0.0
      %5173 = vmatprep.subr.mxu0 0.0
      %5174 = vmatpush1.msra.mxu0 0.0
      %5175 = vmatprep.subr.mxu0 0.0
      %5176 = vmatpush1.msra.mxu0 0.0
      %5177 = vmatprep.subr.mxu0 0.0
      %5178 = vmatpush1.msra.mxu0 0.0
      %5179 = vmatprep.subr.mxu0 0.0
      %5180 = vmatpush1.msra.mxu0 0.0
      %5181 = vmatprep.subr.mxu0 0.0
      %5182 = vmatpush1.msra.mxu0 0.0
      %5183 = vmatprep.subr.mxu0 0.0
      %5184 = vmatpush1.msra.mxu0 0.0
      %5185 = vmatprep.subr.mxu0 0.0
      %5186 = vmatpush1.msra.mxu0 0.0
      %5187 = vmatprep.subr.mxu0 0.0
      %5188 = vmatpush1.msra.mxu0 %v5132
      %5189 = vmatprep.subr.mxu0 0.0
      %5190 = vmatpush2.msra.mxu0 0.0
      %5191 = vmatprep.subr.mxu0 0.0
      %5192 = vmatpush2.msra.mxu0 0.0
      %5193 = vmatprep.subr.mxu0 0.0
      %5194 = vmatpush2.msra.mxu0 0.0
      %5195 = vmatprep.subr.mxu0 0.0
      %5196 = vmatpush2.msra.mxu0 0.0
      %5197 = vmatprep.subr.mxu0 0.0
      %5198 = vmatpush2.msra.mxu0 0.0
      %5199 = vmatprep.subr.mxu0 0.0
      %5200 = vmatpush2.msra.mxu0 0.0
      %5201 = vmatprep.subr.mxu0 0.0
      %5202 = vmatpush2.msra.mxu0 0.0
      %5203 = vmatprep.subr.mxu0 0.0
      %5204 = vmatpush2.msra.mxu0 0.0
      %5205 = vmatprep.subr.mxu0 0.0
      %5206 = vmatpush2.msra.mxu0 0.0
      %5207 = vmatprep.subr.mxu0 0.0
      %5208 = vmatpush2.msra.mxu0 0.0
      %5209 = vmatprep.subr.mxu0 0.0
      %5210 = vmatpush2.msra.mxu0 0.0
      %5211 = vmatprep.subr.mxu0 0.0
      %5212 = vmatpush2.msra.mxu0 0.0
      %5213 = vmatprep.subr.mxu0 0.0
      %5214 = vmatpush2.msra.mxu0 0.0
      %5215 = vmatprep.subr.mxu0 0.0
      %5216 = vmatpush2.msra.mxu0 0.0
      %5217 = vmatprep.subr.mxu0 0.0
      %5218 = vmatpush2.msra.mxu0 0.0
      %5219 = vmatprep.subr.mxu0 0.0
      %5220 = vmatpush2.msra.mxu0 0.0
      %5221 = vmatprep.mubr.f32.mxu0 0.0
      %5222 = vmatmul.mubr.f32.gmra.mxu0 %v5134
      %v5223 = vpop.f32.mrf.mxu0
      %v5224 = vadd.f32 0.0, %v5223
      %v5225 = vpop.f32.mrf.mxu0
      %5226 = vmatprep.mubr.f32.mxu0 0.0
      %5227 = vmatmul.mubr.f32.gmra.mxu0 %v5137
      %v5228 = vpop.f32.mrf.mxu0
      %v5229 = vadd.f32 0.0, %v5228
      %v5230 = vpop.f32.mrf.mxu0
      %5231 = vmatprep.mubr.f32.mxu0 0.0
      %5232 = vmatmul.mubr.f32.gmra.mxu0 %v5140
      %v5233 = vpop.f32.mrf.mxu0
      %v5234 = vadd.f32 0.0, %v5233
      %v5235 = vpop.f32.mrf.mxu0
      %5236 = vmatprep.mubr.f32.mxu0 0.0
      %5237 = vmatmul.mubr.f32.gmra.mxu0 %v5143
      %v5238 = vpop.f32.mrf.mxu0
      %v5239 = vadd.f32 0.0, %v5238
      %v5240 = vpop.f32.mrf.mxu0
      %5241 = vmatprep.mubr.f32.mxu0 0.0
      %5242 = vmatmul.mubr.f32.gmra.mxu0 %v5146
      %v5243 = vpop.f32.mrf.mxu0
      %v5244 = vadd.f32 0.0, %v5243
      %v5245 = vpop.f32.mrf.mxu0
      %5246 = vmatprep.mubr.f32.mxu0 0.0
      %5247 = vmatmul.mubr.f32.gmra.mxu0 %v5149
      %v5248 = vpop.f32.mrf.mxu0
      %v5249 = vadd.f32 0.0, %v5248
      %v5250 = vpop.f32.mrf.mxu0
      %5251 = vmatprep.mubr.f32.mxu0 0.0
      %5252 = vmatmul.mubr.f32.gmra.mxu0 %v5152
      %v5253 = vpop.f32.mrf.mxu0
      %v5254 = vadd.f32 0.0, %v5253
      %v5255 = vpop.f32.mrf.mxu0
      %5256 = vmatprep.mubr.f32.mxu0 0.0
      %5257 = vmatmul.mubr.f32.gmra.mxu0 %v5155
      %v5258 = vpop.f32.mrf.mxu0
      %v5259 = vadd.f32 0.0, %v5258
      %v5260 = vpop.f32.mrf.mxu0
      %5261 = vdwg.mxu0
      %v5263 = vsel %vm561, %v5114, 0
      %v5266 = vsel %vm561, %v5115, 0
      %v5269 = vsel %vm561, %v5116, 0
      %v5272 = vsel %vm561, %v5117, 0
      %v5275 = vsel %vm561, %v5118, 0
      %v5278 = vsel %vm561, %v5119, 0
      %v5281 = vsel %vm561, %v5120, 0
      %v5284 = vsel %vm561, %v5121, 0
      %5286 = vmatprep.subr.mxu0 0.0
      %5287 = vmatpush1.msra.mxu0 0.0
      %5288 = vmatprep.subr.mxu0 0.0
      %5289 = vmatpush1.msra.mxu0 0.0
      %5290 = vmatprep.subr.mxu0 0.0
      %5291 = vmatpush1.msra.mxu0 0.0
      %5292 = vmatprep.subr.mxu0 0.0
      %5293 = vmatpush1.msra.mxu0 0.0
      %5294 = vmatprep.subr.mxu0 0.0
      %5295 = vmatpush1.msra.mxu0 0.0
      %5296 = vmatprep.subr.mxu0 0.0
      %5297 = vmatpush1.msra.mxu0 0.0
      %5298 = vmatprep.subr.mxu0 0.0
      %5299 = vmatpush1.msra.mxu0 0.0
      %5300 = vmatprep.subr.mxu0 0.0
      %5301 = vmatpush1.msra.mxu0 0.0
      %5302 = vmatprep.subr.mxu0 0.0
      %5303 = vmatpush1.msra.mxu0 0.0
      %5304 = vmatprep.subr.mxu0 0.0
      %5305 = vmatpush1.msra.mxu0 0.0
      %5306 = vmatprep.subr.mxu0 0.0
      %5307 = vmatpush1.msra.mxu0 0.0
      %5308 = vmatprep.subr.mxu0 0.0
      %5309 = vmatpush1.msra.mxu0 0.0
      %5310 = vmatprep.subr.mxu0 0.0
      %5311 = vmatpush1.msra.mxu0 0.0
      %5312 = vmatprep.subr.mxu0 0.0
      %5313 = vmatpush1.msra.mxu0 0.0
      %5314 = vmatprep.subr.mxu0 0.0
      %5315 = vmatpush1.msra.mxu0 0.0
      %5316 = vmatprep.subr.mxu0 0.0
      %5317 = vmatpush1.msra.mxu0 %v5122
      %5318 = vmatprep.subr.mxu0 0.0
      %5319 = vmatpush2.msra.mxu0 0.0
      %5320 = vmatprep.subr.mxu0 0.0
      %5321 = vmatpush2.msra.mxu0 0.0
      %5322 = vmatprep.subr.mxu0 0.0
      %5323 = vmatpush2.msra.mxu0 0.0
      %5324 = vmatprep.subr.mxu0 0.0
      %5325 = vmatpush2.msra.mxu0 0.0
      %5326 = vmatprep.subr.mxu0 0.0
      %5327 = vmatpush2.msra.mxu0 0.0
      %5328 = vmatprep.subr.mxu0 0.0
      %5329 = vmatpush2.msra.mxu0 0.0
      %5330 = vmatprep.subr.mxu0 0.0
      %5331 = vmatpush2.msra.mxu0 0.0
      %5332 = vmatprep.subr.mxu0 0.0
      %5333 = vmatpush2.msra.mxu0 0.0
      %5334 = vmatprep.subr.mxu0 0.0
      %5335 = vmatpush2.msra.mxu0 0.0
      %5336 = vmatprep.subr.mxu0 0.0
      %5337 = vmatpush2.msra.mxu0 0.0
      %5338 = vmatprep.subr.mxu0 0.0
      %5339 = vmatpush2.msra.mxu0 0.0
      %5340 = vmatprep.subr.mxu0 0.0
      %5341 = vmatpush2.msra.mxu0 0.0
      %5342 = vmatprep.subr.mxu0 0.0
      %5343 = vmatpush2.msra.mxu0 0.0
      %5344 = vmatprep.subr.mxu0 0.0
      %5345 = vmatpush2.msra.mxu0 0.0
      %5346 = vmatprep.subr.mxu0 0.0
      %5347 = vmatpush2.msra.mxu0 0.0
      %5348 = vmatprep.subr.mxu0 0.0
      %5349 = vmatpush2.msra.mxu0 0.0
      %5350 = vmatprep.mubr.f32.mxu0 0.0
      %5351 = vmatmul.mubr.f32.gmra.mxu0 %v5263
      %v5352 = vpop.f32.mrf.mxu0
      %v5353 = vadd.f32 %v5224, %v5352
      %v5354 = vpop.f32.mrf.mxu0
      %5355 = vmatprep.mubr.f32.mxu0 0.0
      %5356 = vmatmul.mubr.f32.gmra.mxu0 %v5266
      %v5357 = vpop.f32.mrf.mxu0
      %v5358 = vadd.f32 %v5229, %v5357
      %v5359 = vpop.f32.mrf.mxu0
      %5360 = vmatprep.mubr.f32.mxu0 0.0
      %5361 = vmatmul.mubr.f32.gmra.mxu0 %v5269
      %v5362 = vpop.f32.mrf.mxu0
      %v5363 = vadd.f32 %v5234, %v5362
      %v5364 = vpop.f32.mrf.mxu0
      %5365 = vmatprep.mubr.f32.mxu0 0.0
      %5366 = vmatmul.mubr.f32.gmra.mxu0 %v5272
      %v5367 = vpop.f32.mrf.mxu0
      %v5368 = vadd.f32 %v5239, %v5367
      %v5369 = vpop.f32.mrf.mxu0
      %5370 = vmatprep.mubr.f32.mxu0 0.0
      %5371 = vmatmul.mubr.f32.gmra.mxu0 %v5275
      %v5372 = vpop.f32.mrf.mxu0
      %v5373 = vadd.f32 %v5244, %v5372
      %v5374 = vpop.f32.mrf.mxu0
      %5375 = vmatprep.mubr.f32.mxu0 0.0
      %5376 = vmatmul.mubr.f32.gmra.mxu0 %v5278
      %v5377 = vpop.f32.mrf.mxu0
      %v5378 = vadd.f32 %v5249, %v5377
      %v5379 = vpop.f32.mrf.mxu0
      %5380 = vmatprep.mubr.f32.mxu0 0.0
      %5381 = vmatmul.mubr.f32.gmra.mxu0 %v5281
      %v5382 = vpop.f32.mrf.mxu0
      %v5383 = vadd.f32 %v5254, %v5382
      %v5384 = vpop.f32.mrf.mxu0
      %5385 = vmatprep.mubr.f32.mxu0 0.0
      %5386 = vmatmul.mubr.f32.gmra.mxu0 %v5284
      %v5387 = vpop.f32.mrf.mxu0
      %v5388 = vadd.f32 %v5259, %v5387
      %v5389 = vpop.f32.mrf.mxu0
      %5390 = vdwg.mxu0
      %v5391 = vld [vmem:[#allocation3 + $0x2] sm:$0xff]
      %v5392 = vld [vmem:[#allocation3 + $0x12] sm:$0xff]
      %v5393 = vld [vmem:[#allocation3 + $0x22] sm:$0xff]
      %v5394 = vld [vmem:[#allocation3 + $0x32] sm:$0xff]
      %v5395 = vld [vmem:[#allocation3 + $0x42] sm:$0xff]
      %v5396 = vld [vmem:[#allocation3 + $0x52] sm:$0xff]
      %v5397 = vld [vmem:[#allocation3 + $0x62] sm:$0xff]
      %v5398 = vld [vmem:[#allocation3 + $0x72] sm:$0xff]
      %s5399 = scalar_lea.vmem %s11, 16
      %v5400 = vld [vmem:[%s5399] sm:$0xff]
      %v5402 = vsel %vm561, %v5391, 0
      %v5405 = vsel %vm561, %v5392, 0
      %v5408 = vsel %vm561, %v5393, 0
      %v5411 = vsel %vm561, %v5394, 0
      %v5414 = vsel %vm561, %v5395, 0
      %v5417 = vsel %vm561, %v5396, 0
      %v5420 = vsel %vm561, %v5397, 0
      %v5423 = vsel %vm561, %v5398, 0
      %5425 = vmatprep.subr.mxu0 0.0
      %5426 = vmatpush1.msra.mxu0 0.0
      %5427 = vmatprep.subr.mxu0 0.0
      %5428 = vmatpush1.msra.mxu0 0.0
      %5429 = vmatprep.subr.mxu0 0.0
      %5430 = vmatpush1.msra.mxu0 0.0
      %5431 = vmatprep.subr.mxu0 0.0
      %5432 = vmatpush1.msra.mxu0 0.0
      %5433 = vmatprep.subr.mxu0 0.0
      %5434 = vmatpush1.msra.mxu0 0.0
      %5435 = vmatprep.subr.mxu0 0.0
      %5436 = vmatpush1.msra.mxu0 0.0
      %5437 = vmatprep.subr.mxu0 0.0
      %5438 = vmatpush1.msra.mxu0 0.0
      %5439 = vmatprep.subr.mxu0 0.0
      %5440 = vmatpush1.msra.mxu0 0.0
      %5441 = vmatprep.subr.mxu0 0.0
      %5442 = vmatpush1.msra.mxu0 0.0
      %5443 = vmatprep.subr.mxu0 0.0
      %5444 = vmatpush1.msra.mxu0 0.0
      %5445 = vmatprep.subr.mxu0 0.0
      %5446 = vmatpush1.msra.mxu0 0.0
      %5447 = vmatprep.subr.mxu0 0.0
      %5448 = vmatpush1.msra.mxu0 0.0
      %5449 = vmatprep.subr.mxu0 0.0
      %5450 = vmatpush1.msra.mxu0 0.0
      %5451 = vmatprep.subr.mxu0 0.0
      %5452 = vmatpush1.msra.mxu0 0.0
      %5453 = vmatprep.subr.mxu0 0.0
      %5454 = vmatpush1.msra.mxu0 0.0
      %5455 = vmatprep.subr.mxu0 0.0
      %5456 = vmatpush1.msra.mxu0 %v5400
      %5457 = vmatprep.subr.mxu0 0.0
      %5458 = vmatpush2.msra.mxu0 0.0
      %5459 = vmatprep.subr.mxu0 0.0
      %5460 = vmatpush2.msra.mxu0 0.0
      %5461 = vmatprep.subr.mxu0 0.0
      %5462 = vmatpush2.msra.mxu0 0.0
      %5463 = vmatprep.subr.mxu0 0.0
      %5464 = vmatpush2.msra.mxu0 0.0
      %5465 = vmatprep.subr.mxu0 0.0
      %5466 = vmatpush2.msra.mxu0 0.0
      %5467 = vmatprep.subr.mxu0 0.0
      %5468 = vmatpush2.msra.mxu0 0.0
      %5469 = vmatprep.subr.mxu0 0.0
      %5470 = vmatpush2.msra.mxu0 0.0
      %5471 = vmatprep.subr.mxu0 0.0
      %5472 = vmatpush2.msra.mxu0 0.0
      %5473 = vmatprep.subr.mxu0 0.0
      %5474 = vmatpush2.msra.mxu0 0.0
      %5475 = vmatprep.subr.mxu0 0.0
      %5476 = vmatpush2.msra.mxu0 0.0
      %5477 = vmatprep.subr.mxu0 0.0
      %5478 = vmatpush2.msra.mxu0 0.0
      %5479 = vmatprep.subr.mxu0 0.0
      %5480 = vmatpush2.msra.mxu0 0.0
      %5481 = vmatprep.subr.mxu0 0.0
      %5482 = vmatpush2.msra.mxu0 0.0
      %5483 = vmatprep.subr.mxu0 0.0
      %5484 = vmatpush2.msra.mxu0 0.0
      %5485 = vmatprep.subr.mxu0 0.0
      %5486 = vmatpush2.msra.mxu0 0.0
      %5487 = vmatprep.subr.mxu0 0.0
      %5488 = vmatpush2.msra.mxu0 0.0
      %5489 = vmatprep.mubr.f32.mxu0 0.0
      %5490 = vmatmul.mubr.f32.gmra.mxu0 %v5402
      %v5491 = vpop.f32.mrf.mxu0
      %v5492 = vadd.f32 0.0, %v5491
      %v5493 = vpop.f32.mrf.mxu0
      %5494 = vmatprep.mubr.f32.mxu0 0.0
      %5495 = vmatmul.mubr.f32.gmra.mxu0 %v5405
      %v5496 = vpop.f32.mrf.mxu0
      %v5497 = vadd.f32 0.0, %v5496
      %v5498 = vpop.f32.mrf.mxu0
      %5499 = vmatprep.mubr.f32.mxu0 0.0
      %5500 = vmatmul.mubr.f32.gmra.mxu0 %v5408
      %v5501 = vpop.f32.mrf.mxu0
      %v5502 = vadd.f32 0.0, %v5501
      %v5503 = vpop.f32.mrf.mxu0
      %5504 = vmatprep.mubr.f32.mxu0 0.0
      %5505 = vmatmul.mubr.f32.gmra.mxu0 %v5411
      %v5506 = vpop.f32.mrf.mxu0
      %v5507 = vadd.f32 0.0, %v5506
      %v5508 = vpop.f32.mrf.mxu0
      %5509 = vmatprep.mubr.f32.mxu0 0.0
      %5510 = vmatmul.mubr.f32.gmra.mxu0 %v5414
      %v5511 = vpop.f32.mrf.mxu0
      %v5512 = vadd.f32 0.0, %v5511
      %v5513 = vpop.f32.mrf.mxu0
      %5514 = vmatprep.mubr.f32.mxu0 0.0
      %5515 = vmatmul.mubr.f32.gmra.mxu0 %v5417
      %v5516 = vpop.f32.mrf.mxu0
      %v5517 = vadd.f32 0.0, %v5516
      %v5518 = vpop.f32.mrf.mxu0
      %5519 = vmatprep.mubr.f32.mxu0 0.0
      %5520 = vmatmul.mubr.f32.gmra.mxu0 %v5420
      %v5521 = vpop.f32.mrf.mxu0
      %v5522 = vadd.f32 0.0, %v5521
      %v5523 = vpop.f32.mrf.mxu0
      %5524 = vmatprep.mubr.f32.mxu0 0.0
      %5525 = vmatmul.mubr.f32.gmra.mxu0 %v5423
      %v5526 = vpop.f32.mrf.mxu0
      %v5527 = vadd.f32 0.0, %v5526
      %v5528 = vpop.f32.mrf.mxu0
      %5529 = vdwg.mxu0
      %v5530 = vadd.f32 %v5353, %v5492
      %v5531 = vadd.f32 %v5358, %v5497
      %v5532 = vadd.f32 %v5363, %v5502
      %v5533 = vadd.f32 %v5368, %v5507
      %v5534 = vadd.f32 %v5373, %v5512
      %v5535 = vadd.f32 %v5378, %v5517
      %v5536 = vadd.f32 %v5383, %v5522
      %v5537 = vadd.f32 %v5388, %v5527
      %v5538 = vld [vmem:[%s5105] sm:$0xff]
      %v5539 = vld [vmem:[%s5105 + $0x10] sm:$0xff]
      %v5540 = vld [vmem:[%s5105 + $0x20] sm:$0xff]
      %v5541 = vld [vmem:[%s5105 + $0x30] sm:$0xff]
      %v5542 = vld [vmem:[%s5105 + $0x40] sm:$0xff]
      %v5543 = vld [vmem:[%s5105 + $0x50] sm:$0xff]
      %v5544 = vld [vmem:[%s5105 + $0x60] sm:$0xff]
      %v5545 = vld [vmem:[%s5105 + $0x70] sm:$0xff]
      %s5546 = scalar_lea.vmem %s11, 24
      %v5547 = vld [vmem:[%s5546] sm:$0xff]
      %v5549 = vsel %vm561, %v5538, 0
      %v5552 = vsel %vm561, %v5539, 0
      %v5555 = vsel %vm561, %v5540, 0
      %v5558 = vsel %vm561, %v5541, 0
      %v5561 = vsel %vm561, %v5542, 0
      %v5564 = vsel %vm561, %v5543, 0
      %v5567 = vsel %vm561, %v5544, 0
      %v5570 = vsel %vm561, %v5545, 0
      %5572 = vmatprep.subr.mxu0 0.0
      %5573 = vmatpush1.msra.mxu0 0.0
      %5574 = vmatprep.subr.mxu0 0.0
      %5575 = vmatpush1.msra.mxu0 0.0
      %5576 = vmatprep.subr.mxu0 0.0
      %5577 = vmatpush1.msra.mxu0 0.0
      %5578 = vmatprep.subr.mxu0 0.0
      %5579 = vmatpush1.msra.mxu0 0.0
      %5580 = vmatprep.subr.mxu0 0.0
      %5581 = vmatpush1.msra.mxu0 0.0
      %5582 = vmatprep.subr.mxu0 0.0
      %5583 = vmatpush1.msra.mxu0 0.0
      %5584 = vmatprep.subr.mxu0 0.0
      %5585 = vmatpush1.msra.mxu0 0.0
      %5586 = vmatprep.subr.mxu0 0.0
      %5587 = vmatpush1.msra.mxu0 0.0
      %5588 = vmatprep.subr.mxu0 0.0
      %5589 = vmatpush1.msra.mxu0 0.0
      %5590 = vmatprep.subr.mxu0 0.0
      %5591 = vmatpush1.msra.mxu0 0.0
      %5592 = vmatprep.subr.mxu0 0.0
      %5593 = vmatpush1.msra.mxu0 0.0
      %5594 = vmatprep.subr.mxu0 0.0
      %5595 = vmatpush1.msra.mxu0 0.0
      %5596 = vmatprep.subr.mxu0 0.0
      %5597 = vmatpush1.msra.mxu0 0.0
      %5598 = vmatprep.subr.mxu0 0.0
      %5599 = vmatpush1.msra.mxu0 0.0
      %5600 = vmatprep.subr.mxu0 0.0
      %5601 = vmatpush1.msra.mxu0 0.0
      %5602 = vmatprep.subr.mxu0 0.0
      %5603 = vmatpush1.msra.mxu0 %v5547
      %5604 = vmatprep.subr.mxu0 0.0
      %5605 = vmatpush2.msra.mxu0 0.0
      %5606 = vmatprep.subr.mxu0 0.0
      %5607 = vmatpush2.msra.mxu0 0.0
      %5608 = vmatprep.subr.mxu0 0.0
      %5609 = vmatpush2.msra.mxu0 0.0
      %5610 = vmatprep.subr.mxu0 0.0
      %5611 = vmatpush2.msra.mxu0 0.0
      %5612 = vmatprep.subr.mxu0 0.0
      %5613 = vmatpush2.msra.mxu0 0.0
      %5614 = vmatprep.subr.mxu0 0.0
      %5615 = vmatpush2.msra.mxu0 0.0
      %5616 = vmatprep.subr.mxu0 0.0
      %5617 = vmatpush2.msra.mxu0 0.0
      %5618 = vmatprep.subr.mxu0 0.0
      %5619 = vmatpush2.msra.mxu0 0.0
      %5620 = vmatprep.subr.mxu0 0.0
      %5621 = vmatpush2.msra.mxu0 0.0
      %5622 = vmatprep.subr.mxu0 0.0
      %5623 = vmatpush2.msra.mxu0 0.0
      %5624 = vmatprep.subr.mxu0 0.0
      %5625 = vmatpush2.msra.mxu0 0.0
      %5626 = vmatprep.subr.mxu0 0.0
      %5627 = vmatpush2.msra.mxu0 0.0
      %5628 = vmatprep.subr.mxu0 0.0
      %5629 = vmatpush2.msra.mxu0 0.0
      %5630 = vmatprep.subr.mxu0 0.0
      %5631 = vmatpush2.msra.mxu0 0.0
      %5632 = vmatprep.subr.mxu0 0.0
      %5633 = vmatpush2.msra.mxu0 0.0
      %5634 = vmatprep.subr.mxu0 0.0
      %5635 = vmatpush2.msra.mxu0 0.0
      %5636 = vmatprep.mubr.f32.mxu0 0.0
      %5637 = vmatmul.mubr.f32.gmra.mxu0 %v5549
      %v5638 = vpop.f32.mrf.mxu0
      %v5639 = vadd.f32 0.0, %v5638
      %v5640 = vpop.f32.mrf.mxu0
      %5641 = vmatprep.mubr.f32.mxu0 0.0
      %5642 = vmatmul.mubr.f32.gmra.mxu0 %v5552
      %v5643 = vpop.f32.mrf.mxu0
      %v5644 = vadd.f32 0.0, %v5643
      %v5645 = vpop.f32.mrf.mxu0
      %5646 = vmatprep.mubr.f32.mxu0 0.0
      %5647 = vmatmul.mubr.f32.gmra.mxu0 %v5555
      %v5648 = vpop.f32.mrf.mxu0
      %v5649 = vadd.f32 0.0, %v5648
      %v5650 = vpop.f32.mrf.mxu0
      %5651 = vmatprep.mubr.f32.mxu0 0.0
      %5652 = vmatmul.mubr.f32.gmra.mxu0 %v5558
      %v5653 = vpop.f32.mrf.mxu0
      %v5654 = vadd.f32 0.0, %v5653
      %v5655 = vpop.f32.mrf.mxu0
      %5656 = vmatprep.mubr.f32.mxu0 0.0
      %5657 = vmatmul.mubr.f32.gmra.mxu0 %v5561
      %v5658 = vpop.f32.mrf.mxu0
      %v5659 = vadd.f32 0.0, %v5658
      %v5660 = vpop.f32.mrf.mxu0
      %5661 = vmatprep.mubr.f32.mxu0 0.0
      %5662 = vmatmul.mubr.f32.gmra.mxu0 %v5564
      %v5663 = vpop.f32.mrf.mxu0
      %v5664 = vadd.f32 0.0, %v5663
      %v5665 = vpop.f32.mrf.mxu0
      %5666 = vmatprep.mubr.f32.mxu0 0.0
      %5667 = vmatmul.mubr.f32.gmra.mxu0 %v5567
      %v5668 = vpop.f32.mrf.mxu0
      %v5669 = vadd.f32 0.0, %v5668
      %v5670 = vpop.f32.mrf.mxu0
      %5671 = vmatprep.mubr.f32.mxu0 0.0
      %5672 = vmatmul.mubr.f32.gmra.mxu0 %v5570
      %v5673 = vpop.f32.mrf.mxu0
      %v5674 = vadd.f32 0.0, %v5673
      %v5675 = vpop.f32.mrf.mxu0
      %5676 = vdwg.mxu0
      %v5677 = vadd.f32 %v5530, %v5639
      %v5678 = vadd.f32 %v5531, %v5644
      %v5679 = vadd.f32 %v5532, %v5649
      %v5680 = vadd.f32 %v5533, %v5654
      %v5681 = vadd.f32 %v5534, %v5659
      %v5682 = vadd.f32 %v5535, %v5664
      %v5683 = vadd.f32 %v5536, %v5669
      %v5684 = vadd.f32 %v5537, %v5674
      %s5685 = scalar_lea.vmem %s11, 32
      %v5686 = vld [vmem:[%s5685] sm:$0xff]
      %v5688 = vsel %vm561, %v5097, 0
      %v5691 = vsel %vm561, %v5098, 0
      %v5694 = vsel %vm561, %v5099, 0
      %v5697 = vsel %vm561, %v5100, 0
      %v5700 = vsel %vm561, %v5101, 0
      %v5703 = vsel %vm561, %v5102, 0
      %v5706 = vsel %vm561, %v5103, 0
      %v5709 = vsel %vm561, %v5104, 0
      %5711 = vmatprep.subr.mxu0 0.0
      %5712 = vmatpush1.msra.mxu0 0.0
      %5713 = vmatprep.subr.mxu0 0.0
      %5714 = vmatpush1.msra.mxu0 0.0
      %5715 = vmatprep.subr.mxu0 0.0
      %5716 = vmatpush1.msra.mxu0 0.0
      %5717 = vmatprep.subr.mxu0 0.0
      %5718 = vmatpush1.msra.mxu0 0.0
      %5719 = vmatprep.subr.mxu0 0.0
      %5720 = vmatpush1.msra.mxu0 0.0
      %5721 = vmatprep.subr.mxu0 0.0
      %5722 = vmatpush1.msra.mxu0 0.0
      %5723 = vmatprep.subr.mxu0 0.0
      %5724 = vmatpush1.msra.mxu0 0.0
      %5725 = vmatprep.subr.mxu0 0.0
      %5726 = vmatpush1.msra.mxu0 0.0
      %5727 = vmatprep.subr.mxu0 0.0
      %5728 = vmatpush1.msra.mxu0 0.0
      %5729 = vmatprep.subr.mxu0 0.0
      %5730 = vmatpush1.msra.mxu0 0.0
      %5731 = vmatprep.subr.mxu0 0.0
      %5732 = vmatpush1.msra.mxu0 0.0
      %5733 = vmatprep.subr.mxu0 0.0
      %5734 = vmatpush1.msra.mxu0 0.0
      %5735 = vmatprep.subr.mxu0 0.0
      %5736 = vmatpush1.msra.mxu0 0.0
      %5737 = vmatprep.subr.mxu0 0.0
      %5738 = vmatpush1.msra.mxu0 0.0
      %5739 = vmatprep.subr.mxu0 0.0
      %5740 = vmatpush1.msra.mxu0 0.0
      %5741 = vmatprep.subr.mxu0 0.0
      %5742 = vmatpush1.msra.mxu0 %v5686
      %5743 = vmatprep.subr.mxu0 0.0
      %5744 = vmatpush2.msra.mxu0 0.0
      %5745 = vmatprep.subr.mxu0 0.0
      %5746 = vmatpush2.msra.mxu0 0.0
      %5747 = vmatprep.subr.mxu0 0.0
      %5748 = vmatpush2.msra.mxu0 0.0
      %5749 = vmatprep.subr.mxu0 0.0
      %5750 = vmatpush2.msra.mxu0 0.0
      %5751 = vmatprep.subr.mxu0 0.0
      %5752 = vmatpush2.msra.mxu0 0.0
      %5753 = vmatprep.subr.mxu0 0.0
      %5754 = vmatpush2.msra.mxu0 0.0
      %5755 = vmatprep.subr.mxu0 0.0
      %5756 = vmatpush2.msra.mxu0 0.0
      %5757 = vmatprep.subr.mxu0 0.0
      %5758 = vmatpush2.msra.mxu0 0.0
      %5759 = vmatprep.subr.mxu0 0.0
      %5760 = vmatpush2.msra.mxu0 0.0
      %5761 = vmatprep.subr.mxu0 0.0
      %5762 = vmatpush2.msra.mxu0 0.0
      %5763 = vmatprep.subr.mxu0 0.0
      %5764 = vmatpush2.msra.mxu0 0.0
      %5765 = vmatprep.subr.mxu0 0.0
      %5766 = vmatpush2.msra.mxu0 0.0
      %5767 = vmatprep.subr.mxu0 0.0
      %5768 = vmatpush2.msra.mxu0 0.0
      %5769 = vmatprep.subr.mxu0 0.0
      %5770 = vmatpush2.msra.mxu0 0.0
      %5771 = vmatprep.subr.mxu0 0.0
      %5772 = vmatpush2.msra.mxu0 0.0
      %5773 = vmatprep.subr.mxu0 0.0
      %5774 = vmatpush2.msra.mxu0 0.0
      %5775 = vmatprep.mubr.f32.mxu0 0.0
      %5776 = vmatmul.mubr.f32.gmra.mxu0 %v5688
      %v5777 = vpop.f32.mrf.mxu0
      %v5778 = vadd.f32 0.0, %v5777
      %v5779 = vpop.f32.mrf.mxu0
      %5780 = vmatprep.mubr.f32.mxu0 0.0
      %5781 = vmatmul.mubr.f32.gmra.mxu0 %v5691
      %v5782 = vpop.f32.mrf.mxu0
      %v5783 = vadd.f32 0.0, %v5782
      %v5784 = vpop.f32.mrf.mxu0
      %5785 = vmatprep.mubr.f32.mxu0 0.0
      %5786 = vmatmul.mubr.f32.gmra.mxu0 %v5694
      %v5787 = vpop.f32.mrf.mxu0
      %v5788 = vadd.f32 0.0, %v5787
      %v5789 = vpop.f32.mrf.mxu0
      %5790 = vmatprep.mubr.f32.mxu0 0.0
      %5791 = vmatmul.mubr.f32.gmra.mxu0 %v5697
      %v5792 = vpop.f32.mrf.mxu0
      %v5793 = vadd.f32 0.0, %v5792
      %v5794 = vpop.f32.mrf.mxu0
      %5795 = vmatprep.mubr.f32.mxu0 0.0
      %5796 = vmatmul.mubr.f32.gmra.mxu0 %v5700
      %v5797 = vpop.f32.mrf.mxu0
      %v5798 = vadd.f32 0.0, %v5797
      %v5799 = vpop.f32.mrf.mxu0
      %5800 = vmatprep.mubr.f32.mxu0 0.0
      %5801 = vmatmul.mubr.f32.gmra.mxu0 %v5703
      %v5802 = vpop.f32.mrf.mxu0
      %v5803 = vadd.f32 0.0, %v5802
      %v5804 = vpop.f32.mrf.mxu0
      %5805 = vmatprep.mubr.f32.mxu0 0.0
      %5806 = vmatmul.mubr.f32.gmra.mxu0 %v5706
      %v5807 = vpop.f32.mrf.mxu0
      %v5808 = vadd.f32 0.0, %v5807
      %v5809 = vpop.f32.mrf.mxu0
      %5810 = vmatprep.mubr.f32.mxu0 0.0
      %5811 = vmatmul.mubr.f32.gmra.mxu0 %v5709
      %v5812 = vpop.f32.mrf.mxu0
      %v5813 = vadd.f32 0.0, %v5812
      %v5814 = vpop.f32.mrf.mxu0
      %5815 = vdwg.mxu0
      %v5816 = vadd.f32 %v5677, %v5778
      %v5817 = vadd.f32 %v5678, %v5783
      %v5818 = vadd.f32 %v5679, %v5788
      %v5819 = vadd.f32 %v5680, %v5793
      %v5820 = vadd.f32 %v5681, %v5798
      %v5821 = vadd.f32 %v5682, %v5803
      %v5822 = vadd.f32 %v5683, %v5808
      %v5823 = vadd.f32 %v5684, %v5813
      %v5824 = vld [vmem:[%s5105 + $0x2] sm:$0xff]
      %v5825 = vld [vmem:[%s5105 + $0x12] sm:$0xff]
      %v5826 = vld [vmem:[%s5105 + $0x22] sm:$0xff]
      %v5827 = vld [vmem:[%s5105 + $0x32] sm:$0xff]
      %v5828 = vld [vmem:[%s5105 + $0x42] sm:$0xff]
      %v5829 = vld [vmem:[%s5105 + $0x52] sm:$0xff]
      %v5830 = vld [vmem:[%s5105 + $0x62] sm:$0xff]
      %v5831 = vld [vmem:[%s5105 + $0x72] sm:$0xff]
      %s5832 = scalar_lea.vmem %s11, 40
      %v5833 = vld [vmem:[%s5832] sm:$0xff]
      %v5835 = vsel %vm561, %v5824, 0
      %v5838 = vsel %vm561, %v5825, 0
      %v5841 = vsel %vm561, %v5826, 0
      %v5844 = vsel %vm561, %v5827, 0
      %v5847 = vsel %vm561, %v5828, 0
      %v5850 = vsel %vm561, %v5829, 0
      %v5853 = vsel %vm561, %v5830, 0
      %v5856 = vsel %vm561, %v5831, 0
      %5858 = vmatprep.subr.mxu0 0.0
      %5859 = vmatpush1.msra.mxu0 0.0
      %5860 = vmatprep.subr.mxu0 0.0
      %5861 = vmatpush1.msra.mxu0 0.0
      %5862 = vmatprep.subr.mxu0 0.0
      %5863 = vmatpush1.msra.mxu0 0.0
      %5864 = vmatprep.subr.mxu0 0.0
      %5865 = vmatpush1.msra.mxu0 0.0
      %5866 = vmatprep.subr.mxu0 0.0
      %5867 = vmatpush1.msra.mxu0 0.0
      %5868 = vmatprep.subr.mxu0 0.0
      %5869 = vmatpush1.msra.mxu0 0.0
      %5870 = vmatprep.subr.mxu0 0.0
      %5871 = vmatpush1.msra.mxu0 0.0
      %5872 = vmatprep.subr.mxu0 0.0
      %5873 = vmatpush1.msra.mxu0 0.0
      %5874 = vmatprep.subr.mxu0 0.0
      %5875 = vmatpush1.msra.mxu0 0.0
      %5876 = vmatprep.subr.mxu0 0.0
      %5877 = vmatpush1.msra.mxu0 0.0
      %5878 = vmatprep.subr.mxu0 0.0
      %5879 = vmatpush1.msra.mxu0 0.0
      %5880 = vmatprep.subr.mxu0 0.0
      %5881 = vmatpush1.msra.mxu0 0.0
      %5882 = vmatprep.subr.mxu0 0.0
      %5883 = vmatpush1.msra.mxu0 0.0
      %5884 = vmatprep.subr.mxu0 0.0
      %5885 = vmatpush1.msra.mxu0 0.0
      %5886 = vmatprep.subr.mxu0 0.0
      %5887 = vmatpush1.msra.mxu0 0.0
      %5888 = vmatprep.subr.mxu0 0.0
      %5889 = vmatpush1.msra.mxu0 %v5833
      %5890 = vmatprep.subr.mxu0 0.0
      %5891 = vmatpush2.msra.mxu0 0.0
      %5892 = vmatprep.subr.mxu0 0.0
      %5893 = vmatpush2.msra.mxu0 0.0
      %5894 = vmatprep.subr.mxu0 0.0
      %5895 = vmatpush2.msra.mxu0 0.0
      %5896 = vmatprep.subr.mxu0 0.0
      %5897 = vmatpush2.msra.mxu0 0.0
      %5898 = vmatprep.subr.mxu0 0.0
      %5899 = vmatpush2.msra.mxu0 0.0
      %5900 = vmatprep.subr.mxu0 0.0
      %5901 = vmatpush2.msra.mxu0 0.0
      %5902 = vmatprep.subr.mxu0 0.0
      %5903 = vmatpush2.msra.mxu0 0.0
      %5904 = vmatprep.subr.mxu0 0.0
      %5905 = vmatpush2.msra.mxu0 0.0
      %5906 = vmatprep.subr.mxu0 0.0
      %5907 = vmatpush2.msra.mxu0 0.0
      %5908 = vmatprep.subr.mxu0 0.0
      %5909 = vmatpush2.msra.mxu0 0.0
      %5910 = vmatprep.subr.mxu0 0.0
      %5911 = vmatpush2.msra.mxu0 0.0
      %5912 = vmatprep.subr.mxu0 0.0
      %5913 = vmatpush2.msra.mxu0 0.0
      %5914 = vmatprep.subr.mxu0 0.0
      %5915 = vmatpush2.msra.mxu0 0.0
      %5916 = vmatprep.subr.mxu0 0.0
      %5917 = vmatpush2.msra.mxu0 0.0
      %5918 = vmatprep.subr.mxu0 0.0
      %5919 = vmatpush2.msra.mxu0 0.0
      %5920 = vmatprep.subr.mxu0 0.0
      %5921 = vmatpush2.msra.mxu0 0.0
      %5922 = vmatprep.mubr.f32.mxu0 0.0
      %5923 = vmatmul.mubr.f32.gmra.mxu0 %v5835
      %v5924 = vpop.f32.mrf.mxu0
      %v5925 = vadd.f32 0.0, %v5924
      %v5926 = vpop.f32.mrf.mxu0
      %5927 = vmatprep.mubr.f32.mxu0 0.0
      %5928 = vmatmul.mubr.f32.gmra.mxu0 %v5838
      %v5929 = vpop.f32.mrf.mxu0
      %v5930 = vadd.f32 0.0, %v5929
      %v5931 = vpop.f32.mrf.mxu0
      %5932 = vmatprep.mubr.f32.mxu0 0.0
      %5933 = vmatmul.mubr.f32.gmra.mxu0 %v5841
      %v5934 = vpop.f32.mrf.mxu0
      %v5935 = vadd.f32 0.0, %v5934
      %v5936 = vpop.f32.mrf.mxu0
      %5937 = vmatprep.mubr.f32.mxu0 0.0
      %5938 = vmatmul.mubr.f32.gmra.mxu0 %v5844
      %v5939 = vpop.f32.mrf.mxu0
      %v5940 = vadd.f32 0.0, %v5939
      %v5941 = vpop.f32.mrf.mxu0
      %5942 = vmatprep.mubr.f32.mxu0 0.0
      %5943 = vmatmul.mubr.f32.gmra.mxu0 %v5847
      %v5944 = vpop.f32.mrf.mxu0
      %v5945 = vadd.f32 0.0, %v5944
      %v5946 = vpop.f32.mrf.mxu0
      %5947 = vmatprep.mubr.f32.mxu0 0.0
      %5948 = vmatmul.mubr.f32.gmra.mxu0 %v5850
      %v5949 = vpop.f32.mrf.mxu0
      %v5950 = vadd.f32 0.0, %v5949
      %v5951 = vpop.f32.mrf.mxu0
      %5952 = vmatprep.mubr.f32.mxu0 0.0
      %5953 = vmatmul.mubr.f32.gmra.mxu0 %v5853
      %v5954 = vpop.f32.mrf.mxu0
      %v5955 = vadd.f32 0.0, %v5954
      %v5956 = vpop.f32.mrf.mxu0
      %5957 = vmatprep.mubr.f32.mxu0 0.0
      %5958 = vmatmul.mubr.f32.gmra.mxu0 %v5856
      %v5959 = vpop.f32.mrf.mxu0
      %v5960 = vadd.f32 0.0, %v5959
      %v5961 = vpop.f32.mrf.mxu0
      %5962 = vdwg.mxu0
      %v5963 = vadd.f32 %v5816, %v5925
      %v5964 = vadd.f32 %v5817, %v5930
      %v5965 = vadd.f32 %v5818, %v5935
      %v5966 = vadd.f32 %v5819, %v5940
      %v5967 = vadd.f32 %v5820, %v5945
      %v5968 = vadd.f32 %v5821, %v5950
      %v5969 = vadd.f32 %v5822, %v5955
      %v5970 = vadd.f32 %v5823, %v5960
      %s5971 = scalar_lea.vmem [#allocation3], 32
      %v5972 = vld [vmem:[%s5971] sm:$0xff]
      %v5973 = vld [vmem:[%s5971 + $0x10] sm:$0xff]
      %v5974 = vld [vmem:[%s5971 + $0x20] sm:$0xff]
      %v5975 = vld [vmem:[%s5971 + $0x30] sm:$0xff]
      %v5976 = vld [vmem:[%s5971 + $0x40] sm:$0xff]
      %v5977 = vld [vmem:[%s5971 + $0x50] sm:$0xff]
      %v5978 = vld [vmem:[%s5971 + $0x60] sm:$0xff]
      %v5979 = vld [vmem:[%s5971 + $0x70] sm:$0xff]
      %s5980 = scalar_lea.vmem %s11, 48
      %v5981 = vld [vmem:[%s5980] sm:$0xff]
      %v5983 = vsel %vm561, %v5972, 0
      %v5986 = vsel %vm561, %v5973, 0
      %v5989 = vsel %vm561, %v5974, 0
      %v5992 = vsel %vm561, %v5975, 0
      %v5995 = vsel %vm561, %v5976, 0
      %v5998 = vsel %vm561, %v5977, 0
      %v6001 = vsel %vm561, %v5978, 0
      %v6004 = vsel %vm561, %v5979, 0
      %6006 = vmatprep.subr.mxu0 0.0
      %6007 = vmatpush1.msra.mxu0 0.0
      %6008 = vmatprep.subr.mxu0 0.0
      %6009 = vmatpush1.msra.mxu0 0.0
      %6010 = vmatprep.subr.mxu0 0.0
      %6011 = vmatpush1.msra.mxu0 0.0
      %6012 = vmatprep.subr.mxu0 0.0
      %6013 = vmatpush1.msra.mxu0 0.0
      %6014 = vmatprep.subr.mxu0 0.0
      %6015 = vmatpush1.msra.mxu0 0.0
      %6016 = vmatprep.subr.mxu0 0.0
      %6017 = vmatpush1.msra.mxu0 0.0
      %6018 = vmatprep.subr.mxu0 0.0
      %6019 = vmatpush1.msra.mxu0 0.0
      %6020 = vmatprep.subr.mxu0 0.0
      %6021 = vmatpush1.msra.mxu0 0.0
      %6022 = vmatprep.subr.mxu0 0.0
      %6023 = vmatpush1.msra.mxu0 0.0
      %6024 = vmatprep.subr.mxu0 0.0
      %6025 = vmatpush1.msra.mxu0 0.0
      %6026 = vmatprep.subr.mxu0 0.0
      %6027 = vmatpush1.msra.mxu0 0.0
      %6028 = vmatprep.subr.mxu0 0.0
      %6029 = vmatpush1.msra.mxu0 0.0
      %6030 = vmatprep.subr.mxu0 0.0
      %6031 = vmatpush1.msra.mxu0 0.0
      %6032 = vmatprep.subr.mxu0 0.0
      %6033 = vmatpush1.msra.mxu0 0.0
      %6034 = vmatprep.subr.mxu0 0.0
      %6035 = vmatpush1.msra.mxu0 0.0
      %6036 = vmatprep.subr.mxu0 0.0
      %6037 = vmatpush1.msra.mxu0 %v5981
      %6038 = vmatprep.subr.mxu0 0.0
      %6039 = vmatpush2.msra.mxu0 0.0
      %6040 = vmatprep.subr.mxu0 0.0
      %6041 = vmatpush2.msra.mxu0 0.0
      %6042 = vmatprep.subr.mxu0 0.0
      %6043 = vmatpush2.msra.mxu0 0.0
      %6044 = vmatprep.subr.mxu0 0.0
      %6045 = vmatpush2.msra.mxu0 0.0
      %6046 = vmatprep.subr.mxu0 0.0
      %6047 = vmatpush2.msra.mxu0 0.0
      %6048 = vmatprep.subr.mxu0 0.0
      %6049 = vmatpush2.msra.mxu0 0.0
      %6050 = vmatprep.subr.mxu0 0.0
      %6051 = vmatpush2.msra.mxu0 0.0
      %6052 = vmatprep.subr.mxu0 0.0
      %6053 = vmatpush2.msra.mxu0 0.0
      %6054 = vmatprep.subr.mxu0 0.0
      %6055 = vmatpush2.msra.mxu0 0.0
      %6056 = vmatprep.subr.mxu0 0.0
      %6057 = vmatpush2.msra.mxu0 0.0
      %6058 = vmatprep.subr.mxu0 0.0
      %6059 = vmatpush2.msra.mxu0 0.0
      %6060 = vmatprep.subr.mxu0 0.0
      %6061 = vmatpush2.msra.mxu0 0.0
      %6062 = vmatprep.subr.mxu0 0.0
      %6063 = vmatpush2.msra.mxu0 0.0
      %6064 = vmatprep.subr.mxu0 0.0
      %6065 = vmatpush2.msra.mxu0 0.0
      %6066 = vmatprep.subr.mxu0 0.0
      %6067 = vmatpush2.msra.mxu0 0.0
      %6068 = vmatprep.subr.mxu0 0.0
      %6069 = vmatpush2.msra.mxu0 0.0
      %6070 = vmatprep.mubr.f32.mxu0 0.0
      %6071 = vmatmul.mubr.f32.gmra.mxu0 %v5983
      %v6072 = vpop.f32.mrf.mxu0
      %v6073 = vadd.f32 0.0, %v6072
      %v6074 = vpop.f32.mrf.mxu0
      %6075 = vmatprep.mubr.f32.mxu0 0.0
      %6076 = vmatmul.mubr.f32.gmra.mxu0 %v5986
      %v6077 = vpop.f32.mrf.mxu0
      %v6078 = vadd.f32 0.0, %v6077
      %v6079 = vpop.f32.mrf.mxu0
      %6080 = vmatprep.mubr.f32.mxu0 0.0
      %6081 = vmatmul.mubr.f32.gmra.mxu0 %v5989
      %v6082 = vpop.f32.mrf.mxu0
      %v6083 = vadd.f32 0.0, %v6082
      %v6084 = vpop.f32.mrf.mxu0
      %6085 = vmatprep.mubr.f32.mxu0 0.0
      %6086 = vmatmul.mubr.f32.gmra.mxu0 %v5992
      %v6087 = vpop.f32.mrf.mxu0
      %v6088 = vadd.f32 0.0, %v6087
      %v6089 = vpop.f32.mrf.mxu0
      %6090 = vmatprep.mubr.f32.mxu0 0.0
      %6091 = vmatmul.mubr.f32.gmra.mxu0 %v5995
      %v6092 = vpop.f32.mrf.mxu0
      %v6093 = vadd.f32 0.0, %v6092
      %v6094 = vpop.f32.mrf.mxu0
      %6095 = vmatprep.mubr.f32.mxu0 0.0
      %6096 = vmatmul.mubr.f32.gmra.mxu0 %v5998
      %v6097 = vpop.f32.mrf.mxu0
      %v6098 = vadd.f32 0.0, %v6097
      %v6099 = vpop.f32.mrf.mxu0
      %6100 = vmatprep.mubr.f32.mxu0 0.0
      %6101 = vmatmul.mubr.f32.gmra.mxu0 %v6001
      %v6102 = vpop.f32.mrf.mxu0
      %v6103 = vadd.f32 0.0, %v6102
      %v6104 = vpop.f32.mrf.mxu0
      %6105 = vmatprep.mubr.f32.mxu0 0.0
      %6106 = vmatmul.mubr.f32.gmra.mxu0 %v6004
      %v6107 = vpop.f32.mrf.mxu0
      %v6108 = vadd.f32 0.0, %v6107
      %v6109 = vpop.f32.mrf.mxu0
      %6110 = vdwg.mxu0
      %v6111 = vadd.f32 %v5963, %v6073
      %v6112 = vadd.f32 %v5964, %v6078
      %v6113 = vadd.f32 %v5965, %v6083
      %v6114 = vadd.f32 %v5966, %v6088
      %v6115 = vadd.f32 %v5967, %v6093
      %v6116 = vadd.f32 %v5968, %v6098
      %v6117 = vadd.f32 %v5969, %v6103
      %v6118 = vadd.f32 %v5970, %v6108
      %v6119 = vld [vmem:[%s5971 + $0x1] sm:$0xff]
      %v6120 = vld [vmem:[%s5971 + $0x11] sm:$0xff]
      %v6121 = vld [vmem:[%s5971 + $0x21] sm:$0xff]
      %v6122 = vld [vmem:[%s5971 + $0x31] sm:$0xff]
      %v6123 = vld [vmem:[%s5971 + $0x41] sm:$0xff]
      %v6124 = vld [vmem:[%s5971 + $0x51] sm:$0xff]
      %v6125 = vld [vmem:[%s5971 + $0x61] sm:$0xff]
      %v6126 = vld [vmem:[%s5971 + $0x71] sm:$0xff]
      %s6127 = scalar_lea.vmem %s11, 56
      %v6128 = vld [vmem:[%s6127] sm:$0xff]
      %v6130 = vsel %vm561, %v6119, 0
      %v6133 = vsel %vm561, %v6120, 0
      %v6136 = vsel %vm561, %v6121, 0
      %v6139 = vsel %vm561, %v6122, 0
      %v6142 = vsel %vm561, %v6123, 0
      %v6145 = vsel %vm561, %v6124, 0
      %v6148 = vsel %vm561, %v6125, 0
      %v6151 = vsel %vm561, %v6126, 0
      %6153 = vmatprep.subr.mxu0 0.0
      %6154 = vmatpush1.msra.mxu0 0.0
      %6155 = vmatprep.subr.mxu0 0.0
      %6156 = vmatpush1.msra.mxu0 0.0
      %6157 = vmatprep.subr.mxu0 0.0
      %6158 = vmatpush1.msra.mxu0 0.0
      %6159 = vmatprep.subr.mxu0 0.0
      %6160 = vmatpush1.msra.mxu0 0.0
      %6161 = vmatprep.subr.mxu0 0.0
      %6162 = vmatpush1.msra.mxu0 0.0
      %6163 = vmatprep.subr.mxu0 0.0
      %6164 = vmatpush1.msra.mxu0 0.0
      %6165 = vmatprep.subr.mxu0 0.0
      %6166 = vmatpush1.msra.mxu0 0.0
      %6167 = vmatprep.subr.mxu0 0.0
      %6168 = vmatpush1.msra.mxu0 0.0
      %6169 = vmatprep.subr.mxu0 0.0
      %6170 = vmatpush1.msra.mxu0 0.0
      %6171 = vmatprep.subr.mxu0 0.0
      %6172 = vmatpush1.msra.mxu0 0.0
      %6173 = vmatprep.subr.mxu0 0.0
      %6174 = vmatpush1.msra.mxu0 0.0
      %6175 = vmatprep.subr.mxu0 0.0
      %6176 = vmatpush1.msra.mxu0 0.0
      %6177 = vmatprep.subr.mxu0 0.0
      %6178 = vmatpush1.msra.mxu0 0.0
      %6179 = vmatprep.subr.mxu0 0.0
      %6180 = vmatpush1.msra.mxu0 0.0
      %6181 = vmatprep.subr.mxu0 0.0
      %6182 = vmatpush1.msra.mxu0 0.0
      %6183 = vmatprep.subr.mxu0 0.0
      %6184 = vmatpush1.msra.mxu0 %v6128
      %6185 = vmatprep.subr.mxu0 0.0
      %6186 = vmatpush2.msra.mxu0 0.0
      %6187 = vmatprep.subr.mxu0 0.0
      %6188 = vmatpush2.msra.mxu0 0.0
      %6189 = vmatprep.subr.mxu0 0.0
      %6190 = vmatpush2.msra.mxu0 0.0
      %6191 = vmatprep.subr.mxu0 0.0
      %6192 = vmatpush2.msra.mxu0 0.0
      %6193 = vmatprep.subr.mxu0 0.0
      %6194 = vmatpush2.msra.mxu0 0.0
      %6195 = vmatprep.subr.mxu0 0.0
      %6196 = vmatpush2.msra.mxu0 0.0
      %6197 = vmatprep.subr.mxu0 0.0
      %6198 = vmatpush2.msra.mxu0 0.0
      %6199 = vmatprep.subr.mxu0 0.0
      %6200 = vmatpush2.msra.mxu0 0.0
      %6201 = vmatprep.subr.mxu0 0.0
      %6202 = vmatpush2.msra.mxu0 0.0
      %6203 = vmatprep.subr.mxu0 0.0
      %6204 = vmatpush2.msra.mxu0 0.0
      %6205 = vmatprep.subr.mxu0 0.0
      %6206 = vmatpush2.msra.mxu0 0.0
      %6207 = vmatprep.subr.mxu0 0.0
      %6208 = vmatpush2.msra.mxu0 0.0
      %6209 = vmatprep.subr.mxu0 0.0
      %6210 = vmatpush2.msra.mxu0 0.0
      %6211 = vmatprep.subr.mxu0 0.0
      %6212 = vmatpush2.msra.mxu0 0.0
      %6213 = vmatprep.subr.mxu0 0.0
      %6214 = vmatpush2.msra.mxu0 0.0
      %6215 = vmatprep.subr.mxu0 0.0
      %6216 = vmatpush2.msra.mxu0 0.0
      %6217 = vmatprep.mubr.f32.mxu0 0.0
      %6218 = vmatmul.mubr.f32.gmra.mxu0 %v6130
      %v6219 = vpop.f32.mrf.mxu0
      %v6220 = vadd.f32 0.0, %v6219
      %v6221 = vpop.f32.mrf.mxu0
      %6222 = vmatprep.mubr.f32.mxu0 0.0
      %6223 = vmatmul.mubr.f32.gmra.mxu0 %v6133
      %v6224 = vpop.f32.mrf.mxu0
      %v6225 = vadd.f32 0.0, %v6224
      %v6226 = vpop.f32.mrf.mxu0
      %6227 = vmatprep.mubr.f32.mxu0 0.0
      %6228 = vmatmul.mubr.f32.gmra.mxu0 %v6136
      %v6229 = vpop.f32.mrf.mxu0
      %v6230 = vadd.f32 0.0, %v6229
      %v6231 = vpop.f32.mrf.mxu0
      %6232 = vmatprep.mubr.f32.mxu0 0.0
      %6233 = vmatmul.mubr.f32.gmra.mxu0 %v6139
      %v6234 = vpop.f32.mrf.mxu0
      %v6235 = vadd.f32 0.0, %v6234
      %v6236 = vpop.f32.mrf.mxu0
      %6237 = vmatprep.mubr.f32.mxu0 0.0
      %6238 = vmatmul.mubr.f32.gmra.mxu0 %v6142
      %v6239 = vpop.f32.mrf.mxu0
      %v6240 = vadd.f32 0.0, %v6239
      %v6241 = vpop.f32.mrf.mxu0
      %6242 = vmatprep.mubr.f32.mxu0 0.0
      %6243 = vmatmul.mubr.f32.gmra.mxu0 %v6145
      %v6244 = vpop.f32.mrf.mxu0
      %v6245 = vadd.f32 0.0, %v6244
      %v6246 = vpop.f32.mrf.mxu0
      %6247 = vmatprep.mubr.f32.mxu0 0.0
      %6248 = vmatmul.mubr.f32.gmra.mxu0 %v6148
      %v6249 = vpop.f32.mrf.mxu0
      %v6250 = vadd.f32 0.0, %v6249
      %v6251 = vpop.f32.mrf.mxu0
      %6252 = vmatprep.mubr.f32.mxu0 0.0
      %6253 = vmatmul.mubr.f32.gmra.mxu0 %v6151
      %v6254 = vpop.f32.mrf.mxu0
      %v6255 = vadd.f32 0.0, %v6254
      %v6256 = vpop.f32.mrf.mxu0
      %6257 = vdwg.mxu0
      %v6258 = vadd.f32 %v6111, %v6220
      %v6259 = vadd.f32 %v6112, %v6225
      %v6260 = vadd.f32 %v6113, %v6230
      %v6261 = vadd.f32 %v6114, %v6235
      %v6262 = vadd.f32 %v6115, %v6240
      %v6263 = vadd.f32 %v6116, %v6245
      %v6264 = vadd.f32 %v6117, %v6250
      %v6265 = vadd.f32 %v6118, %v6255
      %v6266 = vld [vmem:[%s5971 + $0x2] sm:$0xff]
      %v6267 = vld [vmem:[%s5971 + $0x12] sm:$0xff]
      %v6268 = vld [vmem:[%s5971 + $0x22] sm:$0xff]
      %v6269 = vld [vmem:[%s5971 + $0x32] sm:$0xff]
      %v6270 = vld [vmem:[%s5971 + $0x42] sm:$0xff]
      %v6271 = vld [vmem:[%s5971 + $0x52] sm:$0xff]
      %v6272 = vld [vmem:[%s5971 + $0x62] sm:$0xff]
      %v6273 = vld [vmem:[%s5971 + $0x72] sm:$0xff]
      %s6274 = scalar_lea.vmem %s11, 64
      %v6275 = vld [vmem:[%s6274] sm:$0xff]
      %v6277 = vsel %vm561, %v6266, 0
      %v6280 = vsel %vm561, %v6267, 0
      %v6283 = vsel %vm561, %v6268, 0
      %v6286 = vsel %vm561, %v6269, 0
      %v6289 = vsel %vm561, %v6270, 0
      %v6292 = vsel %vm561, %v6271, 0
      %v6295 = vsel %vm561, %v6272, 0
      %v6298 = vsel %vm561, %v6273, 0
      %6300 = vmatprep.subr.mxu0 0.0
      %6301 = vmatpush1.msra.mxu0 0.0
      %6302 = vmatprep.subr.mxu0 0.0
      %6303 = vmatpush1.msra.mxu0 0.0
      %6304 = vmatprep.subr.mxu0 0.0
      %6305 = vmatpush1.msra.mxu0 0.0
      %6306 = vmatprep.subr.mxu0 0.0
      %6307 = vmatpush1.msra.mxu0 0.0
      %6308 = vmatprep.subr.mxu0 0.0
      %6309 = vmatpush1.msra.mxu0 0.0
      %6310 = vmatprep.subr.mxu0 0.0
      %6311 = vmatpush1.msra.mxu0 0.0
      %6312 = vmatprep.subr.mxu0 0.0
      %6313 = vmatpush1.msra.mxu0 0.0
      %6314 = vmatprep.subr.mxu0 0.0
      %6315 = vmatpush1.msra.mxu0 0.0
      %6316 = vmatprep.subr.mxu0 0.0
      %6317 = vmatpush1.msra.mxu0 0.0
      %6318 = vmatprep.subr.mxu0 0.0
      %6319 = vmatpush1.msra.mxu0 0.0
      %6320 = vmatprep.subr.mxu0 0.0
      %6321 = vmatpush1.msra.mxu0 0.0
      %6322 = vmatprep.subr.mxu0 0.0
      %6323 = vmatpush1.msra.mxu0 0.0
      %6324 = vmatprep.subr.mxu0 0.0
      %6325 = vmatpush1.msra.mxu0 0.0
      %6326 = vmatprep.subr.mxu0 0.0
      %6327 = vmatpush1.msra.mxu0 0.0
      %6328 = vmatprep.subr.mxu0 0.0
      %6329 = vmatpush1.msra.mxu0 0.0
      %6330 = vmatprep.subr.mxu0 0.0
      %6331 = vmatpush1.msra.mxu0 %v6275
      %6332 = vmatprep.subr.mxu0 0.0
      %6333 = vmatpush2.msra.mxu0 0.0
      %6334 = vmatprep.subr.mxu0 0.0
      %6335 = vmatpush2.msra.mxu0 0.0
      %6336 = vmatprep.subr.mxu0 0.0
      %6337 = vmatpush2.msra.mxu0 0.0
      %6338 = vmatprep.subr.mxu0 0.0
      %6339 = vmatpush2.msra.mxu0 0.0
      %6340 = vmatprep.subr.mxu0 0.0
      %6341 = vmatpush2.msra.mxu0 0.0
      %6342 = vmatprep.subr.mxu0 0.0
      %6343 = vmatpush2.msra.mxu0 0.0
      %6344 = vmatprep.subr.mxu0 0.0
      %6345 = vmatpush2.msra.mxu0 0.0
      %6346 = vmatprep.subr.mxu0 0.0
      %6347 = vmatpush2.msra.mxu0 0.0
      %6348 = vmatprep.subr.mxu0 0.0
      %6349 = vmatpush2.msra.mxu0 0.0
      %6350 = vmatprep.subr.mxu0 0.0
      %6351 = vmatpush2.msra.mxu0 0.0
      %6352 = vmatprep.subr.mxu0 0.0
      %6353 = vmatpush2.msra.mxu0 0.0
      %6354 = vmatprep.subr.mxu0 0.0
      %6355 = vmatpush2.msra.mxu0 0.0
      %6356 = vmatprep.subr.mxu0 0.0
      %6357 = vmatpush2.msra.mxu0 0.0
      %6358 = vmatprep.subr.mxu0 0.0
      %6359 = vmatpush2.msra.mxu0 0.0
      %6360 = vmatprep.subr.mxu0 0.0
      %6361 = vmatpush2.msra.mxu0 0.0
      %6362 = vmatprep.subr.mxu0 0.0
      %6363 = vmatpush2.msra.mxu0 0.0
      %6364 = vmatprep.mubr.f32.mxu0 0.0
      %6365 = vmatmul.mubr.f32.gmra.mxu0 %v6277
      %v6366 = vpop.f32.mrf.mxu0
      %v6367 = vadd.f32 0.0, %v6366
      %v6368 = vpop.f32.mrf.mxu0
      %6369 = vmatprep.mubr.f32.mxu0 0.0
      %6370 = vmatmul.mubr.f32.gmra.mxu0 %v6280
      %v6371 = vpop.f32.mrf.mxu0
      %v6372 = vadd.f32 0.0, %v6371
      %v6373 = vpop.f32.mrf.mxu0
      %6374 = vmatprep.mubr.f32.mxu0 0.0
      %6375 = vmatmul.mubr.f32.gmra.mxu0 %v6283
      %v6376 = vpop.f32.mrf.mxu0
      %v6377 = vadd.f32 0.0, %v6376
      %v6378 = vpop.f32.mrf.mxu0
      %6379 = vmatprep.mubr.f32.mxu0 0.0
      %6380 = vmatmul.mubr.f32.gmra.mxu0 %v6286
      %v6381 = vpop.f32.mrf.mxu0
      %v6382 = vadd.f32 0.0, %v6381
      %v6383 = vpop.f32.mrf.mxu0
      %6384 = vmatprep.mubr.f32.mxu0 0.0
      %6385 = vmatmul.mubr.f32.gmra.mxu0 %v6289
      %v6386 = vpop.f32.mrf.mxu0
      %v6387 = vadd.f32 0.0, %v6386
      %v6388 = vpop.f32.mrf.mxu0
      %6389 = vmatprep.mubr.f32.mxu0 0.0
      %6390 = vmatmul.mubr.f32.gmra.mxu0 %v6292
      %v6391 = vpop.f32.mrf.mxu0
      %v6392 = vadd.f32 0.0, %v6391
      %v6393 = vpop.f32.mrf.mxu0
      %6394 = vmatprep.mubr.f32.mxu0 0.0
      %6395 = vmatmul.mubr.f32.gmra.mxu0 %v6295
      %v6396 = vpop.f32.mrf.mxu0
      %v6397 = vadd.f32 0.0, %v6396
      %v6398 = vpop.f32.mrf.mxu0
      %6399 = vmatprep.mubr.f32.mxu0 0.0
      %6400 = vmatmul.mubr.f32.gmra.mxu0 %v6298
      %v6401 = vpop.f32.mrf.mxu0
      %v6402 = vadd.f32 0.0, %v6401
      %v6403 = vpop.f32.mrf.mxu0
      %6404 = vdwg.mxu0
      %v6405 = vadd.f32 %v6258, %v6367
      %v6406 = vadd.f32 %v6259, %v6372
      %v6407 = vadd.f32 %v6260, %v6377
      %v6408 = vadd.f32 %v6261, %v6382
      %v6409 = vadd.f32 %v6262, %v6387
      %v6410 = vadd.f32 %v6263, %v6392
      %v6411 = vadd.f32 %v6264, %v6397
      %v6412 = vadd.f32 %v6265, %v6402
      %v6413 = vsel %vm561, %v6405, 0.0
      %v6414 = vsel %vm561, %v6406, 0.0
      %v6415 = vadd.f32 %v6413, %v6414
      %v6416 = vsel %vm561, %v6407, 0.0
      %v6417 = vadd.f32 %v6415, %v6416
      %v6418 = vsel %vm561, %v6408, 0.0
      %v6419 = vadd.f32 %v6417, %v6418
      %v6420 = vsel %vm561, %v6409, 0.0
      %v6421 = vadd.f32 %v6419, %v6420
      %v6422 = vsel %vm561, %v6410, 0.0
      %v6423 = vadd.f32 %v6421, %v6422
      %v6424 = vsel %vm561, %v6411, 0.0
      %v6425 = vadd.f32 %v6423, %v6424
      %v6426 = vsel %vm561, %v6412, 0.0
      %v6427 = vadd.f32 %v6425, %v6426
      %6428 = vadd.xlane.f32.xlu0 %v6427
      %v6429 = vpop.xlane.xlu0 %6428
      %v6430 = vrot.slane %v6429, 4
      %v6431 = vadd.f32 %v6429, %v6430
      %v6432 = vrot.slane %v6431, 2
      %v6433 = vadd.f32 %v6431, %v6432
      %v6434 = vrot.slane %v6433, 1
      %v6435 = vadd.f32 %v6433, %v6434
      %s6436 = vtos %v6435
      %v6437 = vmul.f32 %v6405, %v6405
      %v6438 = vmul.f32 %v6406, %v6406
      %v6439 = vmul.f32 %v6407, %v6407
      %v6440 = vmul.f32 %v6408, %v6408
      %v6441 = vmul.f32 %v6409, %v6409
      %v6442 = vmul.f32 %v6410, %v6410
      %v6443 = vmul.f32 %v6411, %v6411
      %v6444 = vmul.f32 %v6412, %v6412
      %v6445 = vsel %vm561, %v6437, 0.0
      %v6446 = vsel %vm561, %v6438, 0.0
      %v6447 = vadd.f32 %v6445, %v6446
      %v6448 = vsel %vm561, %v6439, 0.0
      %v6449 = vadd.f32 %v6447, %v6448
      %v6450 = vsel %vm561, %v6440, 0.0
      %v6451 = vadd.f32 %v6449, %v6450
      %v6452 = vsel %vm561, %v6441, 0.0
      %v6453 = vadd.f32 %v6451, %v6452
      %v6454 = vsel %vm561, %v6442, 0.0
      %v6455 = vadd.f32 %v6453, %v6454
      %v6456 = vsel %vm561, %v6443, 0.0
      %v6457 = vadd.f32 %v6455, %v6456
      %v6458 = vsel %vm561, %v6444, 0.0
      %v6459 = vadd.f32 %v6457, %v6458
      %6460 = vadd.xlane.f32.xlu0 %v6459
      %v6461 = vpop.xlane.xlu0 %6460
      %v6462 = vrot.slane %v6461, 4
      %v6463 = vadd.f32 %v6461, %v6462
      %v6464 = vrot.slane %v6463, 2
      %v6465 = vadd.f32 %v6463, %v6464
      %v6466 = vrot.slane %v6465, 1
      %v6467 = vadd.f32 %v6465, %v6466
      %s6468 = vtos %v6467
      %s6469 = smul.f32 %s6436, 0.001953125
      %s6470 = smul.f32 %s6468, 0.001953125
      %s6471 = smul.f32 %s6469, %s6469
      %s6472 = ssub.f32 %s6470, %s6471
      %v6473 = vstv %s6469
      %v6474 = vsub.f32 %v6405, %v6473
      %v6475 = vsub.f32 %v6406, %v6473
      %v6476 = vsub.f32 %v6407, %v6473
      %v6477 = vsub.f32 %v6408, %v6473
      %v6478 = vsub.f32 %v6409, %v6473
      %v6479 = vsub.f32 %v6410, %v6473
      %v6480 = vsub.f32 %v6411, %v6473
      %v6481 = vsub.f32 %v6412, %v6473
      %s6482 = sadd.f32 %s6472, 1e-05
      %v6483 = vstv %s6482
      %v6484 = vrsqrt.pop %v6483
      %s6485 = vtos %v6484
      %v6486 = vstv %s6485
      %v6487 = vmul.f32 %v6474, %v6486
      %v6488 = vmul.f32 %v6475, %v6486
      %v6489 = vmul.f32 %v6476, %v6486
      %v6490 = vmul.f32 %v6477, %v6486
      %v6491 = vmul.f32 %v6478, %v6486
      %v6492 = vmul.f32 %v6479, %v6486
      %v6493 = vmul.f32 %v6480, %v6486
      %v6494 = vmul.f32 %v6481, %v6486
      %v6495 = vld [vmem:[%s12] sm:$0x1]
      %v6497 = vlaneseq
      %v6498 = vshrl.u32 %v6497, 7
      %v6499 = vsub.s32 0, %v6498
      %v6500 = vrot.slane %v6495, %v6499
      %v6502 = vmul.f32 %v6487, %v6500
      %v6503 = vmul.f32 %v6488, %v6500
      %v6504 = vmul.f32 %v6489, %v6500
      %v6505 = vmul.f32 %v6490, %v6500
      %v6506 = vmul.f32 %v6491, %v6500
      %v6507 = vmul.f32 %v6492, %v6500
      %v6508 = vmul.f32 %v6493, %v6500
      %v6509 = vmul.f32 %v6494, %v6500
      %v6510 = vld [vmem:[%s13] sm:$0x1]
      %v6512 = vlaneseq
      %v6513 = vshrl.u32 %v6512, 7
      %v6514 = vsub.s32 0, %v6513
      %v6515 = vrot.slane %v6510, %v6514
      %v6517 = vadd.f32 %v6502, %v6515
      %v6518 = vadd.f32 %v6503, %v6515
      %v6519 = vadd.f32 %v6504, %v6515
      %v6520 = vadd.f32 %v6505, %v6515
      %v6521 = vadd.f32 %v6506, %v6515
      %v6522 = vadd.f32 %v6507, %v6515
      %v6523 = vadd.f32 %v6508, %v6515
      %v6524 = vadd.f32 %v6509, %v6515
      %v6525 = vld [vmem:[%s533] sm:$0x3]
      %v6526 = vxor.u32 %v6525, 2147483648
      %v6527 = vmul.f32 %v6526, 1.442695
      %v6528 = vpow.pop %v6527
      %v6529 = vadd.f32 %v6528, 1.0
      %v6530 = vrcp.pop %v6529
      %v6531 = vmul.f32 1.0, %v6530
      %v6532 = vmul.f32 %v6525, %v6531
      %v6533 = vld [vmem:[%s14] sm:$0xff]
      %v6534 = vld [vmem:[%s14 + $0x8] sm:$0xff]
      %v6535 = vld [vmem:[%s14 + $0x10] sm:$0xff]
      %v6536 = vld [vmem:[%s14 + $0x18] sm:$0xff]
      %v6537 = vld [vmem:[%s14 + $0x20] sm:$0xff]
      %v6538 = vld [vmem:[%s14 + $0x28] sm:$0xff]
      %v6539 = vld [vmem:[%s14 + $0x30] sm:$0xff]
      %v6540 = vld [vmem:[%s14 + $0x38] sm:$0xff]
      %v6541 = vld [vmem:[%s14 + $0x40] sm:$0xff]
      %v6542 = vld [vmem:[%s14 + $0x48] sm:$0xff]
      %v6543 = vld [vmem:[%s14 + $0x50] sm:$0xff]
      %v6544 = vld [vmem:[%s14 + $0x58] sm:$0xff]
      %v6545 = vld [vmem:[%s14 + $0x60] sm:$0xff]
      %v6546 = vld [vmem:[%s14 + $0x68] sm:$0xff]
      %v6547 = vld [vmem:[%s14 + $0x70] sm:$0xff]
      %v6548 = vld [vmem:[%s14 + $0x78] sm:$0xff]
      %v6549 = vld [vmem:[%s14 + $0x80] sm:$0xff]
      %v6550 = vld [vmem:[%s14 + $0x88] sm:$0xff]
      %v6551 = vld [vmem:[%s14 + $0x90] sm:$0xff]
      %v6552 = vld [vmem:[%s14 + $0x98] sm:$0xff]
      %v6553 = vld [vmem:[%s14 + $0xa0] sm:$0xff]
      %v6554 = vld [vmem:[%s14 + $0xa8] sm:$0xff]
      %v6555 = vld [vmem:[%s14 + $0xb0] sm:$0xff]
      %v6556 = vld [vmem:[%s14 + $0xb8] sm:$0xff]
      %v6557 = vld [vmem:[%s14 + $0xc0] sm:$0xff]
      %v6558 = vld [vmem:[%s14 + $0xc8] sm:$0xff]
      %v6559 = vld [vmem:[%s14 + $0xd0] sm:$0xff]
      %v6560 = vld [vmem:[%s14 + $0xd8] sm:$0xff]
      %v6561 = vld [vmem:[%s14 + $0xe0] sm:$0xff]
      %v6562 = vld [vmem:[%s14 + $0xe8] sm:$0xff]
      %v6563 = vld [vmem:[%s14 + $0xf0] sm:$0xff]
      %v6564 = vld [vmem:[%s14 + $0xf8] sm:$0xff]
      %v6565 = vld [vmem:[%s15] sm:$0x1]
      %v6567 = vlaneseq
      %v6568 = vshrl.u32 %v6567, 7
      %v6569 = vsub.s32 0, %v6568
      %v6570 = vrot.slane %v6532, %v6569
      %v6571 = vlaneseq
      %v6572 = vshrl.u32 %v6571, 7
      %v6573 = vsub.s32 1, %v6572
      %v6574 = vrot.slane %v6532, %v6573
      %6577 = vmatprep.subr.mxu0 0.0
      %6578 = vmatpush1.msra.mxu0 %v6548
      %6579 = vmatprep.subr.mxu0 0.0
      %6580 = vmatpush1.msra.mxu0 %v6547
      %6581 = vmatprep.subr.mxu0 0.0
      %6582 = vmatpush1.msra.mxu0 %v6546
      %6583 = vmatprep.subr.mxu0 0.0
      %6584 = vmatpush1.msra.mxu0 %v6545
      %6585 = vmatprep.subr.mxu0 0.0
      %6586 = vmatpush1.msra.mxu0 %v6544
      %6587 = vmatprep.subr.mxu0 0.0
      %6588 = vmatpush1.msra.mxu0 %v6543
      %6589 = vmatprep.subr.mxu0 0.0
      %6590 = vmatpush1.msra.mxu0 %v6542
      %6591 = vmatprep.subr.mxu0 0.0
      %6592 = vmatpush1.msra.mxu0 %v6541
      %6593 = vmatprep.subr.mxu0 0.0
      %6594 = vmatpush1.msra.mxu0 %v6540
      %6595 = vmatprep.subr.mxu0 0.0
      %6596 = vmatpush1.msra.mxu0 %v6539
      %6597 = vmatprep.subr.mxu0 0.0
      %6598 = vmatpush1.msra.mxu0 %v6538
      %6599 = vmatprep.subr.mxu0 0.0
      %6600 = vmatpush1.msra.mxu0 %v6537
      %6601 = vmatprep.subr.mxu0 0.0
      %6602 = vmatpush1.msra.mxu0 %v6536
      %6603 = vmatprep.subr.mxu0 0.0
      %6604 = vmatpush1.msra.mxu0 %v6535
      %6605 = vmatprep.subr.mxu0 0.0
      %6606 = vmatpush1.msra.mxu0 %v6534
      %6607 = vmatprep.subr.mxu0 0.0
      %6608 = vmatpush1.msra.mxu0 %v6533
      %6609 = vmatprep.subr.mxu0 0.0
      %6610 = vmatpush2.msra.mxu0 %v6564
      %6611 = vmatprep.subr.mxu0 0.0
      %6612 = vmatpush2.msra.mxu0 %v6563
      %6613 = vmatprep.subr.mxu0 0.0
      %6614 = vmatpush2.msra.mxu0 %v6562
      %6615 = vmatprep.subr.mxu0 0.0
      %6616 = vmatpush2.msra.mxu0 %v6561
      %6617 = vmatprep.subr.mxu0 0.0
      %6618 = vmatpush2.msra.mxu0 %v6560
      %6619 = vmatprep.subr.mxu0 0.0
      %6620 = vmatpush2.msra.mxu0 %v6559
      %6621 = vmatprep.subr.mxu0 0.0
      %6622 = vmatpush2.msra.mxu0 %v6558
      %6623 = vmatprep.subr.mxu0 0.0
      %6624 = vmatpush2.msra.mxu0 %v6557
      %6625 = vmatprep.subr.mxu0 0.0
      %6626 = vmatpush2.msra.mxu0 %v6556
      %6627 = vmatprep.subr.mxu0 0.0
      %6628 = vmatpush2.msra.mxu0 %v6555
      %6629 = vmatprep.subr.mxu0 0.0
      %6630 = vmatpush2.msra.mxu0 %v6554
      %6631 = vmatprep.subr.mxu0 0.0
      %6632 = vmatpush2.msra.mxu0 %v6553
      %6633 = vmatprep.subr.mxu0 0.0
      %6634 = vmatpush2.msra.mxu0 %v6552
      %6635 = vmatprep.subr.mxu0 0.0
      %6636 = vmatpush2.msra.mxu0 %v6551
      %6637 = vmatprep.subr.mxu0 0.0
      %6638 = vmatpush2.msra.mxu0 %v6550
      %6639 = vmatprep.subr.mxu0 0.0
      %6640 = vmatpush2.msra.mxu0 %v6549
      %6641 = vmatprep.mubr.f32.mxu0 %v6574
      %6642 = vmatmul.mubr.f32.gmra.mxu0 %v6570
      %v6643 = vpop.f32.mrf.mxu0
      %v6644 = vadd.f32 %v6565, %v6643
      %v6645 = vpop.f32.mrf.mxu0
      %6646 = vdwg.mxu0
      %v6647 = vlaneseq
      %v6648 = vshrl.u32 %v6647, 7
      %v6649 = vsub.s32 0, %v6648
      %v6650 = vrot.slane %v6644, %v6649
      %v6651 = vadd.f32 %v6517, %v6650
      %v6652 = vadd.f32 %v6518, %v6650
      %v6653 = vadd.f32 %v6519, %v6650
      %v6654 = vadd.f32 %v6520, %v6650
      %v6655 = vadd.f32 %v6521, %v6650
      %v6656 = vadd.f32 %v6522, %v6650
      %v6657 = vadd.f32 %v6523, %v6650
      %v6658 = vadd.f32 %v6524, %v6650
      %6659 = vst.msk [vmem:[%s538] sm:$0xff] %vm561, %v6651
      %6660 = vst.msk [vmem:[%s538 + $0x8] sm:$0xff] %vm561, %v6652
      %6661 = vst.msk [vmem:[%s538 + $0x10] sm:$0xff] %vm561, %v6653
      %6662 = vst.msk [vmem:[%s538 + $0x18] sm:$0xff] %vm561, %v6654
      %6663 = vst.msk [vmem:[%s538 + $0x20] sm:$0xff] %vm561, %v6655
      %6664 = vst.msk [vmem:[%s538 + $0x28] sm:$0xff] %vm561, %v6656
      %6665 = vst.msk [vmem:[%s538 + $0x30] sm:$0xff] %vm561, %v6657
      %6666 = vst.msk [vmem:[%s538 + $0x38] sm:$0xff] %vm561, %v6658
      %p6667 = scmp.lt.s32.totalorder %s27, 1
      %s6668 = scalar_select %p6667, %s27, 1
      %s6669 = smul.addr %s6668, 8
      %s6670 = smul.addr %s6669, 8
      %s6671 = scalar_lea.vmem %s16, %s6670
      // Predicated region
      $region85: #{down_forward.1} parent=83 // pred_check
        %p6672 = pneg %p391
      $region86: #{down_forward.1} parent=83 // pred_check_branch
        %6674 = sbr.rel (%p6672) target = $region88
      $region87: #{down_forward.1} parent=83 // pred_region
        _
      $region88: #{down_forward.1} parent=83 // pred_fallthru
        _
    $region84: #{down_forward.1} parent=5 // pred_fallthru
      _
    %p6675 = scmp.le.s32.totalorder 2, %s22
    // Predicated region
    $region89: #{down_forward.1} parent=5 // pred_check
      %p6676 = pneg %p6675
    $region90: #{down_forward.1} parent=5 // pred_check_branch
      %6678 = sbr.rel (%p6676) target = $region92
    $region91: #{down_forward.1} parent=5 // pred_region
      %s6679 = ssub.s32 %s22, 2
      // Predicated region
      $region93: #{down_forward.1} parent=91 // pred_check
        %p6680 = pneg %p397
      $region94: #{down_forward.1} parent=91 // pred_check_branch
        %6682 = sbr.rel (%p6680) target = $region96
      $region95: #{down_forward.1} parent=91 // pred_region
        %p6683 = scmp.lt.s32.totalorder %s28, 1
        %s6684 = scalar_select %p6683, %s28, 1
        %s6685 = smul.addr %s6684, 8
        %s6686 = smul.addr %s6685, 8
        %s6687 = scalar_lea.vmem %s16, %s6686
      $region96: #{down_forward.1} parent=91 // pred_fallthru
        _
    $region92: #{down_forward.1} parent=5 // pred_fallthru
      _
  $region6: #{down_forward.1} parent=0 // loop_footer
    %s26 = sadd.s32 1, %s22
  $region7: #{down_forward.1} parent=0 // loop_footer_branch
    %21 = sbr.rel target = $region3
  $region8: #{down_forward.1} parent=0 // loop_exit
    _

</llo_original>
